<compile_context>
chip_gen: v5e
topology: v5e:2x2
jax: 0.10.0
libtpu: 0.0.40
codegen_flags: <defaults>
</compile_context>

<pallas_src>
import jax
import jax.numpy as jnp
from jax import lax
from jax.experimental import pallas as pl
from jax.experimental.pallas import tpu as pltpu


# --------------------------------- small helpers ---------------------------------
def _vmem_limit_bytes():
    """3/4 of physical VMEM, capped at 100 MiB (v5e/v6e: ~96 MiB, v7x: ~48 MiB)."""
    try:
        info = pltpu.get_tpu_info()
        cap = int(getattr(info, "vmem_capacity_bytes", 64 * 1024 * 1024))
    except Exception:
        cap = 64 * 1024 * 1024
    return int(min(cap * 3 // 4, 100 * 1024 * 1024))


_VMEM_LIMIT = _vmem_limit_bytes()


def _largest_divisor_leq(n, cap):
    cap = max(1, min(n, cap))
    for d in range(cap, 0, -1):
        if n % d == 0:
            return d
    return 1


def _batch_tile(B, T):
    """Batch tile for the CNN grid: a multiple of 8 sublanes (or the full batch),
    keeping roughly <= 1024 rows (T*tB) resident per grid step."""
    if B % 8 != 0:
        return B                                     # full extent (sublane rule)
    target = max(8, (1024 // max(T, 1)) // 8 * 8)
    tB = 8
    for d in range(8, min(B, target) + 1, 8):
        if B % d == 0:
            tB = d
    return tB


# ----------------------- fused CNN block: (conv+BN+ReLU) x2 -----------------------
def _cnn_block_kernel(x_ref, w1_ref, s1_ref, sh1_ref, w2_ref, s2_ref, sh2_ref, o_ref):
    """Two Conv1d(k=3, padding=1) + BN(eval, folded) + ReLU stages, time-major.

    x_ref:   (T, tB, Cin)  f32 time-major input tile (full T, batch-tiled; conv is
                           over time so batch tiles need no halo)
    w*_ref:  (3*C, H)      bf16 im2col weights, row order = [tap0 | tap1 | tap2]
    s*_ref:  (1, H)        f32 folded BN scale  = gamma / sqrt(var + eps)
    sh*_ref: (1, H)        f32 folded BN shift  = conv_bias*scale + beta - mean*scale
    o_ref:   (T, tB, H)    bf16 time-major output (feeds the LSTM gate projection)
    """

    def conv3_bn_relu(inp, w, scale, shift):
        T, B, C = inp.shape
        z = jnp.zeros((1, B, C), inp.dtype)
        xm1 = jnp.concatenate([z, inp[:-1]], axis=0)     # x[t-1] ('same' left pad)
        xp1 = jnp.concatenate([inp[1:], z], axis=0)      # x[t+1] ('same' right pad)
        # im2col: a single (T*B, 3C) @ (3C, H) bf16 MXU matmul, f32 accumulation.
        cols = jnp.concatenate([xm1, inp, xp1], axis=-1).reshape(T * B, 3 * C)
        y = jnp.dot(cols, w, preferred_element_type=jnp.float32)
        y = jnp.maximum(y * scale + shift, 0.0)          # BN(eval) + ReLU
        return y.reshape(T, B, -1)

    h1 = conv3_bn_relu(x_ref[...].astype(jnp.bfloat16),
                       w1_ref[...], s1_ref[...], sh1_ref[...])
    h2 = conv3_bn_relu(h1.astype(jnp.bfloat16),
                       w2_ref[...], s2_ref[...], sh2_ref[...])
    o_ref[...] = h2.astype(o_ref.dtype)


def cnn_block(x_tm, w1, s1, sh1, w2, s2, sh2):
    T, B, Cin = x_tm.shape
    H = w1.shape[-1]
    tB = _batch_tile(B, T)
    grid = (B // tB,)
    const2 = lambda b: (0, 0)
    return pl.pallas_call(
        _cnn_block_kernel,
        grid=grid,
        out_shape=jax.ShapeDtypeStruct((T, B, H), jnp.bfloat16),
        in_specs=[
            pl.BlockSpec((T, tB, Cin), lambda b: (0, b, 0)),
            pl.BlockSpec(w1.shape, const2),
            pl.BlockSpec(s1.shape, const2),
            pl.BlockSpec(sh1.shape, const2),
            pl.BlockSpec(w2.shape, const2),
            pl.BlockSpec(s2.shape, const2),
            pl.BlockSpec(sh2.shape, const2),
        ],
        out_specs=pl.BlockSpec((T, tB, H), lambda b: (0, b, 0)),
        compiler_params=pltpu.CompilerParams(
            dimension_semantics=("parallel",),
            vmem_limit_bytes=_VMEM_LIMIT,
        ),
    )(x_tm, w1, s1, sh1, w2, s2, sh2)


# -------------------- LSTM layer, stage 1: hoisted gate projection --------------------
def _make_gate_proj_kernel(n_in):
    def kernel(*refs):
        x_refs = refs[:n_in]
        w_ref, b_ref, gf_ref, gb_ref = refs[n_in:]
        tT, B = x_refs[0].shape[0], x_refs[0].shape[1]
        if n_in > 1:
            x = jnp.concatenate([r[...] for r in x_refs], axis=-1)
        else:
            x = x_refs[0][...]
        x = x.reshape(tT * B, -1).astype(jnp.bfloat16)
        # One matmul for BOTH directions: columns [0:4H]=fwd, [4H:8H]=bwd, bias folded.
        g = jnp.dot(x, w_ref[...], preferred_element_type=jnp.float32) + b_ref[...]
        H4 = gf_ref.shape[-1]
        gf_ref[...] = g[:, :H4].reshape(tT, B, H4).astype(gf_ref.dtype)
        gb_ref[...] = g[:, H4:].reshape(tT, B, H4).astype(gb_ref.dtype)
    return kernel


def lstm_gate_proj(xs, wih, bias, H):
    """gx = concat(xs, lane) @ wih + bias, row-tiled over T; returns bf16 gx_f, gx_b."""
    T, B = xs[0].shape[0], xs[0].shape[1]
    tT = _largest_divisor_leq(T, max(1, 512 // max(B, 1)))
    grid = (T // tT,)
    const2 = lambda i: (0, 0)
    in_specs = [pl.BlockSpec((tT, B, x.shape[-1]), lambda i: (i, 0, 0)) for x in xs]
    in_specs += [pl.BlockSpec(wih.shape, const2), pl.BlockSpec(bias.shape, const2)]
    out_spec = pl.BlockSpec((tT, B, 4 * H), lambda i: (i, 0, 0))
    return pl.pallas_call(
        _make_gate_proj_kernel(len(xs)),
        grid=grid,
        out_shape=(jax.ShapeDtypeStruct((T, B, 4 * H), jnp.bfloat16),
                   jax.ShapeDtypeStruct((T, B, 4 * H), jnp.bfloat16)),
        in_specs=in_specs,
        out_specs=(out_spec, out_spec),
        compiler_params=pltpu.CompilerParams(
            dimension_semantics=("parallel",),
            vmem_limit_bytes=_VMEM_LIMIT,
        ),
    )(*xs, wih, bias)


# ----------------- LSTM layer, stage 2: chunk-streamed bidirectional recurrence -----------------
def _bilstm_recurrence_kernel(gxf_ref, gxb_ref, mf_ref, mb_ref, whf_ref, whb_ref,
                              hf_seq_ref, hb_seq_ref, hfin_ref,
                              hf_st, cf_st, hb_st, cb_st):
    """One time-chunk of the bidirectional recurrence (grid axis = time chunks).

    gxf_ref: (tT, B, 4H) bf16  forward-direction input projection, chunk i
    gxb_ref: (tT, B, 4H) bf16  backward-direction input projection, chunk (nc-1-i)
    m*_ref:  (tT, B, 1)  f32   validity mask (1.0 where t < length), same chunking
    wh*_ref: (H, 4H)     bf16  per-direction recurrent weights
    hf_seq_ref/hb_seq_ref: (tT, B, H) bf16  per-step hidden outputs (fwd / bwd chunk)
    hfin_ref: (B, 2H)    f32   resident final hidden [fwd | bwd]
    *_st:    (B, H)      f32   persistent VMEM carry (h, c) per direction
    """
    tT, B, H4 = gxf_ref.shape
    H = H4 // 4

    @pl.when(pl.program_id(0) == 0)
    def _():
        hf_st[...] = jnp.zeros_like(hf_st)
        cf_st[...] = jnp.zeros_like(cf_st)
        hb_st[...] = jnp.zeros_like(hb_st)
        cb_st[...] = jnp.zeros_like(cb_st)

    whf = whf_ref[...]
    whb = whb_ref[...]

    def cell(g, c):
        i_g = jax.nn.sigmoid(g[:, 0 * H:1 * H])
        f_g = jax.nn.sigmoid(g[:, 1 * H:2 * H])
        g_g = jnp.tanh(g[:, 2 * H:3 * H])
        o_g = jax.nn.sigmoid(g[:, 3 * H:4 * H])
        c_new = f_g * c + i_g * g_g
        return o_g * jnp.tanh(c_new), c_new

    def step(t, carry):
        h_f, c_f, h_b, c_b = carry
        tb = tT - 1 - t                                 # backward chunk is reversed
        # forward direction
        g_f = gxf_ref[t].astype(jnp.float32) + jnp.dot(
            h_f.astype(jnp.bfloat16), whf, preferred_element_type=jnp.float32)
        hf_new, cf_new = cell(g_f, c_f)
        m_f = mf_ref[t]                                 # (B, 1), precomputed mask
        h_f = m_f * hf_new + (1.0 - m_f) * h_f          # freeze state on padded steps
        c_f = m_f * cf_new + (1.0 - m_f) * c_f
        hf_seq_ref[t] = (h_f * m_f).astype(hf_seq_ref.dtype)   # zero padded outputs
        # backward direction
        g_b = gxb_ref[tb].astype(jnp.float32) + jnp.dot(
            h_b.astype(jnp.bfloat16), whb, preferred_element_type=jnp.float32)
        hb_new, cb_new = cell(g_b, c_b)
        m_b = mb_ref[tb]
        h_b = m_b * hb_new + (1.0 - m_b) * h_b
        c_b = m_b * cb_new + (1.0 - m_b) * c_b
        hb_seq_ref[tb] = (h_b * m_b).astype(hb_seq_ref.dtype)
        return h_f, c_f, h_b, c_b

    carry0 = (hf_st[...], cf_st[...], hb_st[...], cb_st[...])
    h_f, c_f, h_b, c_b = lax.fori_loop(0, tT, step, carry0, unroll=min(tT, 8))
    hf_st[...] = h_f
    cf_st[...] = c_f
    hb_st[...] = h_b
    cb_st[...] = c_b
    # Resident output; the last grid step's value matches PyTorch hidden_state[-2:]
    # under packed-sequence semantics (state frozen past each sequence's length).
    hfin_ref[...] = jnp.concatenate([h_f, h_b], axis=-1)


def bilstm_recurrence(gx_f, gx_b, mask_tm, whh_f, whh_b):
    T, B, H4 = gx_f.shape
    H = H4 // 4
    tT = _largest_divisor_leq(T, 64)
    nc = T // tT
    fwd = lambda i: (i, 0, 0)
    bwd = lambda i: (nc - 1 - i, 0, 0)
    const2 = lambda i: (0, 0)
    return pl.pallas_call(
        _bilstm_recurrence_kernel,
        grid=(nc,),
        out_shape=(jax.ShapeDtypeStruct((T, B, H), jnp.bfloat16),
                   jax.ShapeDtypeStruct((T, B, H), jnp.bfloat16),
                   jax.ShapeDtypeStruct((B, 2 * H), jnp.float32)),
        in_specs=[
            pl.BlockSpec((tT, B, H4), fwd),
            pl.BlockSpec((tT, B, H4), bwd),
            pl.BlockSpec((tT, B, 1), fwd),
            pl.BlockSpec((tT, B, 1), bwd),
            pl.BlockSpec(whh_f.shape, const2),
            pl.BlockSpec(whh_b.shape, const2),
        ],
        out_specs=(pl.BlockSpec((tT, B, H), fwd),
                   pl.BlockSpec((tT, B, H), bwd),
                   pl.BlockSpec((B, 2 * H), const2)),
        scratch_shapes=[pltpu.VMEM((B, H), jnp.float32)] * 4,
        compiler_params=pltpu.CompilerParams(
            dimension_semantics=("arbitrary",),       # carried state -> sequential
            vmem_limit_bytes=_VMEM_LIMIT,
        ),
    )(gx_f, gx_b, mask_tm, mask_tm, whh_f, whh_b)


# ----------------------------------- parameters -----------------------------------
def init_params(key, num_numerical, vocab_sizes, emb_dims, hidden, num_layers, eps=1e-5):
    keys = iter(jax.random.split(key, 256))

    def nrm(shape, s=0.1):
        return s * jax.random.normal(next(keys), shape, jnp.float32)

    p = {}
    p["emb"] = [nrm((v, d), 1.0) for v, d in zip(vocab_sizes, emb_dims)]
    cin = num_numerical + sum(emb_dims)

    # Conv weights in im2col layout (3*Cin, H) bf16; BN(eval) + conv bias prefolded
    # into per-channel (scale, shift).
    for idx, c_in in ((1, cin), (2, hidden)):
        w = nrm((3, c_in, hidden))                  # (K, Cin, Cout)
        b = nrm((hidden,))
        gamma = 1.0 + nrm((hidden,))
        beta = nrm((hidden,))
        mean = nrm((hidden,))
        var = 0.5 + jax.random.uniform(next(keys), (hidden,), jnp.float32)
        s = gamma / jnp.sqrt(var + eps)
        p[f"conv{idx}_w"] = w.reshape(3 * c_in, hidden).astype(jnp.bfloat16)
        p[f"conv{idx}_scale"] = s.reshape(1, hidden)
        p[f"conv{idx}_shift"] = (b * s + beta - mean * s).reshape(1, hidden)

    # Bidirectional LSTM: input-projection weights fused column-wise (fwd|bwd),
    # recurrent weights kept per-direction (no block-diagonal zero MACs).
    p["lstm"] = []
    for layer in range(num_layers):
        in_dim = hidden if layer == 0 else 2 * hidden
        wih_f = nrm((in_dim, 4 * hidden))
        wih_b = nrm((in_dim, 4 * hidden))
        whh_f = nrm((hidden, 4 * hidden))
        whh_b = nrm((hidden, 4 * hidden))
        b_f = nrm((4 * hidden,))                    # = b_ih + b_hh (fwd)
        b_b = nrm((4 * hidden,))                    # = b_ih + b_hh (bwd)
        p["lstm"].append({
            "wih": jnp.concatenate([wih_f, wih_b], axis=-1).astype(jnp.bfloat16),
            "whh_f": whh_f.astype(jnp.bfloat16),
            "whh_b": whh_b.astype(jnp.bfloat16),
            "b": jnp.concatenate([b_f, b_b]).reshape(1, 8 * hidden),
        })

    p["fc_w"] = nrm((2 * hidden, 1))
    p["fc_b"] = nrm((1, 1))
    return p


# ------------------------------------- forward -------------------------------------
def forward(params, x_num, x_cat, lengths):
    # Embedding lookup + feature concat (plain JAX gather), single transpose of the
    # smallest tensor to time-major; everything downstream stays time-major.
    embs = [params["emb"][i][x_cat[:, :, i]] for i in range(len(params["emb"]))]
    x = jnp.concatenate([x_num] + embs, axis=-1).astype(jnp.float32)   # (B, T, Cin)
    x_tm = jnp.transpose(x, (1, 0, 2))                                 # (T, B, Cin)
    B, T = x_num.shape[0], x_num.shape[1]
    H = params["conv1_w"].shape[-1]

    # Fused CNN block (Pallas, batch-tiled grid).  Dropout = identity in eval mode.
    h_tm = cnn_block(
        x_tm,
        params["conv1_w"], params["conv1_scale"], params["conv1_shift"],
        params["conv2_w"], params["conv2_scale"], params["conv2_shift"],
    )                                                                  # (T, B, H) bf16

    # Packed-sequence validity mask, computed once and reused by every layer.
    t_iota = lax.broadcasted_iota(jnp.int32, (T, B), 0)
    mask_tm = (t_iota < lengths.astype(jnp.int32)[None, :]).astype(jnp.float32)
    mask_tm = mask_tm.reshape(T, B, 1)

    xs = (h_tm,)
    hfin = None
    for layer in params["lstm"]:
        gx_f, gx_b = lstm_gate_proj(xs, layer["wih"], layer["b"], H)
        hseq_f, hseq_b, hfin = bilstm_recurrence(gx_f, gx_b, mask_tm,
                                                 layer["whh_f"], layer["whh_b"])
        xs = (hseq_f, hseq_b)      # next layer consumes both directions, no concat

    # FC head: (B, 2H) @ (2H, 1). Plain jnp — 1-lane output, below kernel overhead.
    return hfin @ params["fc_w"] + params["fc_b"]                      # (B, 1)


# --------------------------------------- main ---------------------------------------
if __name__ == "__main__":
    B, T = 2, 8
    num_numerical_features = 3
    categorical_vocab_sizes = [5, 7]
    categorical_embedding_dims = [4, 6]
    hidden_size = 32
    num_layers = 2
    # dropout = 0.1 -> identity in eval mode

    key = jax.random.PRNGKey(0)
    kp, kx, kc0, kc1 = jax.random.split(key, 4)
    params = init_params(
        kp, num_numerical_features, categorical_vocab_sizes,
        categorical_embedding_dims, hidden_size, num_layers)

    x_num = jax.random.normal(kx, (B, T, num_numerical_features), jnp.float32)
    x_cat = jnp.stack(
        [jax.random.randint(k, (B, T), 0, v)
         for k, v in zip([kc0, kc1], categorical_vocab_sizes)],
        axis=-1,
    )
    lengths = jnp.array([8, 5], dtype=jnp.int32)

    out = jax.jit(forward)(params, x_num, x_cat, lengths)
    out = jax.block_until_ready(out)
    assert out.shape == (B, 1) and out.dtype == jnp.float32
    print("KERNEL_OK")
</pallas_src>

<mosaic_0001>
module attributes {stable_mosaic.version = 11 : i64} {
  func.func @kernel(%arg0: i32, %arg1: memref<8x2x32xbf16, #tpu.memory_space<vmem>>, %arg2: memref<32x256xbf16, #tpu.memory_space<vmem>>, %arg3: memref<1x256xf32, #tpu.memory_space<vmem>>, %arg4: memref<8x2x128xbf16, #tpu.memory_space<vmem>>, %arg5: memref<8x2x128xbf16, #tpu.memory_space<vmem>>) attributes {dimension_semantics = [#tpu.dimension_semantics<parallel>], iteration_bounds = array<i64: 1>, scalar_prefetch = 0 : i64, scratch_operands = 0 : i64, tpu.core_type = #tpu.core_type<tc>, window_params = [{transform_indices = @transform_0, window_bounds = array<i64: 8, 2, 32>}, {pipeline_mode = #tpu.pipeline_mode<synchronous>, transform_indices = @transform_1, window_bounds = array<i64: 32, 256>}, {pipeline_mode = #tpu.pipeline_mode<synchronous>, transform_indices = @transform_2, window_bounds = array<i64: 1, 256>}, {transform_indices = @transform_3, window_bounds = array<i64: 8, 2, 128>}, {transform_indices = @transform_4, window_bounds = array<i64: 8, 2, 128>}]} {
    %c0 = arith.constant 0 : index
    %c0_0 = arith.constant 0 : index
    %c0_1 = arith.constant 0 : index
    %0 = vector.load %arg1[%c0, %c0_0, %c0_1] : memref<8x2x32xbf16, #tpu.memory_space<vmem>>, vector<8x2x32xbf16>
    %1 = vector.shape_cast %0 : vector<8x2x32xbf16> to vector<16x32xbf16>
    %c0_2 = arith.constant 0 : index
    %c0_3 = arith.constant 0 : index
    %2 = vector.load %arg2[%c0_2, %c0_3] : memref<32x256xbf16, #tpu.memory_space<vmem>>, vector<32x256xbf16>
    %cst = arith.constant dense<0.000000e+00> : vector<16x256xf32>
    %3 = tpu.matmul %1, %2, %cst {dimension_numbers = #tpu.dot_dimension_numbers<[1], [0], [0], [1], [0, 0, 1, 1], [], []>} : vector<16x32xbf16>, vector<32x256xbf16>, vector<16x256xf32> -> vector<16x256xf32>
    %c0_4 = arith.constant 0 : index
    %c0_5 = arith.constant 0 : index
    %4 = vector.load %arg3[%c0_4, %c0_5] : memref<1x256xf32, #tpu.memory_space<vmem>>, vector<1x256xf32>
    %5 = vector.broadcast %4 : vector<1x256xf32> to vector<16x256xf32>
    %6 = arith.addf %3, %5 : vector<16x256xf32>
    %7 = vector.extract_strided_slice %6 {offsets = [0, 0], sizes = [16, 128], strides = [1, 1]} : vector<16x256xf32> to vector<16x128xf32>
    %8 = vector.shape_cast %7 : vector<16x128xf32> to vector<8x2x128xf32>
    %9 = arith.truncf %8 : vector<8x2x128xf32> to vector<8x2x128xbf16>
    %c0_6 = arith.constant 0 : index
    %c0_7 = arith.constant 0 : index
    %c0_8 = arith.constant 0 : index
    %10 = vector.load %arg4[%c0_6, %c0_7, %c0_8] : memref<8x2x128xbf16, #tpu.memory_space<vmem>>, vector<8x2x128xbf16>
    tpu.vector_store %arg4[%c0_6, %c0_7, %c0_8], %9 {strides = array<i32>} : memref<8x2x128xbf16, #tpu.memory_space<vmem>>, vector<8x2x128xbf16>,
    %11 = vector.extract_strided_slice %6 {offsets = [0, 128], sizes = [16, 128], strides = [1, 1]} : vector<16x256xf32> to vector<16x128xf32>
    %12 = vector.shape_cast %11 : vector<16x128xf32> to vector<8x2x128xf32>
    %13 = arith.truncf %12 : vector<8x2x128xf32> to vector<8x2x128xbf16>
    %c0_9 = arith.constant 0 : index
    %c0_10 = arith.constant 0 : index
    %c0_11 = arith.constant 0 : index
    %14 = vector.load %arg5[%c0_9, %c0_10, %c0_11] : memref<8x2x128xbf16, #tpu.memory_space<vmem>>, vector<8x2x128xbf16>
    tpu.vector_store %arg5[%c0_9, %c0_10, %c0_11], %13 {strides = array<i32>} : memref<8x2x128xbf16, #tpu.memory_space<vmem>>, vector<8x2x128xbf16>,
    return
  }
  func.func @transform_0(%arg0: i32) -> (i32, i32, i32) {
    %c0_i32 = arith.constant 0 : i32
    %c0_i32_0 = arith.constant 0 : i32
    %c0_i32_1 = arith.constant 0 : i32
    return %arg0, %c0_i32, %c0_i32_0 : i32, i32, i32
  }
  func.func @transform_1(%arg0: i32) -> (i32, i32) {
    %c0_i32 = arith.constant 0 : i32
    %c0_i32_0 = arith.constant 0 : i32
    %c0_i32_1 = arith.constant 0 : i32
    return %c0_i32, %c0_i32_0 : i32, i32
  }
  func.func @transform_2(%arg0: i32) -> (i32, i32) {
    %c0_i32 = arith.constant 0 : i32
    %c0_i32_0 = arith.constant 0 : i32
    %c0_i32_1 = arith.constant 0 : i32
    return %c0_i32, %c0_i32_0 : i32, i32
  }
  func.func @transform_3(%arg0: i32) -> (i32, i32, i32) {
    %c0_i32 = arith.constant 0 : i32
    %c0_i32_0 = arith.constant 0 : i32
    %c0_i32_1 = arith.constant 0 : i32
    return %arg0, %c0_i32, %c0_i32_0 : i32, i32, i32
  }
  func.func @transform_4(%arg0: i32) -> (i32, i32, i32) {
    %c0_i32 = arith.constant 0 : i32
    %c0_i32_0 = arith.constant 0 : i32
    %c0_i32_1 = arith.constant 0 : i32
    return %arg0, %c0_i32, %c0_i32_0 : i32, i32, i32
  }
}

module attributes {stable_mosaic.version = 11 : i64} {
  func.func @_cnn_block_kernel(%arg0: i32, %arg1: memref<8x2x13xf32, #tpu.memory_space<vmem>>, %arg2: memref<39x32xbf16, #tpu.memory_space<vmem>>, %arg3: memref<1x32xf32, #tpu.memory_space<vmem>>, %arg4: memref<1x32xf32, #tpu.memory_space<vmem>>, %arg5: memref<96x32xbf16, #tpu.memory_space<vmem>>, %arg6: memref<1x32xf32, #tpu.memory_space<vmem>>, %arg7: memref<1x32xf32, #tpu.memory_space<vmem>>, %arg8: memref<8x2x32xbf16, #tpu.memory_space<vmem>>) attributes {dimension_semantics = [#tpu.dimension_semantics<parallel>], iteration_bounds = array<i64: 1>, scalar_prefetch = 0 : i64, scratch_operands = 0 : i64, tpu.core_type = #tpu.core_type<tc>, window_params = [{transform_indices = @transform_0, window_bounds = array<i64: 8, 2, 13>}, {pipeline_mode = #tpu.pipeline_mode<synchronous>, transform_indices = @transform_1, window_bounds = array<i64: 39, 32>}, {pipeline_mode = #tpu.pipeline_mode<synchronous>, transform_indices = @transform_2, window_bounds = array<i64: 1, 32>}, {pipeline_mode = #tpu.pipeline_mode<synchronous>, transform_indices = @transform_3, window_bounds = array<i64: 1, 32>}, {pipeline_mode = #tpu.pipeline_mode<synchronous>, transform_indices = @transform_4, window_bounds = array<i64: 96, 32>}, {pipeline_mode = #tpu.pipeline_mode<synchronous>, transform_indices = @transform_5, window_bounds = array<i64: 1, 32>}, {pipeline_mode = #tpu.pipeline_mode<synchronous>, transform_indices = @transform_6, window_bounds = array<i64: 1, 32>}, {transform_indices = @transform_7, window_bounds = array<i64: 8, 2, 32>}]} {
    %c0 = arith.constant 0 : index
    %c0_0 = arith.constant 0 : index
    %c0_1 = arith.constant 0 : index
    %0 = vector.load %arg1[%c0, %c0_0, %c0_1] : memref<8x2x13xf32, #tpu.memory_space<vmem>>, vector<8x2x13xf32>
    %1 = arith.truncf %0 : vector<8x2x13xf32> to vector<8x2x13xbf16>
    %c0_2 = arith.constant 0 : index
    %c0_3 = arith.constant 0 : index
    %2 = vector.load %arg2[%c0_2, %c0_3] : memref<39x32xbf16, #tpu.memory_space<vmem>>, vector<39x32xbf16>
    %c0_4 = arith.constant 0 : index
    %c0_5 = arith.constant 0 : index
    %3 = vector.load %arg3[%c0_4, %c0_5] : memref<1x32xf32, #tpu.memory_space<vmem>>, vector<1x32xf32>
    %c0_6 = arith.constant 0 : index
    %c0_7 = arith.constant 0 : index
    %4 = vector.load %arg4[%c0_6, %c0_7] : memref<1x32xf32, #tpu.memory_space<vmem>>, vector<1x32xf32>
    %cst = arith.constant 0.000000e+00 : bf16
    %5 = vector.broadcast %cst : bf16 to vector<1x2x13xbf16>
    %6 = vector.extract_strided_slice %1 {offsets = [0, 0, 0], sizes = [7, 2, 13], strides = [1, 1, 1]} : vector<8x2x13xbf16> to vector<7x2x13xbf16>
    %7 = tpu.concatenate %5, %6 in 0 : vector<1x2x13xbf16>, vector<7x2x13xbf16> -> vector<8x2x13xbf16>
    %8 = vector.extract_strided_slice %1 {offsets = [1, 0, 0], sizes = [7, 2, 13], strides = [1, 1, 1]} : vector<8x2x13xbf16> to vector<7x2x13xbf16>
    %9 = tpu.concatenate %8, %5 in 0 : vector<7x2x13xbf16>, vector<1x2x13xbf16> -> vector<8x2x13xbf16>
    %10 = tpu.concatenate %7, %1, %9 in 2 : vector<8x2x13xbf16>, vector<8x2x13xbf16>, vector<8x2x13xbf16> -> vector<8x2x39xbf16>
    %11 = vector.shape_cast %10 : vector<8x2x39xbf16> to vector<16x39xbf16>
    %cst_8 = arith.constant dense<0.000000e+00> : vector<16x32xf32>
    %12 = tpu.matmul %11, %2, %cst_8 {dimension_numbers = #tpu.dot_dimension_numbers<[1], [0], [0], [1], [0, 0, 1, 1], [], []>} : vector<16x39xbf16>, vector<39x32xbf16>, vector<16x32xf32> -> vector<16x32xf32>
    %13 = vector.broadcast %3 : vector<1x32xf32> to vector<16x32xf32>
    %14 = arith.mulf %12, %13 : vector<16x32xf32>
    %15 = vector.broadcast %4 : vector<1x32xf32> to vector<16x32xf32>
    %16 = arith.addf %14, %15 : vector<16x32xf32>
    %cst_9 = arith.constant 0.000000e+00 : f32
    %17 = vector.broadcast %cst_9 : f32 to vector<16x32xf32>
    %18 = arith.maximumf %16, %17 : vector<16x32xf32>
    %19 = vector.shape_cast %18 : vector<16x32xf32> to vector<8x2x32xf32>
    %20 = arith.truncf %19 : vector<8x2x32xf32> to vector<8x2x32xbf16>
    %c0_10 = arith.constant 0 : index
    %c0_11 = arith.constant 0 : index
    %21 = vector.load %arg5[%c0_10, %c0_11] : memref<96x32xbf16, #tpu.memory_space<vmem>>, vector<96x32xbf16>
    %c0_12 = arith.constant 0 : index
    %c0_13 = arith.constant 0 : index
    %22 = vector.load %arg6[%c0_12, %c0_13] : memref<1x32xf32, #tpu.memory_space<vmem>>, vector<1x32xf32>
    %c0_14 = arith.constant 0 : index
    %c0_15 = arith.constant 0 : index
    %23 = vector.load %arg7[%c0_14, %c0_15] : memref<1x32xf32, #tpu.memory_space<vmem>>, vector<1x32xf32>
    %cst_16 = arith.constant 0.000000e+00 : bf16
    %24 = vector.broadcast %cst_16 : bf16 to vector<1x2x32xbf16>
    %25 = vector.extract_strided_slice %20 {offsets = [0, 0, 0], sizes = [7, 2, 32], strides = [1, 1, 1]} : vector<8x2x32xbf16> to vector<7x2x32xbf16>
    %26 = tpu.concatenate %24, %25 in 0 : vector<1x2x32xbf16>, vector<7x2x32xbf16> -> vector<8x2x32xbf16>
    %27 = vector.extract_strided_slice %20 {offsets = [1, 0, 0], sizes = [7, 2, 32], strides = [1, 1, 1]} : vector<8x2x32xbf16> to vector<7x2x32xbf16>
    %28 = tpu.concatenate %27, %24 in 0 : vector<7x2x32xbf16>, vector<1x2x32xbf16> -> vector<8x2x32xbf16>
    %29 = tpu.concatenate %26, %20, %28 in 2 : vector<8x2x32xbf16>, vector<8x2x32xbf16>, vector<8x2x32xbf16> -> vector<8x2x96xbf16>
    %30 = vector.shape_cast %29 : vector<8x2x96xbf16> to vector<16x96xbf16>
    %cst_17 = arith.constant dense<0.000000e+00> : vector<16x32xf32>
    %31 = tpu.matmul %30, %21, %cst_17 {dimension_numbers = #tpu.dot_dimension_numbers<[1], [0], [0], [1], [0, 0, 1, 1], [], []>} : vector<16x96xbf16>, vector<96x32xbf16>, vector<16x32xf32> -> vector<16x32xf32>
    %32 = vector.broadcast %22 : vector<1x32xf32> to vector<16x32xf32>
    %33 = arith.mulf %31, %32 : vector<16x32xf32>
    %34 = vector.broadcast %23 : vector<1x32xf32> to vector<16x32xf32>
    %35 = arith.addf %33, %34 : vector<16x32xf32>
    %cst_18 = arith.constant 0.000000e+00 : f32
    %36 = vector.broadcast %cst_18 : f32 to vector<16x32xf32>
    %37 = arith.maximumf %35, %36 : vector<16x32xf32>
    %38 = vector.shape_cast %37 : vector<16x32xf32> to vector<8x2x32xf32>
    %39 = arith.truncf %38 : vector<8x2x32xf32> to vector<8x2x32xbf16>
    %c0_19 = arith.constant 0 : index
    %c0_20 = arith.constant 0 : index
    %c0_21 = arith.constant 0 : index
    %40 = vector.load %arg8[%c0_19, %c0_20, %c0_21] : memref<8x2x32xbf16, #tpu.memory_space<vmem>>, vector<8x2x32xbf16>
    tpu.vector_store %arg8[%c0_19, %c0_20, %c0_21], %39 {strides = array<i32>} : memref<8x2x32xbf16, #tpu.memory_space<vmem>>, vector<8x2x32xbf16>,
    return
  }
  func.func @transform_0(%arg0: i32) -> (i32, i32, i32) {
    %c0_i32 = arith.constant 0 : i32
    %c0_i32_0 = arith.constant 0 : i32
    %c0_i32_1 = arith.constant 0 : i32
    return %c0_i32, %arg0, %c0_i32_0 : i32, i32, i32
  }
  func.func @transform_1(%arg0: i32) -> (i32, i32) {
    %c0_i32 = arith.constant 0 : i32
    %c0_i32_0 = arith.constant 0 : i32
    %c0_i32_1 = arith.constant 0 : i32
    return %c0_i32, %c0_i32_0 : i32, i32
  }
  func.func @transform_2(%arg0: i32) -> (i32, i32) {
    %c0_i32 = arith.constant 0 : i32
    %c0_i32_0 = arith.constant 0 : i32
    %c0_i32_1 = arith.constant 0 : i32
    return %c0_i32, %c0_i32_0 : i32, i32
  }
  func.func @transform_3(%arg0: i32) -> (i32, i32) {
    %c0_i32 = arith.constant 0 : i32
    %c0_i32_0 = arith.constant 0 : i32
    %c0_i32_1 = arith.constant 0 : i32
    return %c0_i32, %c0_i32_0 : i32, i32
  }
  func.func @transform_4(%arg0: i32) -> (i32, i32) {
    %c0_i32 = arith.constant 0 : i32
    %c0_i32_0 = arith.constant 0 : i32
    %c0_i32_1 = arith.constant 0 : i32
    return %c0_i32, %c0_i32_0 : i32, i32
  }
  func.func @transform_5(%arg0: i32) -> (i32, i32) {
    %c0_i32 = arith.constant 0 : i32
    %c0_i32_0 = arith.constant 0 : i32
    %c0_i32_1 = arith.constant 0 : i32
    return %c0_i32, %c0_i32_0 : i32, i32
  }
  func.func @transform_6(%arg0: i32) -> (i32, i32) {
    %c0_i32 = arith.constant 0 : i32
    %c0_i32_0 = arith.constant 0 : i32
    %c0_i32_1 = arith.constant 0 : i32
    return %c0_i32, %c0_i32_0 : i32, i32
  }
  func.func @transform_7(%arg0: i32) -> (i32, i32, i32) {
    %c0_i32 = arith.constant 0 : i32
    %c0_i32_0 = arith.constant 0 : i32
    %c0_i32_1 = arith.constant 0 : i32
    return %c0_i32, %arg0, %c0_i32_0 : i32, i32, i32
  }
}

module attributes {stable_mosaic.version = 11 : i64} {
  func.func @kernel(%arg0: i32, %arg1: memref<8x2x32xbf16, #tpu.memory_space<vmem>>, %arg2: memref<8x2x32xbf16, #tpu.memory_space<vmem>>, %arg3: memref<64x256xbf16, #tpu.memory_space<vmem>>, %arg4: memref<1x256xf32, #tpu.memory_space<vmem>>, %arg5: memref<8x2x128xbf16, #tpu.memory_space<vmem>>, %arg6: memref<8x2x128xbf16, #tpu.memory_space<vmem>>) attributes {dimension_semantics = [#tpu.dimension_semantics<parallel>], iteration_bounds = array<i64: 1>, scalar_prefetch = 0 : i64, scratch_operands = 0 : i64, tpu.core_type = #tpu.core_type<tc>, window_params = [{transform_indices = @transform_0, window_bounds = array<i64: 8, 2, 32>}, {transform_indices = @transform_1, window_bounds = array<i64: 8, 2, 32>}, {pipeline_mode = #tpu.pipeline_mode<synchronous>, transform_indices = @transform_2, window_bounds = array<i64: 64, 256>}, {pipeline_mode = #tpu.pipeline_mode<synchronous>, transform_indices = @transform_3, window_bounds = array<i64: 1, 256>}, {transform_indices = @transform_4, window_bounds = array<i64: 8, 2, 128>}, {transform_indices = @transform_5, window_bounds = array<i64: 8, 2, 128>}]} {
    %c0 = arith.constant 0 : index
    %c0_0 = arith.constant 0 : index
    %c0_1 = arith.constant 0 : index
    %0 = vector.load %arg1[%c0, %c0_0, %c0_1] : memref<8x2x32xbf16, #tpu.memory_space<vmem>>, vector<8x2x32xbf16>
    %c0_2 = arith.constant 0 : index
    %c0_3 = arith.constant 0 : index
    %c0_4 = arith.constant 0 : index
    %1 = vector.load %arg2[%c0_2, %c0_3, %c0_4] : memref<8x2x32xbf16, #tpu.memory_space<vmem>>, vector<8x2x32xbf16>
    %2 = tpu.concatenate %0, %1 in 2 : vector<8x2x32xbf16>, vector<8x2x32xbf16> -> vector<8x2x64xbf16>
    %3 = vector.shape_cast %2 : vector<8x2x64xbf16> to vector<16x64xbf16>
    %c0_5 = arith.constant 0 : index
    %c0_6 = arith.constant 0 : index
    %4 = vector.load %arg3[%c0_5, %c0_6] : memref<64x256xbf16, #tpu.memory_space<vmem>>, vector<64x256xbf16>
    %cst = arith.constant dense<0.000000e+00> : vector<16x256xf32>
    %5 = tpu.matmul %3, %4, %cst {dimension_numbers = #tpu.dot_dimension_numbers<[1], [0], [0], [1], [0, 0, 1, 1], [], []>} : vector<16x64xbf16>, vector<64x256xbf16>, vector<16x256xf32> -> vector<16x256xf32>
    %c0_7 = arith.constant 0 : index
    %c0_8 = arith.constant 0 : index
    %6 = vector.load %arg4[%c0_7, %c0_8] : memref<1x256xf32, #tpu.memory_space<vmem>>, vector<1x256xf32>
    %7 = vector.broadcast %6 : vector<1x256xf32> to vector<16x256xf32>
    %8 = arith.addf %5, %7 : vector<16x256xf32>
    %9 = vector.extract_strided_slice %8 {offsets = [0, 0], sizes = [16, 128], strides = [1, 1]} : vector<16x256xf32> to vector<16x128xf32>
    %10 = vector.shape_cast %9 : vector<16x128xf32> to vector<8x2x128xf32>
    %11 = arith.truncf %10 : vector<8x2x128xf32> to vector<8x2x128xbf16>
    %c0_9 = arith.constant 0 : index
    %c0_10 = arith.constant 0 : index
    %c0_11 = arith.constant 0 : index
    %12 = vector.load %arg5[%c0_9, %c0_10, %c0_11] : memref<8x2x128xbf16, #tpu.memory_space<vmem>>, vector<8x2x128xbf16>
    tpu.vector_store %arg5[%c0_9, %c0_10, %c0_11], %11 {strides = array<i32>} : memref<8x2x128xbf16, #tpu.memory_space<vmem>>, vector<8x2x128xbf16>,
    %13 = vector.extract_strided_slice %8 {offsets = [0, 128], sizes = [16, 128], strides = [1, 1]} : vector<16x256xf32> to vector<16x128xf32>
    %14 = vector.shape_cast %13 : vector<16x128xf32> to vector<8x2x128xf32>
    %15 = arith.truncf %14 : vector<8x2x128xf32> to vector<8x2x128xbf16>
    %c0_12 = arith.constant 0 : index
    %c0_13 = arith.constant 0 : index
    %c0_14 = arith.constant 0 : index
    %16 = vector.load %arg6[%c0_12, %c0_13, %c0_14] : memref<8x2x128xbf16, #tpu.memory_space<vmem>>, vector<8x2x128xbf16>
    tpu.vector_store %arg6[%c0_12, %c0_13, %c0_14], %15 {strides = array<i32>} : memref<8x2x128xbf16, #tpu.memory_space<vmem>>, vector<8x2x128xbf16>,
    return
  }
  func.func @transform_0(%arg0: i32) -> (i32, i32, i32) {
    %c0_i32 = arith.constant 0 : i32
    %c0_i32_0 = arith.constant 0 : i32
    %c0_i32_1 = arith.constant 0 : i32
    return %arg0, %c0_i32, %c0_i32_0 : i32, i32, i32
  }
  func.func @transform_1(%arg0: i32) -> (i32, i32, i32) {
    %c0_i32 = arith.constant 0 : i32
    %c0_i32_0 = arith.constant 0 : i32
    %c0_i32_1 = arith.constant 0 : i32
    return %arg0, %c0_i32, %c0_i32_0 : i32, i32, i32
  }
  func.func @transform_2(%arg0: i32) -> (i32, i32) {
    %c0_i32 = arith.constant 0 : i32
    %c0_i32_0 = arith.constant 0 : i32
    %c0_i32_1 = arith.constant 0 : i32
    return %c0_i32, %c0_i32_0 : i32, i32
  }
  func.func @transform_3(%arg0: i32) -> (i32, i32) {
    %c0_i32 = arith.constant 0 : i32
    %c0_i32_0 = arith.constant 0 : i32
    %c0_i32_1 = arith.constant 0 : i32
    return %c0_i32, %c0_i32_0 : i32, i32
  }
  func.func @transform_4(%arg0: i32) -> (i32, i32, i32) {
    %c0_i32 = arith.constant 0 : i32
    %c0_i32_0 = arith.constant 0 : i32
    %c0_i32_1 = arith.constant 0 : i32
    return %arg0, %c0_i32, %c0_i32_0 : i32, i32, i32
  }
  func.func @transform_5(%arg0: i32) -> (i32, i32, i32) {
    %c0_i32 = arith.constant 0 : i32
    %c0_i32_0 = arith.constant 0 : i32
    %c0_i32_1 = arith.constant 0 : i32
    return %arg0, %c0_i32, %c0_i32_0 : i32, i32, i32
  }
}

module attributes {stable_mosaic.version = 11 : i64} {
  func.func @_bilstm_recurrence_kernel(%arg0: i32, %arg1: memref<8x2x128xbf16, #tpu.memory_space<vmem>>, %arg2: memref<8x2x128xbf16, #tpu.memory_space<vmem>>, %arg3: memref<8x2x1xf32, #tpu.memory_space<vmem>>, %arg4: memref<8x2x1xf32, #tpu.memory_space<vmem>>, %arg5: memref<32x128xbf16, #tpu.memory_space<vmem>>, %arg6: memref<32x128xbf16, #tpu.memory_space<vmem>>, %arg7: memref<8x2x32xbf16, #tpu.memory_space<vmem>>, %arg8: memref<8x2x32xbf16, #tpu.memory_space<vmem>>, %arg9: memref<2x64xf32, #tpu.memory_space<vmem>>, %arg10: memref<2x32xf32, #tpu.memory_space<vmem>>, %arg11: memref<2x32xf32, #tpu.memory_space<vmem>>, %arg12: memref<2x32xf32, #tpu.memory_space<vmem>>, %arg13: memref<2x32xf32, #tpu.memory_space<vmem>>) attributes {dimension_semantics = [#tpu.dimension_semantics<arbitrary>], iteration_bounds = array<i64: 1>, scalar_prefetch = 0 : i64, scratch_operands = 4 : i64, tpu.core_type = #tpu.core_type<tc>, window_params = [{transform_indices = @transform_0, window_bounds = array<i64: 8, 2, 128>}, {transform_indices = @transform_1, window_bounds = array<i64: 8, 2, 128>}, {transform_indices = @transform_2, window_bounds = array<i64: 8, 2, 1>}, {transform_indices = @transform_3, window_bounds = array<i64: 8, 2, 1>}, {pipeline_mode = #tpu.pipeline_mode<synchronous>, transform_indices = @transform_4, window_bounds = array<i64: 32, 128>}, {pipeline_mode = #tpu.pipeline_mode<synchronous>, transform_indices = @transform_5, window_bounds = array<i64: 32, 128>}, {transform_indices = @transform_6, window_bounds = array<i64: 8, 2, 32>}, {transform_indices = @transform_7, window_bounds = array<i64: 8, 2, 32>}, {pipeline_mode = #tpu.pipeline_mode<synchronous>, transform_indices = @transform_8, window_bounds = array<i64: 2, 64>}]} {
    %c0_i32 = arith.constant 0 : i32
    %0 = arith.cmpi eq, %arg0, %c0_i32 : i32
    %1 = arith.extui %0 : i1 to i32
    %c0_i32_0 = arith.constant 0 : i32
    %2 = arith.cmpi ne, %1, %c0_i32_0 : i32
    scf.if %2 {
      %cst_222 = arith.constant 0.000000e+00 : f32
      %919 = vector.broadcast %cst_222 : f32 to vector<2x32xf32>
      %c0_223 = arith.constant 0 : index
      %c0_224 = arith.constant 0 : index
      %920 = vector.load %arg10[%c0_223, %c0_224] : memref<2x32xf32, #tpu.memory_space<vmem>>, vector<2x32xf32>
      tpu.vector_store %arg10[%c0_223, %c0_224], %919 {strides = array<i32>} : memref<2x32xf32, #tpu.memory_space<vmem>>, vector<2x32xf32>,
      %cst_225 = arith.constant 0.000000e+00 : f32
      %921 = vector.broadcast %cst_225 : f32 to vector<2x32xf32>
      %c0_226 = arith.constant 0 : index
      %c0_227 = arith.constant 0 : index
      %922 = vector.load %arg11[%c0_226, %c0_227] : memref<2x32xf32, #tpu.memory_space<vmem>>, vector<2x32xf32>
      tpu.vector_store %arg11[%c0_226, %c0_227], %921 {strides = array<i32>} : memref<2x32xf32, #tpu.memory_space<vmem>>, vector<2x32xf32>,
      %cst_228 = arith.constant 0.000000e+00 : f32
      %923 = vector.broadcast %cst_228 : f32 to vector<2x32xf32>
      %c0_229 = arith.constant 0 : index
      %c0_230 = arith.constant 0 : index
      %924 = vector.load %arg12[%c0_229, %c0_230] : memref<2x32xf32, #tpu.memory_space<vmem>>, vector<2x32xf32>
      tpu.vector_store %arg12[%c0_229, %c0_230], %923 {strides = array<i32>} : memref<2x32xf32, #tpu.memory_space<vmem>>, vector<2x32xf32>,
      %cst_231 = arith.constant 0.000000e+00 : f32
      %925 = vector.broadcast %cst_231 : f32 to vector<2x32xf32>
      %c0_232 = arith.constant 0 : index
      %c0_233 = arith.constant 0 : index
      %926 = vector.load %arg13[%c0_232, %c0_233] : memref<2x32xf32, #tpu.memory_space<vmem>>, vector<2x32xf32>
      tpu.vector_store %arg13[%c0_232, %c0_233], %925 {strides = array<i32>} : memref<2x32xf32, #tpu.memory_space<vmem>>, vector<2x32xf32>,
    } else {
    }
    %c0 = arith.constant 0 : index
    %c0_1 = arith.constant 0 : index
    %3 = vector.load %arg5[%c0, %c0_1] : memref<32x128xbf16, #tpu.memory_space<vmem>>, vector<32x128xbf16>
    %c0_2 = arith.constant 0 : index
    %c0_3 = arith.constant 0 : index
    %4 = vector.load %arg6[%c0_2, %c0_3] : memref<32x128xbf16, #tpu.memory_space<vmem>>, vector<32x128xbf16>
    %c0_4 = arith.constant 0 : index
    %c0_5 = arith.constant 0 : index
    %5 = vector.load %arg10[%c0_4, %c0_5] : memref<2x32xf32, #tpu.memory_space<vmem>>, vector<2x32xf32>
    %c0_6 = arith.constant 0 : index
    %c0_7 = arith.constant 0 : index
    %6 = vector.load %arg11[%c0_6, %c0_7] : memref<2x32xf32, #tpu.memory_space<vmem>>, vector<2x32xf32>
    %c0_8 = arith.constant 0 : index
    %c0_9 = arith.constant 0 : index
    %7 = vector.load %arg12[%c0_8, %c0_9] : memref<2x32xf32, #tpu.memory_space<vmem>>, vector<2x32xf32>
    %c0_10 = arith.constant 0 : index
    %c0_11 = arith.constant 0 : index
    %8 = vector.load %arg13[%c0_10, %c0_11] : memref<2x32xf32, #tpu.memory_space<vmem>>, vector<2x32xf32>
    %c0_i32_12 = arith.constant 0 : i32
    %c7_i32 = arith.constant 7 : i32
    %9 = arith.subi %c7_i32, %c0_i32_12 : i32
    %10 = arith.index_cast %c0_i32_12 : i32 to index
    %c0_13 = arith.constant 0 : index
    %c0_14 = arith.constant 0 : index
    %11 = vector.load %arg1[%10, %c0_13, %c0_14] : memref<8x2x128xbf16, #tpu.memory_space<vmem>>, vector<1x2x128xbf16>
    %12 = vector.shape_cast %11 : vector<1x2x128xbf16> to vector<2x128xbf16>
    %13 = arith.extf %12 : vector<2x128xbf16> to vector<2x128xf32>
    %14 = arith.truncf %5 : vector<2x32xf32> to vector<2x32xbf16>
    %cst = arith.constant dense<0.000000e+00> : vector<2x128xf32>
    %15 = tpu.matmul %14, %3, %cst {dimension_numbers = #tpu.dot_dimension_numbers<[1], [0], [0], [1], [0, 0, 1, 1], [], []>} : vector<2x32xbf16>, vector<32x128xbf16>, vector<2x128xf32> -> vector<2x128xf32>
    %16 = arith.addf %13, %15 : vector<2x128xf32>
    %17 = vector.extract_strided_slice %16 {offsets = [0, 0], sizes = [2, 32], strides = [1, 1]} : vector<2x128xf32> to vector<2x32xf32>
    %18 = arith.negf %17 : vector<2x32xf32>
    %19 = math.exp %18 : vector<2x32xf32>
    %cst_15 = arith.constant 1.000000e+00 : f32
    %20 = vector.broadcast %cst_15 : f32 to vector<2x32xf32>
    %21 = arith.addf %20, %19 : vector<2x32xf32>
    %22 = arith.divf %20, %21 : vector<2x32xf32>
    %23 = vector.extract_strided_slice %16 {offsets = [0, 32], sizes = [2, 32], strides = [1, 1]} : vector<2x128xf32> to vector<2x32xf32>
    %24 = arith.negf %23 : vector<2x32xf32>
    %25 = math.exp %24 : vector<2x32xf32>
    %cst_16 = arith.constant 1.000000e+00 : f32
    %26 = vector.broadcast %cst_16 : f32 to vector<2x32xf32>
    %27 = arith.addf %26, %25 : vector<2x32xf32>
    %28 = arith.divf %26, %27 : vector<2x32xf32>
    %29 = vector.extract_strided_slice %16 {offsets = [0, 64], sizes = [2, 32], strides = [1, 1]} : vector<2x128xf32> to vector<2x32xf32>
    %30 = math.tanh %29 : vector<2x32xf32>
    %31 = vector.extract_strided_slice %16 {offsets = [0, 96], sizes = [2, 32], strides = [1, 1]} : vector<2x128xf32> to vector<2x32xf32>
    %32 = arith.negf %31 : vector<2x32xf32>
    %33 = math.exp %32 : vector<2x32xf32>
    %cst_17 = arith.constant 1.000000e+00 : f32
    %34 = vector.broadcast %cst_17 : f32 to vector<2x32xf32>
    %35 = arith.addf %34, %33 : vector<2x32xf32>
    %36 = arith.divf %34, %35 : vector<2x32xf32>
    %37 = arith.mulf %28, %6 : vector<2x32xf32>
    %38 = arith.mulf %22, %30 : vector<2x32xf32>
    %39 = arith.addf %37, %38 : vector<2x32xf32>
    %40 = math.tanh %39 : vector<2x32xf32>
    %41 = arith.mulf %36, %40 : vector<2x32xf32>
    %42 = arith.index_cast %c0_i32_12 : i32 to index
    %c0_18 = arith.constant 0 : index
    %c0_19 = arith.constant 0 : index
    %43 = vector.load %arg3[%42, %c0_18, %c0_19] : memref<8x2x1xf32, #tpu.memory_space<vmem>>, vector<1x2x1xf32>
    %44 = vector.shape_cast %43 : vector<1x2x1xf32> to vector<2x1xf32>
    %45 = vector.broadcast %44 : vector<2x1xf32> to vector<2x32xf32>
    %46 = arith.mulf %45, %41 : vector<2x32xf32>
    %cst_20 = arith.constant 1.000000e+00 : f32
    %47 = vector.broadcast %cst_20 : f32 to vector<2x1xf32>
    %48 = arith.subf %47, %44 : vector<2x1xf32>
    %49 = vector.broadcast %48 : vector<2x1xf32> to vector<2x32xf32>
    %50 = arith.mulf %49, %5 : vector<2x32xf32>
    %51 = arith.addf %46, %50 : vector<2x32xf32>
    %52 = vector.broadcast %44 : vector<2x1xf32> to vector<2x32xf32>
    %53 = arith.mulf %52, %39 : vector<2x32xf32>
    %cst_21 = arith.constant 1.000000e+00 : f32
    %54 = vector.broadcast %cst_21 : f32 to vector<2x1xf32>
    %55 = arith.subf %54, %44 : vector<2x1xf32>
    %56 = vector.broadcast %55 : vector<2x1xf32> to vector<2x32xf32>
    %57 = arith.mulf %56, %6 : vector<2x32xf32>
    %58 = arith.addf %53, %57 : vector<2x32xf32>
    %59 = vector.broadcast %44 : vector<2x1xf32> to vector<2x32xf32>
    %60 = arith.mulf %51, %59 : vector<2x32xf32>
    %61 = arith.truncf %60 : vector<2x32xf32> to vector<2x32xbf16>
    %62 = arith.index_cast %c0_i32_12 : i32 to index
    %c0_22 = arith.constant 0 : index
    %c0_23 = arith.constant 0 : index
    %63 = vector.load %arg7[%62, %c0_22, %c0_23] : memref<8x2x32xbf16, #tpu.memory_space<vmem>>, vector<1x2x32xbf16>
    %64 = vector.shape_cast %63 : vector<1x2x32xbf16> to vector<2x32xbf16>
    %65 = vector.shape_cast %61 : vector<2x32xbf16> to vector<1x2x32xbf16>
    tpu.vector_store %arg7[%62, %c0_22, %c0_23], %65 {strides = array<i32>} : memref<8x2x32xbf16, #tpu.memory_space<vmem>>, vector<1x2x32xbf16>,
    %66 = arith.index_cast %9 : i32 to index
    %c0_24 = arith.constant 0 : index
    %c0_25 = arith.constant 0 : index
    %67 = vector.load %arg2[%66, %c0_24, %c0_25] : memref<8x2x128xbf16, #tpu.memory_space<vmem>>, vector<1x2x128xbf16>
    %68 = vector.shape_cast %67 : vector<1x2x128xbf16> to vector<2x128xbf16>
    %69 = arith.extf %68 : vector<2x128xbf16> to vector<2x128xf32>
    %70 = arith.truncf %7 : vector<2x32xf32> to vector<2x32xbf16>
    %cst_26 = arith.constant dense<0.000000e+00> : vector<2x128xf32>
    %71 = tpu.matmul %70, %4, %cst_26 {dimension_numbers = #tpu.dot_dimension_numbers<[1], [0], [0], [1], [0, 0, 1, 1], [], []>} : vector<2x32xbf16>, vector<32x128xbf16>, vector<2x128xf32> -> vector<2x128xf32>
    %72 = arith.addf %69, %71 : vector<2x128xf32>
    %73 = vector.extract_strided_slice %72 {offsets = [0, 0], sizes = [2, 32], strides = [1, 1]} : vector<2x128xf32> to vector<2x32xf32>
    %74 = arith.negf %73 : vector<2x32xf32>
    %75 = math.exp %74 : vector<2x32xf32>
    %cst_27 = arith.constant 1.000000e+00 : f32
    %76 = vector.broadcast %cst_27 : f32 to vector<2x32xf32>
    %77 = arith.addf %76, %75 : vector<2x32xf32>
    %78 = arith.divf %76, %77 : vector<2x32xf32>
    %79 = vector.extract_strided_slice %72 {offsets = [0, 32], sizes = [2, 32], strides = [1, 1]} : vector<2x128xf32> to vector<2x32xf32>
    %80 = arith.negf %79 : vector<2x32xf32>
    %81 = math.exp %80 : vector<2x32xf32>
    %cst_28 = arith.constant 1.000000e+00 : f32
    %82 = vector.broadcast %cst_28 : f32 to vector<2x32xf32>
    %83 = arith.addf %82, %81 : vector<2x32xf32>
    %84 = arith.divf %82, %83 : vector<2x32xf32>
    %85 = vector.extract_strided_slice %72 {offsets = [0, 64], sizes = [2, 32], strides = [1, 1]} : vector<2x128xf32> to vector<2x32xf32>
    %86 = math.tanh %85 : vector<2x32xf32>
    %87 = vector.extract_strided_slice %72 {offsets = [0, 96], sizes = [2, 32], strides = [1, 1]} : vector<2x128xf32> to vector<2x32xf32>
    %88 = arith.negf %87 : vector<2x32xf32>
    %89 = math.exp %88 : vector<2x32xf32>
    %cst_29 = arith.constant 1.000000e+00 : f32
    %90 = vector.broadcast %cst_29 : f32 to vector<2x32xf32>
    %91 = arith.addf %90, %89 : vector<2x32xf32>
    %92 = arith.divf %90, %91 : vector<2x32xf32>
    %93 = arith.mulf %84, %8 : vector<2x32xf32>
    %94 = arith.mulf %78, %86 : vector<2x32xf32>
    %95 = arith.addf %93, %94 : vector<2x32xf32>
    %96 = math.tanh %95 : vector<2x32xf32>
    %97 = arith.mulf %92, %96 : vector<2x32xf32>
    %98 = arith.index_cast %9 : i32 to index
    %c0_30 = arith.constant 0 : index
    %c0_31 = arith.constant 0 : index
    %99 = vector.load %arg4[%98, %c0_30, %c0_31] : memref<8x2x1xf32, #tpu.memory_space<vmem>>, vector<1x2x1xf32>
    %100 = vector.shape_cast %99 : vector<1x2x1xf32> to vector<2x1xf32>
    %101 = vector.broadcast %100 : vector<2x1xf32> to vector<2x32xf32>
    %102 = arith.mulf %101, %97 : vector<2x32xf32>
    %cst_32 = arith.constant 1.000000e+00 : f32
    %103 = vector.broadcast %cst_32 : f32 to vector<2x1xf32>
    %104 = arith.subf %103, %100 : vector<2x1xf32>
    %105 = vector.broadcast %104 : vector<2x1xf32> to vector<2x32xf32>
    %106 = arith.mulf %105, %7 : vector<2x32xf32>
    %107 = arith.addf %102, %106 : vector<2x32xf32>
    %108 = vector.broadcast %100 : vector<2x1xf32> to vector<2x32xf32>
    %109 = arith.mulf %108, %95 : vector<2x32xf32>
    %cst_33 = arith.constant 1.000000e+00 : f32
    %110 = vector.broadcast %cst_33 : f32 to vector<2x1xf32>
    %111 = arith.subf %110, %100 : vector<2x1xf32>
    %112 = vector.broadcast %111 : vector<2x1xf32> to vector<2x32xf32>
    %113 = arith.mulf %112, %8 : vector<2x32xf32>
    %114 = arith.addf %109, %113 : vector<2x32xf32>
    %115 = vector.broadcast %100 : vector<2x1xf32> to vector<2x32xf32>
    %116 = arith.mulf %107, %115 : vector<2x32xf32>
    %117 = arith.truncf %116 : vector<2x32xf32> to vector<2x32xbf16>
    %118 = arith.index_cast %9 : i32 to index
    %c0_34 = arith.constant 0 : index
    %c0_35 = arith.constant 0 : index
    %119 = vector.load %arg8[%118, %c0_34, %c0_35] : memref<8x2x32xbf16, #tpu.memory_space<vmem>>, vector<1x2x32xbf16>
    %120 = vector.shape_cast %119 : vector<1x2x32xbf16> to vector<2x32xbf16>
    %121 = vector.shape_cast %117 : vector<2x32xbf16> to vector<1x2x32xbf16>
    tpu.vector_store %arg8[%118, %c0_34, %c0_35], %121 {strides = array<i32>} : memref<8x2x32xbf16, #tpu.memory_space<vmem>>, vector<1x2x32xbf16>,
    %c1_i32 = arith.constant 1 : i32
    %c7_i32_36 = arith.constant 7 : i32
    %122 = arith.subi %c7_i32_36, %c1_i32 : i32
    %123 = arith.index_cast %c1_i32 : i32 to index
    %c0_37 = arith.constant 0 : index
    %c0_38 = arith.constant 0 : index
    %124 = vector.load %arg1[%123, %c0_37, %c0_38] : memref<8x2x128xbf16, #tpu.memory_space<vmem>>, vector<1x2x128xbf16>
    %125 = vector.shape_cast %124 : vector<1x2x128xbf16> to vector<2x128xbf16>
    %126 = arith.extf %125 : vector<2x128xbf16> to vector<2x128xf32>
    %127 = arith.truncf %51 : vector<2x32xf32> to vector<2x32xbf16>
    %cst_39 = arith.constant dense<0.000000e+00> : vector<2x128xf32>
    %128 = tpu.matmul %127, %3, %cst_39 {dimension_numbers = #tpu.dot_dimension_numbers<[1], [0], [0], [1], [0, 0, 1, 1], [], []>} : vector<2x32xbf16>, vector<32x128xbf16>, vector<2x128xf32> -> vector<2x128xf32>
    %129 = arith.addf %126, %128 : vector<2x128xf32>
    %130 = vector.extract_strided_slice %129 {offsets = [0, 0], sizes = [2, 32], strides = [1, 1]} : vector<2x128xf32> to vector<2x32xf32>
    %131 = arith.negf %130 : vector<2x32xf32>
    %132 = math.exp %131 : vector<2x32xf32>
    %cst_40 = arith.constant 1.000000e+00 : f32
    %133 = vector.broadcast %cst_40 : f32 to vector<2x32xf32>
    %134 = arith.addf %133, %132 : vector<2x32xf32>
    %135 = arith.divf %133, %134 : vector<2x32xf32>
    %136 = vector.extract_strided_slice %129 {offsets = [0, 32], sizes = [2, 32], strides = [1, 1]} : vector<2x128xf32> to vector<2x32xf32>
    %137 = arith.negf %136 : vector<2x32xf32>
    %138 = math.exp %137 : vector<2x32xf32>
    %cst_41 = arith.constant 1.000000e+00 : f32
    %139 = vector.broadcast %cst_41 : f32 to vector<2x32xf32>
    %140 = arith.addf %139, %138 : vector<2x32xf32>
    %141 = arith.divf %139, %140 : vector<2x32xf32>
    %142 = vector.extract_strided_slice %129 {offsets = [0, 64], sizes = [2, 32], strides = [1, 1]} : vector<2x128xf32> to vector<2x32xf32>
    %143 = math.tanh %142 : vector<2x32xf32>
    %144 = vector.extract_strided_slice %129 {offsets = [0, 96], sizes = [2, 32], strides = [1, 1]} : vector<2x128xf32> to vector<2x32xf32>
    %145 = arith.negf %144 : vector<2x32xf32>
    %146 = math.exp %145 : vector<2x32xf32>
    %cst_42 = arith.constant 1.000000e+00 : f32
    %147 = vector.broadcast %cst_42 : f32 to vector<2x32xf32>
    %148 = arith.addf %147, %146 : vector<2x32xf32>
    %149 = arith.divf %147, %148 : vector<2x32xf32>
    %150 = arith.mulf %141, %58 : vector<2x32xf32>
    %151 = arith.mulf %135, %143 : vector<2x32xf32>
    %152 = arith.addf %150, %151 : vector<2x32xf32>
    %153 = math.tanh %152 : vector<2x32xf32>
    %154 = arith.mulf %149, %153 : vector<2x32xf32>
    %155 = arith.index_cast %c1_i32 : i32 to index
    %c0_43 = arith.constant 0 : index
    %c0_44 = arith.constant 0 : index
    %156 = vector.load %arg3[%155, %c0_43, %c0_44] : memref<8x2x1xf32, #tpu.memory_space<vmem>>, vector<1x2x1xf32>
    %157 = vector.shape_cast %156 : vector<1x2x1xf32> to vector<2x1xf32>
    %158 = vector.broadcast %157 : vector<2x1xf32> to vector<2x32xf32>
    %159 = arith.mulf %158, %154 : vector<2x32xf32>
    %cst_45 = arith.constant 1.000000e+00 : f32
    %160 = vector.broadcast %cst_45 : f32 to vector<2x1xf32>
    %161 = arith.subf %160, %157 : vector<2x1xf32>
    %162 = vector.broadcast %161 : vector<2x1xf32> to vector<2x32xf32>
    %163 = arith.mulf %162, %51 : vector<2x32xf32>
    %164 = arith.addf %159, %163 : vector<2x32xf32>
    %165 = vector.broadcast %157 : vector<2x1xf32> to vector<2x32xf32>
    %166 = arith.mulf %165, %152 : vector<2x32xf32>
    %cst_46 = arith.constant 1.000000e+00 : f32
    %167 = vector.broadcast %cst_46 : f32 to vector<2x1xf32>
    %168 = arith.subf %167, %157 : vector<2x1xf32>
    %169 = vector.broadcast %168 : vector<2x1xf32> to vector<2x32xf32>
    %170 = arith.mulf %169, %58 : vector<2x32xf32>
    %171 = arith.addf %166, %170 : vector<2x32xf32>
    %172 = vector.broadcast %157 : vector<2x1xf32> to vector<2x32xf32>
    %173 = arith.mulf %164, %172 : vector<2x32xf32>
    %174 = arith.truncf %173 : vector<2x32xf32> to vector<2x32xbf16>
    %175 = arith.index_cast %c1_i32 : i32 to index
    %c0_47 = arith.constant 0 : index
    %c0_48 = arith.constant 0 : index
    %176 = vector.load %arg7[%175, %c0_47, %c0_48] : memref<8x2x32xbf16, #tpu.memory_space<vmem>>, vector<1x2x32xbf16>
    %177 = vector.shape_cast %176 : vector<1x2x32xbf16> to vector<2x32xbf16>
    %178 = vector.shape_cast %174 : vector<2x32xbf16> to vector<1x2x32xbf16>
    tpu.vector_store %arg7[%175, %c0_47, %c0_48], %178 {strides = array<i32>} : memref<8x2x32xbf16, #tpu.memory_space<vmem>>, vector<1x2x32xbf16>,
    %179 = arith.index_cast %122 : i32 to index
    %c0_49 = arith.constant 0 : index
    %c0_50 = arith.constant 0 : index
    %180 = vector.load %arg2[%179, %c0_49, %c0_50] : memref<8x2x128xbf16, #tpu.memory_space<vmem>>, vector<1x2x128xbf16>
    %181 = vector.shape_cast %180 : vector<1x2x128xbf16> to vector<2x128xbf16>
    %182 = arith.extf %181 : vector<2x128xbf16> to vector<2x128xf32>
    %183 = arith.truncf %107 : vector<2x32xf32> to vector<2x32xbf16>
    %cst_51 = arith.constant dense<0.000000e+00> : vector<2x128xf32>
    %184 = tpu.matmul %183, %4, %cst_51 {dimension_numbers = #tpu.dot_dimension_numbers<[1], [0], [0], [1], [0, 0, 1, 1], [], []>} : vector<2x32xbf16>, vector<32x128xbf16>, vector<2x128xf32> -> vector<2x128xf32>
    %185 = arith.addf %182, %184 : vector<2x128xf32>
    %186 = vector.extract_strided_slice %185 {offsets = [0, 0], sizes = [2, 32], strides = [1, 1]} : vector<2x128xf32> to vector<2x32xf32>
    %187 = arith.negf %186 : vector<2x32xf32>
    %188 = math.exp %187 : vector<2x32xf32>
    %cst_52 = arith.constant 1.000000e+00 : f32
    %189 = vector.broadcast %cst_52 : f32 to vector<2x32xf32>
    %190 = arith.addf %189, %188 : vector<2x32xf32>
    %191 = arith.divf %189, %190 : vector<2x32xf32>
    %192 = vector.extract_strided_slice %185 {offsets = [0, 32], sizes = [2, 32], strides = [1, 1]} : vector<2x128xf32> to vector<2x32xf32>
    %193 = arith.negf %192 : vector<2x32xf32>
    %194 = math.exp %193 : vector<2x32xf32>
    %cst_53 = arith.constant 1.000000e+00 : f32
    %195 = vector.broadcast %cst_53 : f32 to vector<2x32xf32>
    %196 = arith.addf %195, %194 : vector<2x32xf32>
    %197 = arith.divf %195, %196 : vector<2x32xf32>
    %198 = vector.extract_strided_slice %185 {offsets = [0, 64], sizes = [2, 32], strides = [1, 1]} : vector<2x128xf32> to vector<2x32xf32>
    %199 = math.tanh %198 : vector<2x32xf32>
    %200 = vector.extract_strided_slice %185 {offsets = [0, 96], sizes = [2, 32], strides = [1, 1]} : vector<2x128xf32> to vector<2x32xf32>
    %201 = arith.negf %200 : vector<2x32xf32>
    %202 = math.exp %201 : vector<2x32xf32>
    %cst_54 = arith.constant 1.000000e+00 : f32
    %203 = vector.broadcast %cst_54 : f32 to vector<2x32xf32>
    %204 = arith.addf %203, %202 : vector<2x32xf32>
    %205 = arith.divf %203, %204 : vector<2x32xf32>
    %206 = arith.mulf %197, %114 : vector<2x32xf32>
    %207 = arith.mulf %191, %199 : vector<2x32xf32>
    %208 = arith.addf %206, %207 : vector<2x32xf32>
    %209 = math.tanh %208 : vector<2x32xf32>
    %210 = arith.mulf %205, %209 : vector<2x32xf32>
    %211 = arith.index_cast %122 : i32 to index
    %c0_55 = arith.constant 0 : index
    %c0_56 = arith.constant 0 : index
    %212 = vector.load %arg4[%211, %c0_55, %c0_56] : memref<8x2x1xf32, #tpu.memory_space<vmem>>, vector<1x2x1xf32>
    %213 = vector.shape_cast %212 : vector<1x2x1xf32> to vector<2x1xf32>
    %214 = vector.broadcast %213 : vector<2x1xf32> to vector<2x32xf32>
    %215 = arith.mulf %214, %210 : vector<2x32xf32>
    %cst_57 = arith.constant 1.000000e+00 : f32
    %216 = vector.broadcast %cst_57 : f32 to vector<2x1xf32>
    %217 = arith.subf %216, %213 : vector<2x1xf32>
    %218 = vector.broadcast %217 : vector<2x1xf32> to vector<2x32xf32>
    %219 = arith.mulf %218, %107 : vector<2x32xf32>
    %220 = arith.addf %215, %219 : vector<2x32xf32>
    %221 = vector.broadcast %213 : vector<2x1xf32> to vector<2x32xf32>
    %222 = arith.mulf %221, %208 : vector<2x32xf32>
    %cst_58 = arith.constant 1.000000e+00 : f32
    %223 = vector.broadcast %cst_58 : f32 to vector<2x1xf32>
    %224 = arith.subf %223, %213 : vector<2x1xf32>
    %225 = vector.broadcast %224 : vector<2x1xf32> to vector<2x32xf32>
    %226 = arith.mulf %225, %114 : vector<2x32xf32>
    %227 = arith.addf %222, %226 : vector<2x32xf32>
    %228 = vector.broadcast %213 : vector<2x1xf32> to vector<2x32xf32>
    %229 = arith.mulf %220, %228 : vector<2x32xf32>
    %230 = arith.truncf %229 : vector<2x32xf32> to vector<2x32xbf16>
    %231 = arith.index_cast %122 : i32 to index
    %c0_59 = arith.constant 0 : index
    %c0_60 = arith.constant 0 : index
    %232 = vector.load %arg8[%231, %c0_59, %c0_60] : memref<8x2x32xbf16, #tpu.memory_space<vmem>>, vector<1x2x32xbf16>
    %233 = vector.shape_cast %232 : vector<1x2x32xbf16> to vector<2x32xbf16>
    %234 = vector.shape_cast %230 : vector<2x32xbf16> to vector<1x2x32xbf16>
    tpu.vector_store %arg8[%231, %c0_59, %c0_60], %234 {strides = array<i32>} : memref<8x2x32xbf16, #tpu.memory_space<vmem>>, vector<1x2x32xbf16>,
    %c2_i32 = arith.constant 2 : i32
    %c7_i32_61 = arith.constant 7 : i32
    %235 = arith.subi %c7_i32_61, %c2_i32 : i32
    %236 = arith.index_cast %c2_i32 : i32 to index
    %c0_62 = arith.constant 0 : index
    %c0_63 = arith.constant 0 : index
    %237 = vector.load %arg1[%236, %c0_62, %c0_63] : memref<8x2x128xbf16, #tpu.memory_space<vmem>>, vector<1x2x128xbf16>
    %238 = vector.shape_cast %237 : vector<1x2x128xbf16> to vector<2x128xbf16>
    %239 = arith.extf %238 : vector<2x128xbf16> to vector<2x128xf32>
    %240 = arith.truncf %164 : vector<2x32xf32> to vector<2x32xbf16>
    %cst_64 = arith.constant dense<0.000000e+00> : vector<2x128xf32>
    %241 = tpu.matmul %240, %3, %cst_64 {dimension_numbers = #tpu.dot_dimension_numbers<[1], [0], [0], [1], [0, 0, 1, 1], [], []>} : vector<2x32xbf16>, vector<32x128xbf16>, vector<2x128xf32> -> vector<2x128xf32>
    %242 = arith.addf %239, %241 : vector<2x128xf32>
    %243 = vector.extract_strided_slice %242 {offsets = [0, 0], sizes = [2, 32], strides = [1, 1]} : vector<2x128xf32> to vector<2x32xf32>
    %244 = arith.negf %243 : vector<2x32xf32>
    %245 = math.exp %244 : vector<2x32xf32>
    %cst_65 = arith.constant 1.000000e+00 : f32
    %246 = vector.broadcast %cst_65 : f32 to vector<2x32xf32>
    %247 = arith.addf %246, %245 : vector<2x32xf32>
    %248 = arith.divf %246, %247 : vector<2x32xf32>
    %249 = vector.extract_strided_slice %242 {offsets = [0, 32], sizes = [2, 32], strides = [1, 1]} : vector<2x128xf32> to vector<2x32xf32>
    %250 = arith.negf %249 : vector<2x32xf32>
    %251 = math.exp %250 : vector<2x32xf32>
    %cst_66 = arith.constant 1.000000e+00 : f32
    %252 = vector.broadcast %cst_66 : f32 to vector<2x32xf32>
    %253 = arith.addf %252, %251 : vector<2x32xf32>
    %254 = arith.divf %252, %253 : vector<2x32xf32>
    %255 = vector.extract_strided_slice %242 {offsets = [0, 64], sizes = [2, 32], strides = [1, 1]} : vector<2x128xf32> to vector<2x32xf32>
    %256 = math.tanh %255 : vector<2x32xf32>
    %257 = vector.extract_strided_slice %242 {offsets = [0, 96], sizes = [2, 32], strides = [1, 1]} : vector<2x128xf32> to vector<2x32xf32>
    %258 = arith.negf %257 : vector<2x32xf32>
    %259 = math.exp %258 : vector<2x32xf32>
    %cst_67 = arith.constant 1.000000e+00 : f32
    %260 = vector.broadcast %cst_67 : f32 to vector<2x32xf32>
    %261 = arith.addf %260, %259 : vector<2x32xf32>
    %262 = arith.divf %260, %261 : vector<2x32xf32>
    %263 = arith.mulf %254, %171 : vector<2x32xf32>
    %264 = arith.mulf %248, %256 : vector<2x32xf32>
    %265 = arith.addf %263, %264 : vector<2x32xf32>
    %266 = math.tanh %265 : vector<2x32xf32>
    %267 = arith.mulf %262, %266 : vector<2x32xf32>
    %268 = arith.index_cast %c2_i32 : i32 to index
    %c0_68 = arith.constant 0 : index
    %c0_69 = arith.constant 0 : index
    %269 = vector.load %arg3[%268, %c0_68, %c0_69] : memref<8x2x1xf32, #tpu.memory_space<vmem>>, vector<1x2x1xf32>
    %270 = vector.shape_cast %269 : vector<1x2x1xf32> to vector<2x1xf32>
    %271 = vector.broadcast %270 : vector<2x1xf32> to vector<2x32xf32>
    %272 = arith.mulf %271, %267 : vector<2x32xf32>
    %cst_70 = arith.constant 1.000000e+00 : f32
    %273 = vector.broadcast %cst_70 : f32 to vector<2x1xf32>
    %274 = arith.subf %273, %270 : vector<2x1xf32>
    %275 = vector.broadcast %274 : vector<2x1xf32> to vector<2x32xf32>
    %276 = arith.mulf %275, %164 : vector<2x32xf32>
    %277 = arith.addf %272, %276 : vector<2x32xf32>
    %278 = vector.broadcast %270 : vector<2x1xf32> to vector<2x32xf32>
    %279 = arith.mulf %278, %265 : vector<2x32xf32>
    %cst_71 = arith.constant 1.000000e+00 : f32
    %280 = vector.broadcast %cst_71 : f32 to vector<2x1xf32>
    %281 = arith.subf %280, %270 : vector<2x1xf32>
    %282 = vector.broadcast %281 : vector<2x1xf32> to vector<2x32xf32>
    %283 = arith.mulf %282, %171 : vector<2x32xf32>
    %284 = arith.addf %279, %283 : vector<2x32xf32>
    %285 = vector.broadcast %270 : vector<2x1xf32> to vector<2x32xf32>
    %286 = arith.mulf %277, %285 : vector<2x32xf32>
    %287 = arith.truncf %286 : vector<2x32xf32> to vector<2x32xbf16>
    %288 = arith.index_cast %c2_i32 : i32 to index
    %c0_72 = arith.constant 0 : index
    %c0_73 = arith.constant 0 : index
    %289 = vector.load %arg7[%288, %c0_72, %c0_73] : memref<8x2x32xbf16, #tpu.memory_space<vmem>>, vector<1x2x32xbf16>
    %290 = vector.shape_cast %289 : vector<1x2x32xbf16> to vector<2x32xbf16>
    %291 = vector.shape_cast %287 : vector<2x32xbf16> to vector<1x2x32xbf16>
    tpu.vector_store %arg7[%288, %c0_72, %c0_73], %291 {strides = array<i32>} : memref<8x2x32xbf16, #tpu.memory_space<vmem>>, vector<1x2x32xbf16>,
    %292 = arith.index_cast %235 : i32 to index
    %c0_74 = arith.constant 0 : index
    %c0_75 = arith.constant 0 : index
    %293 = vector.load %arg2[%292, %c0_74, %c0_75] : memref<8x2x128xbf16, #tpu.memory_space<vmem>>, vector<1x2x128xbf16>
    %294 = vector.shape_cast %293 : vector<1x2x128xbf16> to vector<2x128xbf16>
    %295 = arith.extf %294 : vector<2x128xbf16> to vector<2x128xf32>
    %296 = arith.truncf %220 : vector<2x32xf32> to vector<2x32xbf16>
    %cst_76 = arith.constant dense<0.000000e+00> : vector<2x128xf32>
    %297 = tpu.matmul %296, %4, %cst_76 {dimension_numbers = #tpu.dot_dimension_numbers<[1], [0], [0], [1], [0, 0, 1, 1], [], []>} : vector<2x32xbf16>, vector<32x128xbf16>, vector<2x128xf32> -> vector<2x128xf32>
    %298 = arith.addf %295, %297 : vector<2x128xf32>
    %299 = vector.extract_strided_slice %298 {offsets = [0, 0], sizes = [2, 32], strides = [1, 1]} : vector<2x128xf32> to vector<2x32xf32>
    %300 = arith.negf %299 : vector<2x32xf32>
    %301 = math.exp %300 : vector<2x32xf32>
    %cst_77 = arith.constant 1.000000e+00 : f32
    %302 = vector.broadcast %cst_77 : f32 to vector<2x32xf32>
    %303 = arith.addf %302, %301 : vector<2x32xf32>
    %304 = arith.divf %302, %303 : vector<2x32xf32>
    %305 = vector.extract_strided_slice %298 {offsets = [0, 32], sizes = [2, 32], strides = [1, 1]} : vector<2x128xf32> to vector<2x32xf32>
    %306 = arith.negf %305 : vector<2x32xf32>
    %307 = math.exp %306 : vector<2x32xf32>
    %cst_78 = arith.constant 1.000000e+00 : f32
    %308 = vector.broadcast %cst_78 : f32 to vector<2x32xf32>
    %309 = arith.addf %308, %307 : vector<2x32xf32>
    %310 = arith.divf %308, %309 : vector<2x32xf32>
    %311 = vector.extract_strided_slice %298 {offsets = [0, 64], sizes = [2, 32], strides = [1, 1]} : vector<2x128xf32> to vector<2x32xf32>
    %312 = math.tanh %311 : vector<2x32xf32>
    %313 = vector.extract_strided_slice %298 {offsets = [0, 96], sizes = [2, 32], strides = [1, 1]} : vector<2x128xf32> to vector<2x32xf32>
    %314 = arith.negf %313 : vector<2x32xf32>
    %315 = math.exp %314 : vector<2x32xf32>
    %cst_79 = arith.constant 1.000000e+00 : f32
    %316 = vector.broadcast %cst_79 : f32 to vector<2x32xf32>
    %317 = arith.addf %316, %315 : vector<2x32xf32>
    %318 = arith.divf %316, %317 : vector<2x32xf32>
    %319 = arith.mulf %310, %227 : vector<2x32xf32>
    %320 = arith.mulf %304, %312 : vector<2x32xf32>
    %321 = arith.addf %319, %320 : vector<2x32xf32>
    %322 = math.tanh %321 : vector<2x32xf32>
    %323 = arith.mulf %318, %322 : vector<2x32xf32>
    %324 = arith.index_cast %235 : i32 to index
    %c0_80 = arith.constant 0 : index
    %c0_81 = arith.constant 0 : index
    %325 = vector.load %arg4[%324, %c0_80, %c0_81] : memref<8x2x1xf32, #tpu.memory_space<vmem>>, vector<1x2x1xf32>
    %326 = vector.shape_cast %325 : vector<1x2x1xf32> to vector<2x1xf32>
    %327 = vector.broadcast %326 : vector<2x1xf32> to vector<2x32xf32>
    %328 = arith.mulf %327, %323 : vector<2x32xf32>
    %cst_82 = arith.constant 1.000000e+00 : f32
    %329 = vector.broadcast %cst_82 : f32 to vector<2x1xf32>
    %330 = arith.subf %329, %326 : vector<2x1xf32>
    %331 = vector.broadcast %330 : vector<2x1xf32> to vector<2x32xf32>
    %332 = arith.mulf %331, %220 : vector<2x32xf32>
    %333 = arith.addf %328, %332 : vector<2x32xf32>
    %334 = vector.broadcast %326 : vector<2x1xf32> to vector<2x32xf32>
    %335 = arith.mulf %334, %321 : vector<2x32xf32>
    %cst_83 = arith.constant 1.000000e+00 : f32
    %336 = vector.broadcast %cst_83 : f32 to vector<2x1xf32>
    %337 = arith.subf %336, %326 : vector<2x1xf32>
    %338 = vector.broadcast %337 : vector<2x1xf32> to vector<2x32xf32>
    %339 = arith.mulf %338, %227 : vector<2x32xf32>
    %340 = arith.addf %335, %339 : vector<2x32xf32>
    %341 = vector.broadcast %326 : vector<2x1xf32> to vector<2x32xf32>
    %342 = arith.mulf %333, %341 : vector<2x32xf32>
    %343 = arith.truncf %342 : vector<2x32xf32> to vector<2x32xbf16>
    %344 = arith.index_cast %235 : i32 to index
    %c0_84 = arith.constant 0 : index
    %c0_85 = arith.constant 0 : index
    %345 = vector.load %arg8[%344, %c0_84, %c0_85] : memref<8x2x32xbf16, #tpu.memory_space<vmem>>, vector<1x2x32xbf16>
    %346 = vector.shape_cast %345 : vector<1x2x32xbf16> to vector<2x32xbf16>
    %347 = vector.shape_cast %343 : vector<2x32xbf16> to vector<1x2x32xbf16>
    tpu.vector_store %arg8[%344, %c0_84, %c0_85], %347 {strides = array<i32>} : memref<8x2x32xbf16, #tpu.memory_space<vmem>>, vector<1x2x32xbf16>,
    %c3_i32 = arith.constant 3 : i32
    %c7_i32_86 = arith.constant 7 : i32
    %348 = arith.subi %c7_i32_86, %c3_i32 : i32
    %349 = arith.index_cast %c3_i32 : i32 to index
    %c0_87 = arith.constant 0 : index
    %c0_88 = arith.constant 0 : index
    %350 = vector.load %arg1[%349, %c0_87, %c0_88] : memref<8x2x128xbf16, #tpu.memory_space<vmem>>, vector<1x2x128xbf16>
    %351 = vector.shape_cast %350 : vector<1x2x128xbf16> to vector<2x128xbf16>
    %352 = arith.extf %351 : vector<2x128xbf16> to vector<2x128xf32>
    %353 = arith.truncf %277 : vector<2x32xf32> to vector<2x32xbf16>
    %cst_89 = arith.constant dense<0.000000e+00> : vector<2x128xf32>
    %354 = tpu.matmul %353, %3, %cst_89 {dimension_numbers = #tpu.dot_dimension_numbers<[1], [0], [0], [1], [0, 0, 1, 1], [], []>} : vector<2x32xbf16>, vector<32x128xbf16>, vector<2x128xf32> -> vector<2x128xf32>
    %355 = arith.addf %352, %354 : vector<2x128xf32>
    %356 = vector.extract_strided_slice %355 {offsets = [0, 0], sizes = [2, 32], strides = [1, 1]} : vector<2x128xf32> to vector<2x32xf32>
    %357 = arith.negf %356 : vector<2x32xf32>
    %358 = math.exp %357 : vector<2x32xf32>
    %cst_90 = arith.constant 1.000000e+00 : f32
    %359 = vector.broadcast %cst_90 : f32 to vector<2x32xf32>
    %360 = arith.addf %359, %358 : vector<2x32xf32>
    %361 = arith.divf %359, %360 : vector<2x32xf32>
    %362 = vector.extract_strided_slice %355 {offsets = [0, 32], sizes = [2, 32], strides = [1, 1]} : vector<2x128xf32> to vector<2x32xf32>
    %363 = arith.negf %362 : vector<2x32xf32>
    %364 = math.exp %363 : vector<2x32xf32>
    %cst_91 = arith.constant 1.000000e+00 : f32
    %365 = vector.broadcast %cst_91 : f32 to vector<2x32xf32>
    %366 = arith.addf %365, %364 : vector<2x32xf32>
    %367 = arith.divf %365, %366 : vector<2x32xf32>
    %368 = vector.extract_strided_slice %355 {offsets = [0, 64], sizes = [2, 32], strides = [1, 1]} : vector<2x128xf32> to vector<2x32xf32>
    %369 = math.tanh %368 : vector<2x32xf32>
    %370 = vector.extract_strided_slice %355 {offsets = [0, 96], sizes = [2, 32], strides = [1, 1]} : vector<2x128xf32> to vector<2x32xf32>
    %371 = arith.negf %370 : vector<2x32xf32>
    %372 = math.exp %371 : vector<2x32xf32>
    %cst_92 = arith.constant 1.000000e+00 : f32
    %373 = vector.broadcast %cst_92 : f32 to vector<2x32xf32>
    %374 = arith.addf %373, %372 : vector<2x32xf32>
    %375 = arith.divf %373, %374 : vector<2x32xf32>
    %376 = arith.mulf %367, %284 : vector<2x32xf32>
    %377 = arith.mulf %361, %369 : vector<2x32xf32>
    %378 = arith.addf %376, %377 : vector<2x32xf32>
    %379 = math.tanh %378 : vector<2x32xf32>
    %380 = arith.mulf %375, %379 : vector<2x32xf32>
    %381 = arith.index_cast %c3_i32 : i32 to index
    %c0_93 = arith.constant 0 : index
    %c0_94 = arith.constant 0 : index
    %382 = vector.load %arg3[%381, %c0_93, %c0_94] : memref<8x2x1xf32, #tpu.memory_space<vmem>>, vector<1x2x1xf32>
    %383 = vector.shape_cast %382 : vector<1x2x1xf32> to vector<2x1xf32>
    %384 = vector.broadcast %383 : vector<2x1xf32> to vector<2x32xf32>
    %385 = arith.mulf %384, %380 : vector<2x32xf32>
    %cst_95 = arith.constant 1.000000e+00 : f32
    %386 = vector.broadcast %cst_95 : f32 to vector<2x1xf32>
    %387 = arith.subf %386, %383 : vector<2x1xf32>
    %388 = vector.broadcast %387 : vector<2x1xf32> to vector<2x32xf32>
    %389 = arith.mulf %388, %277 : vector<2x32xf32>
    %390 = arith.addf %385, %389 : vector<2x32xf32>
    %391 = vector.broadcast %383 : vector<2x1xf32> to vector<2x32xf32>
    %392 = arith.mulf %391, %378 : vector<2x32xf32>
    %cst_96 = arith.constant 1.000000e+00 : f32
    %393 = vector.broadcast %cst_96 : f32 to vector<2x1xf32>
    %394 = arith.subf %393, %383 : vector<2x1xf32>
    %395 = vector.broadcast %394 : vector<2x1xf32> to vector<2x32xf32>
    %396 = arith.mulf %395, %284 : vector<2x32xf32>
    %397 = arith.addf %392, %396 : vector<2x32xf32>
    %398 = vector.broadcast %383 : vector<2x1xf32> to vector<2x32xf32>
    %399 = arith.mulf %390, %398 : vector<2x32xf32>
    %400 = arith.truncf %399 : vector<2x32xf32> to vector<2x32xbf16>
    %401 = arith.index_cast %c3_i32 : i32 to index
    %c0_97 = arith.constant 0 : index
    %c0_98 = arith.constant 0 : index
    %402 = vector.load %arg7[%401, %c0_97, %c0_98] : memref<8x2x32xbf16, #tpu.memory_space<vmem>>, vector<1x2x32xbf16>
    %403 = vector.shape_cast %402 : vector<1x2x32xbf16> to vector<2x32xbf16>
    %404 = vector.shape_cast %400 : vector<2x32xbf16> to vector<1x2x32xbf16>
    tpu.vector_store %arg7[%401, %c0_97, %c0_98], %404 {strides = array<i32>} : memref<8x2x32xbf16, #tpu.memory_space<vmem>>, vector<1x2x32xbf16>,
    %405 = arith.index_cast %348 : i32 to index
    %c0_99 = arith.constant 0 : index
    %c0_100 = arith.constant 0 : index
    %406 = vector.load %arg2[%405, %c0_99, %c0_100] : memref<8x2x128xbf16, #tpu.memory_space<vmem>>, vector<1x2x128xbf16>
    %407 = vector.shape_cast %406 : vector<1x2x128xbf16> to vector<2x128xbf16>
    %408 = arith.extf %407 : vector<2x128xbf16> to vector<2x128xf32>
    %409 = arith.truncf %333 : vector<2x32xf32> to vector<2x32xbf16>
    %cst_101 = arith.constant dense<0.000000e+00> : vector<2x128xf32>
    %410 = tpu.matmul %409, %4, %cst_101 {dimension_numbers = #tpu.dot_dimension_numbers<[1], [0], [0], [1], [0, 0, 1, 1], [], []>} : vector<2x32xbf16>, vector<32x128xbf16>, vector<2x128xf32> -> vector<2x128xf32>
    %411 = arith.addf %408, %410 : vector<2x128xf32>
    %412 = vector.extract_strided_slice %411 {offsets = [0, 0], sizes = [2, 32], strides = [1, 1]} : vector<2x128xf32> to vector<2x32xf32>
    %413 = arith.negf %412 : vector<2x32xf32>
    %414 = math.exp %413 : vector<2x32xf32>
    %cst_102 = arith.constant 1.000000e+00 : f32
    %415 = vector.broadcast %cst_102 : f32 to vector<2x32xf32>
    %416 = arith.addf %415, %414 : vector<2x32xf32>
    %417 = arith.divf %415, %416 : vector<2x32xf32>
    %418 = vector.extract_strided_slice %411 {offsets = [0, 32], sizes = [2, 32], strides = [1, 1]} : vector<2x128xf32> to vector<2x32xf32>
    %419 = arith.negf %418 : vector<2x32xf32>
    %420 = math.exp %419 : vector<2x32xf32>
    %cst_103 = arith.constant 1.000000e+00 : f32
    %421 = vector.broadcast %cst_103 : f32 to vector<2x32xf32>
    %422 = arith.addf %421, %420 : vector<2x32xf32>
    %423 = arith.divf %421, %422 : vector<2x32xf32>
    %424 = vector.extract_strided_slice %411 {offsets = [0, 64], sizes = [2, 32], strides = [1, 1]} : vector<2x128xf32> to vector<2x32xf32>
    %425 = math.tanh %424 : vector<2x32xf32>
    %426 = vector.extract_strided_slice %411 {offsets = [0, 96], sizes = [2, 32], strides = [1, 1]} : vector<2x128xf32> to vector<2x32xf32>
    %427 = arith.negf %426 : vector<2x32xf32>
    %428 = math.exp %427 : vector<2x32xf32>
    %cst_104 = arith.constant 1.000000e+00 : f32
    %429 = vector.broadcast %cst_104 : f32 to vector<2x32xf32>
    %430 = arith.addf %429, %428 : vector<2x32xf32>
    %431 = arith.divf %429, %430 : vector<2x32xf32>
    %432 = arith.mulf %423, %340 : vector<2x32xf32>
    %433 = arith.mulf %417, %425 : vector<2x32xf32>
    %434 = arith.addf %432, %433 : vector<2x32xf32>
    %435 = math.tanh %434 : vector<2x32xf32>
    %436 = arith.mulf %431, %435 : vector<2x32xf32>
    %437 = arith.index_cast %348 : i32 to index
    %c0_105 = arith.constant 0 : index
    %c0_106 = arith.constant 0 : index
    %438 = vector.load %arg4[%437, %c0_105, %c0_106] : memref<8x2x1xf32, #tpu.memory_space<vmem>>, vector<1x2x1xf32>
    %439 = vector.shape_cast %438 : vector<1x2x1xf32> to vector<2x1xf32>
    %440 = vector.broadcast %439 : vector<2x1xf32> to vector<2x32xf32>
    %441 = arith.mulf %440, %436 : vector<2x32xf32>
    %cst_107 = arith.constant 1.000000e+00 : f32
    %442 = vector.broadcast %cst_107 : f32 to vector<2x1xf32>
    %443 = arith.subf %442, %439 : vector<2x1xf32>
    %444 = vector.broadcast %443 : vector<2x1xf32> to vector<2x32xf32>
    %445 = arith.mulf %444, %333 : vector<2x32xf32>
    %446 = arith.addf %441, %445 : vector<2x32xf32>
    %447 = vector.broadcast %439 : vector<2x1xf32> to vector<2x32xf32>
    %448 = arith.mulf %447, %434 : vector<2x32xf32>
    %cst_108 = arith.constant 1.000000e+00 : f32
    %449 = vector.broadcast %cst_108 : f32 to vector<2x1xf32>
    %450 = arith.subf %449, %439 : vector<2x1xf32>
    %451 = vector.broadcast %450 : vector<2x1xf32> to vector<2x32xf32>
    %452 = arith.mulf %451, %340 : vector<2x32xf32>
    %453 = arith.addf %448, %452 : vector<2x32xf32>
    %454 = vector.broadcast %439 : vector<2x1xf32> to vector<2x32xf32>
    %455 = arith.mulf %446, %454 : vector<2x32xf32>
    %456 = arith.truncf %455 : vector<2x32xf32> to vector<2x32xbf16>
    %457 = arith.index_cast %348 : i32 to index
    %c0_109 = arith.constant 0 : index
    %c0_110 = arith.constant 0 : index
    %458 = vector.load %arg8[%457, %c0_109, %c0_110] : memref<8x2x32xbf16, #tpu.memory_space<vmem>>, vector<1x2x32xbf16>
    %459 = vector.shape_cast %458 : vector<1x2x32xbf16> to vector<2x32xbf16>
    %460 = vector.shape_cast %456 : vector<2x32xbf16> to vector<1x2x32xbf16>
    tpu.vector_store %arg8[%457, %c0_109, %c0_110], %460 {strides = array<i32>} : memref<8x2x32xbf16, #tpu.memory_space<vmem>>, vector<1x2x32xbf16>,
    %c4_i32 = arith.constant 4 : i32
    %c7_i32_111 = arith.constant 7 : i32
    %461 = arith.subi %c7_i32_111, %c4_i32 : i32
    %462 = arith.index_cast %c4_i32 : i32 to index
    %c0_112 = arith.constant 0 : index
    %c0_113 = arith.constant 0 : index
    %463 = vector.load %arg1[%462, %c0_112, %c0_113] : memref<8x2x128xbf16, #tpu.memory_space<vmem>>, vector<1x2x128xbf16>
    %464 = vector.shape_cast %463 : vector<1x2x128xbf16> to vector<2x128xbf16>
    %465 = arith.extf %464 : vector<2x128xbf16> to vector<2x128xf32>
    %466 = arith.truncf %390 : vector<2x32xf32> to vector<2x32xbf16>
    %cst_114 = arith.constant dense<0.000000e+00> : vector<2x128xf32>
    %467 = tpu.matmul %466, %3, %cst_114 {dimension_numbers = #tpu.dot_dimension_numbers<[1], [0], [0], [1], [0, 0, 1, 1], [], []>} : vector<2x32xbf16>, vector<32x128xbf16>, vector<2x128xf32> -> vector<2x128xf32>
    %468 = arith.addf %465, %467 : vector<2x128xf32>
    %469 = vector.extract_strided_slice %468 {offsets = [0, 0], sizes = [2, 32], strides = [1, 1]} : vector<2x128xf32> to vector<2x32xf32>
    %470 = arith.negf %469 : vector<2x32xf32>
    %471 = math.exp %470 : vector<2x32xf32>
    %cst_115 = arith.constant 1.000000e+00 : f32
    %472 = vector.broadcast %cst_115 : f32 to vector<2x32xf32>
    %473 = arith.addf %472, %471 : vector<2x32xf32>
    %474 = arith.divf %472, %473 : vector<2x32xf32>
    %475 = vector.extract_strided_slice %468 {offsets = [0, 32], sizes = [2, 32], strides = [1, 1]} : vector<2x128xf32> to vector<2x32xf32>
    %476 = arith.negf %475 : vector<2x32xf32>
    %477 = math.exp %476 : vector<2x32xf32>
    %cst_116 = arith.constant 1.000000e+00 : f32
    %478 = vector.broadcast %cst_116 : f32 to vector<2x32xf32>
    %479 = arith.addf %478, %477 : vector<2x32xf32>
    %480 = arith.divf %478, %479 : vector<2x32xf32>
    %481 = vector.extract_strided_slice %468 {offsets = [0, 64], sizes = [2, 32], strides = [1, 1]} : vector<2x128xf32> to vector<2x32xf32>
    %482 = math.tanh %481 : vector<2x32xf32>
    %483 = vector.extract_strided_slice %468 {offsets = [0, 96], sizes = [2, 32], strides = [1, 1]} : vector<2x128xf32> to vector<2x32xf32>
    %484 = arith.negf %483 : vector<2x32xf32>
    %485 = math.exp %484 : vector<2x32xf32>
    %cst_117 = arith.constant 1.000000e+00 : f32
    %486 = vector.broadcast %cst_117 : f32 to vector<2x32xf32>
    %487 = arith.addf %486, %485 : vector<2x32xf32>
    %488 = arith.divf %486, %487 : vector<2x32xf32>
    %489 = arith.mulf %480, %397 : vector<2x32xf32>
    %490 = arith.mulf %474, %482 : vector<2x32xf32>
    %491 = arith.addf %489, %490 : vector<2x32xf32>
    %492 = math.tanh %491 : vector<2x32xf32>
    %493 = arith.mulf %488, %492 : vector<2x32xf32>
    %494 = arith.index_cast %c4_i32 : i32 to index
    %c0_118 = arith.constant 0 : index
    %c0_119 = arith.constant 0 : index
    %495 = vector.load %arg3[%494, %c0_118, %c0_119] : memref<8x2x1xf32, #tpu.memory_space<vmem>>, vector<1x2x1xf32>
    %496 = vector.shape_cast %495 : vector<1x2x1xf32> to vector<2x1xf32>
    %497 = vector.broadcast %496 : vector<2x1xf32> to vector<2x32xf32>
    %498 = arith.mulf %497, %493 : vector<2x32xf32>
    %cst_120 = arith.constant 1.000000e+00 : f32
    %499 = vector.broadcast %cst_120 : f32 to vector<2x1xf32>
    %500 = arith.subf %499, %496 : vector<2x1xf32>
    %501 = vector.broadcast %500 : vector<2x1xf32> to vector<2x32xf32>
    %502 = arith.mulf %501, %390 : vector<2x32xf32>
    %503 = arith.addf %498, %502 : vector<2x32xf32>
    %504 = vector.broadcast %496 : vector<2x1xf32> to vector<2x32xf32>
    %505 = arith.mulf %504, %491 : vector<2x32xf32>
    %cst_121 = arith.constant 1.000000e+00 : f32
    %506 = vector.broadcast %cst_121 : f32 to vector<2x1xf32>
    %507 = arith.subf %506, %496 : vector<2x1xf32>
    %508 = vector.broadcast %507 : vector<2x1xf32> to vector<2x32xf32>
    %509 = arith.mulf %508, %397 : vector<2x32xf32>
    %510 = arith.addf %505, %509 : vector<2x32xf32>
    %511 = vector.broadcast %496 : vector<2x1xf32> to vector<2x32xf32>
    %512 = arith.mulf %503, %511 : vector<2x32xf32>
    %513 = arith.truncf %512 : vector<2x32xf32> to vector<2x32xbf16>
    %514 = arith.index_cast %c4_i32 : i32 to index
    %c0_122 = arith.constant 0 : index
    %c0_123 = arith.constant 0 : index
    %515 = vector.load %arg7[%514, %c0_122, %c0_123] : memref<8x2x32xbf16, #tpu.memory_space<vmem>>, vector<1x2x32xbf16>
    %516 = vector.shape_cast %515 : vector<1x2x32xbf16> to vector<2x32xbf16>
    %517 = vector.shape_cast %513 : vector<2x32xbf16> to vector<1x2x32xbf16>
    tpu.vector_store %arg7[%514, %c0_122, %c0_123], %517 {strides = array<i32>} : memref<8x2x32xbf16, #tpu.memory_space<vmem>>, vector<1x2x32xbf16>,
    %518 = arith.index_cast %461 : i32 to index
    %c0_124 = arith.constant 0 : index
    %c0_125 = arith.constant 0 : index
    %519 = vector.load %arg2[%518, %c0_124, %c0_125] : memref<8x2x128xbf16, #tpu.memory_space<vmem>>, vector<1x2x128xbf16>
    %520 = vector.shape_cast %519 : vector<1x2x128xbf16> to vector<2x128xbf16>
    %521 = arith.extf %520 : vector<2x128xbf16> to vector<2x128xf32>
    %522 = arith.truncf %446 : vector<2x32xf32> to vector<2x32xbf16>
    %cst_126 = arith.constant dense<0.000000e+00> : vector<2x128xf32>
    %523 = tpu.matmul %522, %4, %cst_126 {dimension_numbers = #tpu.dot_dimension_numbers<[1], [0], [0], [1], [0, 0, 1, 1], [], []>} : vector<2x32xbf16>, vector<32x128xbf16>, vector<2x128xf32> -> vector<2x128xf32>
    %524 = arith.addf %521, %523 : vector<2x128xf32>
    %525 = vector.extract_strided_slice %524 {offsets = [0, 0], sizes = [2, 32], strides = [1, 1]} : vector<2x128xf32> to vector<2x32xf32>
    %526 = arith.negf %525 : vector<2x32xf32>
    %527 = math.exp %526 : vector<2x32xf32>
    %cst_127 = arith.constant 1.000000e+00 : f32
    %528 = vector.broadcast %cst_127 : f32 to vector<2x32xf32>
    %529 = arith.addf %528, %527 : vector<2x32xf32>
    %530 = arith.divf %528, %529 : vector<2x32xf32>
    %531 = vector.extract_strided_slice %524 {offsets = [0, 32], sizes = [2, 32], strides = [1, 1]} : vector<2x128xf32> to vector<2x32xf32>
    %532 = arith.negf %531 : vector<2x32xf32>
    %533 = math.exp %532 : vector<2x32xf32>
    %cst_128 = arith.constant 1.000000e+00 : f32
    %534 = vector.broadcast %cst_128 : f32 to vector<2x32xf32>
    %535 = arith.addf %534, %533 : vector<2x32xf32>
    %536 = arith.divf %534, %535 : vector<2x32xf32>
    %537 = vector.extract_strided_slice %524 {offsets = [0, 64], sizes = [2, 32], strides = [1, 1]} : vector<2x128xf32> to vector<2x32xf32>
    %538 = math.tanh %537 : vector<2x32xf32>
    %539 = vector.extract_strided_slice %524 {offsets = [0, 96], sizes = [2, 32], strides = [1, 1]} : vector<2x128xf32> to vector<2x32xf32>
    %540 = arith.negf %539 : vector<2x32xf32>
    %541 = math.exp %540 : vector<2x32xf32>
    %cst_129 = arith.constant 1.000000e+00 : f32
    %542 = vector.broadcast %cst_129 : f32 to vector<2x32xf32>
    %543 = arith.addf %542, %541 : vector<2x32xf32>
    %544 = arith.divf %542, %543 : vector<2x32xf32>
    %545 = arith.mulf %536, %453 : vector<2x32xf32>
    %546 = arith.mulf %530, %538 : vector<2x32xf32>
    %547 = arith.addf %545, %546 : vector<2x32xf32>
    %548 = math.tanh %547 : vector<2x32xf32>
    %549 = arith.mulf %544, %548 : vector<2x32xf32>
    %550 = arith.index_cast %461 : i32 to index
    %c0_130 = arith.constant 0 : index
    %c0_131 = arith.constant 0 : index
    %551 = vector.load %arg4[%550, %c0_130, %c0_131] : memref<8x2x1xf32, #tpu.memory_space<vmem>>, vector<1x2x1xf32>
    %552 = vector.shape_cast %551 : vector<1x2x1xf32> to vector<2x1xf32>
    %553 = vector.broadcast %552 : vector<2x1xf32> to vector<2x32xf32>
    %554 = arith.mulf %553, %549 : vector<2x32xf32>
    %cst_132 = arith.constant 1.000000e+00 : f32
    %555 = vector.broadcast %cst_132 : f32 to vector<2x1xf32>
    %556 = arith.subf %555, %552 : vector<2x1xf32>
    %557 = vector.broadcast %556 : vector<2x1xf32> to vector<2x32xf32>
    %558 = arith.mulf %557, %446 : vector<2x32xf32>
    %559 = arith.addf %554, %558 : vector<2x32xf32>
    %560 = vector.broadcast %552 : vector<2x1xf32> to vector<2x32xf32>
    %561 = arith.mulf %560, %547 : vector<2x32xf32>
    %cst_133 = arith.constant 1.000000e+00 : f32
    %562 = vector.broadcast %cst_133 : f32 to vector<2x1xf32>
    %563 = arith.subf %562, %552 : vector<2x1xf32>
    %564 = vector.broadcast %563 : vector<2x1xf32> to vector<2x32xf32>
    %565 = arith.mulf %564, %453 : vector<2x32xf32>
    %566 = arith.addf %561, %565 : vector<2x32xf32>
    %567 = vector.broadcast %552 : vector<2x1xf32> to vector<2x32xf32>
    %568 = arith.mulf %559, %567 : vector<2x32xf32>
    %569 = arith.truncf %568 : vector<2x32xf32> to vector<2x32xbf16>
    %570 = arith.index_cast %461 : i32 to index
    %c0_134 = arith.constant 0 : index
    %c0_135 = arith.constant 0 : index
    %571 = vector.load %arg8[%570, %c0_134, %c0_135] : memref<8x2x32xbf16, #tpu.memory_space<vmem>>, vector<1x2x32xbf16>
    %572 = vector.shape_cast %571 : vector<1x2x32xbf16> to vector<2x32xbf16>
    %573 = vector.shape_cast %569 : vector<2x32xbf16> to vector<1x2x32xbf16>
    tpu.vector_store %arg8[%570, %c0_134, %c0_135], %573 {strides = array<i32>} : memref<8x2x32xbf16, #tpu.memory_space<vmem>>, vector<1x2x32xbf16>,
    %c5_i32 = arith.constant 5 : i32
    %c7_i32_136 = arith.constant 7 : i32
    %574 = arith.subi %c7_i32_136, %c5_i32 : i32
    %575 = arith.index_cast %c5_i32 : i32 to index
    %c0_137 = arith.constant 0 : index
    %c0_138 = arith.constant 0 : index
    %576 = vector.load %arg1[%575, %c0_137, %c0_138] : memref<8x2x128xbf16, #tpu.memory_space<vmem>>, vector<1x2x128xbf16>
    %577 = vector.shape_cast %576 : vector<1x2x128xbf16> to vector<2x128xbf16>
    %578 = arith.extf %577 : vector<2x128xbf16> to vector<2x128xf32>
    %579 = arith.truncf %503 : vector<2x32xf32> to vector<2x32xbf16>
    %cst_139 = arith.constant dense<0.000000e+00> : vector<2x128xf32>
    %580 = tpu.matmul %579, %3, %cst_139 {dimension_numbers = #tpu.dot_dimension_numbers<[1], [0], [0], [1], [0, 0, 1, 1], [], []>} : vector<2x32xbf16>, vector<32x128xbf16>, vector<2x128xf32> -> vector<2x128xf32>
    %581 = arith.addf %578, %580 : vector<2x128xf32>
    %582 = vector.extract_strided_slice %581 {offsets = [0, 0], sizes = [2, 32], strides = [1, 1]} : vector<2x128xf32> to vector<2x32xf32>
    %583 = arith.negf %582 : vector<2x32xf32>
    %584 = math.exp %583 : vector<2x32xf32>
    %cst_140 = arith.constant 1.000000e+00 : f32
    %585 = vector.broadcast %cst_140 : f32 to vector<2x32xf32>
    %586 = arith.addf %585, %584 : vector<2x32xf32>
    %587 = arith.divf %585, %586 : vector<2x32xf32>
    %588 = vector.extract_strided_slice %581 {offsets = [0, 32], sizes = [2, 32], strides = [1, 1]} : vector<2x128xf32> to vector<2x32xf32>
    %589 = arith.negf %588 : vector<2x32xf32>
    %590 = math.exp %589 : vector<2x32xf32>
    %cst_141 = arith.constant 1.000000e+00 : f32
    %591 = vector.broadcast %cst_141 : f32 to vector<2x32xf32>
    %592 = arith.addf %591, %590 : vector<2x32xf32>
    %593 = arith.divf %591, %592 : vector<2x32xf32>
    %594 = vector.extract_strided_slice %581 {offsets = [0, 64], sizes = [2, 32], strides = [1, 1]} : vector<2x128xf32> to vector<2x32xf32>
    %595 = math.tanh %594 : vector<2x32xf32>
    %596 = vector.extract_strided_slice %581 {offsets = [0, 96], sizes = [2, 32], strides = [1, 1]} : vector<2x128xf32> to vector<2x32xf32>
    %597 = arith.negf %596 : vector<2x32xf32>
    %598 = math.exp %597 : vector<2x32xf32>
    %cst_142 = arith.constant 1.000000e+00 : f32
    %599 = vector.broadcast %cst_142 : f32 to vector<2x32xf32>
    %600 = arith.addf %599, %598 : vector<2x32xf32>
    %601 = arith.divf %599, %600 : vector<2x32xf32>
    %602 = arith.mulf %593, %510 : vector<2x32xf32>
    %603 = arith.mulf %587, %595 : vector<2x32xf32>
    %604 = arith.addf %602, %603 : vector<2x32xf32>
    %605 = math.tanh %604 : vector<2x32xf32>
    %606 = arith.mulf %601, %605 : vector<2x32xf32>
    %607 = arith.index_cast %c5_i32 : i32 to index
    %c0_143 = arith.constant 0 : index
    %c0_144 = arith.constant 0 : index
    %608 = vector.load %arg3[%607, %c0_143, %c0_144] : memref<8x2x1xf32, #tpu.memory_space<vmem>>, vector<1x2x1xf32>
    %609 = vector.shape_cast %608 : vector<1x2x1xf32> to vector<2x1xf32>
    %610 = vector.broadcast %609 : vector<2x1xf32> to vector<2x32xf32>
    %611 = arith.mulf %610, %606 : vector<2x32xf32>
    %cst_145 = arith.constant 1.000000e+00 : f32
    %612 = vector.broadcast %cst_145 : f32 to vector<2x1xf32>
    %613 = arith.subf %612, %609 : vector<2x1xf32>
    %614 = vector.broadcast %613 : vector<2x1xf32> to vector<2x32xf32>
    %615 = arith.mulf %614, %503 : vector<2x32xf32>
    %616 = arith.addf %611, %615 : vector<2x32xf32>
    %617 = vector.broadcast %609 : vector<2x1xf32> to vector<2x32xf32>
    %618 = arith.mulf %617, %604 : vector<2x32xf32>
    %cst_146 = arith.constant 1.000000e+00 : f32
    %619 = vector.broadcast %cst_146 : f32 to vector<2x1xf32>
    %620 = arith.subf %619, %609 : vector<2x1xf32>
    %621 = vector.broadcast %620 : vector<2x1xf32> to vector<2x32xf32>
    %622 = arith.mulf %621, %510 : vector<2x32xf32>
    %623 = arith.addf %618, %622 : vector<2x32xf32>
    %624 = vector.broadcast %609 : vector<2x1xf32> to vector<2x32xf32>
    %625 = arith.mulf %616, %624 : vector<2x32xf32>
    %626 = arith.truncf %625 : vector<2x32xf32> to vector<2x32xbf16>
    %627 = arith.index_cast %c5_i32 : i32 to index
    %c0_147 = arith.constant 0 : index
    %c0_148 = arith.constant 0 : index
    %628 = vector.load %arg7[%627, %c0_147, %c0_148] : memref<8x2x32xbf16, #tpu.memory_space<vmem>>, vector<1x2x32xbf16>
    %629 = vector.shape_cast %628 : vector<1x2x32xbf16> to vector<2x32xbf16>
    %630 = vector.shape_cast %626 : vector<2x32xbf16> to vector<1x2x32xbf16>
    tpu.vector_store %arg7[%627, %c0_147, %c0_148], %630 {strides = array<i32>} : memref<8x2x32xbf16, #tpu.memory_space<vmem>>, vector<1x2x32xbf16>,
    %631 = arith.index_cast %574 : i32 to index
    %c0_149 = arith.constant 0 : index
    %c0_150 = arith.constant 0 : index
    %632 = vector.load %arg2[%631, %c0_149, %c0_150] : memref<8x2x128xbf16, #tpu.memory_space<vmem>>, vector<1x2x128xbf16>
    %633 = vector.shape_cast %632 : vector<1x2x128xbf16> to vector<2x128xbf16>
    %634 = arith.extf %633 : vector<2x128xbf16> to vector<2x128xf32>
    %635 = arith.truncf %559 : vector<2x32xf32> to vector<2x32xbf16>
    %cst_151 = arith.constant dense<0.000000e+00> : vector<2x128xf32>
    %636 = tpu.matmul %635, %4, %cst_151 {dimension_numbers = #tpu.dot_dimension_numbers<[1], [0], [0], [1], [0, 0, 1, 1], [], []>} : vector<2x32xbf16>, vector<32x128xbf16>, vector<2x128xf32> -> vector<2x128xf32>
    %637 = arith.addf %634, %636 : vector<2x128xf32>
    %638 = vector.extract_strided_slice %637 {offsets = [0, 0], sizes = [2, 32], strides = [1, 1]} : vector<2x128xf32> to vector<2x32xf32>
    %639 = arith.negf %638 : vector<2x32xf32>
    %640 = math.exp %639 : vector<2x32xf32>
    %cst_152 = arith.constant 1.000000e+00 : f32
    %641 = vector.broadcast %cst_152 : f32 to vector<2x32xf32>
    %642 = arith.addf %641, %640 : vector<2x32xf32>
    %643 = arith.divf %641, %642 : vector<2x32xf32>
    %644 = vector.extract_strided_slice %637 {offsets = [0, 32], sizes = [2, 32], strides = [1, 1]} : vector<2x128xf32> to vector<2x32xf32>
    %645 = arith.negf %644 : vector<2x32xf32>
    %646 = math.exp %645 : vector<2x32xf32>
    %cst_153 = arith.constant 1.000000e+00 : f32
    %647 = vector.broadcast %cst_153 : f32 to vector<2x32xf32>
    %648 = arith.addf %647, %646 : vector<2x32xf32>
    %649 = arith.divf %647, %648 : vector<2x32xf32>
    %650 = vector.extract_strided_slice %637 {offsets = [0, 64], sizes = [2, 32], strides = [1, 1]} : vector<2x128xf32> to vector<2x32xf32>
    %651 = math.tanh %650 : vector<2x32xf32>
    %652 = vector.extract_strided_slice %637 {offsets = [0, 96], sizes = [2, 32], strides = [1, 1]} : vector<2x128xf32> to vector<2x32xf32>
    %653 = arith.negf %652 : vector<2x32xf32>
    %654 = math.exp %653 : vector<2x32xf32>
    %cst_154 = arith.constant 1.000000e+00 : f32
    %655 = vector.broadcast %cst_154 : f32 to vector<2x32xf32>
    %656 = arith.addf %655, %654 : vector<2x32xf32>
    %657 = arith.divf %655, %656 : vector<2x32xf32>
    %658 = arith.mulf %649, %566 : vector<2x32xf32>
    %659 = arith.mulf %643, %651 : vector<2x32xf32>
    %660 = arith.addf %658, %659 : vector<2x32xf32>
    %661 = math.tanh %660 : vector<2x32xf32>
    %662 = arith.mulf %657, %661 : vector<2x32xf32>
    %663 = arith.index_cast %574 : i32 to index
    %c0_155 = arith.constant 0 : index
    %c0_156 = arith.constant 0 : index
    %664 = vector.load %arg4[%663, %c0_155, %c0_156] : memref<8x2x1xf32, #tpu.memory_space<vmem>>, vector<1x2x1xf32>
    %665 = vector.shape_cast %664 : vector<1x2x1xf32> to vector<2x1xf32>
    %666 = vector.broadcast %665 : vector<2x1xf32> to vector<2x32xf32>
    %667 = arith.mulf %666, %662 : vector<2x32xf32>
    %cst_157 = arith.constant 1.000000e+00 : f32
    %668 = vector.broadcast %cst_157 : f32 to vector<2x1xf32>
    %669 = arith.subf %668, %665 : vector<2x1xf32>
    %670 = vector.broadcast %669 : vector<2x1xf32> to vector<2x32xf32>
    %671 = arith.mulf %670, %559 : vector<2x32xf32>
    %672 = arith.addf %667, %671 : vector<2x32xf32>
    %673 = vector.broadcast %665 : vector<2x1xf32> to vector<2x32xf32>
    %674 = arith.mulf %673, %660 : vector<2x32xf32>
    %cst_158 = arith.constant 1.000000e+00 : f32
    %675 = vector.broadcast %cst_158 : f32 to vector<2x1xf32>
    %676 = arith.subf %675, %665 : vector<2x1xf32>
    %677 = vector.broadcast %676 : vector<2x1xf32> to vector<2x32xf32>
    %678 = arith.mulf %677, %566 : vector<2x32xf32>
    %679 = arith.addf %674, %678 : vector<2x32xf32>
    %680 = vector.broadcast %665 : vector<2x1xf32> to vector<2x32xf32>
    %681 = arith.mulf %672, %680 : vector<2x32xf32>
    %682 = arith.truncf %681 : vector<2x32xf32> to vector<2x32xbf16>
    %683 = arith.index_cast %574 : i32 to index
    %c0_159 = arith.constant 0 : index
    %c0_160 = arith.constant 0 : index
    %684 = vector.load %arg8[%683, %c0_159, %c0_160] : memref<8x2x32xbf16, #tpu.memory_space<vmem>>, vector<1x2x32xbf16>
    %685 = vector.shape_cast %684 : vector<1x2x32xbf16> to vector<2x32xbf16>
    %686 = vector.shape_cast %682 : vector<2x32xbf16> to vector<1x2x32xbf16>
    tpu.vector_store %arg8[%683, %c0_159, %c0_160], %686 {strides = array<i32>} : memref<8x2x32xbf16, #tpu.memory_space<vmem>>, vector<1x2x32xbf16>,
    %c6_i32 = arith.constant 6 : i32
    %c7_i32_161 = arith.constant 7 : i32
    %687 = arith.subi %c7_i32_161, %c6_i32 : i32
    %688 = arith.index_cast %c6_i32 : i32 to index
    %c0_162 = arith.constant 0 : index
    %c0_163 = arith.constant 0 : index
    %689 = vector.load %arg1[%688, %c0_162, %c0_163] : memref<8x2x128xbf16, #tpu.memory_space<vmem>>, vector<1x2x128xbf16>
    %690 = vector.shape_cast %689 : vector<1x2x128xbf16> to vector<2x128xbf16>
    %691 = arith.extf %690 : vector<2x128xbf16> to vector<2x128xf32>
    %692 = arith.truncf %616 : vector<2x32xf32> to vector<2x32xbf16>
    %cst_164 = arith.constant dense<0.000000e+00> : vector<2x128xf32>
    %693 = tpu.matmul %692, %3, %cst_164 {dimension_numbers = #tpu.dot_dimension_numbers<[1], [0], [0], [1], [0, 0, 1, 1], [], []>} : vector<2x32xbf16>, vector<32x128xbf16>, vector<2x128xf32> -> vector<2x128xf32>
    %694 = arith.addf %691, %693 : vector<2x128xf32>
    %695 = vector.extract_strided_slice %694 {offsets = [0, 0], sizes = [2, 32], strides = [1, 1]} : vector<2x128xf32> to vector<2x32xf32>
    %696 = arith.negf %695 : vector<2x32xf32>
    %697 = math.exp %696 : vector<2x32xf32>
    %cst_165 = arith.constant 1.000000e+00 : f32
    %698 = vector.broadcast %cst_165 : f32 to vector<2x32xf32>
    %699 = arith.addf %698, %697 : vector<2x32xf32>
    %700 = arith.divf %698, %699 : vector<2x32xf32>
    %701 = vector.extract_strided_slice %694 {offsets = [0, 32], sizes = [2, 32], strides = [1, 1]} : vector<2x128xf32> to vector<2x32xf32>
    %702 = arith.negf %701 : vector<2x32xf32>
    %703 = math.exp %702 : vector<2x32xf32>
    %cst_166 = arith.constant 1.000000e+00 : f32
    %704 = vector.broadcast %cst_166 : f32 to vector<2x32xf32>
    %705 = arith.addf %704, %703 : vector<2x32xf32>
    %706 = arith.divf %704, %705 : vector<2x32xf32>
    %707 = vector.extract_strided_slice %694 {offsets = [0, 64], sizes = [2, 32], strides = [1, 1]} : vector<2x128xf32> to vector<2x32xf32>
    %708 = math.tanh %707 : vector<2x32xf32>
    %709 = vector.extract_strided_slice %694 {offsets = [0, 96], sizes = [2, 32], strides = [1, 1]} : vector<2x128xf32> to vector<2x32xf32>
    %710 = arith.negf %709 : vector<2x32xf32>
    %711 = math.exp %710 : vector<2x32xf32>
    %cst_167 = arith.constant 1.000000e+00 : f32
    %712 = vector.broadcast %cst_167 : f32 to vector<2x32xf32>
    %713 = arith.addf %712, %711 : vector<2x32xf32>
    %714 = arith.divf %712, %713 : vector<2x32xf32>
    %715 = arith.mulf %706, %623 : vector<2x32xf32>
    %716 = arith.mulf %700, %708 : vector<2x32xf32>
    %717 = arith.addf %715, %716 : vector<2x32xf32>
    %718 = math.tanh %717 : vector<2x32xf32>
    %719 = arith.mulf %714, %718 : vector<2x32xf32>
    %720 = arith.index_cast %c6_i32 : i32 to index
    %c0_168 = arith.constant 0 : index
    %c0_169 = arith.constant 0 : index
    %721 = vector.load %arg3[%720, %c0_168, %c0_169] : memref<8x2x1xf32, #tpu.memory_space<vmem>>, vector<1x2x1xf32>
    %722 = vector.shape_cast %721 : vector<1x2x1xf32> to vector<2x1xf32>
    %723 = vector.broadcast %722 : vector<2x1xf32> to vector<2x32xf32>
    %724 = arith.mulf %723, %719 : vector<2x32xf32>
    %cst_170 = arith.constant 1.000000e+00 : f32
    %725 = vector.broadcast %cst_170 : f32 to vector<2x1xf32>
    %726 = arith.subf %725, %722 : vector<2x1xf32>
    %727 = vector.broadcast %726 : vector<2x1xf32> to vector<2x32xf32>
    %728 = arith.mulf %727, %616 : vector<2x32xf32>
    %729 = arith.addf %724, %728 : vector<2x32xf32>
    %730 = vector.broadcast %722 : vector<2x1xf32> to vector<2x32xf32>
    %731 = arith.mulf %730, %717 : vector<2x32xf32>
    %cst_171 = arith.constant 1.000000e+00 : f32
    %732 = vector.broadcast %cst_171 : f32 to vector<2x1xf32>
    %733 = arith.subf %732, %722 : vector<2x1xf32>
    %734 = vector.broadcast %733 : vector<2x1xf32> to vector<2x32xf32>
    %735 = arith.mulf %734, %623 : vector<2x32xf32>
    %736 = arith.addf %731, %735 : vector<2x32xf32>
    %737 = vector.broadcast %722 : vector<2x1xf32> to vector<2x32xf32>
    %738 = arith.mulf %729, %737 : vector<2x32xf32>
    %739 = arith.truncf %738 : vector<2x32xf32> to vector<2x32xbf16>
    %740 = arith.index_cast %c6_i32 : i32 to index
    %c0_172 = arith.constant 0 : index
    %c0_173 = arith.constant 0 : index
    %741 = vector.load %arg7[%740, %c0_172, %c0_173] : memref<8x2x32xbf16, #tpu.memory_space<vmem>>, vector<1x2x32xbf16>
    %742 = vector.shape_cast %741 : vector<1x2x32xbf16> to vector<2x32xbf16>
    %743 = vector.shape_cast %739 : vector<2x32xbf16> to vector<1x2x32xbf16>
    tpu.vector_store %arg7[%740, %c0_172, %c0_173], %743 {strides = array<i32>} : memref<8x2x32xbf16, #tpu.memory_space<vmem>>, vector<1x2x32xbf16>,
    %744 = arith.index_cast %687 : i32 to index
    %c0_174 = arith.constant 0 : index
    %c0_175 = arith.constant 0 : index
    %745 = vector.load %arg2[%744, %c0_174, %c0_175] : memref<8x2x128xbf16, #tpu.memory_space<vmem>>, vector<1x2x128xbf16>
    %746 = vector.shape_cast %745 : vector<1x2x128xbf16> to vector<2x128xbf16>
    %747 = arith.extf %746 : vector<2x128xbf16> to vector<2x128xf32>
    %748 = arith.truncf %672 : vector<2x32xf32> to vector<2x32xbf16>
    %cst_176 = arith.constant dense<0.000000e+00> : vector<2x128xf32>
    %749 = tpu.matmul %748, %4, %cst_176 {dimension_numbers = #tpu.dot_dimension_numbers<[1], [0], [0], [1], [0, 0, 1, 1], [], []>} : vector<2x32xbf16>, vector<32x128xbf16>, vector<2x128xf32> -> vector<2x128xf32>
    %750 = arith.addf %747, %749 : vector<2x128xf32>
    %751 = vector.extract_strided_slice %750 {offsets = [0, 0], sizes = [2, 32], strides = [1, 1]} : vector<2x128xf32> to vector<2x32xf32>
    %752 = arith.negf %751 : vector<2x32xf32>
    %753 = math.exp %752 : vector<2x32xf32>
    %cst_177 = arith.constant 1.000000e+00 : f32
    %754 = vector.broadcast %cst_177 : f32 to vector<2x32xf32>
    %755 = arith.addf %754, %753 : vector<2x32xf32>
    %756 = arith.divf %754, %755 : vector<2x32xf32>
    %757 = vector.extract_strided_slice %750 {offsets = [0, 32], sizes = [2, 32], strides = [1, 1]} : vector<2x128xf32> to vector<2x32xf32>
    %758 = arith.negf %757 : vector<2x32xf32>
    %759 = math.exp %758 : vector<2x32xf32>
    %cst_178 = arith.constant 1.000000e+00 : f32
    %760 = vector.broadcast %cst_178 : f32 to vector<2x32xf32>
    %761 = arith.addf %760, %759 : vector<2x32xf32>
    %762 = arith.divf %760, %761 : vector<2x32xf32>
    %763 = vector.extract_strided_slice %750 {offsets = [0, 64], sizes = [2, 32], strides = [1, 1]} : vector<2x128xf32> to vector<2x32xf32>
    %764 = math.tanh %763 : vector<2x32xf32>
    %765 = vector.extract_strided_slice %750 {offsets = [0, 96], sizes = [2, 32], strides = [1, 1]} : vector<2x128xf32> to vector<2x32xf32>
    %766 = arith.negf %765 : vector<2x32xf32>
    %767 = math.exp %766 : vector<2x32xf32>
    %cst_179 = arith.constant 1.000000e+00 : f32
    %768 = vector.broadcast %cst_179 : f32 to vector<2x32xf32>
    %769 = arith.addf %768, %767 : vector<2x32xf32>
    %770 = arith.divf %768, %769 : vector<2x32xf32>
    %771 = arith.mulf %762, %679 : vector<2x32xf32>
    %772 = arith.mulf %756, %764 : vector<2x32xf32>
    %773 = arith.addf %771, %772 : vector<2x32xf32>
    %774 = math.tanh %773 : vector<2x32xf32>
    %775 = arith.mulf %770, %774 : vector<2x32xf32>
    %776 = arith.index_cast %687 : i32 to index
    %c0_180 = arith.constant 0 : index
    %c0_181 = arith.constant 0 : index
    %777 = vector.load %arg4[%776, %c0_180, %c0_181] : memref<8x2x1xf32, #tpu.memory_space<vmem>>, vector<1x2x1xf32>
    %778 = vector.shape_cast %777 : vector<1x2x1xf32> to vector<2x1xf32>
    %779 = vector.broadcast %778 : vector<2x1xf32> to vector<2x32xf32>
    %780 = arith.mulf %779, %775 : vector<2x32xf32>
    %cst_182 = arith.constant 1.000000e+00 : f32
    %781 = vector.broadcast %cst_182 : f32 to vector<2x1xf32>
    %782 = arith.subf %781, %778 : vector<2x1xf32>
    %783 = vector.broadcast %782 : vector<2x1xf32> to vector<2x32xf32>
    %784 = arith.mulf %783, %672 : vector<2x32xf32>
    %785 = arith.addf %780, %784 : vector<2x32xf32>
    %786 = vector.broadcast %778 : vector<2x1xf32> to vector<2x32xf32>
    %787 = arith.mulf %786, %773 : vector<2x32xf32>
    %cst_183 = arith.constant 1.000000e+00 : f32
    %788 = vector.broadcast %cst_183 : f32 to vector<2x1xf32>
    %789 = arith.subf %788, %778 : vector<2x1xf32>
    %790 = vector.broadcast %789 : vector<2x1xf32> to vector<2x32xf32>
    %791 = arith.mulf %790, %679 : vector<2x32xf32>
    %792 = arith.addf %787, %791 : vector<2x32xf32>
    %793 = vector.broadcast %778 : vector<2x1xf32> to vector<2x32xf32>
    %794 = arith.mulf %785, %793 : vector<2x32xf32>
    %795 = arith.truncf %794 : vector<2x32xf32> to vector<2x32xbf16>
    %796 = arith.index_cast %687 : i32 to index
    %c0_184 = arith.constant 0 : index
    %c0_185 = arith.constant 0 : index
    %797 = vector.load %arg8[%796, %c0_184, %c0_185] : memref<8x2x32xbf16, #tpu.memory_space<vmem>>, vector<1x2x32xbf16>
    %798 = vector.shape_cast %797 : vector<1x2x32xbf16> to vector<2x32xbf16>
    %799 = vector.shape_cast %795 : vector<2x32xbf16> to vector<1x2x32xbf16>
    tpu.vector_store %arg8[%796, %c0_184, %c0_185], %799 {strides = array<i32>} : memref<8x2x32xbf16, #tpu.memory_space<vmem>>, vector<1x2x32xbf16>,
    %c7_i32_186 = arith.constant 7 : i32
    %c7_i32_187 = arith.constant 7 : i32
    %800 = arith.subi %c7_i32_187, %c7_i32_186 : i32
    %801 = arith.index_cast %c7_i32_186 : i32 to index
    %c0_188 = arith.constant 0 : index
    %c0_189 = arith.constant 0 : index
    %802 = vector.load %arg1[%801, %c0_188, %c0_189] : memref<8x2x128xbf16, #tpu.memory_space<vmem>>, vector<1x2x128xbf16>
    %803 = vector.shape_cast %802 : vector<1x2x128xbf16> to vector<2x128xbf16>
    %804 = arith.extf %803 : vector<2x128xbf16> to vector<2x128xf32>
    %805 = arith.truncf %729 : vector<2x32xf32> to vector<2x32xbf16>
    %cst_190 = arith.constant dense<0.000000e+00> : vector<2x128xf32>
    %806 = tpu.matmul %805, %3, %cst_190 {dimension_numbers = #tpu.dot_dimension_numbers<[1], [0], [0], [1], [0, 0, 1, 1], [], []>} : vector<2x32xbf16>, vector<32x128xbf16>, vector<2x128xf32> -> vector<2x128xf32>
    %807 = arith.addf %804, %806 : vector<2x128xf32>
    %808 = vector.extract_strided_slice %807 {offsets = [0, 0], sizes = [2, 32], strides = [1, 1]} : vector<2x128xf32> to vector<2x32xf32>
    %809 = arith.negf %808 : vector<2x32xf32>
    %810 = math.exp %809 : vector<2x32xf32>
    %cst_191 = arith.constant 1.000000e+00 : f32
    %811 = vector.broadcast %cst_191 : f32 to vector<2x32xf32>
    %812 = arith.addf %811, %810 : vector<2x32xf32>
    %813 = arith.divf %811, %812 : vector<2x32xf32>
    %814 = vector.extract_strided_slice %807 {offsets = [0, 32], sizes = [2, 32], strides = [1, 1]} : vector<2x128xf32> to vector<2x32xf32>
    %815 = arith.negf %814 : vector<2x32xf32>
    %816 = math.exp %815 : vector<2x32xf32>
    %cst_192 = arith.constant 1.000000e+00 : f32
    %817 = vector.broadcast %cst_192 : f32 to vector<2x32xf32>
    %818 = arith.addf %817, %816 : vector<2x32xf32>
    %819 = arith.divf %817, %818 : vector<2x32xf32>
    %820 = vector.extract_strided_slice %807 {offsets = [0, 64], sizes = [2, 32], strides = [1, 1]} : vector<2x128xf32> to vector<2x32xf32>
    %821 = math.tanh %820 : vector<2x32xf32>
    %822 = vector.extract_strided_slice %807 {offsets = [0, 96], sizes = [2, 32], strides = [1, 1]} : vector<2x128xf32> to vector<2x32xf32>
    %823 = arith.negf %822 : vector<2x32xf32>
    %824 = math.exp %823 : vector<2x32xf32>
    %cst_193 = arith.constant 1.000000e+00 : f32
    %825 = vector.broadcast %cst_193 : f32 to vector<2x32xf32>
    %826 = arith.addf %825, %824 : vector<2x32xf32>
    %827 = arith.divf %825, %826 : vector<2x32xf32>
    %828 = arith.mulf %819, %736 : vector<2x32xf32>
    %829 = arith.mulf %813, %821 : vector<2x32xf32>
    %830 = arith.addf %828, %829 : vector<2x32xf32>
    %831 = math.tanh %830 : vector<2x32xf32>
    %832 = arith.mulf %827, %831 : vector<2x32xf32>
    %833 = arith.index_cast %c7_i32_186 : i32 to index
    %c0_194 = arith.constant 0 : index
    %c0_195 = arith.constant 0 : index
    %834 = vector.load %arg3[%833, %c0_194, %c0_195] : memref<8x2x1xf32, #tpu.memory_space<vmem>>, vector<1x2x1xf32>
    %835 = vector.shape_cast %834 : vector<1x2x1xf32> to vector<2x1xf32>
    %836 = vector.broadcast %835 : vector<2x1xf32> to vector<2x32xf32>
    %837 = arith.mulf %836, %832 : vector<2x32xf32>
    %cst_196 = arith.constant 1.000000e+00 : f32
    %838 = vector.broadcast %cst_196 : f32 to vector<2x1xf32>
    %839 = arith.subf %838, %835 : vector<2x1xf32>
    %840 = vector.broadcast %839 : vector<2x1xf32> to vector<2x32xf32>
    %841 = arith.mulf %840, %729 : vector<2x32xf32>
    %842 = arith.addf %837, %841 : vector<2x32xf32>
    %843 = vector.broadcast %835 : vector<2x1xf32> to vector<2x32xf32>
    %844 = arith.mulf %843, %830 : vector<2x32xf32>
    %cst_197 = arith.constant 1.000000e+00 : f32
    %845 = vector.broadcast %cst_197 : f32 to vector<2x1xf32>
    %846 = arith.subf %845, %835 : vector<2x1xf32>
    %847 = vector.broadcast %846 : vector<2x1xf32> to vector<2x32xf32>
    %848 = arith.mulf %847, %736 : vector<2x32xf32>
    %849 = arith.addf %844, %848 : vector<2x32xf32>
    %850 = vector.broadcast %835 : vector<2x1xf32> to vector<2x32xf32>
    %851 = arith.mulf %842, %850 : vector<2x32xf32>
    %852 = arith.truncf %851 : vector<2x32xf32> to vector<2x32xbf16>
    %853 = arith.index_cast %c7_i32_186 : i32 to index
    %c0_198 = arith.constant 0 : index
    %c0_199 = arith.constant 0 : index
    %854 = vector.load %arg7[%853, %c0_198, %c0_199] : memref<8x2x32xbf16, #tpu.memory_space<vmem>>, vector<1x2x32xbf16>
    %855 = vector.shape_cast %854 : vector<1x2x32xbf16> to vector<2x32xbf16>
    %856 = vector.shape_cast %852 : vector<2x32xbf16> to vector<1x2x32xbf16>
    tpu.vector_store %arg7[%853, %c0_198, %c0_199], %856 {strides = array<i32>} : memref<8x2x32xbf16, #tpu.memory_space<vmem>>, vector<1x2x32xbf16>,
    %857 = arith.index_cast %800 : i32 to index
    %c0_200 = arith.constant 0 : index
    %c0_201 = arith.constant 0 : index
    %858 = vector.load %arg2[%857, %c0_200, %c0_201] : memref<8x2x128xbf16, #tpu.memory_space<vmem>>, vector<1x2x128xbf16>
    %859 = vector.shape_cast %858 : vector<1x2x128xbf16> to vector<2x128xbf16>
    %860 = arith.extf %859 : vector<2x128xbf16> to vector<2x128xf32>
    %861 = arith.truncf %785 : vector<2x32xf32> to vector<2x32xbf16>
    %cst_202 = arith.constant dense<0.000000e+00> : vector<2x128xf32>
    %862 = tpu.matmul %861, %4, %cst_202 {dimension_numbers = #tpu.dot_dimension_numbers<[1], [0], [0], [1], [0, 0, 1, 1], [], []>} : vector<2x32xbf16>, vector<32x128xbf16>, vector<2x128xf32> -> vector<2x128xf32>
    %863 = arith.addf %860, %862 : vector<2x128xf32>
    %864 = vector.extract_strided_slice %863 {offsets = [0, 0], sizes = [2, 32], strides = [1, 1]} : vector<2x128xf32> to vector<2x32xf32>
    %865 = arith.negf %864 : vector<2x32xf32>
    %866 = math.exp %865 : vector<2x32xf32>
    %cst_203 = arith.constant 1.000000e+00 : f32
    %867 = vector.broadcast %cst_203 : f32 to vector<2x32xf32>
    %868 = arith.addf %867, %866 : vector<2x32xf32>
    %869 = arith.divf %867, %868 : vector<2x32xf32>
    %870 = vector.extract_strided_slice %863 {offsets = [0, 32], sizes = [2, 32], strides = [1, 1]} : vector<2x128xf32> to vector<2x32xf32>
    %871 = arith.negf %870 : vector<2x32xf32>
    %872 = math.exp %871 : vector<2x32xf32>
    %cst_204 = arith.constant 1.000000e+00 : f32
    %873 = vector.broadcast %cst_204 : f32 to vector<2x32xf32>
    %874 = arith.addf %873, %872 : vector<2x32xf32>
    %875 = arith.divf %873, %874 : vector<2x32xf32>
    %876 = vector.extract_strided_slice %863 {offsets = [0, 64], sizes = [2, 32], strides = [1, 1]} : vector<2x128xf32> to vector<2x32xf32>
    %877 = math.tanh %876 : vector<2x32xf32>
    %878 = vector.extract_strided_slice %863 {offsets = [0, 96], sizes = [2, 32], strides = [1, 1]} : vector<2x128xf32> to vector<2x32xf32>
    %879 = arith.negf %878 : vector<2x32xf32>
    %880 = math.exp %879 : vector<2x32xf32>
    %cst_205 = arith.constant 1.000000e+00 : f32
    %881 = vector.broadcast %cst_205 : f32 to vector<2x32xf32>
    %882 = arith.addf %881, %880 : vector<2x32xf32>
    %883 = arith.divf %881, %882 : vector<2x32xf32>
    %884 = arith.mulf %875, %792 : vector<2x32xf32>
    %885 = arith.mulf %869, %877 : vector<2x32xf32>
    %886 = arith.addf %884, %885 : vector<2x32xf32>
    %887 = math.tanh %886 : vector<2x32xf32>
    %888 = arith.mulf %883, %887 : vector<2x32xf32>
    %889 = arith.index_cast %800 : i32 to index
    %c0_206 = arith.constant 0 : index
    %c0_207 = arith.constant 0 : index
    %890 = vector.load %arg4[%889, %c0_206, %c0_207] : memref<8x2x1xf32, #tpu.memory_space<vmem>>, vector<1x2x1xf32>
    %891 = vector.shape_cast %890 : vector<1x2x1xf32> to vector<2x1xf32>
    %892 = vector.broadcast %891 : vector<2x1xf32> to vector<2x32xf32>
    %893 = arith.mulf %892, %888 : vector<2x32xf32>
    %cst_208 = arith.constant 1.000000e+00 : f32
    %894 = vector.broadcast %cst_208 : f32 to vector<2x1xf32>
    %895 = arith.subf %894, %891 : vector<2x1xf32>
    %896 = vector.broadcast %895 : vector<2x1xf32> to vector<2x32xf32>
    %897 = arith.mulf %896, %785 : vector<2x32xf32>
    %898 = arith.addf %893, %897 : vector<2x32xf32>
    %899 = vector.broadcast %891 : vector<2x1xf32> to vector<2x32xf32>
    %900 = arith.mulf %899, %886 : vector<2x32xf32>
    %cst_209 = arith.constant 1.000000e+00 : f32
    %901 = vector.broadcast %cst_209 : f32 to vector<2x1xf32>
    %902 = arith.subf %901, %891 : vector<2x1xf32>
    %903 = vector.broadcast %902 : vector<2x1xf32> to vector<2x32xf32>
    %904 = arith.mulf %903, %792 : vector<2x32xf32>
    %905 = arith.addf %900, %904 : vector<2x32xf32>
    %906 = vector.broadcast %891 : vector<2x1xf32> to vector<2x32xf32>
    %907 = arith.mulf %898, %906 : vector<2x32xf32>
    %908 = arith.truncf %907 : vector<2x32xf32> to vector<2x32xbf16>
    %909 = arith.index_cast %800 : i32 to index
    %c0_210 = arith.constant 0 : index
    %c0_211 = arith.constant 0 : index
    %910 = vector.load %arg8[%909, %c0_210, %c0_211] : memref<8x2x32xbf16, #tpu.memory_space<vmem>>, vector<1x2x32xbf16>
    %911 = vector.shape_cast %910 : vector<1x2x32xbf16> to vector<2x32xbf16>
    %912 = vector.shape_cast %908 : vector<2x32xbf16> to vector<1x2x32xbf16>
    tpu.vector_store %arg8[%909, %c0_210, %c0_211], %912 {strides = array<i32>} : memref<8x2x32xbf16, #tpu.memory_space<vmem>>, vector<1x2x32xbf16>,
    %c8_i32 = arith.constant 8 : i32
    %c0_212 = arith.constant 0 : index
    %c0_213 = arith.constant 0 : index
    %913 = vector.load %arg10[%c0_212, %c0_213] : memref<2x32xf32, #tpu.memory_space<vmem>>, vector<2x32xf32>
    tpu.vector_store %arg10[%c0_212, %c0_213], %842 {strides = array<i32>} : memref<2x32xf32, #tpu.memory_space<vmem>>, vector<2x32xf32>,
    %c0_214 = arith.constant 0 : index
    %c0_215 = arith.constant 0 : index
    %914 = vector.load %arg11[%c0_214, %c0_215] : memref<2x32xf32, #tpu.memory_space<vmem>>, vector<2x32xf32>
    tpu.vector_store %arg11[%c0_214, %c0_215], %849 {strides = array<i32>} : memref<2x32xf32, #tpu.memory_space<vmem>>, vector<2x32xf32>,
    %c0_216 = arith.constant 0 : index
    %c0_217 = arith.constant 0 : index
    %915 = vector.load %arg12[%c0_216, %c0_217] : memref<2x32xf32, #tpu.memory_space<vmem>>, vector<2x32xf32>
    tpu.vector_store %arg12[%c0_216, %c0_217], %898 {strides = array<i32>} : memref<2x32xf32, #tpu.memory_space<vmem>>, vector<2x32xf32>,
    %c0_218 = arith.constant 0 : index
    %c0_219 = arith.constant 0 : index
    %916 = vector.load %arg13[%c0_218, %c0_219] : memref<2x32xf32, #tpu.memory_space<vmem>>, vector<2x32xf32>
    tpu.vector_store %arg13[%c0_218, %c0_219], %905 {strides = array<i32>} : memref<2x32xf32, #tpu.memory_space<vmem>>, vector<2x32xf32>,
    %917 = tpu.concatenate %842, %898 in 1 : vector<2x32xf32>, vector<2x32xf32> -> vector<2x64xf32>
    %c0_220 = arith.constant 0 : index
    %c0_221 = arith.constant 0 : index
    %918 = vector.load %arg9[%c0_220, %c0_221] : memref<2x64xf32, #tpu.memory_space<vmem>>, vector<2x64xf32>
    tpu.vector_store %arg9[%c0_220, %c0_221], %917 {strides = array<i32>} : memref<2x64xf32, #tpu.memory_space<vmem>>, vector<2x64xf32>,
    return
  }
  func.func @transform_0(%arg0: i32) -> (i32, i32, i32) {
    %c0_i32 = arith.constant 0 : i32
    %c0_i32_0 = arith.constant 0 : i32
    %c0_i32_1 = arith.constant 0 : i32
    return %arg0, %c0_i32, %c0_i32_0 : i32, i32, i32
  }
  func.func @transform_1(%arg0: i32) -> (i32, i32, i32) {
    %c0_i32 = arith.constant 0 : i32
    %0 = arith.subi %c0_i32, %arg0 : i32
    %c0_i32_0 = arith.constant 0 : i32
    %c0_i32_1 = arith.constant 0 : i32
    %c0_i32_2 = arith.constant 0 : i32
    return %0, %c0_i32_0, %c0_i32_1 : i32, i32, i32
  }
  func.func @transform_2(%arg0: i32) -> (i32, i32, i32) {
    %c0_i32 = arith.constant 0 : i32
    %c0_i32_0 = arith.constant 0 : i32
    %c0_i32_1 = arith.constant 0 : i32
    return %arg0, %c0_i32, %c0_i32_0 : i32, i32, i32
  }
  func.func @transform_3(%arg0: i32) -> (i32, i32, i32) {
    %c0_i32 = arith.constant 0 : i32
    %0 = arith.subi %c0_i32, %arg0 : i32
    %c0_i32_0 = arith.constant 0 : i32
    %c0_i32_1 = arith.constant 0 : i32
    %c0_i32_2 = arith.constant 0 : i32
    return %0, %c0_i32_0, %c0_i32_1 : i32, i32, i32
  }
  func.func @transform_4(%arg0: i32) -> (i32, i32) {
    %c0_i32 = arith.constant 0 : i32
    %c0_i32_0 = arith.constant 0 : i32
    %c0_i32_1 = arith.constant 0 : i32
    return %c0_i32, %c0_i32_0 : i32, i32
  }
  func.func @transform_5(%arg0: i32) -> (i32, i32) {
    %c0_i32 = arith.constant 0 : i32
    %c0_i32_0 = arith.constant 0 : i32
    %c0_i32_1 = arith.constant 0 : i32
    return %c0_i32, %c0_i32_0 : i32, i32
  }
  func.func @transform_6(%arg0: i32) -> (i32, i32, i32) {
    %c0_i32 = arith.constant 0 : i32
    %c0_i32_0 = arith.constant 0 : i32
    %c0_i32_1 = arith.constant 0 : i32
    return %arg0, %c0_i32, %c0_i32_0 : i32, i32, i32
  }
  func.func @transform_7(%arg0: i32) -> (i32, i32, i32) {
    %c0_i32 = arith.constant 0 : i32
    %0 = arith.subi %c0_i32, %arg0 : i32
    %c0_i32_0 = arith.constant 0 : i32
    %c0_i32_1 = arith.constant 0 : i32
    %c0_i32_2 = arith.constant 0 : i32
    return %0, %c0_i32_0, %c0_i32_1 : i32, i32, i32
  }
  func.func @transform_8(%arg0: i32) -> (i32, i32) {
    %c0_i32 = arith.constant 0 : i32
    %c0_i32_0 = arith.constant 0 : i32
    %c0_i32_1 = arith.constant 0 : i32
    return %c0_i32, %c0_i32_0 : i32, i32
  }
}

module attributes {stable_mosaic.version = 11 : i64} {
  func.func @_bilstm_recurrence_kernel(%arg0: i32, %arg1: memref<8x2x128xbf16, #tpu.memory_space<vmem>>, %arg2: memref<8x2x128xbf16, #tpu.memory_space<vmem>>, %arg3: memref<8x2x1xf32, #tpu.memory_space<vmem>>, %arg4: memref<8x2x1xf32, #tpu.memory_space<vmem>>, %arg5: memref<32x128xbf16, #tpu.memory_space<vmem>>, %arg6: memref<32x128xbf16, #tpu.memory_space<vmem>>, %arg7: memref<8x2x32xbf16, #tpu.memory_space<vmem>>, %arg8: memref<8x2x32xbf16, #tpu.memory_space<vmem>>, %arg9: memref<2x64xf32, #tpu.memory_space<vmem>>, %arg10: memref<2x32xf32, #tpu.memory_space<vmem>>, %arg11: memref<2x32xf32, #tpu.memory_space<vmem>>, %arg12: memref<2x32xf32, #tpu.memory_space<vmem>>, %arg13: memref<2x32xf32, #tpu.memory_space<vmem>>) attributes {dimension_semantics = [#tpu.dimension_semantics<arbitrary>], iteration_bounds = array<i64: 1>, scalar_prefetch = 0 : i64, scratch_operands = 4 : i64, tpu.core_type = #tpu.core_type<tc>, window_params = [{transform_indices = @transform_0, window_bounds = array<i64: 8, 2, 128>}, {transform_indices = @transform_1, window_bounds = array<i64: 8, 2, 128>}, {transform_indices = @transform_2, window_bounds = array<i64: 8, 2, 1>}, {transform_indices = @transform_3, window_bounds = array<i64: 8, 2, 1>}, {pipeline_mode = #tpu.pipeline_mode<synchronous>, transform_indices = @transform_4, window_bounds = array<i64: 32, 128>}, {pipeline_mode = #tpu.pipeline_mode<synchronous>, transform_indices = @transform_5, window_bounds = array<i64: 32, 128>}, {transform_indices = @transform_6, window_bounds = array<i64: 8, 2, 32>}, {transform_indices = @transform_7, window_bounds = array<i64: 8, 2, 32>}, {pipeline_mode = #tpu.pipeline_mode<synchronous>, transform_indices = @transform_8, window_bounds = array<i64: 2, 64>}]} {
    %c0_i32 = arith.constant 0 : i32
    %0 = arith.cmpi eq, %arg0, %c0_i32 : i32
    %1 = arith.extui %0 : i1 to i32
    %c0_i32_0 = arith.constant 0 : i32
    %2 = arith.cmpi ne, %1, %c0_i32_0 : i32
    scf.if %2 {
      %cst_222 = arith.constant 0.000000e+00 : f32
      %919 = vector.broadcast %cst_222 : f32 to vector<2x32xf32>
      %c0_223 = arith.constant 0 : index
      %c0_224 = arith.constant 0 : index
      %920 = vector.load %arg10[%c0_223, %c0_224] : memref<2x32xf32, #tpu.memory_space<vmem>>, vector<2x32xf32>
      tpu.vector_store %arg10[%c0_223, %c0_224], %919 {strides = array<i32>} : memref<2x32xf32, #tpu.memory_space<vmem>>, vector<2x32xf32>,
      %cst_225 = arith.constant 0.000000e+00 : f32
      %921 = vector.broadcast %cst_225 : f32 to vector<2x32xf32>
      %c0_226 = arith.constant 0 : index
      %c0_227 = arith.constant 0 : index
      %922 = vector.load %arg11[%c0_226, %c0_227] : memref<2x32xf32, #tpu.memory_space<vmem>>, vector<2x32xf32>
      tpu.vector_store %arg11[%c0_226, %c0_227], %921 {strides = array<i32>} : memref<2x32xf32, #tpu.memory_space<vmem>>, vector<2x32xf32>,
      %cst_228 = arith.constant 0.000000e+00 : f32
      %923 = vector.broadcast %cst_228 : f32 to vector<2x32xf32>
      %c0_229 = arith.constant 0 : index
      %c0_230 = arith.constant 0 : index
      %924 = vector.load %arg12[%c0_229, %c0_230] : memref<2x32xf32, #tpu.memory_space<vmem>>, vector<2x32xf32>
      tpu.vector_store %arg12[%c0_229, %c0_230], %923 {strides = array<i32>} : memref<2x32xf32, #tpu.memory_space<vmem>>, vector<2x32xf32>,
      %cst_231 = arith.constant 0.000000e+00 : f32
      %925 = vector.broadcast %cst_231 : f32 to vector<2x32xf32>
      %c0_232 = arith.constant 0 : index
      %c0_233 = arith.constant 0 : index
      %926 = vector.load %arg13[%c0_232, %c0_233] : memref<2x32xf32, #tpu.memory_space<vmem>>, vector<2x32xf32>
      tpu.vector_store %arg13[%c0_232, %c0_233], %925 {strides = array<i32>} : memref<2x32xf32, #tpu.memory_space<vmem>>, vector<2x32xf32>,
    } else {
    }
    %c0 = arith.constant 0 : index
    %c0_1 = arith.constant 0 : index
    %3 = vector.load %arg5[%c0, %c0_1] : memref<32x128xbf16, #tpu.memory_space<vmem>>, vector<32x128xbf16>
    %c0_2 = arith.constant 0 : index
    %c0_3 = arith.constant 0 : index
    %4 = vector.load %arg6[%c0_2, %c0_3] : memref<32x128xbf16, #tpu.memory_space<vmem>>, vector<32x128xbf16>
    %c0_4 = arith.constant 0 : index
    %c0_5 = arith.constant 0 : index
    %5 = vector.load %arg10[%c0_4, %c0_5] : memref<2x32xf32, #tpu.memory_space<vmem>>, vector<2x32xf32>
    %c0_6 = arith.constant 0 : index
    %c0_7 = arith.constant 0 : index
    %6 = vector.load %arg11[%c0_6, %c0_7] : memref<2x32xf32, #tpu.memory_space<vmem>>, vector<2x32xf32>
    %c0_8 = arith.constant 0 : index
    %c0_9 = arith.constant 0 : index
    %7 = vector.load %arg12[%c0_8, %c0_9] : memref<2x32xf32, #tpu.memory_space<vmem>>, vector<2x32xf32>
    %c0_10 = arith.constant 0 : index
    %c0_11 = arith.constant 0 : index
    %8 = vector.load %arg13[%c0_10, %c0_11] : memref<2x32xf32, #tpu.memory_space<vmem>>, vector<2x32xf32>
    %c0_i32_12 = arith.constant 0 : i32
    %c7_i32 = arith.constant 7 : i32
    %9 = arith.subi %c7_i32, %c0_i32_12 : i32
    %10 = arith.index_cast %c0_i32_12 : i32 to index
    %c0_13 = arith.constant 0 : index
    %c0_14 = arith.constant 0 : index
    %11 = vector.load %arg1[%10, %c0_13, %c0_14] : memref<8x2x128xbf16, #tpu.memory_space<vmem>>, vector<1x2x128xbf16>
    %12 = vector.shape_cast %11 : vector<1x2x128xbf16> to vector<2x128xbf16>
    %13 = arith.extf %12 : vector<2x128xbf16> to vector<2x128xf32>
    %14 = arith.truncf %5 : vector<2x32xf32> to vector<2x32xbf16>
    %cst = arith.constant dense<0.000000e+00> : vector<2x128xf32>
    %15 = tpu.matmul %14, %3, %cst {dimension_numbers = #tpu.dot_dimension_numbers<[1], [0], [0], [1], [0, 0, 1, 1], [], []>} : vector<2x32xbf16>, vector<32x128xbf16>, vector<2x128xf32> -> vector<2x128xf32>
    %16 = arith.addf %13, %15 : vector<2x128xf32>
    %17 = vector.extract_strided_slice %16 {offsets = [0, 0], sizes = [2, 32], strides = [1, 1]} : vector<2x128xf32> to vector<2x32xf32>
    %18 = arith.negf %17 : vector<2x32xf32>
    %19 = math.exp %18 : vector<2x32xf32>
    %cst_15 = arith.constant 1.000000e+00 : f32
    %20 = vector.broadcast %cst_15 : f32 to vector<2x32xf32>
    %21 = arith.addf %20, %19 : vector<2x32xf32>
    %22 = arith.divf %20, %21 : vector<2x32xf32>
    %23 = vector.extract_strided_slice %16 {offsets = [0, 32], sizes = [2, 32], strides = [1, 1]} : vector<2x128xf32> to vector<2x32xf32>
    %24 = arith.negf %23 : vector<2x32xf32>
    %25 = math.exp %24 : vector<2x32xf32>
    %cst_16 = arith.constant 1.000000e+00 : f32
    %26 = vector.broadcast %cst_16 : f32 to vector<2x32xf32>
    %27 = arith.addf %26, %25 : vector<2x32xf32>
    %28 = arith.divf %26, %27 : vector<2x32xf32>
    %29 = vector.extract_strided_slice %16 {offsets = [0, 64], sizes = [2, 32], strides = [1, 1]} : vector<2x128xf32> to vector<2x32xf32>
    %30 = math.tanh %29 : vector<2x32xf32>
    %31 = vector.extract_strided_slice %16 {offsets = [0, 96], sizes = [2, 32], strides = [1, 1]} : vector<2x128xf32> to vector<2x32xf32>
    %32 = arith.negf %31 : vector<2x32xf32>
    %33 = math.exp %32 : vector<2x32xf32>
    %cst_17 = arith.constant 1.000000e+00 : f32
    %34 = vector.broadcast %cst_17 : f32 to vector<2x32xf32>
    %35 = arith.addf %34, %33 : vector<2x32xf32>
    %36 = arith.divf %34, %35 : vector<2x32xf32>
    %37 = arith.mulf %28, %6 : vector<2x32xf32>
    %38 = arith.mulf %22, %30 : vector<2x32xf32>
    %39 = arith.addf %37, %38 : vector<2x32xf32>
    %40 = math.tanh %39 : vector<2x32xf32>
    %41 = arith.mulf %36, %40 : vector<2x32xf32>
    %42 = arith.index_cast %c0_i32_12 : i32 to index
    %c0_18 = arith.constant 0 : index
    %c0_19 = arith.constant 0 : index
    %43 = vector.load %arg3[%42, %c0_18, %c0_19] : memref<8x2x1xf32, #tpu.memory_space<vmem>>, vector<1x2x1xf32>
    %44 = vector.shape_cast %43 : vector<1x2x1xf32> to vector<2x1xf32>
    %45 = vector.broadcast %44 : vector<2x1xf32> to vector<2x32xf32>
    %46 = arith.mulf %45, %41 : vector<2x32xf32>
    %cst_20 = arith.constant 1.000000e+00 : f32
    %47 = vector.broadcast %cst_20 : f32 to vector<2x1xf32>
    %48 = arith.subf %47, %44 : vector<2x1xf32>
    %49 = vector.broadcast %48 : vector<2x1xf32> to vector<2x32xf32>
    %50 = arith.mulf %49, %5 : vector<2x32xf32>
    %51 = arith.addf %46, %50 : vector<2x32xf32>
    %52 = vector.broadcast %44 : vector<2x1xf32> to vector<2x32xf32>
    %53 = arith.mulf %52, %39 : vector<2x32xf32>
    %cst_21 = arith.constant 1.000000e+00 : f32
    %54 = vector.broadcast %cst_21 : f32 to vector<2x1xf32>
    %55 = arith.subf %54, %44 : vector<2x1xf32>
    %56 = vector.broadcast %55 : vector<2x1xf32> to vector<2x32xf32>
    %57 = arith.mulf %56, %6 : vector<2x32xf32>
    %58 = arith.addf %53, %57 : vector<2x32xf32>
    %59 = vector.broadcast %44 : vector<2x1xf32> to vector<2x32xf32>
    %60 = arith.mulf %51, %59 : vector<2x32xf32>
    %61 = arith.truncf %60 : vector<2x32xf32> to vector<2x32xbf16>
    %62 = arith.index_cast %c0_i32_12 : i32 to index
    %c0_22 = arith.constant 0 : index
    %c0_23 = arith.constant 0 : index
    %63 = vector.load %arg7[%62, %c0_22, %c0_23] : memref<8x2x32xbf16, #tpu.memory_space<vmem>>, vector<1x2x32xbf16>
    %64 = vector.shape_cast %63 : vector<1x2x32xbf16> to vector<2x32xbf16>
    %65 = vector.shape_cast %61 : vector<2x32xbf16> to vector<1x2x32xbf16>
    tpu.vector_store %arg7[%62, %c0_22, %c0_23], %65 {strides = array<i32>} : memref<8x2x32xbf16, #tpu.memory_space<vmem>>, vector<1x2x32xbf16>,
    %66 = arith.index_cast %9 : i32 to index
    %c0_24 = arith.constant 0 : index
    %c0_25 = arith.constant 0 : index
    %67 = vector.load %arg2[%66, %c0_24, %c0_25] : memref<8x2x128xbf16, #tpu.memory_space<vmem>>, vector<1x2x128xbf16>
    %68 = vector.shape_cast %67 : vector<1x2x128xbf16> to vector<2x128xbf16>
    %69 = arith.extf %68 : vector<2x128xbf16> to vector<2x128xf32>
    %70 = arith.truncf %7 : vector<2x32xf32> to vector<2x32xbf16>
    %cst_26 = arith.constant dense<0.000000e+00> : vector<2x128xf32>
    %71 = tpu.matmul %70, %4, %cst_26 {dimension_numbers = #tpu.dot_dimension_numbers<[1], [0], [0], [1], [0, 0, 1, 1], [], []>} : vector<2x32xbf16>, vector<32x128xbf16>, vector<2x128xf32> -> vector<2x128xf32>
    %72 = arith.addf %69, %71 : vector<2x128xf32>
    %73 = vector.extract_strided_slice %72 {offsets = [0, 0], sizes = [2, 32], strides = [1, 1]} : vector<2x128xf32> to vector<2x32xf32>
    %74 = arith.negf %73 : vector<2x32xf32>
    %75 = math.exp %74 : vector<2x32xf32>
    %cst_27 = arith.constant 1.000000e+00 : f32
    %76 = vector.broadcast %cst_27 : f32 to vector<2x32xf32>
    %77 = arith.addf %76, %75 : vector<2x32xf32>
    %78 = arith.divf %76, %77 : vector<2x32xf32>
    %79 = vector.extract_strided_slice %72 {offsets = [0, 32], sizes = [2, 32], strides = [1, 1]} : vector<2x128xf32> to vector<2x32xf32>
    %80 = arith.negf %79 : vector<2x32xf32>
    %81 = math.exp %80 : vector<2x32xf32>
    %cst_28 = arith.constant 1.000000e+00 : f32
    %82 = vector.broadcast %cst_28 : f32 to vector<2x32xf32>
    %83 = arith.addf %82, %81 : vector<2x32xf32>
    %84 = arith.divf %82, %83 : vector<2x32xf32>
    %85 = vector.extract_strided_slice %72 {offsets = [0, 64], sizes = [2, 32], strides = [1, 1]} : vector<2x128xf32> to vector<2x32xf32>
    %86 = math.tanh %85 : vector<2x32xf32>
    %87 = vector.extract_strided_slice %72 {offsets = [0, 96], sizes = [2, 32], strides = [1, 1]} : vector<2x128xf32> to vector<2x32xf32>
    %88 = arith.negf %87 : vector<2x32xf32>
    %89 = math.exp %88 : vector<2x32xf32>
    %cst_29 = arith.constant 1.000000e+00 : f32
    %90 = vector.broadcast %cst_29 : f32 to vector<2x32xf32>
    %91 = arith.addf %90, %89 : vector<2x32xf32>
    %92 = arith.divf %90, %91 : vector<2x32xf32>
    %93 = arith.mulf %84, %8 : vector<2x32xf32>
    %94 = arith.mulf %78, %86 : vector<2x32xf32>
    %95 = arith.addf %93, %94 : vector<2x32xf32>
    %96 = math.tanh %95 : vector<2x32xf32>
    %97 = arith.mulf %92, %96 : vector<2x32xf32>
    %98 = arith.index_cast %9 : i32 to index
    %c0_30 = arith.constant 0 : index
    %c0_31 = arith.constant 0 : index
    %99 = vector.load %arg4[%98, %c0_30, %c0_31] : memref<8x2x1xf32, #tpu.memory_space<vmem>>, vector<1x2x1xf32>
    %100 = vector.shape_cast %99 : vector<1x2x1xf32> to vector<2x1xf32>
    %101 = vector.broadcast %100 : vector<2x1xf32> to vector<2x32xf32>
    %102 = arith.mulf %101, %97 : vector<2x32xf32>
    %cst_32 = arith.constant 1.000000e+00 : f32
    %103 = vector.broadcast %cst_32 : f32 to vector<2x1xf32>
    %104 = arith.subf %103, %100 : vector<2x1xf32>
    %105 = vector.broadcast %104 : vector<2x1xf32> to vector<2x32xf32>
    %106 = arith.mulf %105, %7 : vector<2x32xf32>
    %107 = arith.addf %102, %106 : vector<2x32xf32>
    %108 = vector.broadcast %100 : vector<2x1xf32> to vector<2x32xf32>
    %109 = arith.mulf %108, %95 : vector<2x32xf32>
    %cst_33 = arith.constant 1.000000e+00 : f32
    %110 = vector.broadcast %cst_33 : f32 to vector<2x1xf32>
    %111 = arith.subf %110, %100 : vector<2x1xf32>
    %112 = vector.broadcast %111 : vector<2x1xf32> to vector<2x32xf32>
    %113 = arith.mulf %112, %8 : vector<2x32xf32>
    %114 = arith.addf %109, %113 : vector<2x32xf32>
    %115 = vector.broadcast %100 : vector<2x1xf32> to vector<2x32xf32>
    %116 = arith.mulf %107, %115 : vector<2x32xf32>
    %117 = arith.truncf %116 : vector<2x32xf32> to vector<2x32xbf16>
    %118 = arith.index_cast %9 : i32 to index
    %c0_34 = arith.constant 0 : index
    %c0_35 = arith.constant 0 : index
    %119 = vector.load %arg8[%118, %c0_34, %c0_35] : memref<8x2x32xbf16, #tpu.memory_space<vmem>>, vector<1x2x32xbf16>
    %120 = vector.shape_cast %119 : vector<1x2x32xbf16> to vector<2x32xbf16>
    %121 = vector.shape_cast %117 : vector<2x32xbf16> to vector<1x2x32xbf16>
    tpu.vector_store %arg8[%118, %c0_34, %c0_35], %121 {strides = array<i32>} : memref<8x2x32xbf16, #tpu.memory_space<vmem>>, vector<1x2x32xbf16>,
    %c1_i32 = arith.constant 1 : i32
    %c7_i32_36 = arith.constant 7 : i32
    %122 = arith.subi %c7_i32_36, %c1_i32 : i32
    %123 = arith.index_cast %c1_i32 : i32 to index
    %c0_37 = arith.constant 0 : index
    %c0_38 = arith.constant 0 : index
    %124 = vector.load %arg1[%123, %c0_37, %c0_38] : memref<8x2x128xbf16, #tpu.memory_space<vmem>>, vector<1x2x128xbf16>
    %125 = vector.shape_cast %124 : vector<1x2x128xbf16> to vector<2x128xbf16>
    %126 = arith.extf %125 : vector<2x128xbf16> to vector<2x128xf32>
    %127 = arith.truncf %51 : vector<2x32xf32> to vector<2x32xbf16>
    %cst_39 = arith.constant dense<0.000000e+00> : vector<2x128xf32>
    %128 = tpu.matmul %127, %3, %cst_39 {dimension_numbers = #tpu.dot_dimension_numbers<[1], [0], [0], [1], [0, 0, 1, 1], [], []>} : vector<2x32xbf16>, vector<32x128xbf16>, vector<2x128xf32> -> vector<2x128xf32>
    %129 = arith.addf %126, %128 : vector<2x128xf32>
    %130 = vector.extract_strided_slice %129 {offsets = [0, 0], sizes = [2, 32], strides = [1, 1]} : vector<2x128xf32> to vector<2x32xf32>
    %131 = arith.negf %130 : vector<2x32xf32>
    %132 = math.exp %131 : vector<2x32xf32>
    %cst_40 = arith.constant 1.000000e+00 : f32
    %133 = vector.broadcast %cst_40 : f32 to vector<2x32xf32>
    %134 = arith.addf %133, %132 : vector<2x32xf32>
    %135 = arith.divf %133, %134 : vector<2x32xf32>
    %136 = vector.extract_strided_slice %129 {offsets = [0, 32], sizes = [2, 32], strides = [1, 1]} : vector<2x128xf32> to vector<2x32xf32>
    %137 = arith.negf %136 : vector<2x32xf32>
    %138 = math.exp %137 : vector<2x32xf32>
    %cst_41 = arith.constant 1.000000e+00 : f32
    %139 = vector.broadcast %cst_41 : f32 to vector<2x32xf32>
    %140 = arith.addf %139, %138 : vector<2x32xf32>
    %141 = arith.divf %139, %140 : vector<2x32xf32>
    %142 = vector.extract_strided_slice %129 {offsets = [0, 64], sizes = [2, 32], strides = [1, 1]} : vector<2x128xf32> to vector<2x32xf32>
    %143 = math.tanh %142 : vector<2x32xf32>
    %144 = vector.extract_strided_slice %129 {offsets = [0, 96], sizes = [2, 32], strides = [1, 1]} : vector<2x128xf32> to vector<2x32xf32>
    %145 = arith.negf %144 : vector<2x32xf32>
    %146 = math.exp %145 : vector<2x32xf32>
    %cst_42 = arith.constant 1.000000e+00 : f32
    %147 = vector.broadcast %cst_42 : f32 to vector<2x32xf32>
    %148 = arith.addf %147, %146 : vector<2x32xf32>
    %149 = arith.divf %147, %148 : vector<2x32xf32>
    %150 = arith.mulf %141, %58 : vector<2x32xf32>
    %151 = arith.mulf %135, %143 : vector<2x32xf32>
    %152 = arith.addf %150, %151 : vector<2x32xf32>
    %153 = math.tanh %152 : vector<2x32xf32>
    %154 = arith.mulf %149, %153 : vector<2x32xf32>
    %155 = arith.index_cast %c1_i32 : i32 to index
    %c0_43 = arith.constant 0 : index
    %c0_44 = arith.constant 0 : index
    %156 = vector.load %arg3[%155, %c0_43, %c0_44] : memref<8x2x1xf32, #tpu.memory_space<vmem>>, vector<1x2x1xf32>
    %157 = vector.shape_cast %156 : vector<1x2x1xf32> to vector<2x1xf32>
    %158 = vector.broadcast %157 : vector<2x1xf32> to vector<2x32xf32>
    %159 = arith.mulf %158, %154 : vector<2x32xf32>
    %cst_45 = arith.constant 1.000000e+00 : f32
    %160 = vector.broadcast %cst_45 : f32 to vector<2x1xf32>
    %161 = arith.subf %160, %157 : vector<2x1xf32>
    %162 = vector.broadcast %161 : vector<2x1xf32> to vector<2x32xf32>
    %163 = arith.mulf %162, %51 : vector<2x32xf32>
    %164 = arith.addf %159, %163 : vector<2x32xf32>
    %165 = vector.broadcast %157 : vector<2x1xf32> to vector<2x32xf32>
    %166 = arith.mulf %165, %152 : vector<2x32xf32>
    %cst_46 = arith.constant 1.000000e+00 : f32
    %167 = vector.broadcast %cst_46 : f32 to vector<2x1xf32>
    %168 = arith.subf %167, %157 : vector<2x1xf32>
    %169 = vector.broadcast %168 : vector<2x1xf32> to vector<2x32xf32>
    %170 = arith.mulf %169, %58 : vector<2x32xf32>
    %171 = arith.addf %166, %170 : vector<2x32xf32>
    %172 = vector.broadcast %157 : vector<2x1xf32> to vector<2x32xf32>
    %173 = arith.mulf %164, %172 : vector<2x32xf32>
    %174 = arith.truncf %173 : vector<2x32xf32> to vector<2x32xbf16>
    %175 = arith.index_cast %c1_i32 : i32 to index
    %c0_47 = arith.constant 0 : index
    %c0_48 = arith.constant 0 : index
    %176 = vector.load %arg7[%175, %c0_47, %c0_48] : memref<8x2x32xbf16, #tpu.memory_space<vmem>>, vector<1x2x32xbf16>
    %177 = vector.shape_cast %176 : vector<1x2x32xbf16> to vector<2x32xbf16>
    %178 = vector.shape_cast %174 : vector<2x32xbf16> to vector<1x2x32xbf16>
    tpu.vector_store %arg7[%175, %c0_47, %c0_48], %178 {strides = array<i32>} : memref<8x2x32xbf16, #tpu.memory_space<vmem>>, vector<1x2x32xbf16>,
    %179 = arith.index_cast %122 : i32 to index
    %c0_49 = arith.constant 0 : index
    %c0_50 = arith.constant 0 : index
    %180 = vector.load %arg2[%179, %c0_49, %c0_50] : memref<8x2x128xbf16, #tpu.memory_space<vmem>>, vector<1x2x128xbf16>
    %181 = vector.shape_cast %180 : vector<1x2x128xbf16> to vector<2x128xbf16>
    %182 = arith.extf %181 : vector<2x128xbf16> to vector<2x128xf32>
    %183 = arith.truncf %107 : vector<2x32xf32> to vector<2x32xbf16>
    %cst_51 = arith.constant dense<0.000000e+00> : vector<2x128xf32>
    %184 = tpu.matmul %183, %4, %cst_51 {dimension_numbers = #tpu.dot_dimension_numbers<[1], [0], [0], [1], [0, 0, 1, 1], [], []>} : vector<2x32xbf16>, vector<32x128xbf16>, vector<2x128xf32> -> vector<2x128xf32>
    %185 = arith.addf %182, %184 : vector<2x128xf32>
    %186 = vector.extract_strided_slice %185 {offsets = [0, 0], sizes = [2, 32], strides = [1, 1]} : vector<2x128xf32> to vector<2x32xf32>
    %187 = arith.negf %186 : vector<2x32xf32>
    %188 = math.exp %187 : vector<2x32xf32>
    %cst_52 = arith.constant 1.000000e+00 : f32
    %189 = vector.broadcast %cst_52 : f32 to vector<2x32xf32>
    %190 = arith.addf %189, %188 : vector<2x32xf32>
    %191 = arith.divf %189, %190 : vector<2x32xf32>
    %192 = vector.extract_strided_slice %185 {offsets = [0, 32], sizes = [2, 32], strides = [1, 1]} : vector<2x128xf32> to vector<2x32xf32>
    %193 = arith.negf %192 : vector<2x32xf32>
    %194 = math.exp %193 : vector<2x32xf32>
    %cst_53 = arith.constant 1.000000e+00 : f32
    %195 = vector.broadcast %cst_53 : f32 to vector<2x32xf32>
    %196 = arith.addf %195, %194 : vector<2x32xf32>
    %197 = arith.divf %195, %196 : vector<2x32xf32>
    %198 = vector.extract_strided_slice %185 {offsets = [0, 64], sizes = [2, 32], strides = [1, 1]} : vector<2x128xf32> to vector<2x32xf32>
    %199 = math.tanh %198 : vector<2x32xf32>
    %200 = vector.extract_strided_slice %185 {offsets = [0, 96], sizes = [2, 32], strides = [1, 1]} : vector<2x128xf32> to vector<2x32xf32>
    %201 = arith.negf %200 : vector<2x32xf32>
    %202 = math.exp %201 : vector<2x32xf32>
    %cst_54 = arith.constant 1.000000e+00 : f32
    %203 = vector.broadcast %cst_54 : f32 to vector<2x32xf32>
    %204 = arith.addf %203, %202 : vector<2x32xf32>
    %205 = arith.divf %203, %204 : vector<2x32xf32>
    %206 = arith.mulf %197, %114 : vector<2x32xf32>
    %207 = arith.mulf %191, %199 : vector<2x32xf32>
    %208 = arith.addf %206, %207 : vector<2x32xf32>
    %209 = math.tanh %208 : vector<2x32xf32>
    %210 = arith.mulf %205, %209 : vector<2x32xf32>
    %211 = arith.index_cast %122 : i32 to index
    %c0_55 = arith.constant 0 : index
    %c0_56 = arith.constant 0 : index
    %212 = vector.load %arg4[%211, %c0_55, %c0_56] : memref<8x2x1xf32, #tpu.memory_space<vmem>>, vector<1x2x1xf32>
    %213 = vector.shape_cast %212 : vector<1x2x1xf32> to vector<2x1xf32>
    %214 = vector.broadcast %213 : vector<2x1xf32> to vector<2x32xf32>
    %215 = arith.mulf %214, %210 : vector<2x32xf32>
    %cst_57 = arith.constant 1.000000e+00 : f32
    %216 = vector.broadcast %cst_57 : f32 to vector<2x1xf32>
    %217 = arith.subf %216, %213 : vector<2x1xf32>
    %218 = vector.broadcast %217 : vector<2x1xf32> to vector<2x32xf32>
    %219 = arith.mulf %218, %107 : vector<2x32xf32>
    %220 = arith.addf %215, %219 : vector<2x32xf32>
    %221 = vector.broadcast %213 : vector<2x1xf32> to vector<2x32xf32>
    %222 = arith.mulf %221, %208 : vector<2x32xf32>
    %cst_58 = arith.constant 1.000000e+00 : f32
    %223 = vector.broadcast %cst_58 : f32 to vector<2x1xf32>
    %224 = arith.subf %223, %213 : vector<2x1xf32>
    %225 = vector.broadcast %224 : vector<2x1xf32> to vector<2x32xf32>
    %226 = arith.mulf %225, %114 : vector<2x32xf32>
    %227 = arith.addf %222, %226 : vector<2x32xf32>
    %228 = vector.broadcast %213 : vector<2x1xf32> to vector<2x32xf32>
    %229 = arith.mulf %220, %228 : vector<2x32xf32>
    %230 = arith.truncf %229 : vector<2x32xf32> to vector<2x32xbf16>
    %231 = arith.index_cast %122 : i32 to index
    %c0_59 = arith.constant 0 : index
    %c0_60 = arith.constant 0 : index
    %232 = vector.load %arg8[%231, %c0_59, %c0_60] : memref<8x2x32xbf16, #tpu.memory_space<vmem>>, vector<1x2x32xbf16>
    %233 = vector.shape_cast %232 : vector<1x2x32xbf16> to vector<2x32xbf16>
    %234 = vector.shape_cast %230 : vector<2x32xbf16> to vector<1x2x32xbf16>
    tpu.vector_store %arg8[%231, %c0_59, %c0_60], %234 {strides = array<i32>} : memref<8x2x32xbf16, #tpu.memory_space<vmem>>, vector<1x2x32xbf16>,
    %c2_i32 = arith.constant 2 : i32
    %c7_i32_61 = arith.constant 7 : i32
    %235 = arith.subi %c7_i32_61, %c2_i32 : i32
    %236 = arith.index_cast %c2_i32 : i32 to index
    %c0_62 = arith.constant 0 : index
    %c0_63 = arith.constant 0 : index
    %237 = vector.load %arg1[%236, %c0_62, %c0_63] : memref<8x2x128xbf16, #tpu.memory_space<vmem>>, vector<1x2x128xbf16>
    %238 = vector.shape_cast %237 : vector<1x2x128xbf16> to vector<2x128xbf16>
    %239 = arith.extf %238 : vector<2x128xbf16> to vector<2x128xf32>
    %240 = arith.truncf %164 : vector<2x32xf32> to vector<2x32xbf16>
    %cst_64 = arith.constant dense<0.000000e+00> : vector<2x128xf32>
    %241 = tpu.matmul %240, %3, %cst_64 {dimension_numbers = #tpu.dot_dimension_numbers<[1], [0], [0], [1], [0, 0, 1, 1], [], []>} : vector<2x32xbf16>, vector<32x128xbf16>, vector<2x128xf32> -> vector<2x128xf32>
    %242 = arith.addf %239, %241 : vector<2x128xf32>
    %243 = vector.extract_strided_slice %242 {offsets = [0, 0], sizes = [2, 32], strides = [1, 1]} : vector<2x128xf32> to vector<2x32xf32>
    %244 = arith.negf %243 : vector<2x32xf32>
    %245 = math.exp %244 : vector<2x32xf32>
    %cst_65 = arith.constant 1.000000e+00 : f32
    %246 = vector.broadcast %cst_65 : f32 to vector<2x32xf32>
    %247 = arith.addf %246, %245 : vector<2x32xf32>
    %248 = arith.divf %246, %247 : vector<2x32xf32>
    %249 = vector.extract_strided_slice %242 {offsets = [0, 32], sizes = [2, 32], strides = [1, 1]} : vector<2x128xf32> to vector<2x32xf32>
    %250 = arith.negf %249 : vector<2x32xf32>
    %251 = math.exp %250 : vector<2x32xf32>
    %cst_66 = arith.constant 1.000000e+00 : f32
    %252 = vector.broadcast %cst_66 : f32 to vector<2x32xf32>
    %253 = arith.addf %252, %251 : vector<2x32xf32>
    %254 = arith.divf %252, %253 : vector<2x32xf32>
    %255 = vector.extract_strided_slice %242 {offsets = [0, 64], sizes = [2, 32], strides = [1, 1]} : vector<2x128xf32> to vector<2x32xf32>
    %256 = math.tanh %255 : vector<2x32xf32>
    %257 = vector.extract_strided_slice %242 {offsets = [0, 96], sizes = [2, 32], strides = [1, 1]} : vector<2x128xf32> to vector<2x32xf32>
    %258 = arith.negf %257 : vector<2x32xf32>
    %259 = math.exp %258 : vector<2x32xf32>
    %cst_67 = arith.constant 1.000000e+00 : f32
    %260 = vector.broadcast %cst_67 : f32 to vector<2x32xf32>
    %261 = arith.addf %260, %259 : vector<2x32xf32>
    %262 = arith.divf %260, %261 : vector<2x32xf32>
    %263 = arith.mulf %254, %171 : vector<2x32xf32>
    %264 = arith.mulf %248, %256 : vector<2x32xf32>
    %265 = arith.addf %263, %264 : vector<2x32xf32>
    %266 = math.tanh %265 : vector<2x32xf32>
    %267 = arith.mulf %262, %266 : vector<2x32xf32>
    %268 = arith.index_cast %c2_i32 : i32 to index
    %c0_68 = arith.constant 0 : index
    %c0_69 = arith.constant 0 : index
    %269 = vector.load %arg3[%268, %c0_68, %c0_69] : memref<8x2x1xf32, #tpu.memory_space<vmem>>, vector<1x2x1xf32>
    %270 = vector.shape_cast %269 : vector<1x2x1xf32> to vector<2x1xf32>
    %271 = vector.broadcast %270 : vector<2x1xf32> to vector<2x32xf32>
    %272 = arith.mulf %271, %267 : vector<2x32xf32>
    %cst_70 = arith.constant 1.000000e+00 : f32
    %273 = vector.broadcast %cst_70 : f32 to vector<2x1xf32>
    %274 = arith.subf %273, %270 : vector<2x1xf32>
    %275 = vector.broadcast %274 : vector<2x1xf32> to vector<2x32xf32>
    %276 = arith.mulf %275, %164 : vector<2x32xf32>
    %277 = arith.addf %272, %276 : vector<2x32xf32>
    %278 = vector.broadcast %270 : vector<2x1xf32> to vector<2x32xf32>
    %279 = arith.mulf %278, %265 : vector<2x32xf32>
    %cst_71 = arith.constant 1.000000e+00 : f32
    %280 = vector.broadcast %cst_71 : f32 to vector<2x1xf32>
    %281 = arith.subf %280, %270 : vector<2x1xf32>
    %282 = vector.broadcast %281 : vector<2x1xf32> to vector<2x32xf32>
    %283 = arith.mulf %282, %171 : vector<2x32xf32>
    %284 = arith.addf %279, %283 : vector<2x32xf32>
    %285 = vector.broadcast %270 : vector<2x1xf32> to vector<2x32xf32>
    %286 = arith.mulf %277, %285 : vector<2x32xf32>
    %287 = arith.truncf %286 : vector<2x32xf32> to vector<2x32xbf16>
    %288 = arith.index_cast %c2_i32 : i32 to index
    %c0_72 = arith.constant 0 : index
    %c0_73 = arith.constant 0 : index
    %289 = vector.load %arg7[%288, %c0_72, %c0_73] : memref<8x2x32xbf16, #tpu.memory_space<vmem>>, vector<1x2x32xbf16>
    %290 = vector.shape_cast %289 : vector<1x2x32xbf16> to vector<2x32xbf16>
    %291 = vector.shape_cast %287 : vector<2x32xbf16> to vector<1x2x32xbf16>
    tpu.vector_store %arg7[%288, %c0_72, %c0_73], %291 {strides = array<i32>} : memref<8x2x32xbf16, #tpu.memory_space<vmem>>, vector<1x2x32xbf16>,
    %292 = arith.index_cast %235 : i32 to index
    %c0_74 = arith.constant 0 : index
    %c0_75 = arith.constant 0 : index
    %293 = vector.load %arg2[%292, %c0_74, %c0_75] : memref<8x2x128xbf16, #tpu.memory_space<vmem>>, vector<1x2x128xbf16>
    %294 = vector.shape_cast %293 : vector<1x2x128xbf16> to vector<2x128xbf16>
    %295 = arith.extf %294 : vector<2x128xbf16> to vector<2x128xf32>
    %296 = arith.truncf %220 : vector<2x32xf32> to vector<2x32xbf16>
    %cst_76 = arith.constant dense<0.000000e+00> : vector<2x128xf32>
    %297 = tpu.matmul %296, %4, %cst_76 {dimension_numbers = #tpu.dot_dimension_numbers<[1], [0], [0], [1], [0, 0, 1, 1], [], []>} : vector<2x32xbf16>, vector<32x128xbf16>, vector<2x128xf32> -> vector<2x128xf32>
    %298 = arith.addf %295, %297 : vector<2x128xf32>
    %299 = vector.extract_strided_slice %298 {offsets = [0, 0], sizes = [2, 32], strides = [1, 1]} : vector<2x128xf32> to vector<2x32xf32>
    %300 = arith.negf %299 : vector<2x32xf32>
    %301 = math.exp %300 : vector<2x32xf32>
    %cst_77 = arith.constant 1.000000e+00 : f32
    %302 = vector.broadcast %cst_77 : f32 to vector<2x32xf32>
    %303 = arith.addf %302, %301 : vector<2x32xf32>
    %304 = arith.divf %302, %303 : vector<2x32xf32>
    %305 = vector.extract_strided_slice %298 {offsets = [0, 32], sizes = [2, 32], strides = [1, 1]} : vector<2x128xf32> to vector<2x32xf32>
    %306 = arith.negf %305 : vector<2x32xf32>
    %307 = math.exp %306 : vector<2x32xf32>
    %cst_78 = arith.constant 1.000000e+00 : f32
    %308 = vector.broadcast %cst_78 : f32 to vector<2x32xf32>
    %309 = arith.addf %308, %307 : vector<2x32xf32>
    %310 = arith.divf %308, %309 : vector<2x32xf32>
    %311 = vector.extract_strided_slice %298 {offsets = [0, 64], sizes = [2, 32], strides = [1, 1]} : vector<2x128xf32> to vector<2x32xf32>
    %312 = math.tanh %311 : vector<2x32xf32>
    %313 = vector.extract_strided_slice %298 {offsets = [0, 96], sizes = [2, 32], strides = [1, 1]} : vector<2x128xf32> to vector<2x32xf32>
    %314 = arith.negf %313 : vector<2x32xf32>
    %315 = math.exp %314 : vector<2x32xf32>
    %cst_79 = arith.constant 1.000000e+00 : f32
    %316 = vector.broadcast %cst_79 : f32 to vector<2x32xf32>
    %317 = arith.addf %316, %315 : vector<2x32xf32>
    %318 = arith.divf %316, %317 : vector<2x32xf32>
    %319 = arith.mulf %310, %227 : vector<2x32xf32>
    %320 = arith.mulf %304, %312 : vector<2x32xf32>
    %321 = arith.addf %319, %320 : vector<2x32xf32>
    %322 = math.tanh %321 : vector<2x32xf32>
    %323 = arith.mulf %318, %322 : vector<2x32xf32>
    %324 = arith.index_cast %235 : i32 to index
    %c0_80 = arith.constant 0 : index
    %c0_81 = arith.constant 0 : index
    %325 = vector.load %arg4[%324, %c0_80, %c0_81] : memref<8x2x1xf32, #tpu.memory_space<vmem>>, vector<1x2x1xf32>
    %326 = vector.shape_cast %325 : vector<1x2x1xf32> to vector<2x1xf32>
    %327 = vector.broadcast %326 : vector<2x1xf32> to vector<2x32xf32>
    %328 = arith.mulf %327, %323 : vector<2x32xf32>
    %cst_82 = arith.constant 1.000000e+00 : f32
    %329 = vector.broadcast %cst_82 : f32 to vector<2x1xf32>
    %330 = arith.subf %329, %326 : vector<2x1xf32>
    %331 = vector.broadcast %330 : vector<2x1xf32> to vector<2x32xf32>
    %332 = arith.mulf %331, %220 : vector<2x32xf32>
    %333 = arith.addf %328, %332 : vector<2x32xf32>
    %334 = vector.broadcast %326 : vector<2x1xf32> to vector<2x32xf32>
    %335 = arith.mulf %334, %321 : vector<2x32xf32>
    %cst_83 = arith.constant 1.000000e+00 : f32
    %336 = vector.broadcast %cst_83 : f32 to vector<2x1xf32>
    %337 = arith.subf %336, %326 : vector<2x1xf32>
    %338 = vector.broadcast %337 : vector<2x1xf32> to vector<2x32xf32>
    %339 = arith.mulf %338, %227 : vector<2x32xf32>
    %340 = arith.addf %335, %339 : vector<2x32xf32>
    %341 = vector.broadcast %326 : vector<2x1xf32> to vector<2x32xf32>
    %342 = arith.mulf %333, %341 : vector<2x32xf32>
    %343 = arith.truncf %342 : vector<2x32xf32> to vector<2x32xbf16>
    %344 = arith.index_cast %235 : i32 to index
    %c0_84 = arith.constant 0 : index
    %c0_85 = arith.constant 0 : index
    %345 = vector.load %arg8[%344, %c0_84, %c0_85] : memref<8x2x32xbf16, #tpu.memory_space<vmem>>, vector<1x2x32xbf16>
    %346 = vector.shape_cast %345 : vector<1x2x32xbf16> to vector<2x32xbf16>
    %347 = vector.shape_cast %343 : vector<2x32xbf16> to vector<1x2x32xbf16>
    tpu.vector_store %arg8[%344, %c0_84, %c0_85], %347 {strides = array<i32>} : memref<8x2x32xbf16, #tpu.memory_space<vmem>>, vector<1x2x32xbf16>,
    %c3_i32 = arith.constant 3 : i32
    %c7_i32_86 = arith.constant 7 : i32
    %348 = arith.subi %c7_i32_86, %c3_i32 : i32
    %349 = arith.index_cast %c3_i32 : i32 to index
    %c0_87 = arith.constant 0 : index
    %c0_88 = arith.constant 0 : index
    %350 = vector.load %arg1[%349, %c0_87, %c0_88] : memref<8x2x128xbf16, #tpu.memory_space<vmem>>, vector<1x2x128xbf16>
    %351 = vector.shape_cast %350 : vector<1x2x128xbf16> to vector<2x128xbf16>
    %352 = arith.extf %351 : vector<2x128xbf16> to vector<2x128xf32>
    %353 = arith.truncf %277 : vector<2x32xf32> to vector<2x32xbf16>
    %cst_89 = arith.constant dense<0.000000e+00> : vector<2x128xf32>
    %354 = tpu.matmul %353, %3, %cst_89 {dimension_numbers = #tpu.dot_dimension_numbers<[1], [0], [0], [1], [0, 0, 1, 1], [], []>} : vector<2x32xbf16>, vector<32x128xbf16>, vector<2x128xf32> -> vector<2x128xf32>
    %355 = arith.addf %352, %354 : vector<2x128xf32>
    %356 = vector.extract_strided_slice %355 {offsets = [0, 0], sizes = [2, 32], strides = [1, 1]} : vector<2x128xf32> to vector<2x32xf32>
    %357 = arith.negf %356 : vector<2x32xf32>
    %358 = math.exp %357 : vector<2x32xf32>
    %cst_90 = arith.constant 1.000000e+00 : f32
    %359 = vector.broadcast %cst_90 : f32 to vector<2x32xf32>
    %360 = arith.addf %359, %358 : vector<2x32xf32>
    %361 = arith.divf %359, %360 : vector<2x32xf32>
    %362 = vector.extract_strided_slice %355 {offsets = [0, 32], sizes = [2, 32], strides = [1, 1]} : vector<2x128xf32> to vector<2x32xf32>
    %363 = arith.negf %362 : vector<2x32xf32>
    %364 = math.exp %363 : vector<2x32xf32>
    %cst_91 = arith.constant 1.000000e+00 : f32
    %365 = vector.broadcast %cst_91 : f32 to vector<2x32xf32>
    %366 = arith.addf %365, %364 : vector<2x32xf32>
    %367 = arith.divf %365, %366 : vector<2x32xf32>
    %368 = vector.extract_strided_slice %355 {offsets = [0, 64], sizes = [2, 32], strides = [1, 1]} : vector<2x128xf32> to vector<2x32xf32>
    %369 = math.tanh %368 : vector<2x32xf32>
    %370 = vector.extract_strided_slice %355 {offsets = [0, 96], sizes = [2, 32], strides = [1, 1]} : vector<2x128xf32> to vector<2x32xf32>
    %371 = arith.negf %370 : vector<2x32xf32>
    %372 = math.exp %371 : vector<2x32xf32>
    %cst_92 = arith.constant 1.000000e+00 : f32
    %373 = vector.broadcast %cst_92 : f32 to vector<2x32xf32>
    %374 = arith.addf %373, %372 : vector<2x32xf32>
    %375 = arith.divf %373, %374 : vector<2x32xf32>
    %376 = arith.mulf %367, %284 : vector<2x32xf32>
    %377 = arith.mulf %361, %369 : vector<2x32xf32>
    %378 = arith.addf %376, %377 : vector<2x32xf32>
    %379 = math.tanh %378 : vector<2x32xf32>
    %380 = arith.mulf %375, %379 : vector<2x32xf32>
    %381 = arith.index_cast %c3_i32 : i32 to index
    %c0_93 = arith.constant 0 : index
    %c0_94 = arith.constant 0 : index
    %382 = vector.load %arg3[%381, %c0_93, %c0_94] : memref<8x2x1xf32, #tpu.memory_space<vmem>>, vector<1x2x1xf32>
    %383 = vector.shape_cast %382 : vector<1x2x1xf32> to vector<2x1xf32>
    %384 = vector.broadcast %383 : vector<2x1xf32> to vector<2x32xf32>
    %385 = arith.mulf %384, %380 : vector<2x32xf32>
    %cst_95 = arith.constant 1.000000e+00 : f32
    %386 = vector.broadcast %cst_95 : f32 to vector<2x1xf32>
    %387 = arith.subf %386, %383 : vector<2x1xf32>
    %388 = vector.broadcast %387 : vector<2x1xf32> to vector<2x32xf32>
    %389 = arith.mulf %388, %277 : vector<2x32xf32>
    %390 = arith.addf %385, %389 : vector<2x32xf32>
    %391 = vector.broadcast %383 : vector<2x1xf32> to vector<2x32xf32>
    %392 = arith.mulf %391, %378 : vector<2x32xf32>
    %cst_96 = arith.constant 1.000000e+00 : f32
    %393 = vector.broadcast %cst_96 : f32 to vector<2x1xf32>
    %394 = arith.subf %393, %383 : vector<2x1xf32>
    %395 = vector.broadcast %394 : vector<2x1xf32> to vector<2x32xf32>
    %396 = arith.mulf %395, %284 : vector<2x32xf32>
    %397 = arith.addf %392, %396 : vector<2x32xf32>
    %398 = vector.broadcast %383 : vector<2x1xf32> to vector<2x32xf32>
    %399 = arith.mulf %390, %398 : vector<2x32xf32>
    %400 = arith.truncf %399 : vector<2x32xf32> to vector<2x32xbf16>
    %401 = arith.index_cast %c3_i32 : i32 to index
    %c0_97 = arith.constant 0 : index
    %c0_98 = arith.constant 0 : index
    %402 = vector.load %arg7[%401, %c0_97, %c0_98] : memref<8x2x32xbf16, #tpu.memory_space<vmem>>, vector<1x2x32xbf16>
    %403 = vector.shape_cast %402 : vector<1x2x32xbf16> to vector<2x32xbf16>
    %404 = vector.shape_cast %400 : vector<2x32xbf16> to vector<1x2x32xbf16>
    tpu.vector_store %arg7[%401, %c0_97, %c0_98], %404 {strides = array<i32>} : memref<8x2x32xbf16, #tpu.memory_space<vmem>>, vector<1x2x32xbf16>,
    %405 = arith.index_cast %348 : i32 to index
    %c0_99 = arith.constant 0 : index
    %c0_100 = arith.constant 0 : index
    %406 = vector.load %arg2[%405, %c0_99, %c0_100] : memref<8x2x128xbf16, #tpu.memory_space<vmem>>, vector<1x2x128xbf16>
    %407 = vector.shape_cast %406 : vector<1x2x128xbf16> to vector<2x128xbf16>
    %408 = arith.extf %407 : vector<2x128xbf16> to vector<2x128xf32>
    %409 = arith.truncf %333 : vector<2x32xf32> to vector<2x32xbf16>
    %cst_101 = arith.constant dense<0.000000e+00> : vector<2x128xf32>
    %410 = tpu.matmul %409, %4, %cst_101 {dimension_numbers = #tpu.dot_dimension_numbers<[1], [0], [0], [1], [0, 0, 1, 1], [], []>} : vector<2x32xbf16>, vector<32x128xbf16>, vector<2x128xf32> -> vector<2x128xf32>
    %411 = arith.addf %408, %410 : vector<2x128xf32>
    %412 = vector.extract_strided_slice %411 {offsets = [0, 0], sizes = [2, 32], strides = [1, 1]} : vector<2x128xf32> to vector<2x32xf32>
    %413 = arith.negf %412 : vector<2x32xf32>
    %414 = math.exp %413 : vector<2x32xf32>
    %cst_102 = arith.constant 1.000000e+00 : f32
    %415 = vector.broadcast %cst_102 : f32 to vector<2x32xf32>
    %416 = arith.addf %415, %414 : vector<2x32xf32>
    %417 = arith.divf %415, %416 : vector<2x32xf32>
    %418 = vector.extract_strided_slice %411 {offsets = [0, 32], sizes = [2, 32], strides = [1, 1]} : vector<2x128xf32> to vector<2x32xf32>
    %419 = arith.negf %418 : vector<2x32xf32>
    %420 = math.exp %419 : vector<2x32xf32>
    %cst_103 = arith.constant 1.000000e+00 : f32
    %421 = vector.broadcast %cst_103 : f32 to vector<2x32xf32>
    %422 = arith.addf %421, %420 : vector<2x32xf32>
    %423 = arith.divf %421, %422 : vector<2x32xf32>
    %424 = vector.extract_strided_slice %411 {offsets = [0, 64], sizes = [2, 32], strides = [1, 1]} : vector<2x128xf32> to vector<2x32xf32>
    %425 = math.tanh %424 : vector<2x32xf32>
    %426 = vector.extract_strided_slice %411 {offsets = [0, 96], sizes = [2, 32], strides = [1, 1]} : vector<2x128xf32> to vector<2x32xf32>
    %427 = arith.negf %426 : vector<2x32xf32>
    %428 = math.exp %427 : vector<2x32xf32>
    %cst_104 = arith.constant 1.000000e+00 : f32
    %429 = vector.broadcast %cst_104 : f32 to vector<2x32xf32>
    %430 = arith.addf %429, %428 : vector<2x32xf32>
    %431 = arith.divf %429, %430 : vector<2x32xf32>
    %432 = arith.mulf %423, %340 : vector<2x32xf32>
    %433 = arith.mulf %417, %425 : vector<2x32xf32>
    %434 = arith.addf %432, %433 : vector<2x32xf32>
    %435 = math.tanh %434 : vector<2x32xf32>
    %436 = arith.mulf %431, %435 : vector<2x32xf32>
    %437 = arith.index_cast %348 : i32 to index
    %c0_105 = arith.constant 0 : index
    %c0_106 = arith.constant 0 : index
    %438 = vector.load %arg4[%437, %c0_105, %c0_106] : memref<8x2x1xf32, #tpu.memory_space<vmem>>, vector<1x2x1xf32>
    %439 = vector.shape_cast %438 : vector<1x2x1xf32> to vector<2x1xf32>
    %440 = vector.broadcast %439 : vector<2x1xf32> to vector<2x32xf32>
    %441 = arith.mulf %440, %436 : vector<2x32xf32>
    %cst_107 = arith.constant 1.000000e+00 : f32
    %442 = vector.broadcast %cst_107 : f32 to vector<2x1xf32>
    %443 = arith.subf %442, %439 : vector<2x1xf32>
    %444 = vector.broadcast %443 : vector<2x1xf32> to vector<2x32xf32>
    %445 = arith.mulf %444, %333 : vector<2x32xf32>
    %446 = arith.addf %441, %445 : vector<2x32xf32>
    %447 = vector.broadcast %439 : vector<2x1xf32> to vector<2x32xf32>
    %448 = arith.mulf %447, %434 : vector<2x32xf32>
    %cst_108 = arith.constant 1.000000e+00 : f32
    %449 = vector.broadcast %cst_108 : f32 to vector<2x1xf32>
    %450 = arith.subf %449, %439 : vector<2x1xf32>
    %451 = vector.broadcast %450 : vector<2x1xf32> to vector<2x32xf32>
    %452 = arith.mulf %451, %340 : vector<2x32xf32>
    %453 = arith.addf %448, %452 : vector<2x32xf32>
    %454 = vector.broadcast %439 : vector<2x1xf32> to vector<2x32xf32>
    %455 = arith.mulf %446, %454 : vector<2x32xf32>
    %456 = arith.truncf %455 : vector<2x32xf32> to vector<2x32xbf16>
    %457 = arith.index_cast %348 : i32 to index
    %c0_109 = arith.constant 0 : index
    %c0_110 = arith.constant 0 : index
    %458 = vector.load %arg8[%457, %c0_109, %c0_110] : memref<8x2x32xbf16, #tpu.memory_space<vmem>>, vector<1x2x32xbf16>
    %459 = vector.shape_cast %458 : vector<1x2x32xbf16> to vector<2x32xbf16>
    %460 = vector.shape_cast %456 : vector<2x32xbf16> to vector<1x2x32xbf16>
    tpu.vector_store %arg8[%457, %c0_109, %c0_110], %460 {strides = array<i32>} : memref<8x2x32xbf16, #tpu.memory_space<vmem>>, vector<1x2x32xbf16>,
    %c4_i32 = arith.constant 4 : i32
    %c7_i32_111 = arith.constant 7 : i32
    %461 = arith.subi %c7_i32_111, %c4_i32 : i32
    %462 = arith.index_cast %c4_i32 : i32 to index
    %c0_112 = arith.constant 0 : index
    %c0_113 = arith.constant 0 : index
    %463 = vector.load %arg1[%462, %c0_112, %c0_113] : memref<8x2x128xbf16, #tpu.memory_space<vmem>>, vector<1x2x128xbf16>
    %464 = vector.shape_cast %463 : vector<1x2x128xbf16> to vector<2x128xbf16>
    %465 = arith.extf %464 : vector<2x128xbf16> to vector<2x128xf32>
    %466 = arith.truncf %390 : vector<2x32xf32> to vector<2x32xbf16>
    %cst_114 = arith.constant dense<0.000000e+00> : vector<2x128xf32>
    %467 = tpu.matmul %466, %3, %cst_114 {dimension_numbers = #tpu.dot_dimension_numbers<[1], [0], [0], [1], [0, 0, 1, 1], [], []>} : vector<2x32xbf16>, vector<32x128xbf16>, vector<2x128xf32> -> vector<2x128xf32>
    %468 = arith.addf %465, %467 : vector<2x128xf32>
    %469 = vector.extract_strided_slice %468 {offsets = [0, 0], sizes = [2, 32], strides = [1, 1]} : vector<2x128xf32> to vector<2x32xf32>
    %470 = arith.negf %469 : vector<2x32xf32>
    %471 = math.exp %470 : vector<2x32xf32>
    %cst_115 = arith.constant 1.000000e+00 : f32
    %472 = vector.broadcast %cst_115 : f32 to vector<2x32xf32>
    %473 = arith.addf %472, %471 : vector<2x32xf32>
    %474 = arith.divf %472, %473 : vector<2x32xf32>
    %475 = vector.extract_strided_slice %468 {offsets = [0, 32], sizes = [2, 32], strides = [1, 1]} : vector<2x128xf32> to vector<2x32xf32>
    %476 = arith.negf %475 : vector<2x32xf32>
    %477 = math.exp %476 : vector<2x32xf32>
    %cst_116 = arith.constant 1.000000e+00 : f32
    %478 = vector.broadcast %cst_116 : f32 to vector<2x32xf32>
    %479 = arith.addf %478, %477 : vector<2x32xf32>
    %480 = arith.divf %478, %479 : vector<2x32xf32>
    %481 = vector.extract_strided_slice %468 {offsets = [0, 64], sizes = [2, 32], strides = [1, 1]} : vector<2x128xf32> to vector<2x32xf32>
    %482 = math.tanh %481 : vector<2x32xf32>
    %483 = vector.extract_strided_slice %468 {offsets = [0, 96], sizes = [2, 32], strides = [1, 1]} : vector<2x128xf32> to vector<2x32xf32>
    %484 = arith.negf %483 : vector<2x32xf32>
    %485 = math.exp %484 : vector<2x32xf32>
    %cst_117 = arith.constant 1.000000e+00 : f32
    %486 = vector.broadcast %cst_117 : f32 to vector<2x32xf32>
    %487 = arith.addf %486, %485 : vector<2x32xf32>
    %488 = arith.divf %486, %487 : vector<2x32xf32>
    %489 = arith.mulf %480, %397 : vector<2x32xf32>
    %490 = arith.mulf %474, %482 : vector<2x32xf32>
    %491 = arith.addf %489, %490 : vector<2x32xf32>
    %492 = math.tanh %491 : vector<2x32xf32>
    %493 = arith.mulf %488, %492 : vector<2x32xf32>
    %494 = arith.index_cast %c4_i32 : i32 to index
    %c0_118 = arith.constant 0 : index
    %c0_119 = arith.constant 0 : index
    %495 = vector.load %arg3[%494, %c0_118, %c0_119] : memref<8x2x1xf32, #tpu.memory_space<vmem>>, vector<1x2x1xf32>
    %496 = vector.shape_cast %495 : vector<1x2x1xf32> to vector<2x1xf32>
    %497 = vector.broadcast %496 : vector<2x1xf32> to vector<2x32xf32>
    %498 = arith.mulf %497, %493 : vector<2x32xf32>
    %cst_120 = arith.constant 1.000000e+00 : f32
    %499 = vector.broadcast %cst_120 : f32 to vector<2x1xf32>
    %500 = arith.subf %499, %496 : vector<2x1xf32>
    %501 = vector.broadcast %500 : vector<2x1xf32> to vector<2x32xf32>
    %502 = arith.mulf %501, %390 : vector<2x32xf32>
    %503 = arith.addf %498, %502 : vector<2x32xf32>
    %504 = vector.broadcast %496 : vector<2x1xf32> to vector<2x32xf32>
    %505 = arith.mulf %504, %491 : vector<2x32xf32>
    %cst_121 = arith.constant 1.000000e+00 : f32
    %506 = vector.broadcast %cst_121 : f32 to vector<2x1xf32>
    %507 = arith.subf %506, %496 : vector<2x1xf32>
    %508 = vector.broadcast %507 : vector<2x1xf32> to vector<2x32xf32>
    %509 = arith.mulf %508, %397 : vector<2x32xf32>
    %510 = arith.addf %505, %509 : vector<2x32xf32>
    %511 = vector.broadcast %496 : vector<2x1xf32> to vector<2x32xf32>
    %512 = arith.mulf %503, %511 : vector<2x32xf32>
    %513 = arith.truncf %512 : vector<2x32xf32> to vector<2x32xbf16>
    %514 = arith.index_cast %c4_i32 : i32 to index
    %c0_122 = arith.constant 0 : index
    %c0_123 = arith.constant 0 : index
    %515 = vector.load %arg7[%514, %c0_122, %c0_123] : memref<8x2x32xbf16, #tpu.memory_space<vmem>>, vector<1x2x32xbf16>
    %516 = vector.shape_cast %515 : vector<1x2x32xbf16> to vector<2x32xbf16>
    %517 = vector.shape_cast %513 : vector<2x32xbf16> to vector<1x2x32xbf16>
    tpu.vector_store %arg7[%514, %c0_122, %c0_123], %517 {strides = array<i32>} : memref<8x2x32xbf16, #tpu.memory_space<vmem>>, vector<1x2x32xbf16>,
    %518 = arith.index_cast %461 : i32 to index
    %c0_124 = arith.constant 0 : index
    %c0_125 = arith.constant 0 : index
    %519 = vector.load %arg2[%518, %c0_124, %c0_125] : memref<8x2x128xbf16, #tpu.memory_space<vmem>>, vector<1x2x128xbf16>
    %520 = vector.shape_cast %519 : vector<1x2x128xbf16> to vector<2x128xbf16>
    %521 = arith.extf %520 : vector<2x128xbf16> to vector<2x128xf32>
    %522 = arith.truncf %446 : vector<2x32xf32> to vector<2x32xbf16>
    %cst_126 = arith.constant dense<0.000000e+00> : vector<2x128xf32>
    %523 = tpu.matmul %522, %4, %cst_126 {dimension_numbers = #tpu.dot_dimension_numbers<[1], [0], [0], [1], [0, 0, 1, 1], [], []>} : vector<2x32xbf16>, vector<32x128xbf16>, vector<2x128xf32> -> vector<2x128xf32>
    %524 = arith.addf %521, %523 : vector<2x128xf32>
    %525 = vector.extract_strided_slice %524 {offsets = [0, 0], sizes = [2, 32], strides = [1, 1]} : vector<2x128xf32> to vector<2x32xf32>
    %526 = arith.negf %525 : vector<2x32xf32>
    %527 = math.exp %526 : vector<2x32xf32>
    %cst_127 = arith.constant 1.000000e+00 : f32
    %528 = vector.broadcast %cst_127 : f32 to vector<2x32xf32>
    %529 = arith.addf %528, %527 : vector<2x32xf32>
    %530 = arith.divf %528, %529 : vector<2x32xf32>
    %531 = vector.extract_strided_slice %524 {offsets = [0, 32], sizes = [2, 32], strides = [1, 1]} : vector<2x128xf32> to vector<2x32xf32>
    %532 = arith.negf %531 : vector<2x32xf32>
    %533 = math.exp %532 : vector<2x32xf32>
    %cst_128 = arith.constant 1.000000e+00 : f32
    %534 = vector.broadcast %cst_128 : f32 to vector<2x32xf32>
    %535 = arith.addf %534, %533 : vector<2x32xf32>
    %536 = arith.divf %534, %535 : vector<2x32xf32>
    %537 = vector.extract_strided_slice %524 {offsets = [0, 64], sizes = [2, 32], strides = [1, 1]} : vector<2x128xf32> to vector<2x32xf32>
    %538 = math.tanh %537 : vector<2x32xf32>
    %539 = vector.extract_strided_slice %524 {offsets = [0, 96], sizes = [2, 32], strides = [1, 1]} : vector<2x128xf32> to vector<2x32xf32>
    %540 = arith.negf %539 : vector<2x32xf32>
    %541 = math.exp %540 : vector<2x32xf32>
    %cst_129 = arith.constant 1.000000e+00 : f32
    %542 = vector.broadcast %cst_129 : f32 to vector<2x32xf32>
    %543 = arith.addf %542, %541 : vector<2x32xf32>
    %544 = arith.divf %542, %543 : vector<2x32xf32>
    %545 = arith.mulf %536, %453 : vector<2x32xf32>
    %546 = arith.mulf %530, %538 : vector<2x32xf32>
    %547 = arith.addf %545, %546 : vector<2x32xf32>
    %548 = math.tanh %547 : vector<2x32xf32>
    %549 = arith.mulf %544, %548 : vector<2x32xf32>
    %550 = arith.index_cast %461 : i32 to index
    %c0_130 = arith.constant 0 : index
    %c0_131 = arith.constant 0 : index
    %551 = vector.load %arg4[%550, %c0_130, %c0_131] : memref<8x2x1xf32, #tpu.memory_space<vmem>>, vector<1x2x1xf32>
    %552 = vector.shape_cast %551 : vector<1x2x1xf32> to vector<2x1xf32>
    %553 = vector.broadcast %552 : vector<2x1xf32> to vector<2x32xf32>
    %554 = arith.mulf %553, %549 : vector<2x32xf32>
    %cst_132 = arith.constant 1.000000e+00 : f32
    %555 = vector.broadcast %cst_132 : f32 to vector<2x1xf32>
    %556 = arith.subf %555, %552 : vector<2x1xf32>
    %557 = vector.broadcast %556 : vector<2x1xf32> to vector<2x32xf32>
    %558 = arith.mulf %557, %446 : vector<2x32xf32>
    %559 = arith.addf %554, %558 : vector<2x32xf32>
    %560 = vector.broadcast %552 : vector<2x1xf32> to vector<2x32xf32>
    %561 = arith.mulf %560, %547 : vector<2x32xf32>
    %cst_133 = arith.constant 1.000000e+00 : f32
    %562 = vector.broadcast %cst_133 : f32 to vector<2x1xf32>
    %563 = arith.subf %562, %552 : vector<2x1xf32>
    %564 = vector.broadcast %563 : vector<2x1xf32> to vector<2x32xf32>
    %565 = arith.mulf %564, %453 : vector<2x32xf32>
    %566 = arith.addf %561, %565 : vector<2x32xf32>
    %567 = vector.broadcast %552 : vector<2x1xf32> to vector<2x32xf32>
    %568 = arith.mulf %559, %567 : vector<2x32xf32>
    %569 = arith.truncf %568 : vector<2x32xf32> to vector<2x32xbf16>
    %570 = arith.index_cast %461 : i32 to index
    %c0_134 = arith.constant 0 : index
    %c0_135 = arith.constant 0 : index
    %571 = vector.load %arg8[%570, %c0_134, %c0_135] : memref<8x2x32xbf16, #tpu.memory_space<vmem>>, vector<1x2x32xbf16>
    %572 = vector.shape_cast %571 : vector<1x2x32xbf16> to vector<2x32xbf16>
    %573 = vector.shape_cast %569 : vector<2x32xbf16> to vector<1x2x32xbf16>
    tpu.vector_store %arg8[%570, %c0_134, %c0_135], %573 {strides = array<i32>} : memref<8x2x32xbf16, #tpu.memory_space<vmem>>, vector<1x2x32xbf16>,
    %c5_i32 = arith.constant 5 : i32
    %c7_i32_136 = arith.constant 7 : i32
    %574 = arith.subi %c7_i32_136, %c5_i32 : i32
    %575 = arith.index_cast %c5_i32 : i32 to index
    %c0_137 = arith.constant 0 : index
    %c0_138 = arith.constant 0 : index
    %576 = vector.load %arg1[%575, %c0_137, %c0_138] : memref<8x2x128xbf16, #tpu.memory_space<vmem>>, vector<1x2x128xbf16>
    %577 = vector.shape_cast %576 : vector<1x2x128xbf16> to vector<2x128xbf16>
    %578 = arith.extf %577 : vector<2x128xbf16> to vector<2x128xf32>
    %579 = arith.truncf %503 : vector<2x32xf32> to vector<2x32xbf16>
    %cst_139 = arith.constant dense<0.000000e+00> : vector<2x128xf32>
    %580 = tpu.matmul %579, %3, %cst_139 {dimension_numbers = #tpu.dot_dimension_numbers<[1], [0], [0], [1], [0, 0, 1, 1], [], []>} : vector<2x32xbf16>, vector<32x128xbf16>, vector<2x128xf32> -> vector<2x128xf32>
    %581 = arith.addf %578, %580 : vector<2x128xf32>
    %582 = vector.extract_strided_slice %581 {offsets = [0, 0], sizes = [2, 32], strides = [1, 1]} : vector<2x128xf32> to vector<2x32xf32>
    %583 = arith.negf %582 : vector<2x32xf32>
    %584 = math.exp %583 : vector<2x32xf32>
    %cst_140 = arith.constant 1.000000e+00 : f32
    %585 = vector.broadcast %cst_140 : f32 to vector<2x32xf32>
    %586 = arith.addf %585, %584 : vector<2x32xf32>
    %587 = arith.divf %585, %586 : vector<2x32xf32>
    %588 = vector.extract_strided_slice %581 {offsets = [0, 32], sizes = [2, 32], strides = [1, 1]} : vector<2x128xf32> to vector<2x32xf32>
    %589 = arith.negf %588 : vector<2x32xf32>
    %590 = math.exp %589 : vector<2x32xf32>
    %cst_141 = arith.constant 1.000000e+00 : f32
    %591 = vector.broadcast %cst_141 : f32 to vector<2x32xf32>
    %592 = arith.addf %591, %590 : vector<2x32xf32>
    %593 = arith.divf %591, %592 : vector<2x32xf32>
    %594 = vector.extract_strided_slice %581 {offsets = [0, 64], sizes = [2, 32], strides = [1, 1]} : vector<2x128xf32> to vector<2x32xf32>
    %595 = math.tanh %594 : vector<2x32xf32>
    %596 = vector.extract_strided_slice %581 {offsets = [0, 96], sizes = [2, 32], strides = [1, 1]} : vector<2x128xf32> to vector<2x32xf32>
    %597 = arith.negf %596 : vector<2x32xf32>
    %598 = math.exp %597 : vector<2x32xf32>
    %cst_142 = arith.constant 1.000000e+00 : f32
    %599 = vector.broadcast %cst_142 : f32 to vector<2x32xf32>
    %600 = arith.addf %599, %598 : vector<2x32xf32>
    %601 = arith.divf %599, %600 : vector<2x32xf32>
    %602 = arith.mulf %593, %510 : vector<2x32xf32>
    %603 = arith.mulf %587, %595 : vector<2x32xf32>
    %604 = arith.addf %602, %603 : vector<2x32xf32>
    %605 = math.tanh %604 : vector<2x32xf32>
    %606 = arith.mulf %601, %605 : vector<2x32xf32>
    %607 = arith.index_cast %c5_i32 : i32 to index
    %c0_143 = arith.constant 0 : index
    %c0_144 = arith.constant 0 : index
    %608 = vector.load %arg3[%607, %c0_143, %c0_144] : memref<8x2x1xf32, #tpu.memory_space<vmem>>, vector<1x2x1xf32>
    %609 = vector.shape_cast %608 : vector<1x2x1xf32> to vector<2x1xf32>
    %610 = vector.broadcast %609 : vector<2x1xf32> to vector<2x32xf32>
    %611 = arith.mulf %610, %606 : vector<2x32xf32>
    %cst_145 = arith.constant 1.000000e+00 : f32
    %612 = vector.broadcast %cst_145 : f32 to vector<2x1xf32>
    %613 = arith.subf %612, %609 : vector<2x1xf32>
    %614 = vector.broadcast %613 : vector<2x1xf32> to vector<2x32xf32>
    %615 = arith.mulf %614, %503 : vector<2x32xf32>
    %616 = arith.addf %611, %615 : vector<2x32xf32>
    %617 = vector.broadcast %609 : vector<2x1xf32> to vector<2x32xf32>
    %618 = arith.mulf %617, %604 : vector<2x32xf32>
    %cst_146 = arith.constant 1.000000e+00 : f32
    %619 = vector.broadcast %cst_146 : f32 to vector<2x1xf32>
    %620 = arith.subf %619, %609 : vector<2x1xf32>
    %621 = vector.broadcast %620 : vector<2x1xf32> to vector<2x32xf32>
    %622 = arith.mulf %621, %510 : vector<2x32xf32>
    %623 = arith.addf %618, %622 : vector<2x32xf32>
    %624 = vector.broadcast %609 : vector<2x1xf32> to vector<2x32xf32>
    %625 = arith.mulf %616, %624 : vector<2x32xf32>
    %626 = arith.truncf %625 : vector<2x32xf32> to vector<2x32xbf16>
    %627 = arith.index_cast %c5_i32 : i32 to index
    %c0_147 = arith.constant 0 : index
    %c0_148 = arith.constant 0 : index
    %628 = vector.load %arg7[%627, %c0_147, %c0_148] : memref<8x2x32xbf16, #tpu.memory_space<vmem>>, vector<1x2x32xbf16>
    %629 = vector.shape_cast %628 : vector<1x2x32xbf16> to vector<2x32xbf16>
    %630 = vector.shape_cast %626 : vector<2x32xbf16> to vector<1x2x32xbf16>
    tpu.vector_store %arg7[%627, %c0_147, %c0_148], %630 {strides = array<i32>} : memref<8x2x32xbf16, #tpu.memory_space<vmem>>, vector<1x2x32xbf16>,
    %631 = arith.index_cast %574 : i32 to index
    %c0_149 = arith.constant 0 : index
    %c0_150 = arith.constant 0 : index
    %632 = vector.load %arg2[%631, %c0_149, %c0_150] : memref<8x2x128xbf16, #tpu.memory_space<vmem>>, vector<1x2x128xbf16>
    %633 = vector.shape_cast %632 : vector<1x2x128xbf16> to vector<2x128xbf16>
    %634 = arith.extf %633 : vector<2x128xbf16> to vector<2x128xf32>
    %635 = arith.truncf %559 : vector<2x32xf32> to vector<2x32xbf16>
    %cst_151 = arith.constant dense<0.000000e+00> : vector<2x128xf32>
    %636 = tpu.matmul %635, %4, %cst_151 {dimension_numbers = #tpu.dot_dimension_numbers<[1], [0], [0], [1], [0, 0, 1, 1], [], []>} : vector<2x32xbf16>, vector<32x128xbf16>, vector<2x128xf32> -> vector<2x128xf32>
    %637 = arith.addf %634, %636 : vector<2x128xf32>
    %638 = vector.extract_strided_slice %637 {offsets = [0, 0], sizes = [2, 32], strides = [1, 1]} : vector<2x128xf32> to vector<2x32xf32>
    %639 = arith.negf %638 : vector<2x32xf32>
    %640 = math.exp %639 : vector<2x32xf32>
    %cst_152 = arith.constant 1.000000e+00 : f32
    %641 = vector.broadcast %cst_152 : f32 to vector<2x32xf32>
    %642 = arith.addf %641, %640 : vector<2x32xf32>
    %643 = arith.divf %641, %642 : vector<2x32xf32>
    %644 = vector.extract_strided_slice %637 {offsets = [0, 32], sizes = [2, 32], strides = [1, 1]} : vector<2x128xf32> to vector<2x32xf32>
    %645 = arith.negf %644 : vector<2x32xf32>
    %646 = math.exp %645 : vector<2x32xf32>
    %cst_153 = arith.constant 1.000000e+00 : f32
    %647 = vector.broadcast %cst_153 : f32 to vector<2x32xf32>
    %648 = arith.addf %647, %646 : vector<2x32xf32>
    %649 = arith.divf %647, %648 : vector<2x32xf32>
    %650 = vector.extract_strided_slice %637 {offsets = [0, 64], sizes = [2, 32], strides = [1, 1]} : vector<2x128xf32> to vector<2x32xf32>
    %651 = math.tanh %650 : vector<2x32xf32>
    %652 = vector.extract_strided_slice %637 {offsets = [0, 96], sizes = [2, 32], strides = [1, 1]} : vector<2x128xf32> to vector<2x32xf32>
    %653 = arith.negf %652 : vector<2x32xf32>
    %654 = math.exp %653 : vector<2x32xf32>
    %cst_154 = arith.constant 1.000000e+00 : f32
    %655 = vector.broadcast %cst_154 : f32 to vector<2x32xf32>
    %656 = arith.addf %655, %654 : vector<2x32xf32>
    %657 = arith.divf %655, %656 : vector<2x32xf32>
    %658 = arith.mulf %649, %566 : vector<2x32xf32>
    %659 = arith.mulf %643, %651 : vector<2x32xf32>
    %660 = arith.addf %658, %659 : vector<2x32xf32>
    %661 = math.tanh %660 : vector<2x32xf32>
    %662 = arith.mulf %657, %661 : vector<2x32xf32>
    %663 = arith.index_cast %574 : i32 to index
    %c0_155 = arith.constant 0 : index
    %c0_156 = arith.constant 0 : index
    %664 = vector.load %arg4[%663, %c0_155, %c0_156] : memref<8x2x1xf32, #tpu.memory_space<vmem>>, vector<1x2x1xf32>
    %665 = vector.shape_cast %664 : vector<1x2x1xf32> to vector<2x1xf32>
    %666 = vector.broadcast %665 : vector<2x1xf32> to vector<2x32xf32>
    %667 = arith.mulf %666, %662 : vector<2x32xf32>
    %cst_157 = arith.constant 1.000000e+00 : f32
    %668 = vector.broadcast %cst_157 : f32 to vector<2x1xf32>
    %669 = arith.subf %668, %665 : vector<2x1xf32>
    %670 = vector.broadcast %669 : vector<2x1xf32> to vector<2x32xf32>
    %671 = arith.mulf %670, %559 : vector<2x32xf32>
    %672 = arith.addf %667, %671 : vector<2x32xf32>
    %673 = vector.broadcast %665 : vector<2x1xf32> to vector<2x32xf32>
    %674 = arith.mulf %673, %660 : vector<2x32xf32>
    %cst_158 = arith.constant 1.000000e+00 : f32
    %675 = vector.broadcast %cst_158 : f32 to vector<2x1xf32>
    %676 = arith.subf %675, %665 : vector<2x1xf32>
    %677 = vector.broadcast %676 : vector<2x1xf32> to vector<2x32xf32>
    %678 = arith.mulf %677, %566 : vector<2x32xf32>
    %679 = arith.addf %674, %678 : vector<2x32xf32>
    %680 = vector.broadcast %665 : vector<2x1xf32> to vector<2x32xf32>
    %681 = arith.mulf %672, %680 : vector<2x32xf32>
    %682 = arith.truncf %681 : vector<2x32xf32> to vector<2x32xbf16>
    %683 = arith.index_cast %574 : i32 to index
    %c0_159 = arith.constant 0 : index
    %c0_160 = arith.constant 0 : index
    %684 = vector.load %arg8[%683, %c0_159, %c0_160] : memref<8x2x32xbf16, #tpu.memory_space<vmem>>, vector<1x2x32xbf16>
    %685 = vector.shape_cast %684 : vector<1x2x32xbf16> to vector<2x32xbf16>
    %686 = vector.shape_cast %682 : vector<2x32xbf16> to vector<1x2x32xbf16>
    tpu.vector_store %arg8[%683, %c0_159, %c0_160], %686 {strides = array<i32>} : memref<8x2x32xbf16, #tpu.memory_space<vmem>>, vector<1x2x32xbf16>,
    %c6_i32 = arith.constant 6 : i32
    %c7_i32_161 = arith.constant 7 : i32
    %687 = arith.subi %c7_i32_161, %c6_i32 : i32
    %688 = arith.index_cast %c6_i32 : i32 to index
    %c0_162 = arith.constant 0 : index
    %c0_163 = arith.constant 0 : index
    %689 = vector.load %arg1[%688, %c0_162, %c0_163] : memref<8x2x128xbf16, #tpu.memory_space<vmem>>, vector<1x2x128xbf16>
    %690 = vector.shape_cast %689 : vector<1x2x128xbf16> to vector<2x128xbf16>
    %691 = arith.extf %690 : vector<2x128xbf16> to vector<2x128xf32>
    %692 = arith.truncf %616 : vector<2x32xf32> to vector<2x32xbf16>
    %cst_164 = arith.constant dense<0.000000e+00> : vector<2x128xf32>
    %693 = tpu.matmul %692, %3, %cst_164 {dimension_numbers = #tpu.dot_dimension_numbers<[1], [0], [0], [1], [0, 0, 1, 1], [], []>} : vector<2x32xbf16>, vector<32x128xbf16>, vector<2x128xf32> -> vector<2x128xf32>
    %694 = arith.addf %691, %693 : vector<2x128xf32>
    %695 = vector.extract_strided_slice %694 {offsets = [0, 0], sizes = [2, 32], strides = [1, 1]} : vector<2x128xf32> to vector<2x32xf32>
    %696 = arith.negf %695 : vector<2x32xf32>
    %697 = math.exp %696 : vector<2x32xf32>
    %cst_165 = arith.constant 1.000000e+00 : f32
    %698 = vector.broadcast %cst_165 : f32 to vector<2x32xf32>
    %699 = arith.addf %698, %697 : vector<2x32xf32>
    %700 = arith.divf %698, %699 : vector<2x32xf32>
    %701 = vector.extract_strided_slice %694 {offsets = [0, 32], sizes = [2, 32], strides = [1, 1]} : vector<2x128xf32> to vector<2x32xf32>
    %702 = arith.negf %701 : vector<2x32xf32>
    %703 = math.exp %702 : vector<2x32xf32>
    %cst_166 = arith.constant 1.000000e+00 : f32
    %704 = vector.broadcast %cst_166 : f32 to vector<2x32xf32>
    %705 = arith.addf %704, %703 : vector<2x32xf32>
    %706 = arith.divf %704, %705 : vector<2x32xf32>
    %707 = vector.extract_strided_slice %694 {offsets = [0, 64], sizes = [2, 32], strides = [1, 1]} : vector<2x128xf32> to vector<2x32xf32>
    %708 = math.tanh %707 : vector<2x32xf32>
    %709 = vector.extract_strided_slice %694 {offsets = [0, 96], sizes = [2, 32], strides = [1, 1]} : vector<2x128xf32> to vector<2x32xf32>
    %710 = arith.negf %709 : vector<2x32xf32>
    %711 = math.exp %710 : vector<2x32xf32>
    %cst_167 = arith.constant 1.000000e+00 : f32
    %712 = vector.broadcast %cst_167 : f32 to vector<2x32xf32>
    %713 = arith.addf %712, %711 : vector<2x32xf32>
    %714 = arith.divf %712, %713 : vector<2x32xf32>
    %715 = arith.mulf %706, %623 : vector<2x32xf32>
    %716 = arith.mulf %700, %708 : vector<2x32xf32>
    %717 = arith.addf %715, %716 : vector<2x32xf32>
    %718 = math.tanh %717 : vector<2x32xf32>
    %719 = arith.mulf %714, %718 : vector<2x32xf32>
    %720 = arith.index_cast %c6_i32 : i32 to index
    %c0_168 = arith.constant 0 : index
    %c0_169 = arith.constant 0 : index
    %721 = vector.load %arg3[%720, %c0_168, %c0_169] : memref<8x2x1xf32, #tpu.memory_space<vmem>>, vector<1x2x1xf32>
    %722 = vector.shape_cast %721 : vector<1x2x1xf32> to vector<2x1xf32>
    %723 = vector.broadcast %722 : vector<2x1xf32> to vector<2x32xf32>
    %724 = arith.mulf %723, %719 : vector<2x32xf32>
    %cst_170 = arith.constant 1.000000e+00 : f32
    %725 = vector.broadcast %cst_170 : f32 to vector<2x1xf32>
    %726 = arith.subf %725, %722 : vector<2x1xf32>
    %727 = vector.broadcast %726 : vector<2x1xf32> to vector<2x32xf32>
    %728 = arith.mulf %727, %616 : vector<2x32xf32>
    %729 = arith.addf %724, %728 : vector<2x32xf32>
    %730 = vector.broadcast %722 : vector<2x1xf32> to vector<2x32xf32>
    %731 = arith.mulf %730, %717 : vector<2x32xf32>
    %cst_171 = arith.constant 1.000000e+00 : f32
    %732 = vector.broadcast %cst_171 : f32 to vector<2x1xf32>
    %733 = arith.subf %732, %722 : vector<2x1xf32>
    %734 = vector.broadcast %733 : vector<2x1xf32> to vector<2x32xf32>
    %735 = arith.mulf %734, %623 : vector<2x32xf32>
    %736 = arith.addf %731, %735 : vector<2x32xf32>
    %737 = vector.broadcast %722 : vector<2x1xf32> to vector<2x32xf32>
    %738 = arith.mulf %729, %737 : vector<2x32xf32>
    %739 = arith.truncf %738 : vector<2x32xf32> to vector<2x32xbf16>
    %740 = arith.index_cast %c6_i32 : i32 to index
    %c0_172 = arith.constant 0 : index
    %c0_173 = arith.constant 0 : index
    %741 = vector.load %arg7[%740, %c0_172, %c0_173] : memref<8x2x32xbf16, #tpu.memory_space<vmem>>, vector<1x2x32xbf16>
    %742 = vector.shape_cast %741 : vector<1x2x32xbf16> to vector<2x32xbf16>
    %743 = vector.shape_cast %739 : vector<2x32xbf16> to vector<1x2x32xbf16>
    tpu.vector_store %arg7[%740, %c0_172, %c0_173], %743 {strides = array<i32>} : memref<8x2x32xbf16, #tpu.memory_space<vmem>>, vector<1x2x32xbf16>,
    %744 = arith.index_cast %687 : i32 to index
    %c0_174 = arith.constant 0 : index
    %c0_175 = arith.constant 0 : index
    %745 = vector.load %arg2[%744, %c0_174, %c0_175] : memref<8x2x128xbf16, #tpu.memory_space<vmem>>, vector<1x2x128xbf16>
    %746 = vector.shape_cast %745 : vector<1x2x128xbf16> to vector<2x128xbf16>
    %747 = arith.extf %746 : vector<2x128xbf16> to vector<2x128xf32>
    %748 = arith.truncf %672 : vector<2x32xf32> to vector<2x32xbf16>
    %cst_176 = arith.constant dense<0.000000e+00> : vector<2x128xf32>
    %749 = tpu.matmul %748, %4, %cst_176 {dimension_numbers = #tpu.dot_dimension_numbers<[1], [0], [0], [1], [0, 0, 1, 1], [], []>} : vector<2x32xbf16>, vector<32x128xbf16>, vector<2x128xf32> -> vector<2x128xf32>
    %750 = arith.addf %747, %749 : vector<2x128xf32>
    %751 = vector.extract_strided_slice %750 {offsets = [0, 0], sizes = [2, 32], strides = [1, 1]} : vector<2x128xf32> to vector<2x32xf32>
    %752 = arith.negf %751 : vector<2x32xf32>
    %753 = math.exp %752 : vector<2x32xf32>
    %cst_177 = arith.constant 1.000000e+00 : f32
    %754 = vector.broadcast %cst_177 : f32 to vector<2x32xf32>
    %755 = arith.addf %754, %753 : vector<2x32xf32>
    %756 = arith.divf %754, %755 : vector<2x32xf32>
    %757 = vector.extract_strided_slice %750 {offsets = [0, 32], sizes = [2, 32], strides = [1, 1]} : vector<2x128xf32> to vector<2x32xf32>
    %758 = arith.negf %757 : vector<2x32xf32>
    %759 = math.exp %758 : vector<2x32xf32>
    %cst_178 = arith.constant 1.000000e+00 : f32
    %760 = vector.broadcast %cst_178 : f32 to vector<2x32xf32>
    %761 = arith.addf %760, %759 : vector<2x32xf32>
    %762 = arith.divf %760, %761 : vector<2x32xf32>
    %763 = vector.extract_strided_slice %750 {offsets = [0, 64], sizes = [2, 32], strides = [1, 1]} : vector<2x128xf32> to vector<2x32xf32>
    %764 = math.tanh %763 : vector<2x32xf32>
    %765 = vector.extract_strided_slice %750 {offsets = [0, 96], sizes = [2, 32], strides = [1, 1]} : vector<2x128xf32> to vector<2x32xf32>
    %766 = arith.negf %765 : vector<2x32xf32>
    %767 = math.exp %766 : vector<2x32xf32>
    %cst_179 = arith.constant 1.000000e+00 : f32
    %768 = vector.broadcast %cst_179 : f32 to vector<2x32xf32>
    %769 = arith.addf %768, %767 : vector<2x32xf32>
    %770 = arith.divf %768, %769 : vector<2x32xf32>
    %771 = arith.mulf %762, %679 : vector<2x32xf32>
    %772 = arith.mulf %756, %764 : vector<2x32xf32>
    %773 = arith.addf %771, %772 : vector<2x32xf32>
    %774 = math.tanh %773 : vector<2x32xf32>
    %775 = arith.mulf %770, %774 : vector<2x32xf32>
    %776 = arith.index_cast %687 : i32 to index
    %c0_180 = arith.constant 0 : index
    %c0_181 = arith.constant 0 : index
    %777 = vector.load %arg4[%776, %c0_180, %c0_181] : memref<8x2x1xf32, #tpu.memory_space<vmem>>, vector<1x2x1xf32>
    %778 = vector.shape_cast %777 : vector<1x2x1xf32> to vector<2x1xf32>
    %779 = vector.broadcast %778 : vector<2x1xf32> to vector<2x32xf32>
    %780 = arith.mulf %779, %775 : vector<2x32xf32>
    %cst_182 = arith.constant 1.000000e+00 : f32
    %781 = vector.broadcast %cst_182 : f32 to vector<2x1xf32>
    %782 = arith.subf %781, %778 : vector<2x1xf32>
    %783 = vector.broadcast %782 : vector<2x1xf32> to vector<2x32xf32>
    %784 = arith.mulf %783, %672 : vector<2x32xf32>
    %785 = arith.addf %780, %784 : vector<2x32xf32>
    %786 = vector.broadcast %778 : vector<2x1xf32> to vector<2x32xf32>
    %787 = arith.mulf %786, %773 : vector<2x32xf32>
    %cst_183 = arith.constant 1.000000e+00 : f32
    %788 = vector.broadcast %cst_183 : f32 to vector<2x1xf32>
    %789 = arith.subf %788, %778 : vector<2x1xf32>
    %790 = vector.broadcast %789 : vector<2x1xf32> to vector<2x32xf32>
    %791 = arith.mulf %790, %679 : vector<2x32xf32>
    %792 = arith.addf %787, %791 : vector<2x32xf32>
    %793 = vector.broadcast %778 : vector<2x1xf32> to vector<2x32xf32>
    %794 = arith.mulf %785, %793 : vector<2x32xf32>
    %795 = arith.truncf %794 : vector<2x32xf32> to vector<2x32xbf16>
    %796 = arith.index_cast %687 : i32 to index
    %c0_184 = arith.constant 0 : index
    %c0_185 = arith.constant 0 : index
    %797 = vector.load %arg8[%796, %c0_184, %c0_185] : memref<8x2x32xbf16, #tpu.memory_space<vmem>>, vector<1x2x32xbf16>
    %798 = vector.shape_cast %797 : vector<1x2x32xbf16> to vector<2x32xbf16>
    %799 = vector.shape_cast %795 : vector<2x32xbf16> to vector<1x2x32xbf16>
    tpu.vector_store %arg8[%796, %c0_184, %c0_185], %799 {strides = array<i32>} : memref<8x2x32xbf16, #tpu.memory_space<vmem>>, vector<1x2x32xbf16>,
    %c7_i32_186 = arith.constant 7 : i32
    %c7_i32_187 = arith.constant 7 : i32
    %800 = arith.subi %c7_i32_187, %c7_i32_186 : i32
    %801 = arith.index_cast %c7_i32_186 : i32 to index
    %c0_188 = arith.constant 0 : index
    %c0_189 = arith.constant 0 : index
    %802 = vector.load %arg1[%801, %c0_188, %c0_189] : memref<8x2x128xbf16, #tpu.memory_space<vmem>>, vector<1x2x128xbf16>
    %803 = vector.shape_cast %802 : vector<1x2x128xbf16> to vector<2x128xbf16>
    %804 = arith.extf %803 : vector<2x128xbf16> to vector<2x128xf32>
    %805 = arith.truncf %729 : vector<2x32xf32> to vector<2x32xbf16>
    %cst_190 = arith.constant dense<0.000000e+00> : vector<2x128xf32>
    %806 = tpu.matmul %805, %3, %cst_190 {dimension_numbers = #tpu.dot_dimension_numbers<[1], [0], [0], [1], [0, 0, 1, 1], [], []>} : vector<2x32xbf16>, vector<32x128xbf16>, vector<2x128xf32> -> vector<2x128xf32>
    %807 = arith.addf %804, %806 : vector<2x128xf32>
    %808 = vector.extract_strided_slice %807 {offsets = [0, 0], sizes = [2, 32], strides = [1, 1]} : vector<2x128xf32> to vector<2x32xf32>
    %809 = arith.negf %808 : vector<2x32xf32>
    %810 = math.exp %809 : vector<2x32xf32>
    %cst_191 = arith.constant 1.000000e+00 : f32
    %811 = vector.broadcast %cst_191 : f32 to vector<2x32xf32>
    %812 = arith.addf %811, %810 : vector<2x32xf32>
    %813 = arith.divf %811, %812 : vector<2x32xf32>
    %814 = vector.extract_strided_slice %807 {offsets = [0, 32], sizes = [2, 32], strides = [1, 1]} : vector<2x128xf32> to vector<2x32xf32>
    %815 = arith.negf %814 : vector<2x32xf32>
    %816 = math.exp %815 : vector<2x32xf32>
    %cst_192 = arith.constant 1.000000e+00 : f32
    %817 = vector.broadcast %cst_192 : f32 to vector<2x32xf32>
    %818 = arith.addf %817, %816 : vector<2x32xf32>
    %819 = arith.divf %817, %818 : vector<2x32xf32>
    %820 = vector.extract_strided_slice %807 {offsets = [0, 64], sizes = [2, 32], strides = [1, 1]} : vector<2x128xf32> to vector<2x32xf32>
    %821 = math.tanh %820 : vector<2x32xf32>
    %822 = vector.extract_strided_slice %807 {offsets = [0, 96], sizes = [2, 32], strides = [1, 1]} : vector<2x128xf32> to vector<2x32xf32>
    %823 = arith.negf %822 : vector<2x32xf32>
    %824 = math.exp %823 : vector<2x32xf32>
    %cst_193 = arith.constant 1.000000e+00 : f32
    %825 = vector.broadcast %cst_193 : f32 to vector<2x32xf32>
    %826 = arith.addf %825, %824 : vector<2x32xf32>
    %827 = arith.divf %825, %826 : vector<2x32xf32>
    %828 = arith.mulf %819, %736 : vector<2x32xf32>
    %829 = arith.mulf %813, %821 : vector<2x32xf32>
    %830 = arith.addf %828, %829 : vector<2x32xf32>
    %831 = math.tanh %830 : vector<2x32xf32>
    %832 = arith.mulf %827, %831 : vector<2x32xf32>
    %833 = arith.index_cast %c7_i32_186 : i32 to index
    %c0_194 = arith.constant 0 : index
    %c0_195 = arith.constant 0 : index
    %834 = vector.load %arg3[%833, %c0_194, %c0_195] : memref<8x2x1xf32, #tpu.memory_space<vmem>>, vector<1x2x1xf32>
    %835 = vector.shape_cast %834 : vector<1x2x1xf32> to vector<2x1xf32>
    %836 = vector.broadcast %835 : vector<2x1xf32> to vector<2x32xf32>
    %837 = arith.mulf %836, %832 : vector<2x32xf32>
    %cst_196 = arith.constant 1.000000e+00 : f32
    %838 = vector.broadcast %cst_196 : f32 to vector<2x1xf32>
    %839 = arith.subf %838, %835 : vector<2x1xf32>
    %840 = vector.broadcast %839 : vector<2x1xf32> to vector<2x32xf32>
    %841 = arith.mulf %840, %729 : vector<2x32xf32>
    %842 = arith.addf %837, %841 : vector<2x32xf32>
    %843 = vector.broadcast %835 : vector<2x1xf32> to vector<2x32xf32>
    %844 = arith.mulf %843, %830 : vector<2x32xf32>
    %cst_197 = arith.constant 1.000000e+00 : f32
    %845 = vector.broadcast %cst_197 : f32 to vector<2x1xf32>
    %846 = arith.subf %845, %835 : vector<2x1xf32>
    %847 = vector.broadcast %846 : vector<2x1xf32> to vector<2x32xf32>
    %848 = arith.mulf %847, %736 : vector<2x32xf32>
    %849 = arith.addf %844, %848 : vector<2x32xf32>
    %850 = vector.broadcast %835 : vector<2x1xf32> to vector<2x32xf32>
    %851 = arith.mulf %842, %850 : vector<2x32xf32>
    %852 = arith.truncf %851 : vector<2x32xf32> to vector<2x32xbf16>
    %853 = arith.index_cast %c7_i32_186 : i32 to index
    %c0_198 = arith.constant 0 : index
    %c0_199 = arith.constant 0 : index
    %854 = vector.load %arg7[%853, %c0_198, %c0_199] : memref<8x2x32xbf16, #tpu.memory_space<vmem>>, vector<1x2x32xbf16>
    %855 = vector.shape_cast %854 : vector<1x2x32xbf16> to vector<2x32xbf16>
    %856 = vector.shape_cast %852 : vector<2x32xbf16> to vector<1x2x32xbf16>
    tpu.vector_store %arg7[%853, %c0_198, %c0_199], %856 {strides = array<i32>} : memref<8x2x32xbf16, #tpu.memory_space<vmem>>, vector<1x2x32xbf16>,
    %857 = arith.index_cast %800 : i32 to index
    %c0_200 = arith.constant 0 : index
    %c0_201 = arith.constant 0 : index
    %858 = vector.load %arg2[%857, %c0_200, %c0_201] : memref<8x2x128xbf16, #tpu.memory_space<vmem>>, vector<1x2x128xbf16>
    %859 = vector.shape_cast %858 : vector<1x2x128xbf16> to vector<2x128xbf16>
    %860 = arith.extf %859 : vector<2x128xbf16> to vector<2x128xf32>
    %861 = arith.truncf %785 : vector<2x32xf32> to vector<2x32xbf16>
    %cst_202 = arith.constant dense<0.000000e+00> : vector<2x128xf32>
    %862 = tpu.matmul %861, %4, %cst_202 {dimension_numbers = #tpu.dot_dimension_numbers<[1], [0], [0], [1], [0, 0, 1, 1], [], []>} : vector<2x32xbf16>, vector<32x128xbf16>, vector<2x128xf32> -> vector<2x128xf32>
    %863 = arith.addf %860, %862 : vector<2x128xf32>
    %864 = vector.extract_strided_slice %863 {offsets = [0, 0], sizes = [2, 32], strides = [1, 1]} : vector<2x128xf32> to vector<2x32xf32>
    %865 = arith.negf %864 : vector<2x32xf32>
    %866 = math.exp %865 : vector<2x32xf32>
    %cst_203 = arith.constant 1.000000e+00 : f32
    %867 = vector.broadcast %cst_203 : f32 to vector<2x32xf32>
    %868 = arith.addf %867, %866 : vector<2x32xf32>
    %869 = arith.divf %867, %868 : vector<2x32xf32>
    %870 = vector.extract_strided_slice %863 {offsets = [0, 32], sizes = [2, 32], strides = [1, 1]} : vector<2x128xf32> to vector<2x32xf32>
    %871 = arith.negf %870 : vector<2x32xf32>
    %872 = math.exp %871 : vector<2x32xf32>
    %cst_204 = arith.constant 1.000000e+00 : f32
    %873 = vector.broadcast %cst_204 : f32 to vector<2x32xf32>
    %874 = arith.addf %873, %872 : vector<2x32xf32>
    %875 = arith.divf %873, %874 : vector<2x32xf32>
    %876 = vector.extract_strided_slice %863 {offsets = [0, 64], sizes = [2, 32], strides = [1, 1]} : vector<2x128xf32> to vector<2x32xf32>
    %877 = math.tanh %876 : vector<2x32xf32>
    %878 = vector.extract_strided_slice %863 {offsets = [0, 96], sizes = [2, 32], strides = [1, 1]} : vector<2x128xf32> to vector<2x32xf32>
    %879 = arith.negf %878 : vector<2x32xf32>
    %880 = math.exp %879 : vector<2x32xf32>
    %cst_205 = arith.constant 1.000000e+00 : f32
    %881 = vector.broadcast %cst_205 : f32 to vector<2x32xf32>
    %882 = arith.addf %881, %880 : vector<2x32xf32>
    %883 = arith.divf %881, %882 : vector<2x32xf32>
    %884 = arith.mulf %875, %792 : vector<2x32xf32>
    %885 = arith.mulf %869, %877 : vector<2x32xf32>
    %886 = arith.addf %884, %885 : vector<2x32xf32>
    %887 = math.tanh %886 : vector<2x32xf32>
    %888 = arith.mulf %883, %887 : vector<2x32xf32>
    %889 = arith.index_cast %800 : i32 to index
    %c0_206 = arith.constant 0 : index
    %c0_207 = arith.constant 0 : index
    %890 = vector.load %arg4[%889, %c0_206, %c0_207] : memref<8x2x1xf32, #tpu.memory_space<vmem>>, vector<1x2x1xf32>
    %891 = vector.shape_cast %890 : vector<1x2x1xf32> to vector<2x1xf32>
    %892 = vector.broadcast %891 : vector<2x1xf32> to vector<2x32xf32>
    %893 = arith.mulf %892, %888 : vector<2x32xf32>
    %cst_208 = arith.constant 1.000000e+00 : f32
    %894 = vector.broadcast %cst_208 : f32 to vector<2x1xf32>
    %895 = arith.subf %894, %891 : vector<2x1xf32>
    %896 = vector.broadcast %895 : vector<2x1xf32> to vector<2x32xf32>
    %897 = arith.mulf %896, %785 : vector<2x32xf32>
    %898 = arith.addf %893, %897 : vector<2x32xf32>
    %899 = vector.broadcast %891 : vector<2x1xf32> to vector<2x32xf32>
    %900 = arith.mulf %899, %886 : vector<2x32xf32>
    %cst_209 = arith.constant 1.000000e+00 : f32
    %901 = vector.broadcast %cst_209 : f32 to vector<2x1xf32>
    %902 = arith.subf %901, %891 : vector<2x1xf32>
    %903 = vector.broadcast %902 : vector<2x1xf32> to vector<2x32xf32>
    %904 = arith.mulf %903, %792 : vector<2x32xf32>
    %905 = arith.addf %900, %904 : vector<2x32xf32>
    %906 = vector.broadcast %891 : vector<2x1xf32> to vector<2x32xf32>
    %907 = arith.mulf %898, %906 : vector<2x32xf32>
    %908 = arith.truncf %907 : vector<2x32xf32> to vector<2x32xbf16>
    %909 = arith.index_cast %800 : i32 to index
    %c0_210 = arith.constant 0 : index
    %c0_211 = arith.constant 0 : index
    %910 = vector.load %arg8[%909, %c0_210, %c0_211] : memref<8x2x32xbf16, #tpu.memory_space<vmem>>, vector<1x2x32xbf16>
    %911 = vector.shape_cast %910 : vector<1x2x32xbf16> to vector<2x32xbf16>
    %912 = vector.shape_cast %908 : vector<2x32xbf16> to vector<1x2x32xbf16>
    tpu.vector_store %arg8[%909, %c0_210, %c0_211], %912 {strides = array<i32>} : memref<8x2x32xbf16, #tpu.memory_space<vmem>>, vector<1x2x32xbf16>,
    %c8_i32 = arith.constant 8 : i32
    %c0_212 = arith.constant 0 : index
    %c0_213 = arith.constant 0 : index
    %913 = vector.load %arg10[%c0_212, %c0_213] : memref<2x32xf32, #tpu.memory_space<vmem>>, vector<2x32xf32>
    tpu.vector_store %arg10[%c0_212, %c0_213], %842 {strides = array<i32>} : memref<2x32xf32, #tpu.memory_space<vmem>>, vector<2x32xf32>,
    %c0_214 = arith.constant 0 : index
    %c0_215 = arith.constant 0 : index
    %914 = vector.load %arg11[%c0_214, %c0_215] : memref<2x32xf32, #tpu.memory_space<vmem>>, vector<2x32xf32>
    tpu.vector_store %arg11[%c0_214, %c0_215], %849 {strides = array<i32>} : memref<2x32xf32, #tpu.memory_space<vmem>>, vector<2x32xf32>,
    %c0_216 = arith.constant 0 : index
    %c0_217 = arith.constant 0 : index
    %915 = vector.load %arg12[%c0_216, %c0_217] : memref<2x32xf32, #tpu.memory_space<vmem>>, vector<2x32xf32>
    tpu.vector_store %arg12[%c0_216, %c0_217], %898 {strides = array<i32>} : memref<2x32xf32, #tpu.memory_space<vmem>>, vector<2x32xf32>,
    %c0_218 = arith.constant 0 : index
    %c0_219 = arith.constant 0 : index
    %916 = vector.load %arg13[%c0_218, %c0_219] : memref<2x32xf32, #tpu.memory_space<vmem>>, vector<2x32xf32>
    tpu.vector_store %arg13[%c0_218, %c0_219], %905 {strides = array<i32>} : memref<2x32xf32, #tpu.memory_space<vmem>>, vector<2x32xf32>,
    %917 = tpu.concatenate %842, %898 in 1 : vector<2x32xf32>, vector<2x32xf32> -> vector<2x64xf32>
    %c0_220 = arith.constant 0 : index
    %c0_221 = arith.constant 0 : index
    %918 = vector.load %arg9[%c0_220, %c0_221] : memref<2x64xf32, #tpu.memory_space<vmem>>, vector<2x64xf32>
    tpu.vector_store %arg9[%c0_220, %c0_221], %917 {strides = array<i32>} : memref<2x64xf32, #tpu.memory_space<vmem>>, vector<2x64xf32>,
    return
  }
  func.func @transform_0(%arg0: i32) -> (i32, i32, i32) {
    %c0_i32 = arith.constant 0 : i32
    %c0_i32_0 = arith.constant 0 : i32
    %c0_i32_1 = arith.constant 0 : i32
    return %arg0, %c0_i32, %c0_i32_0 : i32, i32, i32
  }
  func.func @transform_1(%arg0: i32) -> (i32, i32, i32) {
    %c0_i32 = arith.constant 0 : i32
    %0 = arith.subi %c0_i32, %arg0 : i32
    %c0_i32_0 = arith.constant 0 : i32
    %c0_i32_1 = arith.constant 0 : i32
    %c0_i32_2 = arith.constant 0 : i32
    return %0, %c0_i32_0, %c0_i32_1 : i32, i32, i32
  }
  func.func @transform_2(%arg0: i32) -> (i32, i32, i32) {
    %c0_i32 = arith.constant 0 : i32
    %c0_i32_0 = arith.constant 0 : i32
    %c0_i32_1 = arith.constant 0 : i32
    return %arg0, %c0_i32, %c0_i32_0 : i32, i32, i32
  }
  func.func @transform_3(%arg0: i32) -> (i32, i32, i32) {
    %c0_i32 = arith.constant 0 : i32
    %0 = arith.subi %c0_i32, %arg0 : i32
    %c0_i32_0 = arith.constant 0 : i32
    %c0_i32_1 = arith.constant 0 : i32
    %c0_i32_2 = arith.constant 0 : i32
    return %0, %c0_i32_0, %c0_i32_1 : i32, i32, i32
  }
  func.func @transform_4(%arg0: i32) -> (i32, i32) {
    %c0_i32 = arith.constant 0 : i32
    %c0_i32_0 = arith.constant 0 : i32
    %c0_i32_1 = arith.constant 0 : i32
    return %c0_i32, %c0_i32_0 : i32, i32
  }
  func.func @transform_5(%arg0: i32) -> (i32, i32) {
    %c0_i32 = arith.constant 0 : i32
    %c0_i32_0 = arith.constant 0 : i32
    %c0_i32_1 = arith.constant 0 : i32
    return %c0_i32, %c0_i32_0 : i32, i32
  }
  func.func @transform_6(%arg0: i32) -> (i32, i32, i32) {
    %c0_i32 = arith.constant 0 : i32
    %c0_i32_0 = arith.constant 0 : i32
    %c0_i32_1 = arith.constant 0 : i32
    return %arg0, %c0_i32, %c0_i32_0 : i32, i32, i32
  }
  func.func @transform_7(%arg0: i32) -> (i32, i32, i32) {
    %c0_i32 = arith.constant 0 : i32
    %0 = arith.subi %c0_i32, %arg0 : i32
    %c0_i32_0 = arith.constant 0 : i32
    %c0_i32_1 = arith.constant 0 : i32
    %c0_i32_2 = arith.constant 0 : i32
    return %0, %c0_i32_0, %c0_i32_1 : i32, i32, i32
  }
  func.func @transform_8(%arg0: i32) -> (i32, i32) {
    %c0_i32 = arith.constant 0 : i32
    %c0_i32_0 = arith.constant 0 : i32
    %c0_i32_1 = arith.constant 0 : i32
    return %c0_i32, %c0_i32_0 : i32, i32
  }
}

</mosaic_0001>

<llo_original>
// kernel: forward.6
$region0: #{forward.6}
  #allocation0 [shape = 'u32[]', space=smem, size = 0x4, offset = 0x4, fixed_abs, tag = 'smem constant byte address 0x4 - core index']
  #allocation1 [shape = 'u32[72,128]{1,0:T(1,128)}', space=vmem, size = 0x9000, scoped, tag = 'internal scratch']
  %s0 = inlined_call_operand.vmem [shape: bf16[8,2,32], index: 0, kind: input, shape index: {}]
  %s1 = inlined_call_operand.vmem [shape: bf16[32,256], index: 1, kind: input, shape index: {}]
  %s2 = inlined_call_operand.vmem [shape: f32[1,256], index: 2, kind: input, shape index: {}]
  %s3 = inlined_call_operand.vmem [shape: bf16[8,2,128], index: 3, kind: output, shape index: {0}]
  %s4 = inlined_call_operand.vmem [shape: bf16[8,2,128], index: 4, kind: output, shape index: {1}]
  %5 = xla_tuple %s3, %s4
  %s6 = sld [smem:[#allocation0]]
  $region30: #{forward.6} parent=0
    _
  %s8 = ssub.s32 1, %s6
  %s9 = scalar_select 0, %s8, %s6
  // Predicated region
  $region2: #{forward.6} parent=0 // pred_check
    _
  $region3: #{forward.6} parent=0 // pred_check_branch
    %11 = sbr.rel (0) target = $region5
  $region4: #{forward.6} parent=0 // pred_region
    _
  $region5: #{forward.6} parent=0 // pred_fallthru
    _
  // Predicated region
  $region6: #{forward.6} parent=0 // pred_check
    _
  $region7: #{forward.6} parent=0 // pred_check_branch
    %13 = sbr.rel (0) target = $region9
  $region8: #{forward.6} parent=0 // pred_region
    _
  $region9: #{forward.6} parent=0 // pred_fallthru
    _
  // Predicated region
  $region10: #{forward.6} parent=0 // pred_check
    _
  $region11: #{forward.6} parent=0 // pred_check_branch
    %15 = sbr.rel (0) target = $region13
  $region12: #{forward.6} parent=0 // pred_region
    _
  $region13: #{forward.6} parent=0 // pred_fallthru
    _
  %v17 = vld [vmem:[%s0] sm:$0x1]
  %v18 = vld [vmem:[%s0 + $0x1] sm:$0x1]
  %v19 = vld [vmem:[%s0 + $0x2] sm:$0x1]
  %v20 = vld [vmem:[%s0 + $0x3] sm:$0x1]
  %v21 = vld [vmem:[%s0 + $0x4] sm:$0x1]
  %v22 = vld [vmem:[%s0 + $0x5] sm:$0x1]
  %v23 = vld [vmem:[%s0 + $0x6] sm:$0x1]
  %v24 = vld [vmem:[%s0 + $0x7] sm:$0x1]
  %v25 = vld [vmem:[%s1] sm:$0xff]
  %v26 = vld [vmem:[%s1 + $0x8] sm:$0xff]
  %v27 = vld [vmem:[%s1 + $0x10] sm:$0xff]
  %v28 = vld [vmem:[%s1 + $0x18] sm:$0xff]
  %v29 = vld [vmem:[%s2] sm:$0x3]
  %v31 = vperm.slane %v29, 0
  %v32 = vperm.slane %v29, 1
  %36 = vst [vmem:[#allocation1] ss:$9 sm:$0xff] %v17
  %s38 = scalar_lea.vmem [#allocation1], 1
  %39 = vst [vmem:[%s38] ss:$9 sm:$0xff] %v18
  %s41 = scalar_lea.vmem [#allocation1], 2
  %42 = vst [vmem:[%s41] ss:$9 sm:$0xff] %v19
  %s44 = scalar_lea.vmem [#allocation1], 3
  %45 = vst [vmem:[%s44] ss:$9 sm:$0xff] %v20
  %s47 = scalar_lea.vmem [#allocation1], 4
  %48 = vst [vmem:[%s47] ss:$9 sm:$0xff] %v21
  %s50 = scalar_lea.vmem [#allocation1], 5
  %51 = vst [vmem:[%s50] ss:$9 sm:$0xff] %v22
  %s53 = scalar_lea.vmem [#allocation1], 6
  %54 = vst [vmem:[%s53] ss:$9 sm:$0xff] %v23
  %s56 = scalar_lea.vmem [#allocation1], 7
  %57 = vst [vmem:[%s56] ss:$9 sm:$0xff] %v24
  %v58 = vld [vmem:[#allocation1] sm:$0xff]
  %v63 = vunpack.c.l.b16 %v25
  %v64 = vunpack.c.h.b16 %v25
  %v65 = vunpack.c.l.b16 %v26
  %v66 = vunpack.c.h.b16 %v26
  %v67 = vunpack.c.l.b16 %v27
  %v68 = vunpack.c.h.b16 %v27
  %v69 = vunpack.c.l.b16 %v28
  %v70 = vunpack.c.h.b16 %v28
  %v71 = vpack.c.b16 %v65, %v63
  %v72 = vpack.c.b16 %v66, %v64
  %v73 = vpack.c.b16 %v69, %v67
  %v74 = vpack.c.b16 %v70, %v68
  %vm79 = vcmask 261120
  %v80 = vsel %vm79, %v58, 0
  %82 = vmatpush.bf16.msra.mxu0 0
  %83 = vmatpush.bf16.msra.mxu0 0
  %84 = vmatpush.bf16.msra.mxu0 0
  %85 = vmatpush.bf16.msra.mxu0 0
  %86 = vmatpush.bf16.msra.mxu0 0
  %87 = vmatpush.bf16.msra.mxu0 0
  %88 = vmatpush.bf16.msra.mxu0 %v73
  %89 = vmatpush.bf16.msra.mxu0 %v71
  %90 = vmatmul.bf16.gmra.mxu0 %v80
  %v91 = vpop.f32.mrf.mxu0
  %v92 = vadd.f32 %v31, %v91
  %v93 = vpop.f32.mrf.mxu0
  %v94 = vadd.f32 %v31, %v93
  %95 = vdwg.mxu0
  %96 = vmatpush.bf16.msra.mxu0 0
  %97 = vmatpush.bf16.msra.mxu0 0
  %98 = vmatpush.bf16.msra.mxu0 0
  %99 = vmatpush.bf16.msra.mxu0 0
  %100 = vmatpush.bf16.msra.mxu0 0
  %101 = vmatpush.bf16.msra.mxu0 0
  %102 = vmatpush.bf16.msra.mxu0 %v74
  %103 = vmatpush.bf16.msra.mxu0 %v72
  %104 = vmatmul.bf16.gmra.mxu0 %v80
  %v105 = vpop.f32.mrf.mxu0
  %v106 = vadd.f32 %v32, %v105
  %v107 = vpop.f32.mrf.mxu0
  %v108 = vadd.f32 %v32, %v107
  %109 = vdwg.mxu0
  %v112 = vrot.slane %v92, 2
  %v113 = vrot.slane %v92, 4
  %v114 = vrot.slane %v92, 6
  %v115 = vrot.slane %v94, 2
  %v116 = vrot.slane %v94, 4
  %v117 = vrot.slane %v94, 6
  %v124 = vpack.c.bf16 %v92, %v92
  %v125 = vpack.c.bf16 %v112, %v112
  %v126 = vpack.c.bf16 %v113, %v113
  %v127 = vpack.c.bf16 %v114, %v114
  %v128 = vpack.c.bf16 %v94, %v94
  %v129 = vpack.c.bf16 %v115, %v115
  %v130 = vpack.c.bf16 %v116, %v116
  %v131 = vpack.c.bf16 %v117, %v117
  %132 = vst [vmem:[%s3] sm:$0x1] %v124
  %133 = vst [vmem:[%s3 + $0x1] sm:$0x1] %v125
  %134 = vst [vmem:[%s3 + $0x2] sm:$0x1] %v126
  %135 = vst [vmem:[%s3 + $0x3] sm:$0x1] %v127
  %136 = vst [vmem:[%s3 + $0x4] sm:$0x1] %v128
  %137 = vst [vmem:[%s3 + $0x5] sm:$0x1] %v129
  %138 = vst [vmem:[%s3 + $0x6] sm:$0x1] %v130
  %139 = vst [vmem:[%s3 + $0x7] sm:$0x1] %v131
  %v142 = vrot.slane %v106, 2
  %v143 = vrot.slane %v106, 4
  %v144 = vrot.slane %v106, 6
  %v145 = vrot.slane %v108, 2
  %v146 = vrot.slane %v108, 4
  %v147 = vrot.slane %v108, 6
  %v154 = vpack.c.bf16 %v106, %v106
  %v155 = vpack.c.bf16 %v142, %v142
  %v156 = vpack.c.bf16 %v143, %v143
  %v157 = vpack.c.bf16 %v144, %v144
  %v158 = vpack.c.bf16 %v108, %v108
  %v159 = vpack.c.bf16 %v145, %v145
  %v160 = vpack.c.bf16 %v146, %v146
  %v161 = vpack.c.bf16 %v147, %v147
  %162 = vst [vmem:[%s4] sm:$0x1] %v154
  %163 = vst [vmem:[%s4 + $0x1] sm:$0x1] %v155
  %164 = vst [vmem:[%s4 + $0x2] sm:$0x1] %v156
  %165 = vst [vmem:[%s4 + $0x3] sm:$0x1] %v157
  %166 = vst [vmem:[%s4 + $0x4] sm:$0x1] %v158
  %167 = vst [vmem:[%s4 + $0x5] sm:$0x1] %v159
  %168 = vst [vmem:[%s4 + $0x6] sm:$0x1] %v160
  %169 = vst [vmem:[%s4 + $0x7] sm:$0x1] %v161
  // Predicated region
  $region14: #{forward.6} parent=0 // pred_check
    _
  $region15: #{forward.6} parent=0 // pred_check_branch
    %171 = sbr.rel (0) target = $region17
  $region16: #{forward.6} parent=0 // pred_region
    _
  $region17: #{forward.6} parent=0 // pred_fallthru
    _
  // Predicated region
  $region18: #{forward.6} parent=0 // pred_check
    _
  $region19: #{forward.6} parent=0 // pred_check_branch
    %173 = sbr.rel (0) target = $region21
  $region20: #{forward.6} parent=0 // pred_region
    _
  $region21: #{forward.6} parent=0 // pred_fallthru
    _
  // Predicated region
  $region22: #{forward.6} parent=0 // pred_check
    _
  $region23: #{forward.6} parent=0 // pred_check_branch
    %175 = sbr.rel (0) target = $region25
  $region24: #{forward.6} parent=0 // pred_region
    _
  $region25: #{forward.6} parent=0 // pred_fallthru
    _
  // Predicated region
  $region26: #{forward.6} parent=0 // pred_check
    _
  $region27: #{forward.6} parent=0 // pred_check_branch
    %177 = sbr.rel (0) target = $region29
  $region28: #{forward.6} parent=0 // pred_region
    _
  $region29: #{forward.6} parent=0 // pred_fallthru
    _

// kernel: forward.8
$region0: #{forward.8}
  #allocation0 [shape = 'u32[]', space=smem, size = 0x4, offset = 0x4, fixed_abs, tag = 'smem constant byte address 0x4 - core index']
  #allocation1 [shape = 'u32[72,128]{1,0:T(1,128)}', space=vmem, size = 0x9000, scoped, tag = 'internal scratch']
  %s0 = inlined_call_operand.vmem [shape: bf16[8,2,32], index: 0, kind: input, shape index: {}]
  %s1 = inlined_call_operand.vmem [shape: bf16[8,2,32], index: 1, kind: input, shape index: {}]
  %s2 = inlined_call_operand.vmem [shape: bf16[64,256], index: 2, kind: input, shape index: {}]
  %s3 = inlined_call_operand.vmem [shape: f32[1,256], index: 3, kind: input, shape index: {}]
  %s4 = inlined_call_operand.vmem [shape: bf16[8,2,128], index: 4, kind: output, shape index: {0}]
  %s5 = inlined_call_operand.vmem [shape: bf16[8,2,128], index: 5, kind: output, shape index: {1}]
  %6 = xla_tuple %s4, %s5
  %s7 = sld [smem:[#allocation0]]
  $region34: #{forward.8} parent=0
    _
  %s9 = ssub.s32 1, %s7
  %s10 = scalar_select 0, %s9, %s7
  // Predicated region
  $region2: #{forward.8} parent=0 // pred_check
    _
  $region3: #{forward.8} parent=0 // pred_check_branch
    %12 = sbr.rel (0) target = $region5
  $region4: #{forward.8} parent=0 // pred_region
    _
  $region5: #{forward.8} parent=0 // pred_fallthru
    _
  // Predicated region
  $region6: #{forward.8} parent=0 // pred_check
    _
  $region7: #{forward.8} parent=0 // pred_check_branch
    %14 = sbr.rel (0) target = $region9
  $region8: #{forward.8} parent=0 // pred_region
    _
  $region9: #{forward.8} parent=0 // pred_fallthru
    _
  // Predicated region
  $region10: #{forward.8} parent=0 // pred_check
    _
  $region11: #{forward.8} parent=0 // pred_check_branch
    %16 = sbr.rel (0) target = $region13
  $region12: #{forward.8} parent=0 // pred_region
    _
  $region13: #{forward.8} parent=0 // pred_fallthru
    _
  // Predicated region
  $region14: #{forward.8} parent=0 // pred_check
    _
  $region15: #{forward.8} parent=0 // pred_check_branch
    %18 = sbr.rel (0) target = $region17
  $region16: #{forward.8} parent=0 // pred_region
    _
  $region17: #{forward.8} parent=0 // pred_fallthru
    _
  %v20 = vld [vmem:[%s0] sm:$0x1]
  %v21 = vld [vmem:[%s0 + $0x1] sm:$0x1]
  %v22 = vld [vmem:[%s0 + $0x2] sm:$0x1]
  %v23 = vld [vmem:[%s0 + $0x3] sm:$0x1]
  %v24 = vld [vmem:[%s0 + $0x4] sm:$0x1]
  %v25 = vld [vmem:[%s0 + $0x5] sm:$0x1]
  %v26 = vld [vmem:[%s0 + $0x6] sm:$0x1]
  %v27 = vld [vmem:[%s0 + $0x7] sm:$0x1]
  %v28 = vld [vmem:[%s1] sm:$0x1]
  %v29 = vld [vmem:[%s1 + $0x1] sm:$0x1]
  %v30 = vld [vmem:[%s1 + $0x2] sm:$0x1]
  %v31 = vld [vmem:[%s1 + $0x3] sm:$0x1]
  %v32 = vld [vmem:[%s1 + $0x4] sm:$0x1]
  %v33 = vld [vmem:[%s1 + $0x5] sm:$0x1]
  %v34 = vld [vmem:[%s1 + $0x6] sm:$0x1]
  %v35 = vld [vmem:[%s1 + $0x7] sm:$0x1]
  %37 = vst [vmem:[#allocation1] ss:$9 sm:$0xff] %v28
  %v38 = vld [vmem:[#allocation1] sm:$0xff]
  %41 = vst [vmem:[#allocation1] ss:$9 sm:$0xff] %v29
  %v42 = vld [vmem:[#allocation1] sm:$0xff]
  %45 = vst [vmem:[#allocation1] ss:$9 sm:$0xff] %v30
  %v46 = vld [vmem:[#allocation1] sm:$0xff]
  %49 = vst [vmem:[#allocation1] ss:$9 sm:$0xff] %v31
  %v50 = vld [vmem:[#allocation1] sm:$0xff]
  %53 = vst [vmem:[#allocation1] ss:$9 sm:$0xff] %v32
  %v54 = vld [vmem:[#allocation1] sm:$0xff]
  %57 = vst [vmem:[#allocation1] ss:$9 sm:$0xff] %v33
  %v58 = vld [vmem:[#allocation1] sm:$0xff]
  %61 = vst [vmem:[#allocation1] ss:$9 sm:$0xff] %v34
  %v62 = vld [vmem:[#allocation1] sm:$0xff]
  %65 = vst [vmem:[#allocation1] ss:$9 sm:$0xff] %v35
  %v66 = vld [vmem:[#allocation1] sm:$0xff]
  %68 = vrot.lane.b32.xlu0 %v38, 32
  %v69 = vpop.permute.xlu0 %68
  %70 = vrot.lane.b32.xlu0 %v42, 32
  %v71 = vpop.permute.xlu0 %70
  %72 = vrot.lane.b32.xlu0 %v46, 32
  %v73 = vpop.permute.xlu0 %72
  %74 = vrot.lane.b32.xlu0 %v50, 32
  %v75 = vpop.permute.xlu0 %74
  %76 = vrot.lane.b32.xlu0 %v54, 32
  %v77 = vpop.permute.xlu0 %76
  %78 = vrot.lane.b32.xlu0 %v58, 32
  %v79 = vpop.permute.xlu0 %78
  %80 = vrot.lane.b32.xlu0 %v62, 32
  %v81 = vpop.permute.xlu0 %80
  %82 = vrot.lane.b32.xlu0 %v66, 32
  %v83 = vpop.permute.xlu0 %82
  %vm84 = vcmask 261120
  %v87 = vsel %vm84, %v20, %v69
  %v90 = vsel %vm84, %v21, %v71
  %v93 = vsel %vm84, %v22, %v73
  %v96 = vsel %vm84, %v23, %v75
  %v99 = vsel %vm84, %v24, %v77
  %v102 = vsel %vm84, %v25, %v79
  %v105 = vsel %vm84, %v26, %v81
  %v108 = vsel %vm84, %v27, %v83
  %v109 = vld [vmem:[%s2] sm:$0xff]
  %v110 = vld [vmem:[%s2 + $0x8] sm:$0xff]
  %v111 = vld [vmem:[%s2 + $0x10] sm:$0xff]
  %v112 = vld [vmem:[%s2 + $0x18] sm:$0xff]
  %v113 = vld [vmem:[%s2 + $0x20] sm:$0xff]
  %v114 = vld [vmem:[%s2 + $0x28] sm:$0xff]
  %v115 = vld [vmem:[%s2 + $0x30] sm:$0xff]
  %v116 = vld [vmem:[%s2 + $0x38] sm:$0xff]
  %v117 = vld [vmem:[%s3] sm:$0x3]
  %v119 = vperm.slane %v117, 0
  %v120 = vperm.slane %v117, 1
  %123 = vst [vmem:[#allocation1] ss:$9 sm:$0xff] %v87
  %s124 = scalar_lea.vmem [#allocation1], 1
  %125 = vst [vmem:[%s124] ss:$9 sm:$0xff] %v90
  %s126 = scalar_lea.vmem [#allocation1], 2
  %127 = vst [vmem:[%s126] ss:$9 sm:$0xff] %v93
  %s128 = scalar_lea.vmem [#allocation1], 3
  %129 = vst [vmem:[%s128] ss:$9 sm:$0xff] %v96
  %s130 = scalar_lea.vmem [#allocation1], 4
  %131 = vst [vmem:[%s130] ss:$9 sm:$0xff] %v99
  %s132 = scalar_lea.vmem [#allocation1], 5
  %133 = vst [vmem:[%s132] ss:$9 sm:$0xff] %v102
  %s134 = scalar_lea.vmem [#allocation1], 6
  %135 = vst [vmem:[%s134] ss:$9 sm:$0xff] %v105
  %s136 = scalar_lea.vmem [#allocation1], 7
  %137 = vst [vmem:[%s136] ss:$9 sm:$0xff] %v108
  %v138 = vld [vmem:[#allocation1] sm:$0xff]
  %v147 = vunpack.c.l.b16 %v109
  %v148 = vunpack.c.h.b16 %v109
  %v149 = vunpack.c.l.b16 %v110
  %v150 = vunpack.c.h.b16 %v110
  %v151 = vunpack.c.l.b16 %v111
  %v152 = vunpack.c.h.b16 %v111
  %v153 = vunpack.c.l.b16 %v112
  %v154 = vunpack.c.h.b16 %v112
  %v155 = vunpack.c.l.b16 %v113
  %v156 = vunpack.c.h.b16 %v113
  %v157 = vunpack.c.l.b16 %v114
  %v158 = vunpack.c.h.b16 %v114
  %v159 = vunpack.c.l.b16 %v115
  %v160 = vunpack.c.h.b16 %v115
  %v161 = vunpack.c.l.b16 %v116
  %v162 = vunpack.c.h.b16 %v116
  %v163 = vpack.c.b16 %v149, %v147
  %v164 = vpack.c.b16 %v150, %v148
  %v165 = vpack.c.b16 %v153, %v151
  %v166 = vpack.c.b16 %v154, %v152
  %v167 = vpack.c.b16 %v157, %v155
  %v168 = vpack.c.b16 %v158, %v156
  %v169 = vpack.c.b16 %v161, %v159
  %v170 = vpack.c.b16 %v162, %v160
  %vm179 = vcmask 523264
  %v180 = vsel %vm179, %v138, 0
  %182 = vmatpush.bf16.msra.mxu0 0
  %183 = vmatpush.bf16.msra.mxu0 0
  %184 = vmatpush.bf16.msra.mxu0 0
  %185 = vmatpush.bf16.msra.mxu0 0
  %186 = vmatpush.bf16.msra.mxu0 %v169
  %187 = vmatpush.bf16.msra.mxu0 %v167
  %188 = vmatpush.bf16.msra.mxu0 %v165
  %189 = vmatpush.bf16.msra.mxu0 %v163
  %190 = vmatmul.bf16.gmra.mxu0 %v180
  %v191 = vpop.f32.mrf.mxu0
  %v192 = vadd.f32 %v119, %v191
  %v193 = vpop.f32.mrf.mxu0
  %v194 = vadd.f32 %v119, %v193
  %195 = vdwg.mxu0
  %196 = vmatpush.bf16.msra.mxu0 0
  %197 = vmatpush.bf16.msra.mxu0 0
  %198 = vmatpush.bf16.msra.mxu0 0
  %199 = vmatpush.bf16.msra.mxu0 0
  %200 = vmatpush.bf16.msra.mxu0 %v170
  %201 = vmatpush.bf16.msra.mxu0 %v168
  %202 = vmatpush.bf16.msra.mxu0 %v166
  %203 = vmatpush.bf16.msra.mxu0 %v164
  %204 = vmatmul.bf16.gmra.mxu0 %v180
  %v205 = vpop.f32.mrf.mxu0
  %v206 = vadd.f32 %v120, %v205
  %v207 = vpop.f32.mrf.mxu0
  %v208 = vadd.f32 %v120, %v207
  %209 = vdwg.mxu0
  %v212 = vrot.slane %v192, 2
  %v213 = vrot.slane %v192, 4
  %v214 = vrot.slane %v192, 6
  %v215 = vrot.slane %v194, 2
  %v216 = vrot.slane %v194, 4
  %v217 = vrot.slane %v194, 6
  %v224 = vpack.c.bf16 %v192, %v192
  %v225 = vpack.c.bf16 %v212, %v212
  %v226 = vpack.c.bf16 %v213, %v213
  %v227 = vpack.c.bf16 %v214, %v214
  %v228 = vpack.c.bf16 %v194, %v194
  %v229 = vpack.c.bf16 %v215, %v215
  %v230 = vpack.c.bf16 %v216, %v216
  %v231 = vpack.c.bf16 %v217, %v217
  %232 = vst [vmem:[%s4] sm:$0x1] %v224
  %233 = vst [vmem:[%s4 + $0x1] sm:$0x1] %v225
  %234 = vst [vmem:[%s4 + $0x2] sm:$0x1] %v226
  %235 = vst [vmem:[%s4 + $0x3] sm:$0x1] %v227
  %236 = vst [vmem:[%s4 + $0x4] sm:$0x1] %v228
  %237 = vst [vmem:[%s4 + $0x5] sm:$0x1] %v229
  %238 = vst [vmem:[%s4 + $0x6] sm:$0x1] %v230
  %239 = vst [vmem:[%s4 + $0x7] sm:$0x1] %v231
  %v242 = vrot.slane %v206, 2
  %v243 = vrot.slane %v206, 4
  %v244 = vrot.slane %v206, 6
  %v245 = vrot.slane %v208, 2
  %v246 = vrot.slane %v208, 4
  %v247 = vrot.slane %v208, 6
  %v254 = vpack.c.bf16 %v206, %v206
  %v255 = vpack.c.bf16 %v242, %v242
  %v256 = vpack.c.bf16 %v243, %v243
  %v257 = vpack.c.bf16 %v244, %v244
  %v258 = vpack.c.bf16 %v208, %v208
  %v259 = vpack.c.bf16 %v245, %v245
  %v260 = vpack.c.bf16 %v246, %v246
  %v261 = vpack.c.bf16 %v247, %v247
  %262 = vst [vmem:[%s5] sm:$0x1] %v254
  %263 = vst [vmem:[%s5 + $0x1] sm:$0x1] %v255
  %264 = vst [vmem:[%s5 + $0x2] sm:$0x1] %v256
  %265 = vst [vmem:[%s5 + $0x3] sm:$0x1] %v257
  %266 = vst [vmem:[%s5 + $0x4] sm:$0x1] %v258
  %267 = vst [vmem:[%s5 + $0x5] sm:$0x1] %v259
  %268 = vst [vmem:[%s5 + $0x6] sm:$0x1] %v260
  %269 = vst [vmem:[%s5 + $0x7] sm:$0x1] %v261
  // Predicated region
  $region18: #{forward.8} parent=0 // pred_check
    _
  $region19: #{forward.8} parent=0 // pred_check_branch
    %271 = sbr.rel (0) target = $region21
  $region20: #{forward.8} parent=0 // pred_region
    _
  $region21: #{forward.8} parent=0 // pred_fallthru
    _
  // Predicated region
  $region22: #{forward.8} parent=0 // pred_check
    _
  $region23: #{forward.8} parent=0 // pred_check_branch
    %273 = sbr.rel (0) target = $region25
  $region24: #{forward.8} parent=0 // pred_region
    _
  $region25: #{forward.8} parent=0 // pred_fallthru
    _
  // Predicated region
  $region26: #{forward.8} parent=0 // pred_check
    _
  $region27: #{forward.8} parent=0 // pred_check_branch
    %275 = sbr.rel (0) target = $region29
  $region28: #{forward.8} parent=0 // pred_region
    _
  $region29: #{forward.8} parent=0 // pred_fallthru
    _
  // Predicated region
  $region30: #{forward.8} parent=0 // pred_check
    _
  $region31: #{forward.8} parent=0 // pred_check_branch
    %277 = sbr.rel (0) target = $region33
  $region32: #{forward.8} parent=0 // pred_region
    _
  $region33: #{forward.8} parent=0 // pred_fallthru
    _

// kernel: forward.5
$region0: #{forward.5}
  #allocation0 [shape = 'u32[]', space=smem, size = 0x4, offset = 0x4, fixed_abs, tag = 'smem constant byte address 0x4 - core index']
  #allocation1 [shape = 'u32[72,128]{1,0:T(1,128)}', space=vmem, size = 0x9000, scoped, tag = 'internal scratch']
  %s0 = inlined_call_operand.vmem [shape: f32[8,2,13], index: 0, kind: input, shape index: {}]
  %s1 = inlined_call_operand.vmem [shape: bf16[39,32], index: 1, kind: input, shape index: {}]
  %s2 = inlined_call_operand.vmem [shape: f32[1,32], index: 2, kind: input, shape index: {}]
  %s3 = inlined_call_operand.vmem [shape: f32[1,32], index: 3, kind: input, shape index: {}]
  %s4 = inlined_call_operand.vmem [shape: bf16[96,32], index: 4, kind: input, shape index: {}]
  %s5 = inlined_call_operand.vmem [shape: f32[1,32], index: 5, kind: input, shape index: {}]
  %s6 = inlined_call_operand.vmem [shape: f32[1,32], index: 6, kind: input, shape index: {}]
  %s7 = inlined_call_operand.vmem [shape: bf16[8,2,32], index: 7, kind: output, shape index: {}]
  %s8 = sld [smem:[#allocation0]]
  $region38: #{forward.5} parent=0
    _
  %s10 = ssub.s32 1, %s8
  %s11 = scalar_select 0, %s10, %s8
  // Predicated region
  $region2: #{forward.5} parent=0 // pred_check
    _
  $region3: #{forward.5} parent=0 // pred_check_branch
    %13 = sbr.rel (0) target = $region5
  $region4: #{forward.5} parent=0 // pred_region
    _
  $region5: #{forward.5} parent=0 // pred_fallthru
    _
  // Predicated region
  $region6: #{forward.5} parent=0 // pred_check
    _
  $region7: #{forward.5} parent=0 // pred_check_branch
    %15 = sbr.rel (0) target = $region9
  $region8: #{forward.5} parent=0 // pred_region
    _
  $region9: #{forward.5} parent=0 // pred_fallthru
    _
  // Predicated region
  $region10: #{forward.5} parent=0 // pred_check
    _
  $region11: #{forward.5} parent=0 // pred_check_branch
    %17 = sbr.rel (0) target = $region13
  $region12: #{forward.5} parent=0 // pred_region
    _
  $region13: #{forward.5} parent=0 // pred_fallthru
    _
  // Predicated region
  $region14: #{forward.5} parent=0 // pred_check
    _
  $region15: #{forward.5} parent=0 // pred_check_branch
    %19 = sbr.rel (0) target = $region17
  $region16: #{forward.5} parent=0 // pred_region
    _
  $region17: #{forward.5} parent=0 // pred_fallthru
    _
  // Predicated region
  $region18: #{forward.5} parent=0 // pred_check
    _
  $region19: #{forward.5} parent=0 // pred_check_branch
    %21 = sbr.rel (0) target = $region21
  $region20: #{forward.5} parent=0 // pred_region
    _
  $region21: #{forward.5} parent=0 // pred_fallthru
    _
  // Predicated region
  $region22: #{forward.5} parent=0 // pred_check
    _
  $region23: #{forward.5} parent=0 // pred_check_branch
    %23 = sbr.rel (0) target = $region25
  $region24: #{forward.5} parent=0 // pred_region
    _
  $region25: #{forward.5} parent=0 // pred_fallthru
    _
  // Predicated region
  $region26: #{forward.5} parent=0 // pred_check
    _
  $region27: #{forward.5} parent=0 // pred_check_branch
    %25 = sbr.rel (0) target = $region29
  $region28: #{forward.5} parent=0 // pred_region
    _
  $region29: #{forward.5} parent=0 // pred_fallthru
    _
  %v27 = vld [vmem:[%s0] sm:$0x3]
  %v28 = vld [vmem:[%s0 + $0x2] sm:$0x3]
  %v29 = vld [vmem:[%s0 + $0x4] sm:$0x3]
  %v30 = vld [vmem:[%s0 + $0x6] sm:$0x3]
  %v31 = vld [vmem:[%s0 + $0x8] sm:$0x3]
  %v32 = vld [vmem:[%s0 + $0xa] sm:$0x3]
  %v33 = vld [vmem:[%s0 + $0xc] sm:$0x3]
  %v34 = vld [vmem:[%s0 + $0xe] sm:$0x3]
  %v35 = vpack.c.bf16 %v27, %v27
  %v36 = vpack.c.bf16 %v28, %v28
  %v37 = vpack.c.bf16 %v29, %v29
  %v38 = vpack.c.bf16 %v30, %v30
  %v39 = vpack.c.bf16 %v31, %v31
  %v40 = vpack.c.bf16 %v32, %v32
  %v41 = vpack.c.bf16 %v33, %v33
  %v42 = vpack.c.bf16 %v34, %v34
  %v43 = vld [vmem:[%s1] sm:$0xf]
  %v44 = vld [vmem:[%s1 + $0x4] sm:$0xf]
  %v45 = vld [vmem:[%s1 + $0x8] sm:$0xf]
  %v46 = vld [vmem:[%s1 + $0xc] sm:$0xf]
  %v47 = vld [vmem:[%s1 + $0x10] sm:$0xf]
  %v48 = vld [vmem:[%s2] sm:$0x1]
  %v49 = vld [vmem:[%s3] sm:$0x1]
  %v58 = vunpack.c.l.b16 %v35
  %v59 = vunpack.c.l.b16 %v36
  %v60 = vunpack.c.l.b16 %v37
  %v61 = vunpack.c.l.b16 %v38
  %v62 = vunpack.c.l.b16 %v39
  %v63 = vunpack.c.l.b16 %v40
  %v64 = vunpack.c.l.b16 %v41
  %v65 = vunpack.c.l.b16 %v42
  %v66 = vpack.c.b16 %v58, %v58
  %v67 = vpack.c.b16 %v59, %v59
  %v68 = vpack.c.b16 %v60, %v60
  %v69 = vpack.c.b16 %v61, %v61
  %v70 = vpack.c.b16 %v62, %v62
  %v71 = vpack.c.b16 %v63, %v63
  %v72 = vpack.c.b16 %v64, %v64
  %v73 = vpack.c.b16 %v65, %v65
  %74 = vrot.lane.b32.xlu0 %v66, 13
  %v75 = vpop.permute.xlu0 %74
  %76 = vrot.lane.b32.xlu0 %v67, 13
  %v77 = vpop.permute.xlu0 %76
  %78 = vrot.lane.b32.xlu0 %v68, 13
  %v79 = vpop.permute.xlu0 %78
  %80 = vrot.lane.b32.xlu0 %v69, 13
  %v81 = vpop.permute.xlu0 %80
  %82 = vrot.lane.b32.xlu0 %v70, 13
  %v83 = vpop.permute.xlu0 %82
  %84 = vrot.lane.b32.xlu0 %v71, 13
  %v85 = vpop.permute.xlu0 %84
  %86 = vrot.lane.b32.xlu0 %v72, 13
  %v87 = vpop.permute.xlu0 %86
  %88 = vrot.lane.b32.xlu0 %v73, 13
  %v89 = vpop.permute.xlu0 %88
  %v91 = vunpack.c.l.b16 0
  %v92 = vpack.c.b16 %v91, %v91
  %93 = vrot.lane.b32.xlu0 %v67, 26
  %v94 = vpop.permute.xlu0 %93
  %95 = vrot.lane.b32.xlu0 %v68, 26
  %v96 = vpop.permute.xlu0 %95
  %97 = vrot.lane.b32.xlu0 %v69, 26
  %v98 = vpop.permute.xlu0 %97
  %99 = vrot.lane.b32.xlu0 %v70, 26
  %v100 = vpop.permute.xlu0 %99
  %101 = vrot.lane.b32.xlu0 %v71, 26
  %v102 = vpop.permute.xlu0 %101
  %103 = vrot.lane.b32.xlu0 %v72, 26
  %v104 = vpop.permute.xlu0 %103
  %105 = vrot.lane.b32.xlu0 %v73, 26
  %v106 = vpop.permute.xlu0 %105
  %107 = vrot.lane.b32.xlu0 %v92, 26
  %v108 = vpop.permute.xlu0 %107
  %vm109 = vcmask 105472
  %v112 = vsel %vm109, 0, %v75
  %v115 = vsel %vm109, %v35, %v77
  %v118 = vsel %vm109, %v36, %v79
  %v121 = vsel %vm109, %v37, %v81
  %v124 = vsel %vm109, %v38, %v83
  %v127 = vsel %vm109, %v39, %v85
  %v130 = vsel %vm109, %v40, %v87
  %v133 = vsel %vm109, %v41, %v89
  %vm134 = vcmask 211968
  %v136 = vsel %vm134, %v112, %v94
  %v138 = vsel %vm134, %v115, %v96
  %v140 = vsel %vm134, %v118, %v98
  %v142 = vsel %vm134, %v121, %v100
  %v144 = vsel %vm134, %v124, %v102
  %v146 = vsel %vm134, %v127, %v104
  %v148 = vsel %vm134, %v130, %v106
  %v150 = vsel %vm134, %v133, %v108
  %151 = vst [vmem:[#allocation1] ss:$9 sm:$0xff] %v136
  %s152 = scalar_lea.vmem [#allocation1], 1
  %153 = vst [vmem:[%s152] ss:$9 sm:$0xff] %v138
  %s154 = scalar_lea.vmem [#allocation1], 2
  %155 = vst [vmem:[%s154] ss:$9 sm:$0xff] %v140
  %s156 = scalar_lea.vmem [#allocation1], 3
  %157 = vst [vmem:[%s156] ss:$9 sm:$0xff] %v142
  %s158 = scalar_lea.vmem [#allocation1], 4
  %159 = vst [vmem:[%s158] ss:$9 sm:$0xff] %v144
  %s160 = scalar_lea.vmem [#allocation1], 5
  %161 = vst [vmem:[%s160] ss:$9 sm:$0xff] %v146
  %s162 = scalar_lea.vmem [#allocation1], 6
  %163 = vst [vmem:[%s162] ss:$9 sm:$0xff] %v148
  %s164 = scalar_lea.vmem [#allocation1], 7
  %165 = vst [vmem:[%s164] ss:$9 sm:$0xff] %v150
  %v166 = vld [vmem:[#allocation1] sm:$0xff]
  %v172 = vunpack.c.l.b16 %v43
  %v173 = vunpack.c.l.b16 %v44
  %v174 = vunpack.c.l.b16 %v45
  %v175 = vunpack.c.l.b16 %v46
  %v176 = vunpack.c.l.b16 %v47
  %v177 = vpack.c.b16 %v173, %v172
  %v178 = vpack.c.b16 %v175, %v174
  %v179 = vpack.c.b16 %v176, %v176
  %vm182 = vcmask 318464
  %v183 = vsel %vm182, %v166, 0
  %vm185 = vcmask 1042432
  %vm186 = vcmask 1043456
  %v187 = vsel %vm185, 4294967295, 65535
  %v188 = vsel %vm186, %v187, 0
  %v190 = vand.u32 %v179, %v188
  %192 = vmatpush.bf16.msra.mxu0 0
  %193 = vmatpush.bf16.msra.mxu0 0
  %194 = vmatpush.bf16.msra.mxu0 0
  %195 = vmatpush.bf16.msra.mxu0 0
  %196 = vmatpush.bf16.msra.mxu0 0
  %197 = vmatpush.bf16.msra.mxu0 %v190
  %198 = vmatpush.bf16.msra.mxu0 %v178
  %199 = vmatpush.bf16.msra.mxu0 %v177
  %200 = vmatmul.bf16.gmra.mxu0 %v183
  %v201 = vpop.f32.mrf.mxu0
  %v202 = vadd.f32 0.0, %v201
  %v203 = vpop.f32.mrf.mxu0
  %v204 = vadd.f32 0.0, %v203
  %205 = vdwg.mxu0
  %v207 = vperm.slane %v48, 0
  %v209 = vmul.f32 %v202, %v207
  %v210 = vmul.f32 %v204, %v207
  %v212 = vperm.slane %v49, 0
  %v214 = vadd.f32 %v209, %v212
  %v215 = vadd.f32 %v210, %v212
  %v216 = vmax.f32 %v214, 0.0
  %v217 = vmax.f32 %v215, 0.0
  %v220 = vrot.slane %v216, 2
  %v221 = vrot.slane %v216, 4
  %v222 = vrot.slane %v216, 6
  %v223 = vrot.slane %v217, 2
  %v224 = vrot.slane %v217, 4
  %v225 = vrot.slane %v217, 6
  %v232 = vpack.c.bf16 %v216, %v216
  %v233 = vpack.c.bf16 %v220, %v220
  %v234 = vpack.c.bf16 %v221, %v221
  %v235 = vpack.c.bf16 %v222, %v222
  %v236 = vpack.c.bf16 %v217, %v217
  %v237 = vpack.c.bf16 %v223, %v223
  %v238 = vpack.c.bf16 %v224, %v224
  %v239 = vpack.c.bf16 %v225, %v225
  %v240 = vld [vmem:[%s4] sm:$0xf]
  %v241 = vld [vmem:[%s4 + $0x4] sm:$0xf]
  %v242 = vld [vmem:[%s4 + $0x8] sm:$0xf]
  %v243 = vld [vmem:[%s4 + $0xc] sm:$0xf]
  %v244 = vld [vmem:[%s4 + $0x10] sm:$0xf]
  %v245 = vld [vmem:[%s4 + $0x14] sm:$0xf]
  %v246 = vld [vmem:[%s4 + $0x18] sm:$0xf]
  %v247 = vld [vmem:[%s4 + $0x1c] sm:$0xf]
  %v248 = vld [vmem:[%s4 + $0x20] sm:$0xf]
  %v249 = vld [vmem:[%s4 + $0x24] sm:$0xf]
  %v250 = vld [vmem:[%s4 + $0x28] sm:$0xf]
  %v251 = vld [vmem:[%s4 + $0x2c] sm:$0xf]
  %v252 = vld [vmem:[%s5] sm:$0x1]
  %v253 = vld [vmem:[%s6] sm:$0x1]
  %v262 = vunpack.c.l.b16 %v232
  %v263 = vunpack.c.l.b16 %v233
  %v264 = vunpack.c.l.b16 %v234
  %v265 = vunpack.c.l.b16 %v235
  %v266 = vunpack.c.l.b16 %v236
  %v267 = vunpack.c.l.b16 %v237
  %v268 = vunpack.c.l.b16 %v238
  %v269 = vunpack.c.l.b16 %v239
  %v270 = vpack.c.b16 %v262, %v262
  %v271 = vpack.c.b16 %v263, %v263
  %v272 = vpack.c.b16 %v264, %v264
  %v273 = vpack.c.b16 %v265, %v265
  %v274 = vpack.c.b16 %v266, %v266
  %v275 = vpack.c.b16 %v267, %v267
  %v276 = vpack.c.b16 %v268, %v268
  %v277 = vpack.c.b16 %v269, %v269
  %278 = vrot.lane.b32.xlu0 %v270, 32
  %v279 = vpop.permute.xlu0 %278
  %280 = vrot.lane.b32.xlu0 %v271, 32
  %v281 = vpop.permute.xlu0 %280
  %282 = vrot.lane.b32.xlu0 %v272, 32
  %v283 = vpop.permute.xlu0 %282
  %284 = vrot.lane.b32.xlu0 %v273, 32
  %v285 = vpop.permute.xlu0 %284
  %286 = vrot.lane.b32.xlu0 %v274, 32
  %v287 = vpop.permute.xlu0 %286
  %288 = vrot.lane.b32.xlu0 %v275, 32
  %v289 = vpop.permute.xlu0 %288
  %290 = vrot.lane.b32.xlu0 %v276, 32
  %v291 = vpop.permute.xlu0 %290
  %292 = vrot.lane.b32.xlu0 %v277, 32
  %v293 = vpop.permute.xlu0 %292
  %294 = vrot.lane.b32.xlu0 %v271, 64
  %v295 = vpop.permute.xlu0 %294
  %296 = vrot.lane.b32.xlu0 %v272, 64
  %v297 = vpop.permute.xlu0 %296
  %298 = vrot.lane.b32.xlu0 %v273, 64
  %v299 = vpop.permute.xlu0 %298
  %300 = vrot.lane.b32.xlu0 %v274, 64
  %v301 = vpop.permute.xlu0 %300
  %302 = vrot.lane.b32.xlu0 %v275, 64
  %v303 = vpop.permute.xlu0 %302
  %304 = vrot.lane.b32.xlu0 %v276, 64
  %v305 = vpop.permute.xlu0 %304
  %306 = vrot.lane.b32.xlu0 %v277, 64
  %v307 = vpop.permute.xlu0 %306
  %308 = vrot.lane.b32.xlu0 %v92, 64
  %v309 = vpop.permute.xlu0 %308
  %vm310 = vcmask 261120
  %v312 = vsel %vm310, 0, %v279
  %v315 = vsel %vm310, %v232, %v281
  %v318 = vsel %vm310, %v233, %v283
  %v321 = vsel %vm310, %v234, %v285
  %v324 = vsel %vm310, %v235, %v287
  %v327 = vsel %vm310, %v236, %v289
  %v330 = vsel %vm310, %v237, %v291
  %v333 = vsel %vm310, %v238, %v293
  %vm334 = vcmask 523264
  %v336 = vsel %vm334, %v312, %v295
  %v338 = vsel %vm334, %v315, %v297
  %v340 = vsel %vm334, %v318, %v299
  %v342 = vsel %vm334, %v321, %v301
  %v344 = vsel %vm334, %v324, %v303
  %v346 = vsel %vm334, %v327, %v305
  %v348 = vsel %vm334, %v330, %v307
  %v350 = vsel %vm334, %v333, %v309
  %351 = vst [vmem:[#allocation1] ss:$9 sm:$0xff] %v336
  %s352 = scalar_lea.vmem [#allocation1], 1
  %353 = vst [vmem:[%s352] ss:$9 sm:$0xff] %v338
  %s354 = scalar_lea.vmem [#allocation1], 2
  %355 = vst [vmem:[%s354] ss:$9 sm:$0xff] %v340
  %s356 = scalar_lea.vmem [#allocation1], 3
  %357 = vst [vmem:[%s356] ss:$9 sm:$0xff] %v342
  %s358 = scalar_lea.vmem [#allocation1], 4
  %359 = vst [vmem:[%s358] ss:$9 sm:$0xff] %v344
  %s360 = scalar_lea.vmem [#allocation1], 5
  %361 = vst [vmem:[%s360] ss:$9 sm:$0xff] %v346
  %s362 = scalar_lea.vmem [#allocation1], 6
  %363 = vst [vmem:[%s362] ss:$9 sm:$0xff] %v348
  %s364 = scalar_lea.vmem [#allocation1], 7
  %365 = vst [vmem:[%s364] ss:$9 sm:$0xff] %v350
  %v366 = vld [vmem:[#allocation1] sm:$0xff]
  %v379 = vunpack.c.l.b16 %v240
  %v380 = vunpack.c.l.b16 %v241
  %v381 = vunpack.c.l.b16 %v242
  %v382 = vunpack.c.l.b16 %v243
  %v383 = vunpack.c.l.b16 %v244
  %v384 = vunpack.c.l.b16 %v245
  %v385 = vunpack.c.l.b16 %v246
  %v386 = vunpack.c.l.b16 %v247
  %v387 = vunpack.c.l.b16 %v248
  %v388 = vunpack.c.l.b16 %v249
  %v389 = vunpack.c.l.b16 %v250
  %v390 = vunpack.c.l.b16 %v251
  %v391 = vpack.c.b16 %v380, %v379
  %v392 = vpack.c.b16 %v382, %v381
  %v393 = vpack.c.b16 %v384, %v383
  %v394 = vpack.c.b16 %v386, %v385
  %v395 = vpack.c.b16 %v388, %v387
  %v396 = vpack.c.b16 %v390, %v389
  %vm403 = vcmask 785408
  %v404 = vsel %vm403, %v366, 0
  %406 = vmatpush.bf16.msra.mxu0 0
  %407 = vmatpush.bf16.msra.mxu0 0
  %408 = vmatpush.bf16.msra.mxu0 %v396
  %409 = vmatpush.bf16.msra.mxu0 %v395
  %410 = vmatpush.bf16.msra.mxu0 %v394
  %411 = vmatpush.bf16.msra.mxu0 %v393
  %412 = vmatpush.bf16.msra.mxu0 %v392
  %413 = vmatpush.bf16.msra.mxu0 %v391
  %414 = vmatmul.bf16.gmra.mxu0 %v404
  %v415 = vpop.f32.mrf.mxu0
  %v416 = vadd.f32 0.0, %v415
  %v417 = vpop.f32.mrf.mxu0
  %v418 = vadd.f32 0.0, %v417
  %419 = vdwg.mxu0
  %v421 = vperm.slane %v252, 0
  %v423 = vmul.f32 %v416, %v421
  %v424 = vmul.f32 %v418, %v421
  %v426 = vperm.slane %v253, 0
  %v428 = vadd.f32 %v423, %v426
  %v429 = vadd.f32 %v424, %v426
  %v430 = vmax.f32 %v428, 0.0
  %v431 = vmax.f32 %v429, 0.0
  %v434 = vrot.slane %v430, 2
  %v435 = vrot.slane %v430, 4
  %v436 = vrot.slane %v430, 6
  %v437 = vrot.slane %v431, 2
  %v438 = vrot.slane %v431, 4
  %v439 = vrot.slane %v431, 6
  %v446 = vpack.c.bf16 %v430, %v430
  %v447 = vpack.c.bf16 %v434, %v434
  %v448 = vpack.c.bf16 %v435, %v435
  %v449 = vpack.c.bf16 %v436, %v436
  %v450 = vpack.c.bf16 %v431, %v431
  %v451 = vpack.c.bf16 %v437, %v437
  %v452 = vpack.c.bf16 %v438, %v438
  %v453 = vpack.c.bf16 %v439, %v439
  %vm454 = vcmask 253952
  %455 = vst.msk [vmem:[%s7] sm:$0x1] %vm454, %v446
  %456 = vst.msk [vmem:[%s7 + $0x1] sm:$0x1] %vm454, %v447
  %457 = vst.msk [vmem:[%s7 + $0x2] sm:$0x1] %vm454, %v448
  %458 = vst.msk [vmem:[%s7 + $0x3] sm:$0x1] %vm454, %v449
  %459 = vst.msk [vmem:[%s7 + $0x4] sm:$0x1] %vm454, %v450
  %460 = vst.msk [vmem:[%s7 + $0x5] sm:$0x1] %vm454, %v451
  %461 = vst.msk [vmem:[%s7 + $0x6] sm:$0x1] %vm454, %v452
  %462 = vst.msk [vmem:[%s7 + $0x7] sm:$0x1] %vm454, %v453
  // Predicated region
  $region30: #{forward.5} parent=0 // pred_check
    _
  $region31: #{forward.5} parent=0 // pred_check_branch
    %464 = sbr.rel (0) target = $region33
  $region32: #{forward.5} parent=0 // pred_region
    _
  $region33: #{forward.5} parent=0 // pred_fallthru
    _
  // Predicated region
  $region34: #{forward.5} parent=0 // pred_check
    _
  $region35: #{forward.5} parent=0 // pred_check_branch
    %466 = sbr.rel (0) target = $region37
  $region36: #{forward.5} parent=0 // pred_region
    _
  $region37: #{forward.5} parent=0 // pred_fallthru
    _

// kernel: forward.7
$region0: #{forward.7}
  #allocation0 [shape = 'u32[]', space=smem, size = 0x4, offset = 0x4, fixed_abs, tag = 'smem constant byte address 0x4 - core index']
  #allocation1 [shape = 'u32[72,128]{1,0:T(1,128)}', space=vmem, size = 0x9000, scoped, tag = 'internal scratch']
  #allocation2 [shape = 'f32[2,32]{1,0:T(2,128)}', space=vmem, size = 0x400, scoped, tag = 'scratch operand']
  #allocation3 [shape = 'f32[2,32]{1,0:T(2,128)}', space=vmem, size = 0x400, scoped, tag = 'scratch operand']
  #allocation4 [shape = 'f32[2,32]{1,0:T(2,128)}', space=vmem, size = 0x400, scoped, tag = 'scratch operand']
  #allocation5 [shape = 'f32[2,32]{1,0:T(2,128)}', space=vmem, size = 0x400, scoped, tag = 'scratch operand']
  %s0 = inlined_call_operand.vmem [shape: bf16[8,2,128], index: 0, kind: input, shape index: {}]
  %s1 = inlined_call_operand.vmem [shape: bf16[8,2,128], index: 1, kind: input, shape index: {}]
  %s2 = inlined_call_operand.vmem [shape: f32[8,2,1], index: 2, kind: input, shape index: {}, may-alias: {2,3}]
  %s3 = inlined_call_operand.vmem [shape: f32[8,2,1], index: 3, kind: input, shape index: {}, may-alias: {2,3}]
  %s4 = inlined_call_operand.vmem [shape: bf16[32,128], index: 4, kind: input, shape index: {}]
  %s5 = inlined_call_operand.vmem [shape: bf16[32,128], index: 5, kind: input, shape index: {}]
  %s6 = inlined_call_operand.vmem [shape: bf16[8,2,32], index: 6, kind: output, shape index: {0}]
  %s7 = inlined_call_operand.vmem [shape: bf16[8,2,32], index: 7, kind: output, shape index: {1}]
  %s8 = inlined_call_operand.hbm [shape: f32[2,64], index: 8, kind: output, shape index: {2}]
  %9 = xla_tuple %s6, %s7, %s8
  %s10 = sld [smem:[#allocation0]]
  $region54: #{forward.7} parent=0
    _
  %s12 = ssub.s32 1, %s10
  %s13 = scalar_select 0, %s12, %s10
  $region1: #{forward.7} parent=0
    #allocation6 [shape = 'u8[1024]{0}', space=vmem, size = 0x400, scoped, tag = 'output window, operand 2, single buffered']
    #allocation7 [shape = 's32[1]{0}', space=sflag, size = 0x4, scoped, tag = 'scoped memory for forward.7']
    %14 = vsyncpa [#allocation7], 0
    // Predicated region
    $region2: #{forward.7} parent=1 // pred_check
      _
    $region3: #{forward.7} parent=1 // pred_check_branch
      %16 = sbr.rel (0) target = $region5
    $region4: #{forward.7} parent=1 // pred_region
      _
    $region5: #{forward.7} parent=1 // pred_fallthru
      _
    // Predicated region
    $region6: #{forward.7} parent=1 // pred_check
      _
    $region7: #{forward.7} parent=1 // pred_check_branch
      %18 = sbr.rel (0) target = $region9
    $region8: #{forward.7} parent=1 // pred_region
      %s19 = ssub.s32 0, 0
      %s20 = smul.u32 8, %s19
      %p21 = scmp.lt.s32.totalorder %s20, 7
      %s22 = scalar_select %p21, %s20, 7
      %s23 = scalar_lea.vmem %s1, %s22
      %s24 = ssub.s32 0, 0
      %s25 = smul.u32 8, %s24
    $region9: #{forward.7} parent=1 // pred_fallthru
      _
    // Predicated region
    $region10: #{forward.7} parent=1 // pred_check
      _
    $region11: #{forward.7} parent=1 // pred_check_branch
      %27 = sbr.rel (0) target = $region13
    $region12: #{forward.7} parent=1 // pred_region
      _
    $region13: #{forward.7} parent=1 // pred_fallthru
      _
    // Predicated region
    $region14: #{forward.7} parent=1 // pred_check
      _
    $region15: #{forward.7} parent=1 // pred_check_branch
      %29 = sbr.rel (0) target = $region17
    $region16: #{forward.7} parent=1 // pred_region
      %s30 = ssub.s32 0, 0
      %s31 = smul.u32 8, %s30
      %p32 = scmp.lt.s32.totalorder %s31, 7
      %s33 = scalar_select %p32, %s31, 7
      %s34 = smul.addr %s33, 2
      %s35 = scalar_lea.vmem %s3, %s34
      %s36 = ssub.s32 0, 0
      %s37 = smul.u32 8, %s36
    $region17: #{forward.7} parent=1 // pred_fallthru
      _
    // Predicated region
    $region18: #{forward.7} parent=1 // pred_check
      _
    $region19: #{forward.7} parent=1 // pred_check_branch
      %39 = sbr.rel (0) target = $region21
    $region20: #{forward.7} parent=1 // pred_region
      _
    $region21: #{forward.7} parent=1 // pred_fallthru
      _
    // Predicated region
    $region22: #{forward.7} parent=1 // pred_check
      _
    $region23: #{forward.7} parent=1 // pred_check_branch
      %41 = sbr.rel (0) target = $region25
    $region24: #{forward.7} parent=1 // pred_region
      _
    $region25: #{forward.7} parent=1 // pred_fallthru
      _
    %s42 = ssub.s32 0, 0
    %s43 = smul.u32 8, %s42
    %p44 = scmp.lt.s32.totalorder %s43, 7
    %s45 = scalar_select %p44, %s43, 7
    %s46 = scalar_lea.vmem %s1, %s45
    %s47 = ssub.s32 0, 0
    %s48 = smul.u32 8, %s47
    %p49 = scmp.lt.s32.totalorder %s48, 7
    %s50 = scalar_select %p49, %s48, 7
    %s51 = smul.addr %s50, 2
    %s52 = scalar_lea.vmem %s3, %s51
    %s53 = ssub.s32 0, 0
    %s54 = smul.u32 8, %s53
    %p55 = scmp.lt.s32.totalorder %s54, 7
    %s56 = scalar_select %p55, %s54, 7
    %s57 = scalar_lea.vmem %s7, %s56
    %s58 = ssub.s32 0, 0
    %s59 = smul.u32 8, %s58
    %p60 = scmp.lt.s32.totalorder %s59, 7
    %s61 = scalar_select %p60, %s59, 7
    %s62 = scalar_lea.vmem %s1, %s61
    %s63 = ssub.s32 0, 0
    %s64 = smul.u32 8, %s63
    %s65 = ssub.s32 0, 0
    %s66 = smul.u32 8, %s65
    %p67 = scmp.lt.s32.totalorder %s66, 7
    %s68 = scalar_select %p67, %s66, 7
    %s69 = smul.addr %s68, 2
    %s70 = scalar_lea.vmem %s3, %s69
    %s71 = ssub.s32 0, 0
    %s72 = smul.u32 8, %s71
    %s73 = ssub.s32 0, 0
    %s74 = smul.u32 8, %s73
    %p75 = scmp.lt.s32.totalorder %s74, 7
    %s76 = scalar_select %p75, %s74, 7
    %s77 = scalar_lea.vmem %s7, %s76
    %s78 = ssub.s32 0, 0
    %s79 = smul.u32 8, %s78
    %p81 = scmp.eq.s32.totalorder 0, 0
    // Predicated region
    $region26: #{forward.7} parent=1 // pred_check
      %p82 = pneg %p81
    $region27: #{forward.7} parent=1 // pred_check_branch
      %84 = sbr.rel (%p82) target = $region29
    $region28: #{forward.7} parent=1 // pred_region
      %vm85 = vcmask 254976
      %86 = vst.msk [vmem:[#allocation2] sm:$0x3] %vm85, 0.0
      %87 = vst.msk [vmem:[#allocation3] sm:$0x3] %vm85, 0.0
      %88 = vst.msk [vmem:[#allocation4] sm:$0x3] %vm85, 0.0
      %89 = vst.msk [vmem:[#allocation5] sm:$0x3] %vm85, 0.0
    $region29: #{forward.7} parent=1 // pred_fallthru
      _
    %v90 = vld [vmem:[%s4] sm:$0xf]
    %v91 = vld [vmem:[%s4 + $0x4] sm:$0xf]
    %v92 = vld [vmem:[%s4 + $0x8] sm:$0xf]
    %v93 = vld [vmem:[%s4 + $0xc] sm:$0xf]
    %v94 = vld [vmem:[%s5] sm:$0xf]
    %v95 = vld [vmem:[%s5 + $0x4] sm:$0xf]
    %v96 = vld [vmem:[%s5 + $0x8] sm:$0xf]
    %v97 = vld [vmem:[%s5 + $0xc] sm:$0xf]
    %v98 = vld [vmem:[#allocation2] sm:$0x3]
    %v99 = vld [vmem:[#allocation3] sm:$0x3]
    %v100 = vld [vmem:[#allocation4] sm:$0x3]
    %v101 = vld [vmem:[#allocation5] sm:$0x3]
    %v102 = vld [vmem:[%s0] sm:$0x1]
    %v103 = vunpack.c.l.bf16 %v102
    %v104 = vpack.c.bf16 %v98, %v98
    %v109 = vunpack.c.l.b16 %v90
    %v110 = vunpack.c.l.b16 %v91
    %v111 = vunpack.c.l.b16 %v92
    %v112 = vunpack.c.l.b16 %v93
    %v113 = vpack.c.b16 %v110, %v109
    %v114 = vpack.c.b16 %v112, %v111
    %vm117 = vcmask 261120
    %v119 = vsel %vm117, %v104, 0
    %121 = vmatpush.bf16.msra.mxu0 0
    %122 = vmatpush.bf16.msra.mxu0 0
    %123 = vmatpush.bf16.msra.mxu0 0
    %124 = vmatpush.bf16.msra.mxu0 0
    %125 = vmatpush.bf16.msra.mxu0 0
    %126 = vmatpush.bf16.msra.mxu0 0
    %127 = vmatpush.bf16.msra.mxu0 %v114
    %128 = vmatpush.bf16.msra.mxu0 %v113
    %129 = vmatmul.bf16.gmra.mxu0 %v119
    %v130 = vpop.f32.mrf.mxu0
    %v131 = vadd.f32 0.0, %v130
    %v132 = vpop.f32.mrf.mxu0
    %133 = vdwg.mxu0
    %v134 = vadd.f32 %v103, %v131
    %v135 = vxor.u32 %v134, 2147483648
    %v136 = vmul.f32 %v135, 1.442695
    %v137 = vpow.pop %v136
    %v138 = vadd.f32 %v137, 1.0
    %v139 = vrcp.pop %v138
    %v140 = vmul.f32 %v138, %v139
    %v141 = vsub.f32 1.0, %v140
    %v142 = vmul.f32 %v139, %v141
    %v143 = vadd.f32 %v139, %v142
    %vm144 = vweird.f32 %v138
    %vm145 = vweird.f32 %v139
    %vm146 = vmor %vm144, %vm145
    %v147 = vsel %vm146, %v139, %v143
    %v148 = vand.u32 2147483647, %v138
    %vm149 = vcmp.eq.f32.partialorder %v148, 8.507059e+37
    %v150 = vand.u32 %v138, 2147483648
    %v151 = vor.u32 1.1754944e-38, %v150
    %v152 = vsel %vm149, %v151, %v147
    %v153 = vmul.f32 1.0, %v152
    %v154 = vtanh.pop %v134
    %156 = vrot.lane.b32.xlu0 %v99, 32
    %v157 = vpop.permute.xlu0 %156
    %v159 = vmul.f32 %v153, %v157
    %161 = vrot.lane.b32.xlu0 %v154, 64
    %v162 = vpop.permute.xlu0 %161
    %v164 = vmul.f32 %v153, %v162
    %166 = vrot.lane.b32.xlu0 %v164, 32
    %v167 = vpop.permute.xlu0 %166
    %v169 = vadd.f32 %v159, %v167
    %v170 = vtanh.pop %v169
    %172 = vrot.lane.b32.xlu0 %v170, 64
    %v173 = vpop.permute.xlu0 %172
    %v175 = vmul.f32 %v153, %v173
    %v176 = vld [vmem:[%s2] sm:$0x3]
    %178 = vset.pattern.permute.xlu0 0
    %179 = vperm.xlu0 %178, %v176
    %v180 = vpop.permute.xlu0 %179
    %183 = vst [vmem:[#allocation1] ss:$4 sm:$0xff] %v175
    %v184 = vld.sshfl [vmem:[#allocation1] sm:$0xff pattern:$0x73625140]
    %185 = vrot.lane.b32.xlu0 %v184, 32
    %v186 = vpop.permute.xlu0 %185
    %v188 = vmul.f32 %v180, %v186
    %v189 = vsub.f32 1.0, %v176
    %191 = vset.pattern.permute.xlu0 0
    %192 = vperm.xlu0 %191, %v189
    %v193 = vpop.permute.xlu0 %192
    %v195 = vmul.f32 %v193, %v98
    %v196 = vadd.f32 %v188, %v195
    %198 = vst [vmem:[#allocation1] ss:$4 sm:$0xff] %v169
    %v199 = vld.sshfl [vmem:[#allocation1] sm:$0xff pattern:$0x73625140]
    %200 = vrot.lane.b32.xlu0 %v199, 96
    %v201 = vpop.permute.xlu0 %200
    %v203 = vmul.f32 %v180, %v201
    %v204 = vmul.f32 %v193, %v99
    %v205 = vadd.f32 %v203, %v204
    %v206 = vmul.f32 %v196, %v180
    %v207 = vpack.c.bf16 %v206, %v206
    %vm208 = vcmask 253952
    %209 = vst.msk [vmem:[%s6] sm:$0x1] %vm208, %v207
    %s210 = scalar_lea.vmem %s62, 7
    %v211 = vld [vmem:[%s210] sm:$0x1]
    %v212 = vunpack.c.l.bf16 %v211
    %v213 = vpack.c.bf16 %v100, %v100
    %v218 = vunpack.c.l.b16 %v94
    %v219 = vunpack.c.l.b16 %v95
    %v220 = vunpack.c.l.b16 %v96
    %v221 = vunpack.c.l.b16 %v97
    %v222 = vpack.c.b16 %v219, %v218
    %v223 = vpack.c.b16 %v221, %v220
    %v227 = vsel %vm117, %v213, 0
    %229 = vmatpush.bf16.msra.mxu0 0
    %230 = vmatpush.bf16.msra.mxu0 0
    %231 = vmatpush.bf16.msra.mxu0 0
    %232 = vmatpush.bf16.msra.mxu0 0
    %233 = vmatpush.bf16.msra.mxu0 0
    %234 = vmatpush.bf16.msra.mxu0 0
    %235 = vmatpush.bf16.msra.mxu0 %v223
    %236 = vmatpush.bf16.msra.mxu0 %v222
    %237 = vmatmul.bf16.gmra.mxu0 %v227
    %v238 = vpop.f32.mrf.mxu0
    %v239 = vadd.f32 0.0, %v238
    %v240 = vpop.f32.mrf.mxu0
    %241 = vdwg.mxu0
    %v242 = vadd.f32 %v212, %v239
    %v243 = vxor.u32 %v242, 2147483648
    %v244 = vmul.f32 %v243, 1.442695
    %v245 = vpow.pop %v244
    %v246 = vadd.f32 %v245, 1.0
    %v247 = vrcp.pop %v246
    %v248 = vmul.f32 %v246, %v247
    %v249 = vsub.f32 1.0, %v248
    %v250 = vmul.f32 %v247, %v249
    %v251 = vadd.f32 %v247, %v250
    %vm252 = vweird.f32 %v246
    %vm253 = vweird.f32 %v247
    %vm254 = vmor %vm252, %vm253
    %v255 = vsel %vm254, %v247, %v251
    %v256 = vand.u32 2147483647, %v246
    %vm257 = vcmp.eq.f32.partialorder %v256, 8.507059e+37
    %v258 = vand.u32 %v246, 2147483648
    %v259 = vor.u32 1.1754944e-38, %v258
    %v260 = vsel %vm257, %v259, %v255
    %v261 = vmul.f32 1.0, %v260
    %v262 = vtanh.pop %v242
    %264 = vrot.lane.b32.xlu0 %v101, 32
    %v265 = vpop.permute.xlu0 %264
    %v267 = vmul.f32 %v261, %v265
    %269 = vrot.lane.b32.xlu0 %v262, 64
    %v270 = vpop.permute.xlu0 %269
    %v272 = vmul.f32 %v261, %v270
    %274 = vrot.lane.b32.xlu0 %v272, 32
    %v275 = vpop.permute.xlu0 %274
    %v277 = vadd.f32 %v267, %v275
    %v278 = vtanh.pop %v277
    %280 = vrot.lane.b32.xlu0 %v278, 64
    %v281 = vpop.permute.xlu0 %280
    %v283 = vmul.f32 %v261, %v281
    %s284 = scalar_lea.vmem %s70, 14
    %v285 = vld [vmem:[%s284] sm:$0x3]
    %287 = vset.pattern.permute.xlu0 0
    %288 = vperm.xlu0 %287, %v285
    %v289 = vpop.permute.xlu0 %288
    %292 = vst [vmem:[#allocation1] ss:$4 sm:$0xff] %v283
    %v293 = vld.sshfl [vmem:[#allocation1] sm:$0xff pattern:$0x73625140]
    %294 = vrot.lane.b32.xlu0 %v293, 32
    %v295 = vpop.permute.xlu0 %294
    %v297 = vmul.f32 %v289, %v295
    %v298 = vsub.f32 1.0, %v285
    %300 = vset.pattern.permute.xlu0 0
    %301 = vperm.xlu0 %300, %v298
    %v302 = vpop.permute.xlu0 %301
    %v304 = vmul.f32 %v302, %v100
    %v305 = vadd.f32 %v297, %v304
    %307 = vst [vmem:[#allocation1] ss:$4 sm:$0xff] %v277
    %v308 = vld.sshfl [vmem:[#allocation1] sm:$0xff pattern:$0x73625140]
    %309 = vrot.lane.b32.xlu0 %v308, 96
    %v310 = vpop.permute.xlu0 %309
    %v312 = vmul.f32 %v289, %v310
    %v313 = vmul.f32 %v302, %v101
    %v314 = vadd.f32 %v312, %v313
    %v315 = vmul.f32 %v305, %v289
    %v316 = vpack.c.bf16 %v315, %v315
    %s317 = scalar_lea.vmem %s77, 7
    %318 = vst.msk [vmem:[%s317] sm:$0x1] %vm208, %v316
    %s319 = scalar_lea.vmem %s0, 1
    %v320 = vld [vmem:[%s319] sm:$0x1]
    %v321 = vunpack.c.l.bf16 %v320
    %v322 = vpack.c.bf16 %v196, %v196
    %v324 = vsel %vm117, %v322, 0
    %326 = vmatpush.bf16.msra.mxu0 0
    %327 = vmatpush.bf16.msra.mxu0 0
    %328 = vmatpush.bf16.msra.mxu0 0
    %329 = vmatpush.bf16.msra.mxu0 0
    %330 = vmatpush.bf16.msra.mxu0 0
    %331 = vmatpush.bf16.msra.mxu0 0
    %332 = vmatpush.bf16.msra.mxu0 %v114
    %333 = vmatpush.bf16.msra.mxu0 %v113
    %334 = vmatmul.bf16.gmra.mxu0 %v324
    %v335 = vpop.f32.mrf.mxu0
    %v336 = vadd.f32 0.0, %v335
    %v337 = vpop.f32.mrf.mxu0
    %338 = vdwg.mxu0
    %v339 = vadd.f32 %v321, %v336
    %v340 = vxor.u32 %v339, 2147483648
    %v341 = vmul.f32 %v340, 1.442695
    %v342 = vpow.pop %v341
    %v343 = vadd.f32 %v342, 1.0
    %v344 = vrcp.pop %v343
    %v345 = vmul.f32 %v343, %v344
    %v346 = vsub.f32 1.0, %v345
    %v347 = vmul.f32 %v344, %v346
    %v348 = vadd.f32 %v344, %v347
    %vm349 = vweird.f32 %v343
    %vm350 = vweird.f32 %v344
    %vm351 = vmor %vm349, %vm350
    %v352 = vsel %vm351, %v344, %v348
    %v353 = vand.u32 2147483647, %v343
    %vm354 = vcmp.eq.f32.partialorder %v353, 8.507059e+37
    %v355 = vand.u32 %v343, 2147483648
    %v356 = vor.u32 1.1754944e-38, %v355
    %v357 = vsel %vm354, %v356, %v352
    %v358 = vmul.f32 1.0, %v357
    %v359 = vtanh.pop %v339
    %361 = vrot.lane.b32.xlu0 %v205, 32
    %v362 = vpop.permute.xlu0 %361
    %v364 = vmul.f32 %v358, %v362
    %366 = vrot.lane.b32.xlu0 %v359, 64
    %v367 = vpop.permute.xlu0 %366
    %v369 = vmul.f32 %v358, %v367
    %371 = vrot.lane.b32.xlu0 %v369, 32
    %v372 = vpop.permute.xlu0 %371
    %v374 = vadd.f32 %v364, %v372
    %v375 = vtanh.pop %v374
    %377 = vrot.lane.b32.xlu0 %v375, 64
    %v378 = vpop.permute.xlu0 %377
    %v380 = vmul.f32 %v358, %v378
    %s381 = scalar_lea.vmem %s2, 2
    %v382 = vld [vmem:[%s381] sm:$0x3]
    %384 = vset.pattern.permute.xlu0 0
    %385 = vperm.xlu0 %384, %v382
    %v386 = vpop.permute.xlu0 %385
    %389 = vst [vmem:[#allocation1] ss:$4 sm:$0xff] %v380
    %v390 = vld.sshfl [vmem:[#allocation1] sm:$0xff pattern:$0x73625140]
    %391 = vrot.lane.b32.xlu0 %v390, 32
    %v392 = vpop.permute.xlu0 %391
    %v394 = vmul.f32 %v386, %v392
    %v395 = vsub.f32 1.0, %v382
    %397 = vset.pattern.permute.xlu0 0
    %398 = vperm.xlu0 %397, %v395
    %v399 = vpop.permute.xlu0 %398
    %v401 = vmul.f32 %v399, %v196
    %v402 = vadd.f32 %v394, %v401
    %404 = vst [vmem:[#allocation1] ss:$4 sm:$0xff] %v374
    %v405 = vld.sshfl [vmem:[#allocation1] sm:$0xff pattern:$0x73625140]
    %406 = vrot.lane.b32.xlu0 %v405, 96
    %v407 = vpop.permute.xlu0 %406
    %v409 = vmul.f32 %v386, %v407
    %v410 = vmul.f32 %v399, %v205
    %v411 = vadd.f32 %v409, %v410
    %v412 = vmul.f32 %v402, %v386
    %v413 = vpack.c.bf16 %v412, %v412
    %s414 = scalar_lea.vmem %s6, 1
    %415 = vst.msk [vmem:[%s414] sm:$0x1] %vm208, %v413
    %s416 = scalar_lea.vmem %s62, 6
    %v417 = vld [vmem:[%s416] sm:$0x1]
    %v418 = vunpack.c.l.bf16 %v417
    %v419 = vpack.c.bf16 %v305, %v305
    %v421 = vsel %vm117, %v419, 0
    %423 = vmatpush.bf16.msra.mxu0 0
    %424 = vmatpush.bf16.msra.mxu0 0
    %425 = vmatpush.bf16.msra.mxu0 0
    %426 = vmatpush.bf16.msra.mxu0 0
    %427 = vmatpush.bf16.msra.mxu0 0
    %428 = vmatpush.bf16.msra.mxu0 0
    %429 = vmatpush.bf16.msra.mxu0 %v223
    %430 = vmatpush.bf16.msra.mxu0 %v222
    %431 = vmatmul.bf16.gmra.mxu0 %v421
    %v432 = vpop.f32.mrf.mxu0
    %v433 = vadd.f32 0.0, %v432
    %v434 = vpop.f32.mrf.mxu0
    %435 = vdwg.mxu0
    %v436 = vadd.f32 %v418, %v433
    %v437 = vxor.u32 %v436, 2147483648
    %v438 = vmul.f32 %v437, 1.442695
    %v439 = vpow.pop %v438
    %v440 = vadd.f32 %v439, 1.0
    %v441 = vrcp.pop %v440
    %v442 = vmul.f32 %v440, %v441
    %v443 = vsub.f32 1.0, %v442
    %v444 = vmul.f32 %v441, %v443
    %v445 = vadd.f32 %v441, %v444
    %vm446 = vweird.f32 %v440
    %vm447 = vweird.f32 %v441
    %vm448 = vmor %vm446, %vm447
    %v449 = vsel %vm448, %v441, %v445
    %v450 = vand.u32 2147483647, %v440
    %vm451 = vcmp.eq.f32.partialorder %v450, 8.507059e+37
    %v452 = vand.u32 %v440, 2147483648
    %v453 = vor.u32 1.1754944e-38, %v452
    %v454 = vsel %vm451, %v453, %v449
    %v455 = vmul.f32 1.0, %v454
    %v456 = vtanh.pop %v436
    %458 = vrot.lane.b32.xlu0 %v314, 32
    %v459 = vpop.permute.xlu0 %458
    %v461 = vmul.f32 %v455, %v459
    %463 = vrot.lane.b32.xlu0 %v456, 64
    %v464 = vpop.permute.xlu0 %463
    %v466 = vmul.f32 %v455, %v464
    %468 = vrot.lane.b32.xlu0 %v466, 32
    %v469 = vpop.permute.xlu0 %468
    %v471 = vadd.f32 %v461, %v469
    %v472 = vtanh.pop %v471
    %474 = vrot.lane.b32.xlu0 %v472, 64
    %v475 = vpop.permute.xlu0 %474
    %v477 = vmul.f32 %v455, %v475
    %s478 = scalar_lea.vmem %s70, 12
    %v479 = vld [vmem:[%s478] sm:$0x3]
    %481 = vset.pattern.permute.xlu0 0
    %482 = vperm.xlu0 %481, %v479
    %v483 = vpop.permute.xlu0 %482
    %486 = vst [vmem:[#allocation1] ss:$4 sm:$0xff] %v477
    %v487 = vld.sshfl [vmem:[#allocation1] sm:$0xff pattern:$0x73625140]
    %488 = vrot.lane.b32.xlu0 %v487, 32
    %v489 = vpop.permute.xlu0 %488
    %v491 = vmul.f32 %v483, %v489
    %v492 = vsub.f32 1.0, %v479
    %494 = vset.pattern.permute.xlu0 0
    %495 = vperm.xlu0 %494, %v492
    %v496 = vpop.permute.xlu0 %495
    %v498 = vmul.f32 %v496, %v305
    %v499 = vadd.f32 %v491, %v498
    %501 = vst [vmem:[#allocation1] ss:$4 sm:$0xff] %v471
    %v502 = vld.sshfl [vmem:[#allocation1] sm:$0xff pattern:$0x73625140]
    %503 = vrot.lane.b32.xlu0 %v502, 96
    %v504 = vpop.permute.xlu0 %503
    %v506 = vmul.f32 %v483, %v504
    %v507 = vmul.f32 %v496, %v314
    %v508 = vadd.f32 %v506, %v507
    %v509 = vmul.f32 %v499, %v483
    %v510 = vpack.c.bf16 %v509, %v509
    %s511 = scalar_lea.vmem %s77, 6
    %512 = vst.msk [vmem:[%s511] sm:$0x1] %vm208, %v510
    %s513 = scalar_lea.vmem %s0, 2
    %v514 = vld [vmem:[%s513] sm:$0x1]
    %v515 = vunpack.c.l.bf16 %v514
    %v516 = vpack.c.bf16 %v402, %v402
    %v518 = vsel %vm117, %v516, 0
    %520 = vmatpush.bf16.msra.mxu0 0
    %521 = vmatpush.bf16.msra.mxu0 0
    %522 = vmatpush.bf16.msra.mxu0 0
    %523 = vmatpush.bf16.msra.mxu0 0
    %524 = vmatpush.bf16.msra.mxu0 0
    %525 = vmatpush.bf16.msra.mxu0 0
    %526 = vmatpush.bf16.msra.mxu0 %v114
    %527 = vmatpush.bf16.msra.mxu0 %v113
    %528 = vmatmul.bf16.gmra.mxu0 %v518
    %v529 = vpop.f32.mrf.mxu0
    %v530 = vadd.f32 0.0, %v529
    %v531 = vpop.f32.mrf.mxu0
    %532 = vdwg.mxu0
    %v533 = vadd.f32 %v515, %v530
    %v534 = vxor.u32 %v533, 2147483648
    %v535 = vmul.f32 %v534, 1.442695
    %v536 = vpow.pop %v535
    %v537 = vadd.f32 %v536, 1.0
    %v538 = vrcp.pop %v537
    %v539 = vmul.f32 %v537, %v538
    %v540 = vsub.f32 1.0, %v539
    %v541 = vmul.f32 %v538, %v540
    %v542 = vadd.f32 %v538, %v541
    %vm543 = vweird.f32 %v537
    %vm544 = vweird.f32 %v538
    %vm545 = vmor %vm543, %vm544
    %v546 = vsel %vm545, %v538, %v542
    %v547 = vand.u32 2147483647, %v537
    %vm548 = vcmp.eq.f32.partialorder %v547, 8.507059e+37
    %v549 = vand.u32 %v537, 2147483648
    %v550 = vor.u32 1.1754944e-38, %v549
    %v551 = vsel %vm548, %v550, %v546
    %v552 = vmul.f32 1.0, %v551
    %v553 = vtanh.pop %v533
    %555 = vrot.lane.b32.xlu0 %v411, 32
    %v556 = vpop.permute.xlu0 %555
    %v558 = vmul.f32 %v552, %v556
    %560 = vrot.lane.b32.xlu0 %v553, 64
    %v561 = vpop.permute.xlu0 %560
    %v563 = vmul.f32 %v552, %v561
    %565 = vrot.lane.b32.xlu0 %v563, 32
    %v566 = vpop.permute.xlu0 %565
    %v568 = vadd.f32 %v558, %v566
    %v569 = vtanh.pop %v568
    %571 = vrot.lane.b32.xlu0 %v569, 64
    %v572 = vpop.permute.xlu0 %571
    %v574 = vmul.f32 %v552, %v572
    %s575 = scalar_lea.vmem %s2, 4
    %v576 = vld [vmem:[%s575] sm:$0x3]
    %578 = vset.pattern.permute.xlu0 0
    %579 = vperm.xlu0 %578, %v576
    %v580 = vpop.permute.xlu0 %579
    %583 = vst [vmem:[#allocation1] ss:$4 sm:$0xff] %v574
    %v584 = vld.sshfl [vmem:[#allocation1] sm:$0xff pattern:$0x73625140]
    %585 = vrot.lane.b32.xlu0 %v584, 32
    %v586 = vpop.permute.xlu0 %585
    %v588 = vmul.f32 %v580, %v586
    %v589 = vsub.f32 1.0, %v576
    %591 = vset.pattern.permute.xlu0 0
    %592 = vperm.xlu0 %591, %v589
    %v593 = vpop.permute.xlu0 %592
    %v595 = vmul.f32 %v593, %v402
    %v596 = vadd.f32 %v588, %v595
    %598 = vst [vmem:[#allocation1] ss:$4 sm:$0xff] %v568
    %v599 = vld.sshfl [vmem:[#allocation1] sm:$0xff pattern:$0x73625140]
    %600 = vrot.lane.b32.xlu0 %v599, 96
    %v601 = vpop.permute.xlu0 %600
    %v603 = vmul.f32 %v580, %v601
    %v604 = vmul.f32 %v593, %v411
    %v605 = vadd.f32 %v603, %v604
    %v606 = vmul.f32 %v596, %v580
    %v607 = vpack.c.bf16 %v606, %v606
    %s608 = scalar_lea.vmem %s6, 2
    %609 = vst.msk [vmem:[%s608] sm:$0x1] %vm208, %v607
    %s610 = scalar_lea.vmem %s62, 5
    %v611 = vld [vmem:[%s610] sm:$0x1]
    %v612 = vunpack.c.l.bf16 %v611
    %v613 = vpack.c.bf16 %v499, %v499
    %v615 = vsel %vm117, %v613, 0
    %617 = vmatpush.bf16.msra.mxu0 0
    %618 = vmatpush.bf16.msra.mxu0 0
    %619 = vmatpush.bf16.msra.mxu0 0
    %620 = vmatpush.bf16.msra.mxu0 0
    %621 = vmatpush.bf16.msra.mxu0 0
    %622 = vmatpush.bf16.msra.mxu0 0
    %623 = vmatpush.bf16.msra.mxu0 %v223
    %624 = vmatpush.bf16.msra.mxu0 %v222
    %625 = vmatmul.bf16.gmra.mxu0 %v615
    %v626 = vpop.f32.mrf.mxu0
    %v627 = vadd.f32 0.0, %v626
    %v628 = vpop.f32.mrf.mxu0
    %629 = vdwg.mxu0
    %v630 = vadd.f32 %v612, %v627
    %v631 = vxor.u32 %v630, 2147483648
    %v632 = vmul.f32 %v631, 1.442695
    %v633 = vpow.pop %v632
    %v634 = vadd.f32 %v633, 1.0
    %v635 = vrcp.pop %v634
    %v636 = vmul.f32 %v634, %v635
    %v637 = vsub.f32 1.0, %v636
    %v638 = vmul.f32 %v635, %v637
    %v639 = vadd.f32 %v635, %v638
    %vm640 = vweird.f32 %v634
    %vm641 = vweird.f32 %v635
    %vm642 = vmor %vm640, %vm641
    %v643 = vsel %vm642, %v635, %v639
    %v644 = vand.u32 2147483647, %v634
    %vm645 = vcmp.eq.f32.partialorder %v644, 8.507059e+37
    %v646 = vand.u32 %v634, 2147483648
    %v647 = vor.u32 1.1754944e-38, %v646
    %v648 = vsel %vm645, %v647, %v643
    %v649 = vmul.f32 1.0, %v648
    %v650 = vtanh.pop %v630
    %652 = vrot.lane.b32.xlu0 %v508, 32
    %v653 = vpop.permute.xlu0 %652
    %v655 = vmul.f32 %v649, %v653
    %657 = vrot.lane.b32.xlu0 %v650, 64
    %v658 = vpop.permute.xlu0 %657
    %v660 = vmul.f32 %v649, %v658
    %662 = vrot.lane.b32.xlu0 %v660, 32
    %v663 = vpop.permute.xlu0 %662
    %v665 = vadd.f32 %v655, %v663
    %v666 = vtanh.pop %v665
    %668 = vrot.lane.b32.xlu0 %v666, 64
    %v669 = vpop.permute.xlu0 %668
    %v671 = vmul.f32 %v649, %v669
    %s672 = scalar_lea.vmem %s70, 10
    %v673 = vld [vmem:[%s672] sm:$0x3]
    %675 = vset.pattern.permute.xlu0 0
    %676 = vperm.xlu0 %675, %v673
    %v677 = vpop.permute.xlu0 %676
    %680 = vst [vmem:[#allocation1] ss:$4 sm:$0xff] %v671
    %v681 = vld.sshfl [vmem:[#allocation1] sm:$0xff pattern:$0x73625140]
    %682 = vrot.lane.b32.xlu0 %v681, 32
    %v683 = vpop.permute.xlu0 %682
    %v685 = vmul.f32 %v677, %v683
    %v686 = vsub.f32 1.0, %v673
    %688 = vset.pattern.permute.xlu0 0
    %689 = vperm.xlu0 %688, %v686
    %v690 = vpop.permute.xlu0 %689
    %v692 = vmul.f32 %v690, %v499
    %v693 = vadd.f32 %v685, %v692
    %695 = vst [vmem:[#allocation1] ss:$4 sm:$0xff] %v665
    %v696 = vld.sshfl [vmem:[#allocation1] sm:$0xff pattern:$0x73625140]
    %697 = vrot.lane.b32.xlu0 %v696, 96
    %v698 = vpop.permute.xlu0 %697
    %v700 = vmul.f32 %v677, %v698
    %v701 = vmul.f32 %v690, %v508
    %v702 = vadd.f32 %v700, %v701
    %v703 = vmul.f32 %v693, %v677
    %v704 = vpack.c.bf16 %v703, %v703
    %s705 = scalar_lea.vmem %s77, 5
    %706 = vst.msk [vmem:[%s705] sm:$0x1] %vm208, %v704
    %s707 = scalar_lea.vmem %s0, 3
    %v708 = vld [vmem:[%s707] sm:$0x1]
    %v709 = vunpack.c.l.bf16 %v708
    %v710 = vpack.c.bf16 %v596, %v596
    %v712 = vsel %vm117, %v710, 0
    %714 = vmatpush.bf16.msra.mxu0 0
    %715 = vmatpush.bf16.msra.mxu0 0
    %716 = vmatpush.bf16.msra.mxu0 0
    %717 = vmatpush.bf16.msra.mxu0 0
    %718 = vmatpush.bf16.msra.mxu0 0
    %719 = vmatpush.bf16.msra.mxu0 0
    %720 = vmatpush.bf16.msra.mxu0 %v114
    %721 = vmatpush.bf16.msra.mxu0 %v113
    %722 = vmatmul.bf16.gmra.mxu0 %v712
    %v723 = vpop.f32.mrf.mxu0
    %v724 = vadd.f32 0.0, %v723
    %v725 = vpop.f32.mrf.mxu0
    %726 = vdwg.mxu0
    %v727 = vadd.f32 %v709, %v724
    %v728 = vxor.u32 %v727, 2147483648
    %v729 = vmul.f32 %v728, 1.442695
    %v730 = vpow.pop %v729
    %v731 = vadd.f32 %v730, 1.0
    %v732 = vrcp.pop %v731
    %v733 = vmul.f32 %v731, %v732
    %v734 = vsub.f32 1.0, %v733
    %v735 = vmul.f32 %v732, %v734
    %v736 = vadd.f32 %v732, %v735
    %vm737 = vweird.f32 %v731
    %vm738 = vweird.f32 %v732
    %vm739 = vmor %vm737, %vm738
    %v740 = vsel %vm739, %v732, %v736
    %v741 = vand.u32 2147483647, %v731
    %vm742 = vcmp.eq.f32.partialorder %v741, 8.507059e+37
    %v743 = vand.u32 %v731, 2147483648
    %v744 = vor.u32 1.1754944e-38, %v743
    %v745 = vsel %vm742, %v744, %v740
    %v746 = vmul.f32 1.0, %v745
    %v747 = vtanh.pop %v727
    %749 = vrot.lane.b32.xlu0 %v605, 32
    %v750 = vpop.permute.xlu0 %749
    %v752 = vmul.f32 %v746, %v750
    %754 = vrot.lane.b32.xlu0 %v747, 64
    %v755 = vpop.permute.xlu0 %754
    %v757 = vmul.f32 %v746, %v755
    %759 = vrot.lane.b32.xlu0 %v757, 32
    %v760 = vpop.permute.xlu0 %759
    %v762 = vadd.f32 %v752, %v760
    %v763 = vtanh.pop %v762
    %765 = vrot.lane.b32.xlu0 %v763, 64
    %v766 = vpop.permute.xlu0 %765
    %v768 = vmul.f32 %v746, %v766
    %s769 = scalar_lea.vmem %s2, 6
    %v770 = vld [vmem:[%s769] sm:$0x3]
    %772 = vset.pattern.permute.xlu0 0
    %773 = vperm.xlu0 %772, %v770
    %v774 = vpop.permute.xlu0 %773
    %777 = vst [vmem:[#allocation1] ss:$4 sm:$0xff] %v768
    %v778 = vld.sshfl [vmem:[#allocation1] sm:$0xff pattern:$0x73625140]
    %779 = vrot.lane.b32.xlu0 %v778, 32
    %v780 = vpop.permute.xlu0 %779
    %v782 = vmul.f32 %v774, %v780
    %v783 = vsub.f32 1.0, %v770
    %785 = vset.pattern.permute.xlu0 0
    %786 = vperm.xlu0 %785, %v783
    %v787 = vpop.permute.xlu0 %786
    %v789 = vmul.f32 %v787, %v596
    %v790 = vadd.f32 %v782, %v789
    %792 = vst [vmem:[#allocation1] ss:$4 sm:$0xff] %v762
    %v793 = vld.sshfl [vmem:[#allocation1] sm:$0xff pattern:$0x73625140]
    %794 = vrot.lane.b32.xlu0 %v793, 96
    %v795 = vpop.permute.xlu0 %794
    %v797 = vmul.f32 %v774, %v795
    %v798 = vmul.f32 %v787, %v605
    %v799 = vadd.f32 %v797, %v798
    %v800 = vmul.f32 %v790, %v774
    %v801 = vpack.c.bf16 %v800, %v800
    %s802 = scalar_lea.vmem %s6, 3
    %803 = vst.msk [vmem:[%s802] sm:$0x1] %vm208, %v801
    %s804 = scalar_lea.vmem %s62, 4
    %v805 = vld [vmem:[%s804] sm:$0x1]
    %v806 = vunpack.c.l.bf16 %v805
    %v807 = vpack.c.bf16 %v693, %v693
    %v809 = vsel %vm117, %v807, 0
    %811 = vmatpush.bf16.msra.mxu0 0
    %812 = vmatpush.bf16.msra.mxu0 0
    %813 = vmatpush.bf16.msra.mxu0 0
    %814 = vmatpush.bf16.msra.mxu0 0
    %815 = vmatpush.bf16.msra.mxu0 0
    %816 = vmatpush.bf16.msra.mxu0 0
    %817 = vmatpush.bf16.msra.mxu0 %v223
    %818 = vmatpush.bf16.msra.mxu0 %v222
    %819 = vmatmul.bf16.gmra.mxu0 %v809
    %v820 = vpop.f32.mrf.mxu0
    %v821 = vadd.f32 0.0, %v820
    %v822 = vpop.f32.mrf.mxu0
    %823 = vdwg.mxu0
    %v824 = vadd.f32 %v806, %v821
    %v825 = vxor.u32 %v824, 2147483648
    %v826 = vmul.f32 %v825, 1.442695
    %v827 = vpow.pop %v826
    %v828 = vadd.f32 %v827, 1.0
    %v829 = vrcp.pop %v828
    %v830 = vmul.f32 %v828, %v829
    %v831 = vsub.f32 1.0, %v830
    %v832 = vmul.f32 %v829, %v831
    %v833 = vadd.f32 %v829, %v832
    %vm834 = vweird.f32 %v828
    %vm835 = vweird.f32 %v829
    %vm836 = vmor %vm834, %vm835
    %v837 = vsel %vm836, %v829, %v833
    %v838 = vand.u32 2147483647, %v828
    %vm839 = vcmp.eq.f32.partialorder %v838, 8.507059e+37
    %v840 = vand.u32 %v828, 2147483648
    %v841 = vor.u32 1.1754944e-38, %v840
    %v842 = vsel %vm839, %v841, %v837
    %v843 = vmul.f32 1.0, %v842
    %v844 = vtanh.pop %v824
    %846 = vrot.lane.b32.xlu0 %v702, 32
    %v847 = vpop.permute.xlu0 %846
    %v849 = vmul.f32 %v843, %v847
    %851 = vrot.lane.b32.xlu0 %v844, 64
    %v852 = vpop.permute.xlu0 %851
    %v854 = vmul.f32 %v843, %v852
    %856 = vrot.lane.b32.xlu0 %v854, 32
    %v857 = vpop.permute.xlu0 %856
    %v859 = vadd.f32 %v849, %v857
    %v860 = vtanh.pop %v859
    %862 = vrot.lane.b32.xlu0 %v860, 64
    %v863 = vpop.permute.xlu0 %862
    %v865 = vmul.f32 %v843, %v863
    %s866 = scalar_lea.vmem %s70, 8
    %v867 = vld [vmem:[%s866] sm:$0x3]
    %869 = vset.pattern.permute.xlu0 0
    %870 = vperm.xlu0 %869, %v867
    %v871 = vpop.permute.xlu0 %870
    %874 = vst [vmem:[#allocation1] ss:$4 sm:$0xff] %v865
    %v875 = vld.sshfl [vmem:[#allocation1] sm:$0xff pattern:$0x73625140]
    %876 = vrot.lane.b32.xlu0 %v875, 32
    %v877 = vpop.permute.xlu0 %876
    %v879 = vmul.f32 %v871, %v877
    %v880 = vsub.f32 1.0, %v867
    %882 = vset.pattern.permute.xlu0 0
    %883 = vperm.xlu0 %882, %v880
    %v884 = vpop.permute.xlu0 %883
    %v886 = vmul.f32 %v884, %v693
    %v887 = vadd.f32 %v879, %v886
    %889 = vst [vmem:[#allocation1] ss:$4 sm:$0xff] %v859
    %v890 = vld.sshfl [vmem:[#allocation1] sm:$0xff pattern:$0x73625140]
    %891 = vrot.lane.b32.xlu0 %v890, 96
    %v892 = vpop.permute.xlu0 %891
    %v894 = vmul.f32 %v871, %v892
    %v895 = vmul.f32 %v884, %v702
    %v896 = vadd.f32 %v894, %v895
    %v897 = vmul.f32 %v887, %v871
    %v898 = vpack.c.bf16 %v897, %v897
    %s899 = scalar_lea.vmem %s77, 4
    %900 = vst.msk [vmem:[%s899] sm:$0x1] %vm208, %v898
    %s901 = scalar_lea.vmem %s0, 4
    %v902 = vld [vmem:[%s901] sm:$0x1]
    %v903 = vunpack.c.l.bf16 %v902
    %v904 = vpack.c.bf16 %v790, %v790
    %v906 = vsel %vm117, %v904, 0
    %908 = vmatpush.bf16.msra.mxu0 0
    %909 = vmatpush.bf16.msra.mxu0 0
    %910 = vmatpush.bf16.msra.mxu0 0
    %911 = vmatpush.bf16.msra.mxu0 0
    %912 = vmatpush.bf16.msra.mxu0 0
    %913 = vmatpush.bf16.msra.mxu0 0
    %914 = vmatpush.bf16.msra.mxu0 %v114
    %915 = vmatpush.bf16.msra.mxu0 %v113
    %916 = vmatmul.bf16.gmra.mxu0 %v906
    %v917 = vpop.f32.mrf.mxu0
    %v918 = vadd.f32 0.0, %v917
    %v919 = vpop.f32.mrf.mxu0
    %920 = vdwg.mxu0
    %v921 = vadd.f32 %v903, %v918
    %v922 = vxor.u32 %v921, 2147483648
    %v923 = vmul.f32 %v922, 1.442695
    %v924 = vpow.pop %v923
    %v925 = vadd.f32 %v924, 1.0
    %v926 = vrcp.pop %v925
    %v927 = vmul.f32 %v925, %v926
    %v928 = vsub.f32 1.0, %v927
    %v929 = vmul.f32 %v926, %v928
    %v930 = vadd.f32 %v926, %v929
    %vm931 = vweird.f32 %v925
    %vm932 = vweird.f32 %v926
    %vm933 = vmor %vm931, %vm932
    %v934 = vsel %vm933, %v926, %v930
    %v935 = vand.u32 2147483647, %v925
    %vm936 = vcmp.eq.f32.partialorder %v935, 8.507059e+37
    %v937 = vand.u32 %v925, 2147483648
    %v938 = vor.u32 1.1754944e-38, %v937
    %v939 = vsel %vm936, %v938, %v934
    %v940 = vmul.f32 1.0, %v939
    %v941 = vtanh.pop %v921
    %943 = vrot.lane.b32.xlu0 %v799, 32
    %v944 = vpop.permute.xlu0 %943
    %v946 = vmul.f32 %v940, %v944
    %948 = vrot.lane.b32.xlu0 %v941, 64
    %v949 = vpop.permute.xlu0 %948
    %v951 = vmul.f32 %v940, %v949
    %953 = vrot.lane.b32.xlu0 %v951, 32
    %v954 = vpop.permute.xlu0 %953
    %v956 = vadd.f32 %v946, %v954
    %v957 = vtanh.pop %v956
    %959 = vrot.lane.b32.xlu0 %v957, 64
    %v960 = vpop.permute.xlu0 %959
    %v962 = vmul.f32 %v940, %v960
    %s963 = scalar_lea.vmem %s2, 8
    %v964 = vld [vmem:[%s963] sm:$0x3]
    %966 = vset.pattern.permute.xlu0 0
    %967 = vperm.xlu0 %966, %v964
    %v968 = vpop.permute.xlu0 %967
    %971 = vst [vmem:[#allocation1] ss:$4 sm:$0xff] %v962
    %v972 = vld.sshfl [vmem:[#allocation1] sm:$0xff pattern:$0x73625140]
    %973 = vrot.lane.b32.xlu0 %v972, 32
    %v974 = vpop.permute.xlu0 %973
    %v976 = vmul.f32 %v968, %v974
    %v977 = vsub.f32 1.0, %v964
    %979 = vset.pattern.permute.xlu0 0
    %980 = vperm.xlu0 %979, %v977
    %v981 = vpop.permute.xlu0 %980
    %v983 = vmul.f32 %v981, %v790
    %v984 = vadd.f32 %v976, %v983
    %986 = vst [vmem:[#allocation1] ss:$4 sm:$0xff] %v956
    %v987 = vld.sshfl [vmem:[#allocation1] sm:$0xff pattern:$0x73625140]
    %988 = vrot.lane.b32.xlu0 %v987, 96
    %v989 = vpop.permute.xlu0 %988
    %v991 = vmul.f32 %v968, %v989
    %v992 = vmul.f32 %v981, %v799
    %v993 = vadd.f32 %v991, %v992
    %v994 = vmul.f32 %v984, %v968
    %v995 = vpack.c.bf16 %v994, %v994
    %s996 = scalar_lea.vmem %s6, 4
    %997 = vst.msk [vmem:[%s996] sm:$0x1] %vm208, %v995
    %s998 = scalar_lea.vmem %s62, 3
    %v999 = vld [vmem:[%s998] sm:$0x1]
    %v1000 = vunpack.c.l.bf16 %v999
    %v1001 = vpack.c.bf16 %v887, %v887
    %v1003 = vsel %vm117, %v1001, 0
    %1005 = vmatpush.bf16.msra.mxu0 0
    %1006 = vmatpush.bf16.msra.mxu0 0
    %1007 = vmatpush.bf16.msra.mxu0 0
    %1008 = vmatpush.bf16.msra.mxu0 0
    %1009 = vmatpush.bf16.msra.mxu0 0
    %1010 = vmatpush.bf16.msra.mxu0 0
    %1011 = vmatpush.bf16.msra.mxu0 %v223
    %1012 = vmatpush.bf16.msra.mxu0 %v222
    %1013 = vmatmul.bf16.gmra.mxu0 %v1003
    %v1014 = vpop.f32.mrf.mxu0
    %v1015 = vadd.f32 0.0, %v1014
    %v1016 = vpop.f32.mrf.mxu0
    %1017 = vdwg.mxu0
    %v1018 = vadd.f32 %v1000, %v1015
    %v1019 = vxor.u32 %v1018, 2147483648
    %v1020 = vmul.f32 %v1019, 1.442695
    %v1021 = vpow.pop %v1020
    %v1022 = vadd.f32 %v1021, 1.0
    %v1023 = vrcp.pop %v1022
    %v1024 = vmul.f32 %v1022, %v1023
    %v1025 = vsub.f32 1.0, %v1024
    %v1026 = vmul.f32 %v1023, %v1025
    %v1027 = vadd.f32 %v1023, %v1026
    %vm1028 = vweird.f32 %v1022
    %vm1029 = vweird.f32 %v1023
    %vm1030 = vmor %vm1028, %vm1029
    %v1031 = vsel %vm1030, %v1023, %v1027
    %v1032 = vand.u32 2147483647, %v1022
    %vm1033 = vcmp.eq.f32.partialorder %v1032, 8.507059e+37
    %v1034 = vand.u32 %v1022, 2147483648
    %v1035 = vor.u32 1.1754944e-38, %v1034
    %v1036 = vsel %vm1033, %v1035, %v1031
    %v1037 = vmul.f32 1.0, %v1036
    %v1038 = vtanh.pop %v1018
    %1040 = vrot.lane.b32.xlu0 %v896, 32
    %v1041 = vpop.permute.xlu0 %1040
    %v1043 = vmul.f32 %v1037, %v1041
    %1045 = vrot.lane.b32.xlu0 %v1038, 64
    %v1046 = vpop.permute.xlu0 %1045
    %v1048 = vmul.f32 %v1037, %v1046
    %1050 = vrot.lane.b32.xlu0 %v1048, 32
    %v1051 = vpop.permute.xlu0 %1050
    %v1053 = vadd.f32 %v1043, %v1051
    %v1054 = vtanh.pop %v1053
    %1056 = vrot.lane.b32.xlu0 %v1054, 64
    %v1057 = vpop.permute.xlu0 %1056
    %v1059 = vmul.f32 %v1037, %v1057
    %s1060 = scalar_lea.vmem %s70, 6
    %v1061 = vld [vmem:[%s1060] sm:$0x3]
    %1063 = vset.pattern.permute.xlu0 0
    %1064 = vperm.xlu0 %1063, %v1061
    %v1065 = vpop.permute.xlu0 %1064
    %1068 = vst [vmem:[#allocation1] ss:$4 sm:$0xff] %v1059
    %v1069 = vld.sshfl [vmem:[#allocation1] sm:$0xff pattern:$0x73625140]
    %1070 = vrot.lane.b32.xlu0 %v1069, 32
    %v1071 = vpop.permute.xlu0 %1070
    %v1073 = vmul.f32 %v1065, %v1071
    %v1074 = vsub.f32 1.0, %v1061
    %1076 = vset.pattern.permute.xlu0 0
    %1077 = vperm.xlu0 %1076, %v1074
    %v1078 = vpop.permute.xlu0 %1077
    %v1080 = vmul.f32 %v1078, %v887
    %v1081 = vadd.f32 %v1073, %v1080
    %1083 = vst [vmem:[#allocation1] ss:$4 sm:$0xff] %v1053
    %v1084 = vld.sshfl [vmem:[#allocation1] sm:$0xff pattern:$0x73625140]
    %1085 = vrot.lane.b32.xlu0 %v1084, 96
    %v1086 = vpop.permute.xlu0 %1085
    %v1088 = vmul.f32 %v1065, %v1086
    %v1089 = vmul.f32 %v1078, %v896
    %v1090 = vadd.f32 %v1088, %v1089
    %v1091 = vmul.f32 %v1081, %v1065
    %v1092 = vpack.c.bf16 %v1091, %v1091
    %s1093 = scalar_lea.vmem %s77, 3
    %1094 = vst.msk [vmem:[%s1093] sm:$0x1] %vm208, %v1092
    %s1095 = scalar_lea.vmem %s0, 5
    %v1096 = vld [vmem:[%s1095] sm:$0x1]
    %v1097 = vunpack.c.l.bf16 %v1096
    %v1098 = vpack.c.bf16 %v984, %v984
    %v1100 = vsel %vm117, %v1098, 0
    %1102 = vmatpush.bf16.msra.mxu0 0
    %1103 = vmatpush.bf16.msra.mxu0 0
    %1104 = vmatpush.bf16.msra.mxu0 0
    %1105 = vmatpush.bf16.msra.mxu0 0
    %1106 = vmatpush.bf16.msra.mxu0 0
    %1107 = vmatpush.bf16.msra.mxu0 0
    %1108 = vmatpush.bf16.msra.mxu0 %v114
    %1109 = vmatpush.bf16.msra.mxu0 %v113
    %1110 = vmatmul.bf16.gmra.mxu0 %v1100
    %v1111 = vpop.f32.mrf.mxu0
    %v1112 = vadd.f32 0.0, %v1111
    %v1113 = vpop.f32.mrf.mxu0
    %1114 = vdwg.mxu0
    %v1115 = vadd.f32 %v1097, %v1112
    %v1116 = vxor.u32 %v1115, 2147483648
    %v1117 = vmul.f32 %v1116, 1.442695
    %v1118 = vpow.pop %v1117
    %v1119 = vadd.f32 %v1118, 1.0
    %v1120 = vrcp.pop %v1119
    %v1121 = vmul.f32 %v1119, %v1120
    %v1122 = vsub.f32 1.0, %v1121
    %v1123 = vmul.f32 %v1120, %v1122
    %v1124 = vadd.f32 %v1120, %v1123
    %vm1125 = vweird.f32 %v1119
    %vm1126 = vweird.f32 %v1120
    %vm1127 = vmor %vm1125, %vm1126
    %v1128 = vsel %vm1127, %v1120, %v1124
    %v1129 = vand.u32 2147483647, %v1119
    %vm1130 = vcmp.eq.f32.partialorder %v1129, 8.507059e+37
    %v1131 = vand.u32 %v1119, 2147483648
    %v1132 = vor.u32 1.1754944e-38, %v1131
    %v1133 = vsel %vm1130, %v1132, %v1128
    %v1134 = vmul.f32 1.0, %v1133
    %v1135 = vtanh.pop %v1115
    %1137 = vrot.lane.b32.xlu0 %v993, 32
    %v1138 = vpop.permute.xlu0 %1137
    %v1140 = vmul.f32 %v1134, %v1138
    %1142 = vrot.lane.b32.xlu0 %v1135, 64
    %v1143 = vpop.permute.xlu0 %1142
    %v1145 = vmul.f32 %v1134, %v1143
    %1147 = vrot.lane.b32.xlu0 %v1145, 32
    %v1148 = vpop.permute.xlu0 %1147
    %v1150 = vadd.f32 %v1140, %v1148
    %v1151 = vtanh.pop %v1150
    %1153 = vrot.lane.b32.xlu0 %v1151, 64
    %v1154 = vpop.permute.xlu0 %1153
    %v1156 = vmul.f32 %v1134, %v1154
    %s1157 = scalar_lea.vmem %s2, 10
    %v1158 = vld [vmem:[%s1157] sm:$0x3]
    %1160 = vset.pattern.permute.xlu0 0
    %1161 = vperm.xlu0 %1160, %v1158
    %v1162 = vpop.permute.xlu0 %1161
    %1165 = vst [vmem:[#allocation1] ss:$4 sm:$0xff] %v1156
    %v1166 = vld.sshfl [vmem:[#allocation1] sm:$0xff pattern:$0x73625140]
    %1167 = vrot.lane.b32.xlu0 %v1166, 32
    %v1168 = vpop.permute.xlu0 %1167
    %v1170 = vmul.f32 %v1162, %v1168
    %v1171 = vsub.f32 1.0, %v1158
    %1173 = vset.pattern.permute.xlu0 0
    %1174 = vperm.xlu0 %1173, %v1171
    %v1175 = vpop.permute.xlu0 %1174
    %v1177 = vmul.f32 %v1175, %v984
    %v1178 = vadd.f32 %v1170, %v1177
    %1180 = vst [vmem:[#allocation1] ss:$4 sm:$0xff] %v1150
    %v1181 = vld.sshfl [vmem:[#allocation1] sm:$0xff pattern:$0x73625140]
    %1182 = vrot.lane.b32.xlu0 %v1181, 96
    %v1183 = vpop.permute.xlu0 %1182
    %v1185 = vmul.f32 %v1162, %v1183
    %v1186 = vmul.f32 %v1175, %v993
    %v1187 = vadd.f32 %v1185, %v1186
    %v1188 = vmul.f32 %v1178, %v1162
    %v1189 = vpack.c.bf16 %v1188, %v1188
    %s1190 = scalar_lea.vmem %s6, 5
    %1191 = vst.msk [vmem:[%s1190] sm:$0x1] %vm208, %v1189
    %s1192 = scalar_lea.vmem %s62, 2
    %v1193 = vld [vmem:[%s1192] sm:$0x1]
    %v1194 = vunpack.c.l.bf16 %v1193
    %v1195 = vpack.c.bf16 %v1081, %v1081
    %v1197 = vsel %vm117, %v1195, 0
    %1199 = vmatpush.bf16.msra.mxu0 0
    %1200 = vmatpush.bf16.msra.mxu0 0
    %1201 = vmatpush.bf16.msra.mxu0 0
    %1202 = vmatpush.bf16.msra.mxu0 0
    %1203 = vmatpush.bf16.msra.mxu0 0
    %1204 = vmatpush.bf16.msra.mxu0 0
    %1205 = vmatpush.bf16.msra.mxu0 %v223
    %1206 = vmatpush.bf16.msra.mxu0 %v222
    %1207 = vmatmul.bf16.gmra.mxu0 %v1197
    %v1208 = vpop.f32.mrf.mxu0
    %v1209 = vadd.f32 0.0, %v1208
    %v1210 = vpop.f32.mrf.mxu0
    %1211 = vdwg.mxu0
    %v1212 = vadd.f32 %v1194, %v1209
    %v1213 = vxor.u32 %v1212, 2147483648
    %v1214 = vmul.f32 %v1213, 1.442695
    %v1215 = vpow.pop %v1214
    %v1216 = vadd.f32 %v1215, 1.0
    %v1217 = vrcp.pop %v1216
    %v1218 = vmul.f32 %v1216, %v1217
    %v1219 = vsub.f32 1.0, %v1218
    %v1220 = vmul.f32 %v1217, %v1219
    %v1221 = vadd.f32 %v1217, %v1220
    %vm1222 = vweird.f32 %v1216
    %vm1223 = vweird.f32 %v1217
    %vm1224 = vmor %vm1222, %vm1223
    %v1225 = vsel %vm1224, %v1217, %v1221
    %v1226 = vand.u32 2147483647, %v1216
    %vm1227 = vcmp.eq.f32.partialorder %v1226, 8.507059e+37
    %v1228 = vand.u32 %v1216, 2147483648
    %v1229 = vor.u32 1.1754944e-38, %v1228
    %v1230 = vsel %vm1227, %v1229, %v1225
    %v1231 = vmul.f32 1.0, %v1230
    %v1232 = vtanh.pop %v1212
    %1234 = vrot.lane.b32.xlu0 %v1090, 32
    %v1235 = vpop.permute.xlu0 %1234
    %v1237 = vmul.f32 %v1231, %v1235
    %1239 = vrot.lane.b32.xlu0 %v1232, 64
    %v1240 = vpop.permute.xlu0 %1239
    %v1242 = vmul.f32 %v1231, %v1240
    %1244 = vrot.lane.b32.xlu0 %v1242, 32
    %v1245 = vpop.permute.xlu0 %1244
    %v1247 = vadd.f32 %v1237, %v1245
    %v1248 = vtanh.pop %v1247
    %1250 = vrot.lane.b32.xlu0 %v1248, 64
    %v1251 = vpop.permute.xlu0 %1250
    %v1253 = vmul.f32 %v1231, %v1251
    %s1254 = scalar_lea.vmem %s70, 4
    %v1255 = vld [vmem:[%s1254] sm:$0x3]
    %1257 = vset.pattern.permute.xlu0 0
    %1258 = vperm.xlu0 %1257, %v1255
    %v1259 = vpop.permute.xlu0 %1258
    %1262 = vst [vmem:[#allocation1] ss:$4 sm:$0xff] %v1253
    %v1263 = vld.sshfl [vmem:[#allocation1] sm:$0xff pattern:$0x73625140]
    %1264 = vrot.lane.b32.xlu0 %v1263, 32
    %v1265 = vpop.permute.xlu0 %1264
    %v1267 = vmul.f32 %v1259, %v1265
    %v1268 = vsub.f32 1.0, %v1255
    %1270 = vset.pattern.permute.xlu0 0
    %1271 = vperm.xlu0 %1270, %v1268
    %v1272 = vpop.permute.xlu0 %1271
    %v1274 = vmul.f32 %v1272, %v1081
    %v1275 = vadd.f32 %v1267, %v1274
    %1277 = vst [vmem:[#allocation1] ss:$4 sm:$0xff] %v1247
    %v1278 = vld.sshfl [vmem:[#allocation1] sm:$0xff pattern:$0x73625140]
    %1279 = vrot.lane.b32.xlu0 %v1278, 96
    %v1280 = vpop.permute.xlu0 %1279
    %v1282 = vmul.f32 %v1259, %v1280
    %v1283 = vmul.f32 %v1272, %v1090
    %v1284 = vadd.f32 %v1282, %v1283
    %v1285 = vmul.f32 %v1275, %v1259
    %v1286 = vpack.c.bf16 %v1285, %v1285
    %s1287 = scalar_lea.vmem %s77, 2
    %1288 = vst.msk [vmem:[%s1287] sm:$0x1] %vm208, %v1286
    %s1289 = scalar_lea.vmem %s0, 6
    %v1290 = vld [vmem:[%s1289] sm:$0x1]
    %v1291 = vunpack.c.l.bf16 %v1290
    %v1292 = vpack.c.bf16 %v1178, %v1178
    %v1294 = vsel %vm117, %v1292, 0
    %1296 = vmatpush.bf16.msra.mxu0 0
    %1297 = vmatpush.bf16.msra.mxu0 0
    %1298 = vmatpush.bf16.msra.mxu0 0
    %1299 = vmatpush.bf16.msra.mxu0 0
    %1300 = vmatpush.bf16.msra.mxu0 0
    %1301 = vmatpush.bf16.msra.mxu0 0
    %1302 = vmatpush.bf16.msra.mxu0 %v114
    %1303 = vmatpush.bf16.msra.mxu0 %v113
    %1304 = vmatmul.bf16.gmra.mxu0 %v1294
    %v1305 = vpop.f32.mrf.mxu0
    %v1306 = vadd.f32 0.0, %v1305
    %v1307 = vpop.f32.mrf.mxu0
    %1308 = vdwg.mxu0
    %v1309 = vadd.f32 %v1291, %v1306
    %v1310 = vxor.u32 %v1309, 2147483648
    %v1311 = vmul.f32 %v1310, 1.442695
    %v1312 = vpow.pop %v1311
    %v1313 = vadd.f32 %v1312, 1.0
    %v1314 = vrcp.pop %v1313
    %v1315 = vmul.f32 %v1313, %v1314
    %v1316 = vsub.f32 1.0, %v1315
    %v1317 = vmul.f32 %v1314, %v1316
    %v1318 = vadd.f32 %v1314, %v1317
    %vm1319 = vweird.f32 %v1313
    %vm1320 = vweird.f32 %v1314
    %vm1321 = vmor %vm1319, %vm1320
    %v1322 = vsel %vm1321, %v1314, %v1318
    %v1323 = vand.u32 2147483647, %v1313
    %vm1324 = vcmp.eq.f32.partialorder %v1323, 8.507059e+37
    %v1325 = vand.u32 %v1313, 2147483648
    %v1326 = vor.u32 1.1754944e-38, %v1325
    %v1327 = vsel %vm1324, %v1326, %v1322
    %v1328 = vmul.f32 1.0, %v1327
    %v1329 = vtanh.pop %v1309
    %1331 = vrot.lane.b32.xlu0 %v1187, 32
    %v1332 = vpop.permute.xlu0 %1331
    %v1334 = vmul.f32 %v1328, %v1332
    %1336 = vrot.lane.b32.xlu0 %v1329, 64
    %v1337 = vpop.permute.xlu0 %1336
    %v1339 = vmul.f32 %v1328, %v1337
    %1341 = vrot.lane.b32.xlu0 %v1339, 32
    %v1342 = vpop.permute.xlu0 %1341
    %v1344 = vadd.f32 %v1334, %v1342
    %v1345 = vtanh.pop %v1344
    %1347 = vrot.lane.b32.xlu0 %v1345, 64
    %v1348 = vpop.permute.xlu0 %1347
    %v1350 = vmul.f32 %v1328, %v1348
    %s1351 = scalar_lea.vmem %s2, 12
    %v1352 = vld [vmem:[%s1351] sm:$0x3]
    %1354 = vset.pattern.permute.xlu0 0
    %1355 = vperm.xlu0 %1354, %v1352
    %v1356 = vpop.permute.xlu0 %1355
    %1359 = vst [vmem:[#allocation1] ss:$4 sm:$0xff] %v1350
    %v1360 = vld.sshfl [vmem:[#allocation1] sm:$0xff pattern:$0x73625140]
    %1361 = vrot.lane.b32.xlu0 %v1360, 32
    %v1362 = vpop.permute.xlu0 %1361
    %v1364 = vmul.f32 %v1356, %v1362
    %v1365 = vsub.f32 1.0, %v1352
    %1367 = vset.pattern.permute.xlu0 0
    %1368 = vperm.xlu0 %1367, %v1365
    %v1369 = vpop.permute.xlu0 %1368
    %v1371 = vmul.f32 %v1369, %v1178
    %v1372 = vadd.f32 %v1364, %v1371
    %1374 = vst [vmem:[#allocation1] ss:$4 sm:$0xff] %v1344
    %v1375 = vld.sshfl [vmem:[#allocation1] sm:$0xff pattern:$0x73625140]
    %1376 = vrot.lane.b32.xlu0 %v1375, 96
    %v1377 = vpop.permute.xlu0 %1376
    %v1379 = vmul.f32 %v1356, %v1377
    %v1380 = vmul.f32 %v1369, %v1187
    %v1381 = vadd.f32 %v1379, %v1380
    %v1382 = vmul.f32 %v1372, %v1356
    %v1383 = vpack.c.bf16 %v1382, %v1382
    %s1384 = scalar_lea.vmem %s6, 6
    %1385 = vst.msk [vmem:[%s1384] sm:$0x1] %vm208, %v1383
    %s1386 = scalar_lea.vmem %s62, 1
    %v1387 = vld [vmem:[%s1386] sm:$0x1]
    %v1388 = vunpack.c.l.bf16 %v1387
    %v1389 = vpack.c.bf16 %v1275, %v1275
    %v1391 = vsel %vm117, %v1389, 0
    %1393 = vmatpush.bf16.msra.mxu0 0
    %1394 = vmatpush.bf16.msra.mxu0 0
    %1395 = vmatpush.bf16.msra.mxu0 0
    %1396 = vmatpush.bf16.msra.mxu0 0
    %1397 = vmatpush.bf16.msra.mxu0 0
    %1398 = vmatpush.bf16.msra.mxu0 0
    %1399 = vmatpush.bf16.msra.mxu0 %v223
    %1400 = vmatpush.bf16.msra.mxu0 %v222
    %1401 = vmatmul.bf16.gmra.mxu0 %v1391
    %v1402 = vpop.f32.mrf.mxu0
    %v1403 = vadd.f32 0.0, %v1402
    %v1404 = vpop.f32.mrf.mxu0
    %1405 = vdwg.mxu0
    %v1406 = vadd.f32 %v1388, %v1403
    %v1407 = vxor.u32 %v1406, 2147483648
    %v1408 = vmul.f32 %v1407, 1.442695
    %v1409 = vpow.pop %v1408
    %v1410 = vadd.f32 %v1409, 1.0
    %v1411 = vrcp.pop %v1410
    %v1412 = vmul.f32 %v1410, %v1411
    %v1413 = vsub.f32 1.0, %v1412
    %v1414 = vmul.f32 %v1411, %v1413
    %v1415 = vadd.f32 %v1411, %v1414
    %vm1416 = vweird.f32 %v1410
    %vm1417 = vweird.f32 %v1411
    %vm1418 = vmor %vm1416, %vm1417
    %v1419 = vsel %vm1418, %v1411, %v1415
    %v1420 = vand.u32 2147483647, %v1410
    %vm1421 = vcmp.eq.f32.partialorder %v1420, 8.507059e+37
    %v1422 = vand.u32 %v1410, 2147483648
    %v1423 = vor.u32 1.1754944e-38, %v1422
    %v1424 = vsel %vm1421, %v1423, %v1419
    %v1425 = vmul.f32 1.0, %v1424
    %v1426 = vtanh.pop %v1406
    %1428 = vrot.lane.b32.xlu0 %v1284, 32
    %v1429 = vpop.permute.xlu0 %1428
    %v1431 = vmul.f32 %v1425, %v1429
    %1433 = vrot.lane.b32.xlu0 %v1426, 64
    %v1434 = vpop.permute.xlu0 %1433
    %v1436 = vmul.f32 %v1425, %v1434
    %1438 = vrot.lane.b32.xlu0 %v1436, 32
    %v1439 = vpop.permute.xlu0 %1438
    %v1441 = vadd.f32 %v1431, %v1439
    %v1442 = vtanh.pop %v1441
    %1444 = vrot.lane.b32.xlu0 %v1442, 64
    %v1445 = vpop.permute.xlu0 %1444
    %v1447 = vmul.f32 %v1425, %v1445
    %s1448 = scalar_lea.vmem %s70, 2
    %v1449 = vld [vmem:[%s1448] sm:$0x3]
    %1451 = vset.pattern.permute.xlu0 0
    %1452 = vperm.xlu0 %1451, %v1449
    %v1453 = vpop.permute.xlu0 %1452
    %1456 = vst [vmem:[#allocation1] ss:$4 sm:$0xff] %v1447
    %v1457 = vld.sshfl [vmem:[#allocation1] sm:$0xff pattern:$0x73625140]
    %1458 = vrot.lane.b32.xlu0 %v1457, 32
    %v1459 = vpop.permute.xlu0 %1458
    %v1461 = vmul.f32 %v1453, %v1459
    %v1462 = vsub.f32 1.0, %v1449
    %1464 = vset.pattern.permute.xlu0 0
    %1465 = vperm.xlu0 %1464, %v1462
    %v1466 = vpop.permute.xlu0 %1465
    %v1468 = vmul.f32 %v1466, %v1275
    %v1469 = vadd.f32 %v1461, %v1468
    %1471 = vst [vmem:[#allocation1] ss:$4 sm:$0xff] %v1441
    %v1472 = vld.sshfl [vmem:[#allocation1] sm:$0xff pattern:$0x73625140]
    %1473 = vrot.lane.b32.xlu0 %v1472, 96
    %v1474 = vpop.permute.xlu0 %1473
    %v1476 = vmul.f32 %v1453, %v1474
    %v1477 = vmul.f32 %v1466, %v1284
    %v1478 = vadd.f32 %v1476, %v1477
    %v1479 = vmul.f32 %v1469, %v1453
    %v1480 = vpack.c.bf16 %v1479, %v1479
    %s1481 = scalar_lea.vmem %s77, 1
    %1482 = vst.msk [vmem:[%s1481] sm:$0x1] %vm208, %v1480
    %s1483 = scalar_lea.vmem %s0, 7
    %v1484 = vld [vmem:[%s1483] sm:$0x1]
    %v1485 = vunpack.c.l.bf16 %v1484
    %v1486 = vpack.c.bf16 %v1372, %v1372
    %v1488 = vsel %vm117, %v1486, 0
    %1490 = vmatpush.bf16.msra.mxu0 0
    %1491 = vmatpush.bf16.msra.mxu0 0
    %1492 = vmatpush.bf16.msra.mxu0 0
    %1493 = vmatpush.bf16.msra.mxu0 0
    %1494 = vmatpush.bf16.msra.mxu0 0
    %1495 = vmatpush.bf16.msra.mxu0 0
    %1496 = vmatpush.bf16.msra.mxu0 %v114
    %1497 = vmatpush.bf16.msra.mxu0 %v113
    %1498 = vmatmul.bf16.gmra.mxu0 %v1488
    %v1499 = vpop.f32.mrf.mxu0
    %v1500 = vadd.f32 0.0, %v1499
    %v1501 = vpop.f32.mrf.mxu0
    %1502 = vdwg.mxu0
    %v1503 = vadd.f32 %v1485, %v1500
    %v1504 = vxor.u32 %v1503, 2147483648
    %v1505 = vmul.f32 %v1504, 1.442695
    %v1506 = vpow.pop %v1505
    %v1507 = vadd.f32 %v1506, 1.0
    %v1508 = vrcp.pop %v1507
    %v1509 = vmul.f32 %v1507, %v1508
    %v1510 = vsub.f32 1.0, %v1509
    %v1511 = vmul.f32 %v1508, %v1510
    %v1512 = vadd.f32 %v1508, %v1511
    %vm1513 = vweird.f32 %v1507
    %vm1514 = vweird.f32 %v1508
    %vm1515 = vmor %vm1513, %vm1514
    %v1516 = vsel %vm1515, %v1508, %v1512
    %v1517 = vand.u32 2147483647, %v1507
    %vm1518 = vcmp.eq.f32.partialorder %v1517, 8.507059e+37
    %v1519 = vand.u32 %v1507, 2147483648
    %v1520 = vor.u32 1.1754944e-38, %v1519
    %v1521 = vsel %vm1518, %v1520, %v1516
    %v1522 = vmul.f32 1.0, %v1521
    %v1523 = vtanh.pop %v1503
    %1525 = vrot.lane.b32.xlu0 %v1381, 32
    %v1526 = vpop.permute.xlu0 %1525
    %v1528 = vmul.f32 %v1522, %v1526
    %1530 = vrot.lane.b32.xlu0 %v1523, 64
    %v1531 = vpop.permute.xlu0 %1530
    %v1533 = vmul.f32 %v1522, %v1531
    %1535 = vrot.lane.b32.xlu0 %v1533, 32
    %v1536 = vpop.permute.xlu0 %1535
    %v1538 = vadd.f32 %v1528, %v1536
    %v1539 = vtanh.pop %v1538
    %1541 = vrot.lane.b32.xlu0 %v1539, 64
    %v1542 = vpop.permute.xlu0 %1541
    %v1544 = vmul.f32 %v1522, %v1542
    %s1545 = scalar_lea.vmem %s2, 14
    %v1546 = vld [vmem:[%s1545] sm:$0x3]
    %1548 = vset.pattern.permute.xlu0 0
    %1549 = vperm.xlu0 %1548, %v1546
    %v1550 = vpop.permute.xlu0 %1549
    %1553 = vst [vmem:[#allocation1] ss:$4 sm:$0xff] %v1544
    %v1554 = vld.sshfl [vmem:[#allocation1] sm:$0xff pattern:$0x73625140]
    %1555 = vrot.lane.b32.xlu0 %v1554, 32
    %v1556 = vpop.permute.xlu0 %1555
    %v1558 = vmul.f32 %v1550, %v1556
    %v1559 = vsub.f32 1.0, %v1546
    %1561 = vset.pattern.permute.xlu0 0
    %1562 = vperm.xlu0 %1561, %v1559
    %v1563 = vpop.permute.xlu0 %1562
    %v1565 = vmul.f32 %v1563, %v1372
    %v1566 = vadd.f32 %v1558, %v1565
    %1568 = vst [vmem:[#allocation1] ss:$4 sm:$0xff] %v1538
    %v1569 = vld.sshfl [vmem:[#allocation1] sm:$0xff pattern:$0x73625140]
    %1570 = vrot.lane.b32.xlu0 %v1569, 96
    %v1571 = vpop.permute.xlu0 %1570
    %v1573 = vmul.f32 %v1550, %v1571
    %v1574 = vmul.f32 %v1563, %v1381
    %v1575 = vadd.f32 %v1573, %v1574
    %v1576 = vmul.f32 %v1566, %v1550
    %v1577 = vpack.c.bf16 %v1576, %v1576
    %s1578 = scalar_lea.vmem %s6, 7
    %1579 = vst.msk [vmem:[%s1578] sm:$0x1] %vm208, %v1577
    %v1580 = vld [vmem:[%s62] sm:$0x1]
    %v1581 = vunpack.c.l.bf16 %v1580
    %v1582 = vpack.c.bf16 %v1469, %v1469
    %v1584 = vsel %vm117, %v1582, 0
    %1586 = vmatpush.bf16.msra.mxu0 0
    %1587 = vmatpush.bf16.msra.mxu0 0
    %1588 = vmatpush.bf16.msra.mxu0 0
    %1589 = vmatpush.bf16.msra.mxu0 0
    %1590 = vmatpush.bf16.msra.mxu0 0
    %1591 = vmatpush.bf16.msra.mxu0 0
    %1592 = vmatpush.bf16.msra.mxu0 %v223
    %1593 = vmatpush.bf16.msra.mxu0 %v222
    %1594 = vmatmul.bf16.gmra.mxu0 %v1584
    %v1595 = vpop.f32.mrf.mxu0
    %v1596 = vadd.f32 0.0, %v1595
    %v1597 = vpop.f32.mrf.mxu0
    %1598 = vdwg.mxu0
    %v1599 = vadd.f32 %v1581, %v1596
    %v1600 = vxor.u32 %v1599, 2147483648
    %v1601 = vmul.f32 %v1600, 1.442695
    %v1602 = vpow.pop %v1601
    %v1603 = vadd.f32 %v1602, 1.0
    %v1604 = vrcp.pop %v1603
    %v1605 = vmul.f32 %v1603, %v1604
    %v1606 = vsub.f32 1.0, %v1605
    %v1607 = vmul.f32 %v1604, %v1606
    %v1608 = vadd.f32 %v1604, %v1607
    %vm1609 = vweird.f32 %v1603
    %vm1610 = vweird.f32 %v1604
    %vm1611 = vmor %vm1609, %vm1610
    %v1612 = vsel %vm1611, %v1604, %v1608
    %v1613 = vand.u32 2147483647, %v1603
    %vm1614 = vcmp.eq.f32.partialorder %v1613, 8.507059e+37
    %v1615 = vand.u32 %v1603, 2147483648
    %v1616 = vor.u32 1.1754944e-38, %v1615
    %v1617 = vsel %vm1614, %v1616, %v1612
    %v1618 = vmul.f32 1.0, %v1617
    %v1619 = vtanh.pop %v1599
    %1621 = vrot.lane.b32.xlu0 %v1478, 32
    %v1622 = vpop.permute.xlu0 %1621
    %v1624 = vmul.f32 %v1618, %v1622
    %1626 = vrot.lane.b32.xlu0 %v1619, 64
    %v1627 = vpop.permute.xlu0 %1626
    %v1629 = vmul.f32 %v1618, %v1627
    %1631 = vrot.lane.b32.xlu0 %v1629, 32
    %v1632 = vpop.permute.xlu0 %1631
    %v1634 = vadd.f32 %v1624, %v1632
    %v1635 = vtanh.pop %v1634
    %1637 = vrot.lane.b32.xlu0 %v1635, 64
    %v1638 = vpop.permute.xlu0 %1637
    %v1640 = vmul.f32 %v1618, %v1638
    %v1641 = vld [vmem:[%s70] sm:$0x3]
    %1643 = vset.pattern.permute.xlu0 0
    %1644 = vperm.xlu0 %1643, %v1641
    %v1645 = vpop.permute.xlu0 %1644
    %1648 = vst [vmem:[#allocation1] ss:$4 sm:$0xff] %v1640
    %v1649 = vld.sshfl [vmem:[#allocation1] sm:$0xff pattern:$0x73625140]
    %1650 = vrot.lane.b32.xlu0 %v1649, 32
    %v1651 = vpop.permute.xlu0 %1650
    %v1653 = vmul.f32 %v1645, %v1651
    %v1654 = vsub.f32 1.0, %v1641
    %1656 = vset.pattern.permute.xlu0 0
    %1657 = vperm.xlu0 %1656, %v1654
    %v1658 = vpop.permute.xlu0 %1657
    %v1660 = vmul.f32 %v1658, %v1469
    %v1661 = vadd.f32 %v1653, %v1660
    %1663 = vst [vmem:[#allocation1] ss:$4 sm:$0xff] %v1634
    %v1664 = vld.sshfl [vmem:[#allocation1] sm:$0xff pattern:$0x73625140]
    %1665 = vrot.lane.b32.xlu0 %v1664, 96
    %v1666 = vpop.permute.xlu0 %1665
    %v1668 = vmul.f32 %v1645, %v1666
    %v1669 = vmul.f32 %v1658, %v1478
    %v1670 = vadd.f32 %v1668, %v1669
    %v1671 = vmul.f32 %v1661, %v1645
    %v1672 = vpack.c.bf16 %v1671, %v1671
    %1673 = vst.msk [vmem:[%s77] sm:$0x1] %vm208, %v1672
    %vm1674 = vcmask 254976
    %1675 = vst.msk [vmem:[#allocation2] sm:$0x3] %vm1674, %v1566
    %1676 = vst.msk [vmem:[#allocation3] sm:$0x3] %vm1674, %v1575
    %1677 = vst.msk [vmem:[#allocation4] sm:$0x3] %vm1674, %v1661
    %1678 = vst.msk [vmem:[#allocation5] sm:$0x3] %vm1674, %v1670
    %1680 = vrot.lane.b32.xlu0 %v1661, 32
    %v1681 = vpop.permute.xlu0 %1680
    %v1683 = vsel %vm117, %v1566, %v1681
    %vm1684 = vcmask 517120
    %1685 = vst.msk [vmem:[#allocation6] sm:$0x3] %vm1684, %v1683
    %s1686 = ssub.s32 0, 0
    %s1687 = smul.u32 8, %s1686
    %p1688 = scmp.lt.s32.totalorder %s1687, 7
    %s1689 = scalar_select %p1688, %s1687, 7
    %s1690 = scalar_lea.vmem %s7, %s1689
    // Predicated region
    $region30: #{forward.7} parent=1 // pred_check
      _
    $region31: #{forward.7} parent=1 // pred_check_branch
      %1692 = sbr.rel (0) target = $region33
    $region32: #{forward.7} parent=1 // pred_region
      _
    $region33: #{forward.7} parent=1 // pred_fallthru
      _
    // Predicated region
    $region34: #{forward.7} parent=1 // pred_check
      _
    $region35: #{forward.7} parent=1 // pred_check_branch
      %1694 = sbr.rel (0) target = $region37
    $region36: #{forward.7} parent=1 // pred_region
      %s1695 = ssub.s32 0, 0
      %s1696 = smul.u32 8, %s1695
    $region37: #{forward.7} parent=1 // pred_fallthru
      _
    // Predicated region
    $region38: #{forward.7} parent=1 // pred_check
      _
    $region39: #{forward.7} parent=1 // pred_check_branch
      %1698 = sbr.rel (0) target = $region41
    $region40: #{forward.7} parent=1 // pred_region
      %1700 = vsyncadd [#allocation7], 0
      %s1702 = sshll.u32 [#allocation6], 4
      %s1703 = int_to_ptr.vmem [resolvable:$true] %s1702
      %s1704 = sshll.u32 %s8, 4
      %s1705 = int_to_ptr.hbm [resolvable:$true] %s1704
      %1707 = dma.vmem_to_hbm [thread:$0]  %s1703, 32, %s1705, [#allocation7]
    $region41: #{forward.7} parent=1 // pred_fallthru
      _
    // Predicated region
    $region42: #{forward.7} parent=1 // pred_check
      _
    $region43: #{forward.7} parent=1 // pred_check_branch
      %1709 = sbr.rel (0) target = $region45
    $region44: #{forward.7} parent=1 // pred_region
      _
    $region45: #{forward.7} parent=1 // pred_fallthru
      _
    // Predicated region
    $region46: #{forward.7} parent=1 // pred_check
      _
    $region47: #{forward.7} parent=1 // pred_check_branch
      %1711 = sbr.rel (0) target = $region49
    $region48: #{forward.7} parent=1 // pred_region
      %s1712 = ssub.s32 0, 0
      %s1713 = smul.u32 8, %s1712
      %p1714 = scmp.lt.s32.totalorder %s1713, 7
      %s1715 = scalar_select %p1714, %s1713, 7
      %s1716 = scalar_lea.vmem %s7, %s1715
    $region49: #{forward.7} parent=1 // pred_fallthru
      _
    // Predicated region
    $region50: #{forward.7} parent=1 // pred_check
      _
    $region51: #{forward.7} parent=1 // pred_check_branch
      %1718 = sbr.rel (0) target = $region53
    $region52: #{forward.7} parent=1 // pred_region
      %1720 = dma.done [#allocation7], 32
    $region53: #{forward.7} parent=1 // pred_fallthru
      _
    %1721 = vsyncpa [#allocation7], 1

// kernel: forward.9
$region0: #{forward.9}
  #allocation0 [shape = 'u32[]', space=smem, size = 0x4, offset = 0x4, fixed_abs, tag = 'smem constant byte address 0x4 - core index']
  #allocation1 [shape = 'u32[72,128]{1,0:T(1,128)}', space=vmem, size = 0x9000, scoped, tag = 'internal scratch']
  #allocation2 [shape = 'f32[2,32]{1,0:T(2,128)}', space=vmem, size = 0x400, scoped, tag = 'scratch operand']
  #allocation3 [shape = 'f32[2,32]{1,0:T(2,128)}', space=vmem, size = 0x400, scoped, tag = 'scratch operand']
  #allocation4 [shape = 'f32[2,32]{1,0:T(2,128)}', space=vmem, size = 0x400, scoped, tag = 'scratch operand']
  #allocation5 [shape = 'f32[2,32]{1,0:T(2,128)}', space=vmem, size = 0x400, scoped, tag = 'scratch operand']
  %s0 = inlined_call_operand.vmem [shape: bf16[8,2,128], index: 0, kind: input, shape index: {}]
  %s1 = inlined_call_operand.vmem [shape: bf16[8,2,128], index: 1, kind: input, shape index: {}]
  %s2 = inlined_call_operand.vmem [shape: f32[8,2,1], index: 2, kind: input, shape index: {}, may-alias: {2,3}]
  %s3 = inlined_call_operand.vmem [shape: f32[8,2,1], index: 3, kind: input, shape index: {}, may-alias: {2,3}]
  %s4 = inlined_call_operand.vmem [shape: bf16[32,128], index: 4, kind: input, shape index: {}]
  %s5 = inlined_call_operand.vmem [shape: bf16[32,128], index: 5, kind: input, shape index: {}]
  %s6 = inlined_call_operand.hbm [shape: bf16[8,2,32], index: 6, kind: output, shape index: {0}]
  %s7 = inlined_call_operand.hbm [shape: bf16[8,2,32], index: 7, kind: output, shape index: {1}]
  %s8 = inlined_call_operand.vmem [shape: f32[2,64], index: 8, kind: output, shape index: {2}]
  %9 = xla_tuple %s6, %s7, %s8
  %s10 = sld [smem:[#allocation0]]
  $region54: #{forward.9} parent=0
    _
  %s12 = ssub.s32 1, %s10
  %s13 = scalar_select 0, %s12, %s10
  $region1: #{forward.9} parent=0
    #allocation6 [shape = 'u8[4096]{0}', space=vmem, size = 0x1000, scoped, tag = 'output window, operand 0, single buffered']
    #allocation7 [shape = 's32[1]{0}', space=sflag, size = 0x4, scoped, tag = 'scoped memory for forward.9']
    #allocation8 [shape = 'u8[4096]{0}', space=vmem, size = 0x1000, scoped, tag = 'output window, operand 1, single buffered']
    #allocation9 [shape = 's32[1]{0}', space=sflag, size = 0x4, scoped, tag = 'scoped memory for forward.9']
    %14 = vsyncpa [#allocation7], 0
    %15 = vsyncpa [#allocation9], 0
    // Predicated region
    $region2: #{forward.9} parent=1 // pred_check
      _
    $region3: #{forward.9} parent=1 // pred_check_branch
      %17 = sbr.rel (0) target = $region5
    $region4: #{forward.9} parent=1 // pred_region
      _
    $region5: #{forward.9} parent=1 // pred_fallthru
      _
    // Predicated region
    $region6: #{forward.9} parent=1 // pred_check
      _
    $region7: #{forward.9} parent=1 // pred_check_branch
      %19 = sbr.rel (0) target = $region9
    $region8: #{forward.9} parent=1 // pred_region
      %s20 = ssub.s32 0, 0
      %s21 = smul.u32 8, %s20
      %p22 = scmp.lt.s32.totalorder %s21, 7
      %s23 = scalar_select %p22, %s21, 7
      %s24 = scalar_lea.vmem %s1, %s23
      %s25 = ssub.s32 0, 0
      %s26 = smul.u32 8, %s25
    $region9: #{forward.9} parent=1 // pred_fallthru
      _
    // Predicated region
    $region10: #{forward.9} parent=1 // pred_check
      _
    $region11: #{forward.9} parent=1 // pred_check_branch
      %28 = sbr.rel (0) target = $region13
    $region12: #{forward.9} parent=1 // pred_region
      _
    $region13: #{forward.9} parent=1 // pred_fallthru
      _
    // Predicated region
    $region14: #{forward.9} parent=1 // pred_check
      _
    $region15: #{forward.9} parent=1 // pred_check_branch
      %30 = sbr.rel (0) target = $region17
    $region16: #{forward.9} parent=1 // pred_region
      %s31 = ssub.s32 0, 0
      %s32 = smul.u32 8, %s31
      %p33 = scmp.lt.s32.totalorder %s32, 7
      %s34 = scalar_select %p33, %s32, 7
      %s35 = smul.addr %s34, 2
      %s36 = scalar_lea.vmem %s3, %s35
      %s37 = ssub.s32 0, 0
      %s38 = smul.u32 8, %s37
    $region17: #{forward.9} parent=1 // pred_fallthru
      _
    // Predicated region
    $region18: #{forward.9} parent=1 // pred_check
      _
    $region19: #{forward.9} parent=1 // pred_check_branch
      %40 = sbr.rel (0) target = $region21
    $region20: #{forward.9} parent=1 // pred_region
      _
    $region21: #{forward.9} parent=1 // pred_fallthru
      _
    // Predicated region
    $region22: #{forward.9} parent=1 // pred_check
      _
    $region23: #{forward.9} parent=1 // pred_check_branch
      %42 = sbr.rel (0) target = $region25
    $region24: #{forward.9} parent=1 // pred_region
      _
    $region25: #{forward.9} parent=1 // pred_fallthru
      _
    %s43 = ssub.s32 0, 0
    %s44 = smul.u32 8, %s43
    %p45 = scmp.lt.s32.totalorder %s44, 7
    %s46 = scalar_select %p45, %s44, 7
    %s47 = scalar_lea.vmem %s1, %s46
    %s48 = ssub.s32 0, 0
    %s49 = smul.u32 8, %s48
    %p50 = scmp.lt.s32.totalorder %s49, 7
    %s51 = scalar_select %p50, %s49, 7
    %s52 = smul.addr %s51, 2
    %s53 = scalar_lea.vmem %s3, %s52
    %s54 = ssub.s32 0, 0
    %s55 = smul.u32 8, %s54
    %p56 = scmp.lt.s32.totalorder %s55, 7
    %s57 = scalar_select %p56, %s55, 7
    %s58 = scalar_lea.vmem %s1, %s57
    %s59 = ssub.s32 0, 0
    %s60 = smul.u32 8, %s59
    %s61 = ssub.s32 0, 0
    %s62 = smul.u32 8, %s61
    %p63 = scmp.lt.s32.totalorder %s62, 7
    %s64 = scalar_select %p63, %s62, 7
    %s65 = smul.addr %s64, 2
    %s66 = scalar_lea.vmem %s3, %s65
    %s67 = ssub.s32 0, 0
    %s68 = smul.u32 8, %s67
    %s69 = ssub.s32 0, 0
    %s70 = smul.u32 8, %s69
    %p72 = scmp.eq.s32.totalorder 0, 0
    // Predicated region
    $region26: #{forward.9} parent=1 // pred_check
      %p73 = pneg %p72
    $region27: #{forward.9} parent=1 // pred_check_branch
      %75 = sbr.rel (%p73) target = $region29
    $region28: #{forward.9} parent=1 // pred_region
      %vm76 = vcmask 254976
      %77 = vst.msk [vmem:[#allocation2] sm:$0x3] %vm76, 0.0
      %78 = vst.msk [vmem:[#allocation3] sm:$0x3] %vm76, 0.0
      %79 = vst.msk [vmem:[#allocation4] sm:$0x3] %vm76, 0.0
      %80 = vst.msk [vmem:[#allocation5] sm:$0x3] %vm76, 0.0
    $region29: #{forward.9} parent=1 // pred_fallthru
      _
    %v81 = vld [vmem:[%s4] sm:$0xf]
    %v82 = vld [vmem:[%s4 + $0x4] sm:$0xf]
    %v83 = vld [vmem:[%s4 + $0x8] sm:$0xf]
    %v84 = vld [vmem:[%s4 + $0xc] sm:$0xf]
    %v85 = vld [vmem:[%s5] sm:$0xf]
    %v86 = vld [vmem:[%s5 + $0x4] sm:$0xf]
    %v87 = vld [vmem:[%s5 + $0x8] sm:$0xf]
    %v88 = vld [vmem:[%s5 + $0xc] sm:$0xf]
    %v89 = vld [vmem:[#allocation2] sm:$0x3]
    %v90 = vld [vmem:[#allocation3] sm:$0x3]
    %v91 = vld [vmem:[#allocation4] sm:$0x3]
    %v92 = vld [vmem:[#allocation5] sm:$0x3]
    %v93 = vld [vmem:[%s0] sm:$0x1]
    %v94 = vunpack.c.l.bf16 %v93
    %v95 = vpack.c.bf16 %v89, %v89
    %v100 = vunpack.c.l.b16 %v81
    %v101 = vunpack.c.l.b16 %v82
    %v102 = vunpack.c.l.b16 %v83
    %v103 = vunpack.c.l.b16 %v84
    %v104 = vpack.c.b16 %v101, %v100
    %v105 = vpack.c.b16 %v103, %v102
    %vm108 = vcmask 261120
    %v110 = vsel %vm108, %v95, 0
    %112 = vmatpush.bf16.msra.mxu0 0
    %113 = vmatpush.bf16.msra.mxu0 0
    %114 = vmatpush.bf16.msra.mxu0 0
    %115 = vmatpush.bf16.msra.mxu0 0
    %116 = vmatpush.bf16.msra.mxu0 0
    %117 = vmatpush.bf16.msra.mxu0 0
    %118 = vmatpush.bf16.msra.mxu0 %v105
    %119 = vmatpush.bf16.msra.mxu0 %v104
    %120 = vmatmul.bf16.gmra.mxu0 %v110
    %v121 = vpop.f32.mrf.mxu0
    %v122 = vadd.f32 0.0, %v121
    %v123 = vpop.f32.mrf.mxu0
    %124 = vdwg.mxu0
    %v125 = vadd.f32 %v94, %v122
    %v126 = vxor.u32 %v125, 2147483648
    %v127 = vmul.f32 %v126, 1.442695
    %v128 = vpow.pop %v127
    %v129 = vadd.f32 %v128, 1.0
    %v130 = vrcp.pop %v129
    %v131 = vmul.f32 %v129, %v130
    %v132 = vsub.f32 1.0, %v131
    %v133 = vmul.f32 %v130, %v132
    %v134 = vadd.f32 %v130, %v133
    %vm135 = vweird.f32 %v129
    %vm136 = vweird.f32 %v130
    %vm137 = vmor %vm135, %vm136
    %v138 = vsel %vm137, %v130, %v134
    %v139 = vand.u32 2147483647, %v129
    %vm140 = vcmp.eq.f32.partialorder %v139, 8.507059e+37
    %v141 = vand.u32 %v129, 2147483648
    %v142 = vor.u32 1.1754944e-38, %v141
    %v143 = vsel %vm140, %v142, %v138
    %v144 = vmul.f32 1.0, %v143
    %v145 = vtanh.pop %v125
    %147 = vrot.lane.b32.xlu0 %v90, 32
    %v148 = vpop.permute.xlu0 %147
    %v150 = vmul.f32 %v144, %v148
    %152 = vrot.lane.b32.xlu0 %v145, 64
    %v153 = vpop.permute.xlu0 %152
    %v155 = vmul.f32 %v144, %v153
    %157 = vrot.lane.b32.xlu0 %v155, 32
    %v158 = vpop.permute.xlu0 %157
    %v160 = vadd.f32 %v150, %v158
    %v161 = vtanh.pop %v160
    %163 = vrot.lane.b32.xlu0 %v161, 64
    %v164 = vpop.permute.xlu0 %163
    %v166 = vmul.f32 %v144, %v164
    %v167 = vld [vmem:[%s2] sm:$0x3]
    %169 = vset.pattern.permute.xlu0 0
    %170 = vperm.xlu0 %169, %v167
    %v171 = vpop.permute.xlu0 %170
    %174 = vst [vmem:[#allocation1] ss:$4 sm:$0xff] %v166
    %v175 = vld.sshfl [vmem:[#allocation1] sm:$0xff pattern:$0x73625140]
    %176 = vrot.lane.b32.xlu0 %v175, 32
    %v177 = vpop.permute.xlu0 %176
    %v179 = vmul.f32 %v171, %v177
    %v180 = vsub.f32 1.0, %v167
    %182 = vset.pattern.permute.xlu0 0
    %183 = vperm.xlu0 %182, %v180
    %v184 = vpop.permute.xlu0 %183
    %v186 = vmul.f32 %v184, %v89
    %v187 = vadd.f32 %v179, %v186
    %189 = vst [vmem:[#allocation1] ss:$4 sm:$0xff] %v160
    %v190 = vld.sshfl [vmem:[#allocation1] sm:$0xff pattern:$0x73625140]
    %191 = vrot.lane.b32.xlu0 %v190, 96
    %v192 = vpop.permute.xlu0 %191
    %v194 = vmul.f32 %v171, %v192
    %v195 = vmul.f32 %v184, %v90
    %v196 = vadd.f32 %v194, %v195
    %v197 = vmul.f32 %v187, %v171
    %v198 = vpack.c.bf16 %v197, %v197
    %vm199 = vcmask 253952
    %200 = vst.msk [vmem:[#allocation6] sm:$0x1] %vm199, %v198
    %s201 = scalar_lea.vmem %s58, 7
    %v202 = vld [vmem:[%s201] sm:$0x1]
    %v203 = vunpack.c.l.bf16 %v202
    %v204 = vpack.c.bf16 %v91, %v91
    %v209 = vunpack.c.l.b16 %v85
    %v210 = vunpack.c.l.b16 %v86
    %v211 = vunpack.c.l.b16 %v87
    %v212 = vunpack.c.l.b16 %v88
    %v213 = vpack.c.b16 %v210, %v209
    %v214 = vpack.c.b16 %v212, %v211
    %v218 = vsel %vm108, %v204, 0
    %220 = vmatpush.bf16.msra.mxu0 0
    %221 = vmatpush.bf16.msra.mxu0 0
    %222 = vmatpush.bf16.msra.mxu0 0
    %223 = vmatpush.bf16.msra.mxu0 0
    %224 = vmatpush.bf16.msra.mxu0 0
    %225 = vmatpush.bf16.msra.mxu0 0
    %226 = vmatpush.bf16.msra.mxu0 %v214
    %227 = vmatpush.bf16.msra.mxu0 %v213
    %228 = vmatmul.bf16.gmra.mxu0 %v218
    %v229 = vpop.f32.mrf.mxu0
    %v230 = vadd.f32 0.0, %v229
    %v231 = vpop.f32.mrf.mxu0
    %232 = vdwg.mxu0
    %v233 = vadd.f32 %v203, %v230
    %v234 = vxor.u32 %v233, 2147483648
    %v235 = vmul.f32 %v234, 1.442695
    %v236 = vpow.pop %v235
    %v237 = vadd.f32 %v236, 1.0
    %v238 = vrcp.pop %v237
    %v239 = vmul.f32 %v237, %v238
    %v240 = vsub.f32 1.0, %v239
    %v241 = vmul.f32 %v238, %v240
    %v242 = vadd.f32 %v238, %v241
    %vm243 = vweird.f32 %v237
    %vm244 = vweird.f32 %v238
    %vm245 = vmor %vm243, %vm244
    %v246 = vsel %vm245, %v238, %v242
    %v247 = vand.u32 2147483647, %v237
    %vm248 = vcmp.eq.f32.partialorder %v247, 8.507059e+37
    %v249 = vand.u32 %v237, 2147483648
    %v250 = vor.u32 1.1754944e-38, %v249
    %v251 = vsel %vm248, %v250, %v246
    %v252 = vmul.f32 1.0, %v251
    %v253 = vtanh.pop %v233
    %255 = vrot.lane.b32.xlu0 %v92, 32
    %v256 = vpop.permute.xlu0 %255
    %v258 = vmul.f32 %v252, %v256
    %260 = vrot.lane.b32.xlu0 %v253, 64
    %v261 = vpop.permute.xlu0 %260
    %v263 = vmul.f32 %v252, %v261
    %265 = vrot.lane.b32.xlu0 %v263, 32
    %v266 = vpop.permute.xlu0 %265
    %v268 = vadd.f32 %v258, %v266
    %v269 = vtanh.pop %v268
    %271 = vrot.lane.b32.xlu0 %v269, 64
    %v272 = vpop.permute.xlu0 %271
    %v274 = vmul.f32 %v252, %v272
    %s275 = scalar_lea.vmem %s66, 14
    %v276 = vld [vmem:[%s275] sm:$0x3]
    %278 = vset.pattern.permute.xlu0 0
    %279 = vperm.xlu0 %278, %v276
    %v280 = vpop.permute.xlu0 %279
    %283 = vst [vmem:[#allocation1] ss:$4 sm:$0xff] %v274
    %v284 = vld.sshfl [vmem:[#allocation1] sm:$0xff pattern:$0x73625140]
    %285 = vrot.lane.b32.xlu0 %v284, 32
    %v286 = vpop.permute.xlu0 %285
    %v288 = vmul.f32 %v280, %v286
    %v289 = vsub.f32 1.0, %v276
    %291 = vset.pattern.permute.xlu0 0
    %292 = vperm.xlu0 %291, %v289
    %v293 = vpop.permute.xlu0 %292
    %v295 = vmul.f32 %v293, %v91
    %v296 = vadd.f32 %v288, %v295
    %298 = vst [vmem:[#allocation1] ss:$4 sm:$0xff] %v268
    %v299 = vld.sshfl [vmem:[#allocation1] sm:$0xff pattern:$0x73625140]
    %300 = vrot.lane.b32.xlu0 %v299, 96
    %v301 = vpop.permute.xlu0 %300
    %v303 = vmul.f32 %v280, %v301
    %v304 = vmul.f32 %v293, %v92
    %v305 = vadd.f32 %v303, %v304
    %v306 = vmul.f32 %v296, %v280
    %v307 = vpack.c.bf16 %v306, %v306
    %s308 = scalar_lea.vmem [#allocation8], 7
    %309 = vst.msk [vmem:[%s308] sm:$0x1] %vm199, %v307
    %s310 = scalar_lea.vmem %s0, 1
    %v311 = vld [vmem:[%s310] sm:$0x1]
    %v312 = vunpack.c.l.bf16 %v311
    %v313 = vpack.c.bf16 %v187, %v187
    %v315 = vsel %vm108, %v313, 0
    %317 = vmatpush.bf16.msra.mxu0 0
    %318 = vmatpush.bf16.msra.mxu0 0
    %319 = vmatpush.bf16.msra.mxu0 0
    %320 = vmatpush.bf16.msra.mxu0 0
    %321 = vmatpush.bf16.msra.mxu0 0
    %322 = vmatpush.bf16.msra.mxu0 0
    %323 = vmatpush.bf16.msra.mxu0 %v105
    %324 = vmatpush.bf16.msra.mxu0 %v104
    %325 = vmatmul.bf16.gmra.mxu0 %v315
    %v326 = vpop.f32.mrf.mxu0
    %v327 = vadd.f32 0.0, %v326
    %v328 = vpop.f32.mrf.mxu0
    %329 = vdwg.mxu0
    %v330 = vadd.f32 %v312, %v327
    %v331 = vxor.u32 %v330, 2147483648
    %v332 = vmul.f32 %v331, 1.442695
    %v333 = vpow.pop %v332
    %v334 = vadd.f32 %v333, 1.0
    %v335 = vrcp.pop %v334
    %v336 = vmul.f32 %v334, %v335
    %v337 = vsub.f32 1.0, %v336
    %v338 = vmul.f32 %v335, %v337
    %v339 = vadd.f32 %v335, %v338
    %vm340 = vweird.f32 %v334
    %vm341 = vweird.f32 %v335
    %vm342 = vmor %vm340, %vm341
    %v343 = vsel %vm342, %v335, %v339
    %v344 = vand.u32 2147483647, %v334
    %vm345 = vcmp.eq.f32.partialorder %v344, 8.507059e+37
    %v346 = vand.u32 %v334, 2147483648
    %v347 = vor.u32 1.1754944e-38, %v346
    %v348 = vsel %vm345, %v347, %v343
    %v349 = vmul.f32 1.0, %v348
    %v350 = vtanh.pop %v330
    %352 = vrot.lane.b32.xlu0 %v196, 32
    %v353 = vpop.permute.xlu0 %352
    %v355 = vmul.f32 %v349, %v353
    %357 = vrot.lane.b32.xlu0 %v350, 64
    %v358 = vpop.permute.xlu0 %357
    %v360 = vmul.f32 %v349, %v358
    %362 = vrot.lane.b32.xlu0 %v360, 32
    %v363 = vpop.permute.xlu0 %362
    %v365 = vadd.f32 %v355, %v363
    %v366 = vtanh.pop %v365
    %368 = vrot.lane.b32.xlu0 %v366, 64
    %v369 = vpop.permute.xlu0 %368
    %v371 = vmul.f32 %v349, %v369
    %s372 = scalar_lea.vmem %s2, 2
    %v373 = vld [vmem:[%s372] sm:$0x3]
    %375 = vset.pattern.permute.xlu0 0
    %376 = vperm.xlu0 %375, %v373
    %v377 = vpop.permute.xlu0 %376
    %380 = vst [vmem:[#allocation1] ss:$4 sm:$0xff] %v371
    %v381 = vld.sshfl [vmem:[#allocation1] sm:$0xff pattern:$0x73625140]
    %382 = vrot.lane.b32.xlu0 %v381, 32
    %v383 = vpop.permute.xlu0 %382
    %v385 = vmul.f32 %v377, %v383
    %v386 = vsub.f32 1.0, %v373
    %388 = vset.pattern.permute.xlu0 0
    %389 = vperm.xlu0 %388, %v386
    %v390 = vpop.permute.xlu0 %389
    %v392 = vmul.f32 %v390, %v187
    %v393 = vadd.f32 %v385, %v392
    %395 = vst [vmem:[#allocation1] ss:$4 sm:$0xff] %v365
    %v396 = vld.sshfl [vmem:[#allocation1] sm:$0xff pattern:$0x73625140]
    %397 = vrot.lane.b32.xlu0 %v396, 96
    %v398 = vpop.permute.xlu0 %397
    %v400 = vmul.f32 %v377, %v398
    %v401 = vmul.f32 %v390, %v196
    %v402 = vadd.f32 %v400, %v401
    %v403 = vmul.f32 %v393, %v377
    %v404 = vpack.c.bf16 %v403, %v403
    %s405 = scalar_lea.vmem [#allocation6], 1
    %406 = vst.msk [vmem:[%s405] sm:$0x1] %vm199, %v404
    %s407 = scalar_lea.vmem %s58, 6
    %v408 = vld [vmem:[%s407] sm:$0x1]
    %v409 = vunpack.c.l.bf16 %v408
    %v410 = vpack.c.bf16 %v296, %v296
    %v412 = vsel %vm108, %v410, 0
    %414 = vmatpush.bf16.msra.mxu0 0
    %415 = vmatpush.bf16.msra.mxu0 0
    %416 = vmatpush.bf16.msra.mxu0 0
    %417 = vmatpush.bf16.msra.mxu0 0
    %418 = vmatpush.bf16.msra.mxu0 0
    %419 = vmatpush.bf16.msra.mxu0 0
    %420 = vmatpush.bf16.msra.mxu0 %v214
    %421 = vmatpush.bf16.msra.mxu0 %v213
    %422 = vmatmul.bf16.gmra.mxu0 %v412
    %v423 = vpop.f32.mrf.mxu0
    %v424 = vadd.f32 0.0, %v423
    %v425 = vpop.f32.mrf.mxu0
    %426 = vdwg.mxu0
    %v427 = vadd.f32 %v409, %v424
    %v428 = vxor.u32 %v427, 2147483648
    %v429 = vmul.f32 %v428, 1.442695
    %v430 = vpow.pop %v429
    %v431 = vadd.f32 %v430, 1.0
    %v432 = vrcp.pop %v431
    %v433 = vmul.f32 %v431, %v432
    %v434 = vsub.f32 1.0, %v433
    %v435 = vmul.f32 %v432, %v434
    %v436 = vadd.f32 %v432, %v435
    %vm437 = vweird.f32 %v431
    %vm438 = vweird.f32 %v432
    %vm439 = vmor %vm437, %vm438
    %v440 = vsel %vm439, %v432, %v436
    %v441 = vand.u32 2147483647, %v431
    %vm442 = vcmp.eq.f32.partialorder %v441, 8.507059e+37
    %v443 = vand.u32 %v431, 2147483648
    %v444 = vor.u32 1.1754944e-38, %v443
    %v445 = vsel %vm442, %v444, %v440
    %v446 = vmul.f32 1.0, %v445
    %v447 = vtanh.pop %v427
    %449 = vrot.lane.b32.xlu0 %v305, 32
    %v450 = vpop.permute.xlu0 %449
    %v452 = vmul.f32 %v446, %v450
    %454 = vrot.lane.b32.xlu0 %v447, 64
    %v455 = vpop.permute.xlu0 %454
    %v457 = vmul.f32 %v446, %v455
    %459 = vrot.lane.b32.xlu0 %v457, 32
    %v460 = vpop.permute.xlu0 %459
    %v462 = vadd.f32 %v452, %v460
    %v463 = vtanh.pop %v462
    %465 = vrot.lane.b32.xlu0 %v463, 64
    %v466 = vpop.permute.xlu0 %465
    %v468 = vmul.f32 %v446, %v466
    %s469 = scalar_lea.vmem %s66, 12
    %v470 = vld [vmem:[%s469] sm:$0x3]
    %472 = vset.pattern.permute.xlu0 0
    %473 = vperm.xlu0 %472, %v470
    %v474 = vpop.permute.xlu0 %473
    %477 = vst [vmem:[#allocation1] ss:$4 sm:$0xff] %v468
    %v478 = vld.sshfl [vmem:[#allocation1] sm:$0xff pattern:$0x73625140]
    %479 = vrot.lane.b32.xlu0 %v478, 32
    %v480 = vpop.permute.xlu0 %479
    %v482 = vmul.f32 %v474, %v480
    %v483 = vsub.f32 1.0, %v470
    %485 = vset.pattern.permute.xlu0 0
    %486 = vperm.xlu0 %485, %v483
    %v487 = vpop.permute.xlu0 %486
    %v489 = vmul.f32 %v487, %v296
    %v490 = vadd.f32 %v482, %v489
    %492 = vst [vmem:[#allocation1] ss:$4 sm:$0xff] %v462
    %v493 = vld.sshfl [vmem:[#allocation1] sm:$0xff pattern:$0x73625140]
    %494 = vrot.lane.b32.xlu0 %v493, 96
    %v495 = vpop.permute.xlu0 %494
    %v497 = vmul.f32 %v474, %v495
    %v498 = vmul.f32 %v487, %v305
    %v499 = vadd.f32 %v497, %v498
    %v500 = vmul.f32 %v490, %v474
    %v501 = vpack.c.bf16 %v500, %v500
    %s502 = scalar_lea.vmem [#allocation8], 6
    %503 = vst.msk [vmem:[%s502] sm:$0x1] %vm199, %v501
    %s504 = scalar_lea.vmem %s0, 2
    %v505 = vld [vmem:[%s504] sm:$0x1]
    %v506 = vunpack.c.l.bf16 %v505
    %v507 = vpack.c.bf16 %v393, %v393
    %v509 = vsel %vm108, %v507, 0
    %511 = vmatpush.bf16.msra.mxu0 0
    %512 = vmatpush.bf16.msra.mxu0 0
    %513 = vmatpush.bf16.msra.mxu0 0
    %514 = vmatpush.bf16.msra.mxu0 0
    %515 = vmatpush.bf16.msra.mxu0 0
    %516 = vmatpush.bf16.msra.mxu0 0
    %517 = vmatpush.bf16.msra.mxu0 %v105
    %518 = vmatpush.bf16.msra.mxu0 %v104
    %519 = vmatmul.bf16.gmra.mxu0 %v509
    %v520 = vpop.f32.mrf.mxu0
    %v521 = vadd.f32 0.0, %v520
    %v522 = vpop.f32.mrf.mxu0
    %523 = vdwg.mxu0
    %v524 = vadd.f32 %v506, %v521
    %v525 = vxor.u32 %v524, 2147483648
    %v526 = vmul.f32 %v525, 1.442695
    %v527 = vpow.pop %v526
    %v528 = vadd.f32 %v527, 1.0
    %v529 = vrcp.pop %v528
    %v530 = vmul.f32 %v528, %v529
    %v531 = vsub.f32 1.0, %v530
    %v532 = vmul.f32 %v529, %v531
    %v533 = vadd.f32 %v529, %v532
    %vm534 = vweird.f32 %v528
    %vm535 = vweird.f32 %v529
    %vm536 = vmor %vm534, %vm535
    %v537 = vsel %vm536, %v529, %v533
    %v538 = vand.u32 2147483647, %v528
    %vm539 = vcmp.eq.f32.partialorder %v538, 8.507059e+37
    %v540 = vand.u32 %v528, 2147483648
    %v541 = vor.u32 1.1754944e-38, %v540
    %v542 = vsel %vm539, %v541, %v537
    %v543 = vmul.f32 1.0, %v542
    %v544 = vtanh.pop %v524
    %546 = vrot.lane.b32.xlu0 %v402, 32
    %v547 = vpop.permute.xlu0 %546
    %v549 = vmul.f32 %v543, %v547
    %551 = vrot.lane.b32.xlu0 %v544, 64
    %v552 = vpop.permute.xlu0 %551
    %v554 = vmul.f32 %v543, %v552
    %556 = vrot.lane.b32.xlu0 %v554, 32
    %v557 = vpop.permute.xlu0 %556
    %v559 = vadd.f32 %v549, %v557
    %v560 = vtanh.pop %v559
    %562 = vrot.lane.b32.xlu0 %v560, 64
    %v563 = vpop.permute.xlu0 %562
    %v565 = vmul.f32 %v543, %v563
    %s566 = scalar_lea.vmem %s2, 4
    %v567 = vld [vmem:[%s566] sm:$0x3]
    %569 = vset.pattern.permute.xlu0 0
    %570 = vperm.xlu0 %569, %v567
    %v571 = vpop.permute.xlu0 %570
    %574 = vst [vmem:[#allocation1] ss:$4 sm:$0xff] %v565
    %v575 = vld.sshfl [vmem:[#allocation1] sm:$0xff pattern:$0x73625140]
    %576 = vrot.lane.b32.xlu0 %v575, 32
    %v577 = vpop.permute.xlu0 %576
    %v579 = vmul.f32 %v571, %v577
    %v580 = vsub.f32 1.0, %v567
    %582 = vset.pattern.permute.xlu0 0
    %583 = vperm.xlu0 %582, %v580
    %v584 = vpop.permute.xlu0 %583
    %v586 = vmul.f32 %v584, %v393
    %v587 = vadd.f32 %v579, %v586
    %589 = vst [vmem:[#allocation1] ss:$4 sm:$0xff] %v559
    %v590 = vld.sshfl [vmem:[#allocation1] sm:$0xff pattern:$0x73625140]
    %591 = vrot.lane.b32.xlu0 %v590, 96
    %v592 = vpop.permute.xlu0 %591
    %v594 = vmul.f32 %v571, %v592
    %v595 = vmul.f32 %v584, %v402
    %v596 = vadd.f32 %v594, %v595
    %v597 = vmul.f32 %v587, %v571
    %v598 = vpack.c.bf16 %v597, %v597
    %s599 = scalar_lea.vmem [#allocation6], 2
    %600 = vst.msk [vmem:[%s599] sm:$0x1] %vm199, %v598
    %s601 = scalar_lea.vmem %s58, 5
    %v602 = vld [vmem:[%s601] sm:$0x1]
    %v603 = vunpack.c.l.bf16 %v602
    %v604 = vpack.c.bf16 %v490, %v490
    %v606 = vsel %vm108, %v604, 0
    %608 = vmatpush.bf16.msra.mxu0 0
    %609 = vmatpush.bf16.msra.mxu0 0
    %610 = vmatpush.bf16.msra.mxu0 0
    %611 = vmatpush.bf16.msra.mxu0 0
    %612 = vmatpush.bf16.msra.mxu0 0
    %613 = vmatpush.bf16.msra.mxu0 0
    %614 = vmatpush.bf16.msra.mxu0 %v214
    %615 = vmatpush.bf16.msra.mxu0 %v213
    %616 = vmatmul.bf16.gmra.mxu0 %v606
    %v617 = vpop.f32.mrf.mxu0
    %v618 = vadd.f32 0.0, %v617
    %v619 = vpop.f32.mrf.mxu0
    %620 = vdwg.mxu0
    %v621 = vadd.f32 %v603, %v618
    %v622 = vxor.u32 %v621, 2147483648
    %v623 = vmul.f32 %v622, 1.442695
    %v624 = vpow.pop %v623
    %v625 = vadd.f32 %v624, 1.0
    %v626 = vrcp.pop %v625
    %v627 = vmul.f32 %v625, %v626
    %v628 = vsub.f32 1.0, %v627
    %v629 = vmul.f32 %v626, %v628
    %v630 = vadd.f32 %v626, %v629
    %vm631 = vweird.f32 %v625
    %vm632 = vweird.f32 %v626
    %vm633 = vmor %vm631, %vm632
    %v634 = vsel %vm633, %v626, %v630
    %v635 = vand.u32 2147483647, %v625
    %vm636 = vcmp.eq.f32.partialorder %v635, 8.507059e+37
    %v637 = vand.u32 %v625, 2147483648
    %v638 = vor.u32 1.1754944e-38, %v637
    %v639 = vsel %vm636, %v638, %v634
    %v640 = vmul.f32 1.0, %v639
    %v641 = vtanh.pop %v621
    %643 = vrot.lane.b32.xlu0 %v499, 32
    %v644 = vpop.permute.xlu0 %643
    %v646 = vmul.f32 %v640, %v644
    %648 = vrot.lane.b32.xlu0 %v641, 64
    %v649 = vpop.permute.xlu0 %648
    %v651 = vmul.f32 %v640, %v649
    %653 = vrot.lane.b32.xlu0 %v651, 32
    %v654 = vpop.permute.xlu0 %653
    %v656 = vadd.f32 %v646, %v654
    %v657 = vtanh.pop %v656
    %659 = vrot.lane.b32.xlu0 %v657, 64
    %v660 = vpop.permute.xlu0 %659
    %v662 = vmul.f32 %v640, %v660
    %s663 = scalar_lea.vmem %s66, 10
    %v664 = vld [vmem:[%s663] sm:$0x3]
    %666 = vset.pattern.permute.xlu0 0
    %667 = vperm.xlu0 %666, %v664
    %v668 = vpop.permute.xlu0 %667
    %671 = vst [vmem:[#allocation1] ss:$4 sm:$0xff] %v662
    %v672 = vld.sshfl [vmem:[#allocation1] sm:$0xff pattern:$0x73625140]
    %673 = vrot.lane.b32.xlu0 %v672, 32
    %v674 = vpop.permute.xlu0 %673
    %v676 = vmul.f32 %v668, %v674
    %v677 = vsub.f32 1.0, %v664
    %679 = vset.pattern.permute.xlu0 0
    %680 = vperm.xlu0 %679, %v677
    %v681 = vpop.permute.xlu0 %680
    %v683 = vmul.f32 %v681, %v490
    %v684 = vadd.f32 %v676, %v683
    %686 = vst [vmem:[#allocation1] ss:$4 sm:$0xff] %v656
    %v687 = vld.sshfl [vmem:[#allocation1] sm:$0xff pattern:$0x73625140]
    %688 = vrot.lane.b32.xlu0 %v687, 96
    %v689 = vpop.permute.xlu0 %688
    %v691 = vmul.f32 %v668, %v689
    %v692 = vmul.f32 %v681, %v499
    %v693 = vadd.f32 %v691, %v692
    %v694 = vmul.f32 %v684, %v668
    %v695 = vpack.c.bf16 %v694, %v694
    %s696 = scalar_lea.vmem [#allocation8], 5
    %697 = vst.msk [vmem:[%s696] sm:$0x1] %vm199, %v695
    %s698 = scalar_lea.vmem %s0, 3
    %v699 = vld [vmem:[%s698] sm:$0x1]
    %v700 = vunpack.c.l.bf16 %v699
    %v701 = vpack.c.bf16 %v587, %v587
    %v703 = vsel %vm108, %v701, 0
    %705 = vmatpush.bf16.msra.mxu0 0
    %706 = vmatpush.bf16.msra.mxu0 0
    %707 = vmatpush.bf16.msra.mxu0 0
    %708 = vmatpush.bf16.msra.mxu0 0
    %709 = vmatpush.bf16.msra.mxu0 0
    %710 = vmatpush.bf16.msra.mxu0 0
    %711 = vmatpush.bf16.msra.mxu0 %v105
    %712 = vmatpush.bf16.msra.mxu0 %v104
    %713 = vmatmul.bf16.gmra.mxu0 %v703
    %v714 = vpop.f32.mrf.mxu0
    %v715 = vadd.f32 0.0, %v714
    %v716 = vpop.f32.mrf.mxu0
    %717 = vdwg.mxu0
    %v718 = vadd.f32 %v700, %v715
    %v719 = vxor.u32 %v718, 2147483648
    %v720 = vmul.f32 %v719, 1.442695
    %v721 = vpow.pop %v720
    %v722 = vadd.f32 %v721, 1.0
    %v723 = vrcp.pop %v722
    %v724 = vmul.f32 %v722, %v723
    %v725 = vsub.f32 1.0, %v724
    %v726 = vmul.f32 %v723, %v725
    %v727 = vadd.f32 %v723, %v726
    %vm728 = vweird.f32 %v722
    %vm729 = vweird.f32 %v723
    %vm730 = vmor %vm728, %vm729
    %v731 = vsel %vm730, %v723, %v727
    %v732 = vand.u32 2147483647, %v722
    %vm733 = vcmp.eq.f32.partialorder %v732, 8.507059e+37
    %v734 = vand.u32 %v722, 2147483648
    %v735 = vor.u32 1.1754944e-38, %v734
    %v736 = vsel %vm733, %v735, %v731
    %v737 = vmul.f32 1.0, %v736
    %v738 = vtanh.pop %v718
    %740 = vrot.lane.b32.xlu0 %v596, 32
    %v741 = vpop.permute.xlu0 %740
    %v743 = vmul.f32 %v737, %v741
    %745 = vrot.lane.b32.xlu0 %v738, 64
    %v746 = vpop.permute.xlu0 %745
    %v748 = vmul.f32 %v737, %v746
    %750 = vrot.lane.b32.xlu0 %v748, 32
    %v751 = vpop.permute.xlu0 %750
    %v753 = vadd.f32 %v743, %v751
    %v754 = vtanh.pop %v753
    %756 = vrot.lane.b32.xlu0 %v754, 64
    %v757 = vpop.permute.xlu0 %756
    %v759 = vmul.f32 %v737, %v757
    %s760 = scalar_lea.vmem %s2, 6
    %v761 = vld [vmem:[%s760] sm:$0x3]
    %763 = vset.pattern.permute.xlu0 0
    %764 = vperm.xlu0 %763, %v761
    %v765 = vpop.permute.xlu0 %764
    %768 = vst [vmem:[#allocation1] ss:$4 sm:$0xff] %v759
    %v769 = vld.sshfl [vmem:[#allocation1] sm:$0xff pattern:$0x73625140]
    %770 = vrot.lane.b32.xlu0 %v769, 32
    %v771 = vpop.permute.xlu0 %770
    %v773 = vmul.f32 %v765, %v771
    %v774 = vsub.f32 1.0, %v761
    %776 = vset.pattern.permute.xlu0 0
    %777 = vperm.xlu0 %776, %v774
    %v778 = vpop.permute.xlu0 %777
    %v780 = vmul.f32 %v778, %v587
    %v781 = vadd.f32 %v773, %v780
    %783 = vst [vmem:[#allocation1] ss:$4 sm:$0xff] %v753
    %v784 = vld.sshfl [vmem:[#allocation1] sm:$0xff pattern:$0x73625140]
    %785 = vrot.lane.b32.xlu0 %v784, 96
    %v786 = vpop.permute.xlu0 %785
    %v788 = vmul.f32 %v765, %v786
    %v789 = vmul.f32 %v778, %v596
    %v790 = vadd.f32 %v788, %v789
    %v791 = vmul.f32 %v781, %v765
    %v792 = vpack.c.bf16 %v791, %v791
    %s793 = scalar_lea.vmem [#allocation6], 3
    %794 = vst.msk [vmem:[%s793] sm:$0x1] %vm199, %v792
    %s795 = scalar_lea.vmem %s58, 4
    %v796 = vld [vmem:[%s795] sm:$0x1]
    %v797 = vunpack.c.l.bf16 %v796
    %v798 = vpack.c.bf16 %v684, %v684
    %v800 = vsel %vm108, %v798, 0
    %802 = vmatpush.bf16.msra.mxu0 0
    %803 = vmatpush.bf16.msra.mxu0 0
    %804 = vmatpush.bf16.msra.mxu0 0
    %805 = vmatpush.bf16.msra.mxu0 0
    %806 = vmatpush.bf16.msra.mxu0 0
    %807 = vmatpush.bf16.msra.mxu0 0
    %808 = vmatpush.bf16.msra.mxu0 %v214
    %809 = vmatpush.bf16.msra.mxu0 %v213
    %810 = vmatmul.bf16.gmra.mxu0 %v800
    %v811 = vpop.f32.mrf.mxu0
    %v812 = vadd.f32 0.0, %v811
    %v813 = vpop.f32.mrf.mxu0
    %814 = vdwg.mxu0
    %v815 = vadd.f32 %v797, %v812
    %v816 = vxor.u32 %v815, 2147483648
    %v817 = vmul.f32 %v816, 1.442695
    %v818 = vpow.pop %v817
    %v819 = vadd.f32 %v818, 1.0
    %v820 = vrcp.pop %v819
    %v821 = vmul.f32 %v819, %v820
    %v822 = vsub.f32 1.0, %v821
    %v823 = vmul.f32 %v820, %v822
    %v824 = vadd.f32 %v820, %v823
    %vm825 = vweird.f32 %v819
    %vm826 = vweird.f32 %v820
    %vm827 = vmor %vm825, %vm826
    %v828 = vsel %vm827, %v820, %v824
    %v829 = vand.u32 2147483647, %v819
    %vm830 = vcmp.eq.f32.partialorder %v829, 8.507059e+37
    %v831 = vand.u32 %v819, 2147483648
    %v832 = vor.u32 1.1754944e-38, %v831
    %v833 = vsel %vm830, %v832, %v828
    %v834 = vmul.f32 1.0, %v833
    %v835 = vtanh.pop %v815
    %837 = vrot.lane.b32.xlu0 %v693, 32
    %v838 = vpop.permute.xlu0 %837
    %v840 = vmul.f32 %v834, %v838
    %842 = vrot.lane.b32.xlu0 %v835, 64
    %v843 = vpop.permute.xlu0 %842
    %v845 = vmul.f32 %v834, %v843
    %847 = vrot.lane.b32.xlu0 %v845, 32
    %v848 = vpop.permute.xlu0 %847
    %v850 = vadd.f32 %v840, %v848
    %v851 = vtanh.pop %v850
    %853 = vrot.lane.b32.xlu0 %v851, 64
    %v854 = vpop.permute.xlu0 %853
    %v856 = vmul.f32 %v834, %v854
    %s857 = scalar_lea.vmem %s66, 8
    %v858 = vld [vmem:[%s857] sm:$0x3]
    %860 = vset.pattern.permute.xlu0 0
    %861 = vperm.xlu0 %860, %v858
    %v862 = vpop.permute.xlu0 %861
    %865 = vst [vmem:[#allocation1] ss:$4 sm:$0xff] %v856
    %v866 = vld.sshfl [vmem:[#allocation1] sm:$0xff pattern:$0x73625140]
    %867 = vrot.lane.b32.xlu0 %v866, 32
    %v868 = vpop.permute.xlu0 %867
    %v870 = vmul.f32 %v862, %v868
    %v871 = vsub.f32 1.0, %v858
    %873 = vset.pattern.permute.xlu0 0
    %874 = vperm.xlu0 %873, %v871
    %v875 = vpop.permute.xlu0 %874
    %v877 = vmul.f32 %v875, %v684
    %v878 = vadd.f32 %v870, %v877
    %880 = vst [vmem:[#allocation1] ss:$4 sm:$0xff] %v850
    %v881 = vld.sshfl [vmem:[#allocation1] sm:$0xff pattern:$0x73625140]
    %882 = vrot.lane.b32.xlu0 %v881, 96
    %v883 = vpop.permute.xlu0 %882
    %v885 = vmul.f32 %v862, %v883
    %v886 = vmul.f32 %v875, %v693
    %v887 = vadd.f32 %v885, %v886
    %v888 = vmul.f32 %v878, %v862
    %v889 = vpack.c.bf16 %v888, %v888
    %s890 = scalar_lea.vmem [#allocation8], 4
    %891 = vst.msk [vmem:[%s890] sm:$0x1] %vm199, %v889
    %s892 = scalar_lea.vmem %s0, 4
    %v893 = vld [vmem:[%s892] sm:$0x1]
    %v894 = vunpack.c.l.bf16 %v893
    %v895 = vpack.c.bf16 %v781, %v781
    %v897 = vsel %vm108, %v895, 0
    %899 = vmatpush.bf16.msra.mxu0 0
    %900 = vmatpush.bf16.msra.mxu0 0
    %901 = vmatpush.bf16.msra.mxu0 0
    %902 = vmatpush.bf16.msra.mxu0 0
    %903 = vmatpush.bf16.msra.mxu0 0
    %904 = vmatpush.bf16.msra.mxu0 0
    %905 = vmatpush.bf16.msra.mxu0 %v105
    %906 = vmatpush.bf16.msra.mxu0 %v104
    %907 = vmatmul.bf16.gmra.mxu0 %v897
    %v908 = vpop.f32.mrf.mxu0
    %v909 = vadd.f32 0.0, %v908
    %v910 = vpop.f32.mrf.mxu0
    %911 = vdwg.mxu0
    %v912 = vadd.f32 %v894, %v909
    %v913 = vxor.u32 %v912, 2147483648
    %v914 = vmul.f32 %v913, 1.442695
    %v915 = vpow.pop %v914
    %v916 = vadd.f32 %v915, 1.0
    %v917 = vrcp.pop %v916
    %v918 = vmul.f32 %v916, %v917
    %v919 = vsub.f32 1.0, %v918
    %v920 = vmul.f32 %v917, %v919
    %v921 = vadd.f32 %v917, %v920
    %vm922 = vweird.f32 %v916
    %vm923 = vweird.f32 %v917
    %vm924 = vmor %vm922, %vm923
    %v925 = vsel %vm924, %v917, %v921
    %v926 = vand.u32 2147483647, %v916
    %vm927 = vcmp.eq.f32.partialorder %v926, 8.507059e+37
    %v928 = vand.u32 %v916, 2147483648
    %v929 = vor.u32 1.1754944e-38, %v928
    %v930 = vsel %vm927, %v929, %v925
    %v931 = vmul.f32 1.0, %v930
    %v932 = vtanh.pop %v912
    %934 = vrot.lane.b32.xlu0 %v790, 32
    %v935 = vpop.permute.xlu0 %934
    %v937 = vmul.f32 %v931, %v935
    %939 = vrot.lane.b32.xlu0 %v932, 64
    %v940 = vpop.permute.xlu0 %939
    %v942 = vmul.f32 %v931, %v940
    %944 = vrot.lane.b32.xlu0 %v942, 32
    %v945 = vpop.permute.xlu0 %944
    %v947 = vadd.f32 %v937, %v945
    %v948 = vtanh.pop %v947
    %950 = vrot.lane.b32.xlu0 %v948, 64
    %v951 = vpop.permute.xlu0 %950
    %v953 = vmul.f32 %v931, %v951
    %s954 = scalar_lea.vmem %s2, 8
    %v955 = vld [vmem:[%s954] sm:$0x3]
    %957 = vset.pattern.permute.xlu0 0
    %958 = vperm.xlu0 %957, %v955
    %v959 = vpop.permute.xlu0 %958
    %962 = vst [vmem:[#allocation1] ss:$4 sm:$0xff] %v953
    %v963 = vld.sshfl [vmem:[#allocation1] sm:$0xff pattern:$0x73625140]
    %964 = vrot.lane.b32.xlu0 %v963, 32
    %v965 = vpop.permute.xlu0 %964
    %v967 = vmul.f32 %v959, %v965
    %v968 = vsub.f32 1.0, %v955
    %970 = vset.pattern.permute.xlu0 0
    %971 = vperm.xlu0 %970, %v968
    %v972 = vpop.permute.xlu0 %971
    %v974 = vmul.f32 %v972, %v781
    %v975 = vadd.f32 %v967, %v974
    %977 = vst [vmem:[#allocation1] ss:$4 sm:$0xff] %v947
    %v978 = vld.sshfl [vmem:[#allocation1] sm:$0xff pattern:$0x73625140]
    %979 = vrot.lane.b32.xlu0 %v978, 96
    %v980 = vpop.permute.xlu0 %979
    %v982 = vmul.f32 %v959, %v980
    %v983 = vmul.f32 %v972, %v790
    %v984 = vadd.f32 %v982, %v983
    %v985 = vmul.f32 %v975, %v959
    %v986 = vpack.c.bf16 %v985, %v985
    %s987 = scalar_lea.vmem [#allocation6], 4
    %988 = vst.msk [vmem:[%s987] sm:$0x1] %vm199, %v986
    %s989 = scalar_lea.vmem %s58, 3
    %v990 = vld [vmem:[%s989] sm:$0x1]
    %v991 = vunpack.c.l.bf16 %v990
    %v992 = vpack.c.bf16 %v878, %v878
    %v994 = vsel %vm108, %v992, 0
    %996 = vmatpush.bf16.msra.mxu0 0
    %997 = vmatpush.bf16.msra.mxu0 0
    %998 = vmatpush.bf16.msra.mxu0 0
    %999 = vmatpush.bf16.msra.mxu0 0
    %1000 = vmatpush.bf16.msra.mxu0 0
    %1001 = vmatpush.bf16.msra.mxu0 0
    %1002 = vmatpush.bf16.msra.mxu0 %v214
    %1003 = vmatpush.bf16.msra.mxu0 %v213
    %1004 = vmatmul.bf16.gmra.mxu0 %v994
    %v1005 = vpop.f32.mrf.mxu0
    %v1006 = vadd.f32 0.0, %v1005
    %v1007 = vpop.f32.mrf.mxu0
    %1008 = vdwg.mxu0
    %v1009 = vadd.f32 %v991, %v1006
    %v1010 = vxor.u32 %v1009, 2147483648
    %v1011 = vmul.f32 %v1010, 1.442695
    %v1012 = vpow.pop %v1011
    %v1013 = vadd.f32 %v1012, 1.0
    %v1014 = vrcp.pop %v1013
    %v1015 = vmul.f32 %v1013, %v1014
    %v1016 = vsub.f32 1.0, %v1015
    %v1017 = vmul.f32 %v1014, %v1016
    %v1018 = vadd.f32 %v1014, %v1017
    %vm1019 = vweird.f32 %v1013
    %vm1020 = vweird.f32 %v1014
    %vm1021 = vmor %vm1019, %vm1020
    %v1022 = vsel %vm1021, %v1014, %v1018
    %v1023 = vand.u32 2147483647, %v1013
    %vm1024 = vcmp.eq.f32.partialorder %v1023, 8.507059e+37
    %v1025 = vand.u32 %v1013, 2147483648
    %v1026 = vor.u32 1.1754944e-38, %v1025
    %v1027 = vsel %vm1024, %v1026, %v1022
    %v1028 = vmul.f32 1.0, %v1027
    %v1029 = vtanh.pop %v1009
    %1031 = vrot.lane.b32.xlu0 %v887, 32
    %v1032 = vpop.permute.xlu0 %1031
    %v1034 = vmul.f32 %v1028, %v1032
    %1036 = vrot.lane.b32.xlu0 %v1029, 64
    %v1037 = vpop.permute.xlu0 %1036
    %v1039 = vmul.f32 %v1028, %v1037
    %1041 = vrot.lane.b32.xlu0 %v1039, 32
    %v1042 = vpop.permute.xlu0 %1041
    %v1044 = vadd.f32 %v1034, %v1042
    %v1045 = vtanh.pop %v1044
    %1047 = vrot.lane.b32.xlu0 %v1045, 64
    %v1048 = vpop.permute.xlu0 %1047
    %v1050 = vmul.f32 %v1028, %v1048
    %s1051 = scalar_lea.vmem %s66, 6
    %v1052 = vld [vmem:[%s1051] sm:$0x3]
    %1054 = vset.pattern.permute.xlu0 0
    %1055 = vperm.xlu0 %1054, %v1052
    %v1056 = vpop.permute.xlu0 %1055
    %1059 = vst [vmem:[#allocation1] ss:$4 sm:$0xff] %v1050
    %v1060 = vld.sshfl [vmem:[#allocation1] sm:$0xff pattern:$0x73625140]
    %1061 = vrot.lane.b32.xlu0 %v1060, 32
    %v1062 = vpop.permute.xlu0 %1061
    %v1064 = vmul.f32 %v1056, %v1062
    %v1065 = vsub.f32 1.0, %v1052
    %1067 = vset.pattern.permute.xlu0 0
    %1068 = vperm.xlu0 %1067, %v1065
    %v1069 = vpop.permute.xlu0 %1068
    %v1071 = vmul.f32 %v1069, %v878
    %v1072 = vadd.f32 %v1064, %v1071
    %1074 = vst [vmem:[#allocation1] ss:$4 sm:$0xff] %v1044
    %v1075 = vld.sshfl [vmem:[#allocation1] sm:$0xff pattern:$0x73625140]
    %1076 = vrot.lane.b32.xlu0 %v1075, 96
    %v1077 = vpop.permute.xlu0 %1076
    %v1079 = vmul.f32 %v1056, %v1077
    %v1080 = vmul.f32 %v1069, %v887
    %v1081 = vadd.f32 %v1079, %v1080
    %v1082 = vmul.f32 %v1072, %v1056
    %v1083 = vpack.c.bf16 %v1082, %v1082
    %s1084 = scalar_lea.vmem [#allocation8], 3
    %1085 = vst.msk [vmem:[%s1084] sm:$0x1] %vm199, %v1083
    %s1086 = scalar_lea.vmem %s0, 5
    %v1087 = vld [vmem:[%s1086] sm:$0x1]
    %v1088 = vunpack.c.l.bf16 %v1087
    %v1089 = vpack.c.bf16 %v975, %v975
    %v1091 = vsel %vm108, %v1089, 0
    %1093 = vmatpush.bf16.msra.mxu0 0
    %1094 = vmatpush.bf16.msra.mxu0 0
    %1095 = vmatpush.bf16.msra.mxu0 0
    %1096 = vmatpush.bf16.msra.mxu0 0
    %1097 = vmatpush.bf16.msra.mxu0 0
    %1098 = vmatpush.bf16.msra.mxu0 0
    %1099 = vmatpush.bf16.msra.mxu0 %v105
    %1100 = vmatpush.bf16.msra.mxu0 %v104
    %1101 = vmatmul.bf16.gmra.mxu0 %v1091
    %v1102 = vpop.f32.mrf.mxu0
    %v1103 = vadd.f32 0.0, %v1102
    %v1104 = vpop.f32.mrf.mxu0
    %1105 = vdwg.mxu0
    %v1106 = vadd.f32 %v1088, %v1103
    %v1107 = vxor.u32 %v1106, 2147483648
    %v1108 = vmul.f32 %v1107, 1.442695
    %v1109 = vpow.pop %v1108
    %v1110 = vadd.f32 %v1109, 1.0
    %v1111 = vrcp.pop %v1110
    %v1112 = vmul.f32 %v1110, %v1111
    %v1113 = vsub.f32 1.0, %v1112
    %v1114 = vmul.f32 %v1111, %v1113
    %v1115 = vadd.f32 %v1111, %v1114
    %vm1116 = vweird.f32 %v1110
    %vm1117 = vweird.f32 %v1111
    %vm1118 = vmor %vm1116, %vm1117
    %v1119 = vsel %vm1118, %v1111, %v1115
    %v1120 = vand.u32 2147483647, %v1110
    %vm1121 = vcmp.eq.f32.partialorder %v1120, 8.507059e+37
    %v1122 = vand.u32 %v1110, 2147483648
    %v1123 = vor.u32 1.1754944e-38, %v1122
    %v1124 = vsel %vm1121, %v1123, %v1119
    %v1125 = vmul.f32 1.0, %v1124
    %v1126 = vtanh.pop %v1106
    %1128 = vrot.lane.b32.xlu0 %v984, 32
    %v1129 = vpop.permute.xlu0 %1128
    %v1131 = vmul.f32 %v1125, %v1129
    %1133 = vrot.lane.b32.xlu0 %v1126, 64
    %v1134 = vpop.permute.xlu0 %1133
    %v1136 = vmul.f32 %v1125, %v1134
    %1138 = vrot.lane.b32.xlu0 %v1136, 32
    %v1139 = vpop.permute.xlu0 %1138
    %v1141 = vadd.f32 %v1131, %v1139
    %v1142 = vtanh.pop %v1141
    %1144 = vrot.lane.b32.xlu0 %v1142, 64
    %v1145 = vpop.permute.xlu0 %1144
    %v1147 = vmul.f32 %v1125, %v1145
    %s1148 = scalar_lea.vmem %s2, 10
    %v1149 = vld [vmem:[%s1148] sm:$0x3]
    %1151 = vset.pattern.permute.xlu0 0
    %1152 = vperm.xlu0 %1151, %v1149
    %v1153 = vpop.permute.xlu0 %1152
    %1156 = vst [vmem:[#allocation1] ss:$4 sm:$0xff] %v1147
    %v1157 = vld.sshfl [vmem:[#allocation1] sm:$0xff pattern:$0x73625140]
    %1158 = vrot.lane.b32.xlu0 %v1157, 32
    %v1159 = vpop.permute.xlu0 %1158
    %v1161 = vmul.f32 %v1153, %v1159
    %v1162 = vsub.f32 1.0, %v1149
    %1164 = vset.pattern.permute.xlu0 0
    %1165 = vperm.xlu0 %1164, %v1162
    %v1166 = vpop.permute.xlu0 %1165
    %v1168 = vmul.f32 %v1166, %v975
    %v1169 = vadd.f32 %v1161, %v1168
    %1171 = vst [vmem:[#allocation1] ss:$4 sm:$0xff] %v1141
    %v1172 = vld.sshfl [vmem:[#allocation1] sm:$0xff pattern:$0x73625140]
    %1173 = vrot.lane.b32.xlu0 %v1172, 96
    %v1174 = vpop.permute.xlu0 %1173
    %v1176 = vmul.f32 %v1153, %v1174
    %v1177 = vmul.f32 %v1166, %v984
    %v1178 = vadd.f32 %v1176, %v1177
    %v1179 = vmul.f32 %v1169, %v1153
    %v1180 = vpack.c.bf16 %v1179, %v1179
    %s1181 = scalar_lea.vmem [#allocation6], 5
    %1182 = vst.msk [vmem:[%s1181] sm:$0x1] %vm199, %v1180
    %s1183 = scalar_lea.vmem %s58, 2
    %v1184 = vld [vmem:[%s1183] sm:$0x1]
    %v1185 = vunpack.c.l.bf16 %v1184
    %v1186 = vpack.c.bf16 %v1072, %v1072
    %v1188 = vsel %vm108, %v1186, 0
    %1190 = vmatpush.bf16.msra.mxu0 0
    %1191 = vmatpush.bf16.msra.mxu0 0
    %1192 = vmatpush.bf16.msra.mxu0 0
    %1193 = vmatpush.bf16.msra.mxu0 0
    %1194 = vmatpush.bf16.msra.mxu0 0
    %1195 = vmatpush.bf16.msra.mxu0 0
    %1196 = vmatpush.bf16.msra.mxu0 %v214
    %1197 = vmatpush.bf16.msra.mxu0 %v213
    %1198 = vmatmul.bf16.gmra.mxu0 %v1188
    %v1199 = vpop.f32.mrf.mxu0
    %v1200 = vadd.f32 0.0, %v1199
    %v1201 = vpop.f32.mrf.mxu0
    %1202 = vdwg.mxu0
    %v1203 = vadd.f32 %v1185, %v1200
    %v1204 = vxor.u32 %v1203, 2147483648
    %v1205 = vmul.f32 %v1204, 1.442695
    %v1206 = vpow.pop %v1205
    %v1207 = vadd.f32 %v1206, 1.0
    %v1208 = vrcp.pop %v1207
    %v1209 = vmul.f32 %v1207, %v1208
    %v1210 = vsub.f32 1.0, %v1209
    %v1211 = vmul.f32 %v1208, %v1210
    %v1212 = vadd.f32 %v1208, %v1211
    %vm1213 = vweird.f32 %v1207
    %vm1214 = vweird.f32 %v1208
    %vm1215 = vmor %vm1213, %vm1214
    %v1216 = vsel %vm1215, %v1208, %v1212
    %v1217 = vand.u32 2147483647, %v1207
    %vm1218 = vcmp.eq.f32.partialorder %v1217, 8.507059e+37
    %v1219 = vand.u32 %v1207, 2147483648
    %v1220 = vor.u32 1.1754944e-38, %v1219
    %v1221 = vsel %vm1218, %v1220, %v1216
    %v1222 = vmul.f32 1.0, %v1221
    %v1223 = vtanh.pop %v1203
    %1225 = vrot.lane.b32.xlu0 %v1081, 32
    %v1226 = vpop.permute.xlu0 %1225
    %v1228 = vmul.f32 %v1222, %v1226
    %1230 = vrot.lane.b32.xlu0 %v1223, 64
    %v1231 = vpop.permute.xlu0 %1230
    %v1233 = vmul.f32 %v1222, %v1231
    %1235 = vrot.lane.b32.xlu0 %v1233, 32
    %v1236 = vpop.permute.xlu0 %1235
    %v1238 = vadd.f32 %v1228, %v1236
    %v1239 = vtanh.pop %v1238
    %1241 = vrot.lane.b32.xlu0 %v1239, 64
    %v1242 = vpop.permute.xlu0 %1241
    %v1244 = vmul.f32 %v1222, %v1242
    %s1245 = scalar_lea.vmem %s66, 4
    %v1246 = vld [vmem:[%s1245] sm:$0x3]
    %1248 = vset.pattern.permute.xlu0 0
    %1249 = vperm.xlu0 %1248, %v1246
    %v1250 = vpop.permute.xlu0 %1249
    %1253 = vst [vmem:[#allocation1] ss:$4 sm:$0xff] %v1244
    %v1254 = vld.sshfl [vmem:[#allocation1] sm:$0xff pattern:$0x73625140]
    %1255 = vrot.lane.b32.xlu0 %v1254, 32
    %v1256 = vpop.permute.xlu0 %1255
    %v1258 = vmul.f32 %v1250, %v1256
    %v1259 = vsub.f32 1.0, %v1246
    %1261 = vset.pattern.permute.xlu0 0
    %1262 = vperm.xlu0 %1261, %v1259
    %v1263 = vpop.permute.xlu0 %1262
    %v1265 = vmul.f32 %v1263, %v1072
    %v1266 = vadd.f32 %v1258, %v1265
    %1268 = vst [vmem:[#allocation1] ss:$4 sm:$0xff] %v1238
    %v1269 = vld.sshfl [vmem:[#allocation1] sm:$0xff pattern:$0x73625140]
    %1270 = vrot.lane.b32.xlu0 %v1269, 96
    %v1271 = vpop.permute.xlu0 %1270
    %v1273 = vmul.f32 %v1250, %v1271
    %v1274 = vmul.f32 %v1263, %v1081
    %v1275 = vadd.f32 %v1273, %v1274
    %v1276 = vmul.f32 %v1266, %v1250
    %v1277 = vpack.c.bf16 %v1276, %v1276
    %s1278 = scalar_lea.vmem [#allocation8], 2
    %1279 = vst.msk [vmem:[%s1278] sm:$0x1] %vm199, %v1277
    %s1280 = scalar_lea.vmem %s0, 6
    %v1281 = vld [vmem:[%s1280] sm:$0x1]
    %v1282 = vunpack.c.l.bf16 %v1281
    %v1283 = vpack.c.bf16 %v1169, %v1169
    %v1285 = vsel %vm108, %v1283, 0
    %1287 = vmatpush.bf16.msra.mxu0 0
    %1288 = vmatpush.bf16.msra.mxu0 0
    %1289 = vmatpush.bf16.msra.mxu0 0
    %1290 = vmatpush.bf16.msra.mxu0 0
    %1291 = vmatpush.bf16.msra.mxu0 0
    %1292 = vmatpush.bf16.msra.mxu0 0
    %1293 = vmatpush.bf16.msra.mxu0 %v105
    %1294 = vmatpush.bf16.msra.mxu0 %v104
    %1295 = vmatmul.bf16.gmra.mxu0 %v1285
    %v1296 = vpop.f32.mrf.mxu0
    %v1297 = vadd.f32 0.0, %v1296
    %v1298 = vpop.f32.mrf.mxu0
    %1299 = vdwg.mxu0
    %v1300 = vadd.f32 %v1282, %v1297
    %v1301 = vxor.u32 %v1300, 2147483648
    %v1302 = vmul.f32 %v1301, 1.442695
    %v1303 = vpow.pop %v1302
    %v1304 = vadd.f32 %v1303, 1.0
    %v1305 = vrcp.pop %v1304
    %v1306 = vmul.f32 %v1304, %v1305
    %v1307 = vsub.f32 1.0, %v1306
    %v1308 = vmul.f32 %v1305, %v1307
    %v1309 = vadd.f32 %v1305, %v1308
    %vm1310 = vweird.f32 %v1304
    %vm1311 = vweird.f32 %v1305
    %vm1312 = vmor %vm1310, %vm1311
    %v1313 = vsel %vm1312, %v1305, %v1309
    %v1314 = vand.u32 2147483647, %v1304
    %vm1315 = vcmp.eq.f32.partialorder %v1314, 8.507059e+37
    %v1316 = vand.u32 %v1304, 2147483648
    %v1317 = vor.u32 1.1754944e-38, %v1316
    %v1318 = vsel %vm1315, %v1317, %v1313
    %v1319 = vmul.f32 1.0, %v1318
    %v1320 = vtanh.pop %v1300
    %1322 = vrot.lane.b32.xlu0 %v1178, 32
    %v1323 = vpop.permute.xlu0 %1322
    %v1325 = vmul.f32 %v1319, %v1323
    %1327 = vrot.lane.b32.xlu0 %v1320, 64
    %v1328 = vpop.permute.xlu0 %1327
    %v1330 = vmul.f32 %v1319, %v1328
    %1332 = vrot.lane.b32.xlu0 %v1330, 32
    %v1333 = vpop.permute.xlu0 %1332
    %v1335 = vadd.f32 %v1325, %v1333
    %v1336 = vtanh.pop %v1335
    %1338 = vrot.lane.b32.xlu0 %v1336, 64
    %v1339 = vpop.permute.xlu0 %1338
    %v1341 = vmul.f32 %v1319, %v1339
    %s1342 = scalar_lea.vmem %s2, 12
    %v1343 = vld [vmem:[%s1342] sm:$0x3]
    %1345 = vset.pattern.permute.xlu0 0
    %1346 = vperm.xlu0 %1345, %v1343
    %v1347 = vpop.permute.xlu0 %1346
    %1350 = vst [vmem:[#allocation1] ss:$4 sm:$0xff] %v1341
    %v1351 = vld.sshfl [vmem:[#allocation1] sm:$0xff pattern:$0x73625140]
    %1352 = vrot.lane.b32.xlu0 %v1351, 32
    %v1353 = vpop.permute.xlu0 %1352
    %v1355 = vmul.f32 %v1347, %v1353
    %v1356 = vsub.f32 1.0, %v1343
    %1358 = vset.pattern.permute.xlu0 0
    %1359 = vperm.xlu0 %1358, %v1356
    %v1360 = vpop.permute.xlu0 %1359
    %v1362 = vmul.f32 %v1360, %v1169
    %v1363 = vadd.f32 %v1355, %v1362
    %1365 = vst [vmem:[#allocation1] ss:$4 sm:$0xff] %v1335
    %v1366 = vld.sshfl [vmem:[#allocation1] sm:$0xff pattern:$0x73625140]
    %1367 = vrot.lane.b32.xlu0 %v1366, 96
    %v1368 = vpop.permute.xlu0 %1367
    %v1370 = vmul.f32 %v1347, %v1368
    %v1371 = vmul.f32 %v1360, %v1178
    %v1372 = vadd.f32 %v1370, %v1371
    %v1373 = vmul.f32 %v1363, %v1347
    %v1374 = vpack.c.bf16 %v1373, %v1373
    %s1375 = scalar_lea.vmem [#allocation6], 6
    %1376 = vst.msk [vmem:[%s1375] sm:$0x1] %vm199, %v1374
    %s1377 = scalar_lea.vmem %s58, 1
    %v1378 = vld [vmem:[%s1377] sm:$0x1]
    %v1379 = vunpack.c.l.bf16 %v1378
    %v1380 = vpack.c.bf16 %v1266, %v1266
    %v1382 = vsel %vm108, %v1380, 0
    %1384 = vmatpush.bf16.msra.mxu0 0
    %1385 = vmatpush.bf16.msra.mxu0 0
    %1386 = vmatpush.bf16.msra.mxu0 0
    %1387 = vmatpush.bf16.msra.mxu0 0
    %1388 = vmatpush.bf16.msra.mxu0 0
    %1389 = vmatpush.bf16.msra.mxu0 0
    %1390 = vmatpush.bf16.msra.mxu0 %v214
    %1391 = vmatpush.bf16.msra.mxu0 %v213
    %1392 = vmatmul.bf16.gmra.mxu0 %v1382
    %v1393 = vpop.f32.mrf.mxu0
    %v1394 = vadd.f32 0.0, %v1393
    %v1395 = vpop.f32.mrf.mxu0
    %1396 = vdwg.mxu0
    %v1397 = vadd.f32 %v1379, %v1394
    %v1398 = vxor.u32 %v1397, 2147483648
    %v1399 = vmul.f32 %v1398, 1.442695
    %v1400 = vpow.pop %v1399
    %v1401 = vadd.f32 %v1400, 1.0
    %v1402 = vrcp.pop %v1401
    %v1403 = vmul.f32 %v1401, %v1402
    %v1404 = vsub.f32 1.0, %v1403
    %v1405 = vmul.f32 %v1402, %v1404
    %v1406 = vadd.f32 %v1402, %v1405
    %vm1407 = vweird.f32 %v1401
    %vm1408 = vweird.f32 %v1402
    %vm1409 = vmor %vm1407, %vm1408
    %v1410 = vsel %vm1409, %v1402, %v1406
    %v1411 = vand.u32 2147483647, %v1401
    %vm1412 = vcmp.eq.f32.partialorder %v1411, 8.507059e+37
    %v1413 = vand.u32 %v1401, 2147483648
    %v1414 = vor.u32 1.1754944e-38, %v1413
    %v1415 = vsel %vm1412, %v1414, %v1410
    %v1416 = vmul.f32 1.0, %v1415
    %v1417 = vtanh.pop %v1397
    %1419 = vrot.lane.b32.xlu0 %v1275, 32
    %v1420 = vpop.permute.xlu0 %1419
    %v1422 = vmul.f32 %v1416, %v1420
    %1424 = vrot.lane.b32.xlu0 %v1417, 64
    %v1425 = vpop.permute.xlu0 %1424
    %v1427 = vmul.f32 %v1416, %v1425
    %1429 = vrot.lane.b32.xlu0 %v1427, 32
    %v1430 = vpop.permute.xlu0 %1429
    %v1432 = vadd.f32 %v1422, %v1430
    %v1433 = vtanh.pop %v1432
    %1435 = vrot.lane.b32.xlu0 %v1433, 64
    %v1436 = vpop.permute.xlu0 %1435
    %v1438 = vmul.f32 %v1416, %v1436
    %s1439 = scalar_lea.vmem %s66, 2
    %v1440 = vld [vmem:[%s1439] sm:$0x3]
    %1442 = vset.pattern.permute.xlu0 0
    %1443 = vperm.xlu0 %1442, %v1440
    %v1444 = vpop.permute.xlu0 %1443
    %1447 = vst [vmem:[#allocation1] ss:$4 sm:$0xff] %v1438
    %v1448 = vld.sshfl [vmem:[#allocation1] sm:$0xff pattern:$0x73625140]
    %1449 = vrot.lane.b32.xlu0 %v1448, 32
    %v1450 = vpop.permute.xlu0 %1449
    %v1452 = vmul.f32 %v1444, %v1450
    %v1453 = vsub.f32 1.0, %v1440
    %1455 = vset.pattern.permute.xlu0 0
    %1456 = vperm.xlu0 %1455, %v1453
    %v1457 = vpop.permute.xlu0 %1456
    %v1459 = vmul.f32 %v1457, %v1266
    %v1460 = vadd.f32 %v1452, %v1459
    %1462 = vst [vmem:[#allocation1] ss:$4 sm:$0xff] %v1432
    %v1463 = vld.sshfl [vmem:[#allocation1] sm:$0xff pattern:$0x73625140]
    %1464 = vrot.lane.b32.xlu0 %v1463, 96
    %v1465 = vpop.permute.xlu0 %1464
    %v1467 = vmul.f32 %v1444, %v1465
    %v1468 = vmul.f32 %v1457, %v1275
    %v1469 = vadd.f32 %v1467, %v1468
    %v1470 = vmul.f32 %v1460, %v1444
    %v1471 = vpack.c.bf16 %v1470, %v1470
    %s1472 = scalar_lea.vmem [#allocation8], 1
    %1473 = vst.msk [vmem:[%s1472] sm:$0x1] %vm199, %v1471
    %s1474 = scalar_lea.vmem %s0, 7
    %v1475 = vld [vmem:[%s1474] sm:$0x1]
    %v1476 = vunpack.c.l.bf16 %v1475
    %v1477 = vpack.c.bf16 %v1363, %v1363
    %v1479 = vsel %vm108, %v1477, 0
    %1481 = vmatpush.bf16.msra.mxu0 0
    %1482 = vmatpush.bf16.msra.mxu0 0
    %1483 = vmatpush.bf16.msra.mxu0 0
    %1484 = vmatpush.bf16.msra.mxu0 0
    %1485 = vmatpush.bf16.msra.mxu0 0
    %1486 = vmatpush.bf16.msra.mxu0 0
    %1487 = vmatpush.bf16.msra.mxu0 %v105
    %1488 = vmatpush.bf16.msra.mxu0 %v104
    %1489 = vmatmul.bf16.gmra.mxu0 %v1479
    %v1490 = vpop.f32.mrf.mxu0
    %v1491 = vadd.f32 0.0, %v1490
    %v1492 = vpop.f32.mrf.mxu0
    %1493 = vdwg.mxu0
    %v1494 = vadd.f32 %v1476, %v1491
    %v1495 = vxor.u32 %v1494, 2147483648
    %v1496 = vmul.f32 %v1495, 1.442695
    %v1497 = vpow.pop %v1496
    %v1498 = vadd.f32 %v1497, 1.0
    %v1499 = vrcp.pop %v1498
    %v1500 = vmul.f32 %v1498, %v1499
    %v1501 = vsub.f32 1.0, %v1500
    %v1502 = vmul.f32 %v1499, %v1501
    %v1503 = vadd.f32 %v1499, %v1502
    %vm1504 = vweird.f32 %v1498
    %vm1505 = vweird.f32 %v1499
    %vm1506 = vmor %vm1504, %vm1505
    %v1507 = vsel %vm1506, %v1499, %v1503
    %v1508 = vand.u32 2147483647, %v1498
    %vm1509 = vcmp.eq.f32.partialorder %v1508, 8.507059e+37
    %v1510 = vand.u32 %v1498, 2147483648
    %v1511 = vor.u32 1.1754944e-38, %v1510
    %v1512 = vsel %vm1509, %v1511, %v1507
    %v1513 = vmul.f32 1.0, %v1512
    %v1514 = vtanh.pop %v1494
    %1516 = vrot.lane.b32.xlu0 %v1372, 32
    %v1517 = vpop.permute.xlu0 %1516
    %v1519 = vmul.f32 %v1513, %v1517
    %1521 = vrot.lane.b32.xlu0 %v1514, 64
    %v1522 = vpop.permute.xlu0 %1521
    %v1524 = vmul.f32 %v1513, %v1522
    %1526 = vrot.lane.b32.xlu0 %v1524, 32
    %v1527 = vpop.permute.xlu0 %1526
    %v1529 = vadd.f32 %v1519, %v1527
    %v1530 = vtanh.pop %v1529
    %1532 = vrot.lane.b32.xlu0 %v1530, 64
    %v1533 = vpop.permute.xlu0 %1532
    %v1535 = vmul.f32 %v1513, %v1533
    %s1536 = scalar_lea.vmem %s2, 14
    %v1537 = vld [vmem:[%s1536] sm:$0x3]
    %1539 = vset.pattern.permute.xlu0 0
    %1540 = vperm.xlu0 %1539, %v1537
    %v1541 = vpop.permute.xlu0 %1540
    %1544 = vst [vmem:[#allocation1] ss:$4 sm:$0xff] %v1535
    %v1545 = vld.sshfl [vmem:[#allocation1] sm:$0xff pattern:$0x73625140]
    %1546 = vrot.lane.b32.xlu0 %v1545, 32
    %v1547 = vpop.permute.xlu0 %1546
    %v1549 = vmul.f32 %v1541, %v1547
    %v1550 = vsub.f32 1.0, %v1537
    %1552 = vset.pattern.permute.xlu0 0
    %1553 = vperm.xlu0 %1552, %v1550
    %v1554 = vpop.permute.xlu0 %1553
    %v1556 = vmul.f32 %v1554, %v1363
    %v1557 = vadd.f32 %v1549, %v1556
    %1559 = vst [vmem:[#allocation1] ss:$4 sm:$0xff] %v1529
    %v1560 = vld.sshfl [vmem:[#allocation1] sm:$0xff pattern:$0x73625140]
    %1561 = vrot.lane.b32.xlu0 %v1560, 96
    %v1562 = vpop.permute.xlu0 %1561
    %v1564 = vmul.f32 %v1541, %v1562
    %v1565 = vmul.f32 %v1554, %v1372
    %v1566 = vadd.f32 %v1564, %v1565
    %v1567 = vmul.f32 %v1557, %v1541
    %v1568 = vpack.c.bf16 %v1567, %v1567
    %s1569 = scalar_lea.vmem [#allocation6], 7
    %1570 = vst.msk [vmem:[%s1569] sm:$0x1] %vm199, %v1568
    %v1571 = vld [vmem:[%s58] sm:$0x1]
    %v1572 = vunpack.c.l.bf16 %v1571
    %v1573 = vpack.c.bf16 %v1460, %v1460
    %v1575 = vsel %vm108, %v1573, 0
    %1577 = vmatpush.bf16.msra.mxu0 0
    %1578 = vmatpush.bf16.msra.mxu0 0
    %1579 = vmatpush.bf16.msra.mxu0 0
    %1580 = vmatpush.bf16.msra.mxu0 0
    %1581 = vmatpush.bf16.msra.mxu0 0
    %1582 = vmatpush.bf16.msra.mxu0 0
    %1583 = vmatpush.bf16.msra.mxu0 %v214
    %1584 = vmatpush.bf16.msra.mxu0 %v213
    %1585 = vmatmul.bf16.gmra.mxu0 %v1575
    %v1586 = vpop.f32.mrf.mxu0
    %v1587 = vadd.f32 0.0, %v1586
    %v1588 = vpop.f32.mrf.mxu0
    %1589 = vdwg.mxu0
    %v1590 = vadd.f32 %v1572, %v1587
    %v1591 = vxor.u32 %v1590, 2147483648
    %v1592 = vmul.f32 %v1591, 1.442695
    %v1593 = vpow.pop %v1592
    %v1594 = vadd.f32 %v1593, 1.0
    %v1595 = vrcp.pop %v1594
    %v1596 = vmul.f32 %v1594, %v1595
    %v1597 = vsub.f32 1.0, %v1596
    %v1598 = vmul.f32 %v1595, %v1597
    %v1599 = vadd.f32 %v1595, %v1598
    %vm1600 = vweird.f32 %v1594
    %vm1601 = vweird.f32 %v1595
    %vm1602 = vmor %vm1600, %vm1601
    %v1603 = vsel %vm1602, %v1595, %v1599
    %v1604 = vand.u32 2147483647, %v1594
    %vm1605 = vcmp.eq.f32.partialorder %v1604, 8.507059e+37
    %v1606 = vand.u32 %v1594, 2147483648
    %v1607 = vor.u32 1.1754944e-38, %v1606
    %v1608 = vsel %vm1605, %v1607, %v1603
    %v1609 = vmul.f32 1.0, %v1608
    %v1610 = vtanh.pop %v1590
    %1612 = vrot.lane.b32.xlu0 %v1469, 32
    %v1613 = vpop.permute.xlu0 %1612
    %v1615 = vmul.f32 %v1609, %v1613
    %1617 = vrot.lane.b32.xlu0 %v1610, 64
    %v1618 = vpop.permute.xlu0 %1617
    %v1620 = vmul.f32 %v1609, %v1618
    %1622 = vrot.lane.b32.xlu0 %v1620, 32
    %v1623 = vpop.permute.xlu0 %1622
    %v1625 = vadd.f32 %v1615, %v1623
    %v1626 = vtanh.pop %v1625
    %1628 = vrot.lane.b32.xlu0 %v1626, 64
    %v1629 = vpop.permute.xlu0 %1628
    %v1631 = vmul.f32 %v1609, %v1629
    %v1632 = vld [vmem:[%s66] sm:$0x3]
    %1634 = vset.pattern.permute.xlu0 0
    %1635 = vperm.xlu0 %1634, %v1632
    %v1636 = vpop.permute.xlu0 %1635
    %1639 = vst [vmem:[#allocation1] ss:$4 sm:$0xff] %v1631
    %v1640 = vld.sshfl [vmem:[#allocation1] sm:$0xff pattern:$0x73625140]
    %1641 = vrot.lane.b32.xlu0 %v1640, 32
    %v1642 = vpop.permute.xlu0 %1641
    %v1644 = vmul.f32 %v1636, %v1642
    %v1645 = vsub.f32 1.0, %v1632
    %1647 = vset.pattern.permute.xlu0 0
    %1648 = vperm.xlu0 %1647, %v1645
    %v1649 = vpop.permute.xlu0 %1648
    %v1651 = vmul.f32 %v1649, %v1460
    %v1652 = vadd.f32 %v1644, %v1651
    %1654 = vst [vmem:[#allocation1] ss:$4 sm:$0xff] %v1625
    %v1655 = vld.sshfl [vmem:[#allocation1] sm:$0xff pattern:$0x73625140]
    %1656 = vrot.lane.b32.xlu0 %v1655, 96
    %v1657 = vpop.permute.xlu0 %1656
    %v1659 = vmul.f32 %v1636, %v1657
    %v1660 = vmul.f32 %v1649, %v1469
    %v1661 = vadd.f32 %v1659, %v1660
    %v1662 = vmul.f32 %v1652, %v1636
    %v1663 = vpack.c.bf16 %v1662, %v1662
    %1664 = vst.msk [vmem:[#allocation8] sm:$0x1] %vm199, %v1663
    %vm1665 = vcmask 254976
    %1666 = vst.msk [vmem:[#allocation2] sm:$0x3] %vm1665, %v1557
    %1667 = vst.msk [vmem:[#allocation3] sm:$0x3] %vm1665, %v1566
    %1668 = vst.msk [vmem:[#allocation4] sm:$0x3] %vm1665, %v1652
    %1669 = vst.msk [vmem:[#allocation5] sm:$0x3] %vm1665, %v1661
    %1671 = vrot.lane.b32.xlu0 %v1652, 32
    %v1672 = vpop.permute.xlu0 %1671
    %v1674 = vsel %vm108, %v1557, %v1672
    %vm1675 = vcmask 517120
    %1676 = vst.msk [vmem:[%s8] sm:$0x3] %vm1675, %v1674
    // Predicated region
    $region30: #{forward.9} parent=1 // pred_check
      _
    $region31: #{forward.9} parent=1 // pred_check_branch
      %1678 = sbr.rel (0) target = $region33
    $region32: #{forward.9} parent=1 // pred_region
      %1680 = vsyncadd [#allocation7], 0
      %s1681 = sshll.u32 [#allocation6], 4
      %s1682 = int_to_ptr.vmem [resolvable:$true] %s1681
      %s1683 = sshll.u32 %s6, 4
      %s1684 = int_to_ptr.hbm [resolvable:$true] %s1683
      %1689 = dma.vmem_to_hbm [thread:$0]  %s1682, 128, %s1684, [#allocation7], 16, 16, 1
    $region33: #{forward.9} parent=1 // pred_fallthru
      _
    // Predicated region
    $region34: #{forward.9} parent=1 // pred_check
      _
    $region35: #{forward.9} parent=1 // pred_check_branch
      %1691 = sbr.rel (0) target = $region37
    $region36: #{forward.9} parent=1 // pred_region
      %s1692 = ssub.s32 0, 0
      %s1693 = smul.u32 8, %s1692
      %1695 = vsyncadd [#allocation9], 0
      %s1696 = scalar_lea.hbm %s7, %s1693
      %s1697 = sshll.u32 [#allocation8], 4
      %s1698 = int_to_ptr.vmem [resolvable:$true] %s1697
      %s1699 = sshll.u32 %s1696, 4
      %s1700 = int_to_ptr.hbm [resolvable:$true] %s1699
      %1705 = dma.vmem_to_hbm [thread:$0]  %s1698, 128, %s1700, [#allocation9], 16, 16, 1
    $region37: #{forward.9} parent=1 // pred_fallthru
      _
    // Predicated region
    $region38: #{forward.9} parent=1 // pred_check
      _
    $region39: #{forward.9} parent=1 // pred_check_branch
      %1707 = sbr.rel (0) target = $region41
    $region40: #{forward.9} parent=1 // pred_region
      _
    $region41: #{forward.9} parent=1 // pred_fallthru
      _
    // Predicated region
    $region42: #{forward.9} parent=1 // pred_check
      _
    $region43: #{forward.9} parent=1 // pred_check_branch
      %1709 = sbr.rel (0) target = $region45
    $region44: #{forward.9} parent=1 // pred_region
      %1711 = dma.done [#allocation7], 128
    $region45: #{forward.9} parent=1 // pred_fallthru
      _
    // Predicated region
    $region46: #{forward.9} parent=1 // pred_check
      _
    $region47: #{forward.9} parent=1 // pred_check_branch
      %1713 = sbr.rel (0) target = $region49
    $region48: #{forward.9} parent=1 // pred_region
      %1715 = dma.done [#allocation9], 128
    $region49: #{forward.9} parent=1 // pred_fallthru
      _
    // Predicated region
    $region50: #{forward.9} parent=1 // pred_check
      _
    $region51: #{forward.9} parent=1 // pred_check_branch
      %1717 = sbr.rel (0) target = $region53
    $region52: #{forward.9} parent=1 // pred_region
      _
    $region53: #{forward.9} parent=1 // pred_fallthru
      _
    %1718 = vsyncpa [#allocation7], 1
    %1719 = vsyncpa [#allocation9], 1

</llo_original>
